<compile_context>
chip_gen: v7x
topology: tpu7x:2x2x1
jax: 0.10.0
libtpu: 0.0.40
codegen_flags: <defaults>
</compile_context>

<pallas_src>
import jax
import jax.numpy as jnp
from jax import lax
from jax.experimental import pallas as pl
from jax.experimental.pallas import tpu as pltpu

# ---- hyperparameters (CharGPT defaults, small vocab for the synthetic test) ----
VOCAB = 64           # vocab_size
EMB = 128            # emb_size          (module default)
HEADS = 4            # num_heads         (module default)
LAYERS = 2           # num_layers        (module default)
FF = 2048            # dim_feedforward   (nn.TransformerDecoderLayer default)
MAX_SEQ = 100        # max_seq_length    (module default)
HEAD_DIM = EMB // HEADS
LN_EPS = 1e-5
NEG_INF = -1e30
HEAD_PAD = 128       # lane-dense LM-head width (sliced back to VOCAB in the wrapper)
SCALE = 1.0 / (HEAD_DIM ** 0.5)


def _layer_norm(v, w, b):
    mu = jnp.mean(v, axis=-1, keepdims=True)
    var = jnp.mean(jnp.square(v - mu), axis=-1, keepdims=True)
    return (v - mu) * lax.rsqrt(var + LN_EPS) * w + b


# ---------------------------------- Pallas kernel ----------------------------------
def chargpt_kernel(x_ref, self_bias_ref, cross_bias_ref, hmask_ref,
                   sa_qkv_w, sa_qkv_b, sa_out_w, sa_out_b,
                   ca_qkv_w, ca_qkv_b, ca_out_w, ca_out_b,
                   ff1_w, ff1_b, ff2_w, ff2_b,
                   ln_w, ln_b, lnf_w, lnf_b, head_w, head_b,
                   out_ref):
    x = x_ref[...]                        # (B*S, E) f32 token+pos embeddings
    x0_bf = x.astype(jnp.bfloat16)        # cross-attention "memory" (decoder input), bf16 once
    self_bias = self_bias_ref[...]        # (BS, BS) additive causal + batch-block mask
    cross_bias = cross_bias_ref[...]      # (BS, BS) additive batch-block mask
    hmask = hmask_ref[...]                # (HEADS, 1, E) one-hot head lane masks

    def attend(q, k, v, wo, bo, bias):
        """Masked-lane multi-head attention core on flattened (BS, E) q/k/v (f32)."""
        kb = k.astype(jnp.bfloat16)
        acc = None
        for h in range(HEADS):
            m = hmask[h]                   # (1, E): 1.0 on head-h lanes, 0.0 elsewhere
            # (q*m) @ k^T == q_h @ k_h^T  — full-K contraction, no 32-lane slicing.
            qh = (q * m).astype(jnp.bfloat16)
            s = lax.dot_general(qh, kb, (((1,), (1,)), ((), ())),
                                preferred_element_type=jnp.float32)     # (BS, BS)
            s = s + bias
            s = s - jnp.max(s, axis=-1, keepdims=True)
            p = jnp.exp(s)
            p = p * pl.reciprocal(jnp.sum(p, axis=-1, keepdims=True), approx=True)
            # p_h @ (v*m) places head-h output in its own lanes; summing over heads
            # reconstructs the concatenated-head layout directly.
            vh = (v * m).astype(jnp.bfloat16)
            part = jnp.dot(p.astype(jnp.bfloat16), vh, preferred_element_type=jnp.float32)
            acc = part if acc is None else acc + part
        # single full-K output projection over the concatenated heads
        return jnp.dot(acc.astype(jnp.bfloat16), wo, preferred_element_type=jnp.float32) + bo

    for l in range(LAYERS):
        lw = ln_w[l]                       # (3, 1, E)
        lb = ln_b[l]

        # --- causal self-attention: ONE fused (BS,E)@(E,3E) QKV matmul ---
        xb = x.astype(jnp.bfloat16)
        qkv = jnp.dot(xb, sa_qkv_w[l], preferred_element_type=jnp.float32) + sa_qkv_b[l]
        q = qkv[:, 0 * EMB:1 * EMB] * SCALE    # 1/sqrt(head_dim) applied once, not per head
        k = qkv[:, 1 * EMB:2 * EMB]
        v = qkv[:, 2 * EMB:3 * EMB]
        a = attend(q, k, v, sa_out_w[l], sa_out_b[l], self_bias)
        x = _layer_norm(x + a, lw[0], lb[0])

        # --- cross-attention over memory (= decoder input x0): fused (E,2E) KV matmul ---
        xb = x.astype(jnp.bfloat16)
        q = (jnp.dot(xb, ca_qkv_w[l, :, 0:EMB], preferred_element_type=jnp.float32)
             + ca_qkv_b[l, :, 0:EMB]) * SCALE
        kv = (jnp.dot(x0_bf, ca_qkv_w[l, :, EMB:], preferred_element_type=jnp.float32)
              + ca_qkv_b[l, :, EMB:])
        k = kv[:, 0:EMB]
        v = kv[:, EMB:]
        a = attend(q, k, v, ca_out_w[l], ca_out_b[l], cross_bias)
        x = _layer_norm(x + a, lw[1], lb[1])

        # --- feed-forward (Linear -> ReLU -> Linear) + residual + norm3 ---
        h1 = jnp.maximum(jnp.dot(x.astype(jnp.bfloat16), ff1_w[l],
                                 preferred_element_type=jnp.float32) + ff1_b[l], 0.0)
        f = jnp.dot(h1.astype(jnp.bfloat16), ff2_w[l],
                    preferred_element_type=jnp.float32) + ff2_b[l]
        x = _layer_norm(x + f, lw[2], lb[2])

    # --- final LayerNorm + LM head (lane-dense, padded to 128 output lanes) ---
    x = _layer_norm(x, lnf_w[...], lnf_b[...])
    out_ref[...] = jnp.dot(x.astype(jnp.bfloat16), head_w[...],
                           preferred_element_type=jnp.float32) + head_b[...]


# ---------------------------------- wrapper ----------------------------------
def char_gpt_forward(idx, params):
    B, S = idx.shape
    if S > MAX_SEQ:
        raise ValueError("Sequence length exceeds maximum supported length.")
    BS = B * S

    # Plain-JAX glue: embedding gather + positional embedding, flattened to (B*S, E).
    # TODO(synk): the embedding-table gather stays in XLA; an in-kernel gather would need
    # manual DMA and is not worthwhile at these sizes.
    x = (params["tok_emb"][idx] + params["pos_emb"][:, :S, :]).astype(jnp.float32)
    x = x.reshape(BS, EMB)

    # Additive attention-bias masks, built ONCE outside the kernel (hoisted, jit-constant).
    r = jnp.arange(BS, dtype=jnp.int32)
    same_batch = (r[:, None] // S) == (r[None, :] // S)
    causal_ok = (r[None, :] % S) <= (r[:, None] % S)          # torch.triu(..., diag=1) mask
    self_bias = jnp.where(same_batch & causal_ok, 0.0, NEG_INF).astype(jnp.float32)
    cross_bias = jnp.where(same_batch, 0.0, NEG_INF).astype(jnp.float32)

    # One-hot lane masks selecting each head's HEAD_DIM columns.
    lane = jnp.arange(EMB, dtype=jnp.int32)
    hmask = (lane[None, :] // HEAD_DIM == jnp.arange(HEADS, dtype=jnp.int32)[:, None])
    hmask = hmask.astype(jnp.float32).reshape(HEADS, 1, EMB)

    # Pad the LM head to 128 output lanes so the output store is lane-dense.
    head_w = jnp.pad(params["head_w"], ((0, 0), (0, HEAD_PAD - VOCAB)))
    head_b = jnp.pad(params["head_b"], ((0, 0), (0, HEAD_PAD - VOCAB)))

    weights = (params["sa_qkv_w"], params["sa_qkv_b"], params["sa_out_w"], params["sa_out_b"],
               params["ca_qkv_w"], params["ca_qkv_b"], params["ca_out_w"], params["ca_out_b"],
               params["ff1_w"], params["ff1_b"], params["ff2_w"], params["ff2_b"],
               params["ln_w"], params["ln_b"], params["lnf_w"], params["lnf_b"],
               head_w, head_b)

    inputs = (x, self_bias, cross_bias, hmask) + weights
    in_specs = [pl.BlockSpec(memory_space=pltpu.MemorySpace.VMEM) for _ in inputs]

    logits = pl.pallas_call(
        chargpt_kernel,
        out_shape=jax.ShapeDtypeStruct((BS, HEAD_PAD), jnp.float32),
        in_specs=in_specs,
        out_specs=pl.BlockSpec(memory_space=pltpu.MemorySpace.VMEM),
    )(*inputs)

    return logits[:, :VOCAB].reshape(B, S, VOCAB)


# ---------------------------------- parameters ----------------------------------
def init_params(key):
    ks = jax.random.split(key, 16)

    def nrm(k, shape, scale=0.02):
        return scale * jax.random.normal(k, shape, dtype=jnp.float32)

    def nrm_bf16(k, shape, scale=0.02):
        # Matmul weights live in bf16 (halves weight DMA, native bf16 MXU rate).
        return nrm(k, shape, scale).astype(jnp.bfloat16)

    return {
        "tok_emb": nrm(ks[0], (VOCAB, EMB), 1.0),                       # nn.Embedding
        "pos_emb": jnp.zeros((1, MAX_SEQ, EMB), jnp.float32),           # nn.Parameter(torch.zeros)
        "sa_qkv_w": nrm_bf16(ks[1], (LAYERS, EMB, 3 * EMB)),
        "sa_qkv_b": nrm(ks[2], (LAYERS, 1, 3 * EMB)),
        "sa_out_w": nrm_bf16(ks[3], (LAYERS, EMB, EMB)),
        "sa_out_b": nrm(ks[4], (LAYERS, 1, EMB)),
        "ca_qkv_w": nrm_bf16(ks[5], (LAYERS, EMB, 3 * EMB)),
        "ca_qkv_b": nrm(ks[6], (LAYERS, 1, 3 * EMB)),
        "ca_out_w": nrm_bf16(ks[7], (LAYERS, EMB, EMB)),
        "ca_out_b": nrm(ks[8], (LAYERS, 1, EMB)),
        "ff1_w": nrm_bf16(ks[9], (LAYERS, EMB, FF)),
        "ff1_b": nrm(ks[10], (LAYERS, 1, FF)),
        "ff2_w": nrm_bf16(ks[11], (LAYERS, FF, EMB)),
        "ff2_b": nrm(ks[12], (LAYERS, 1, EMB)),
        "ln_w": jnp.ones((LAYERS, 3, 1, EMB), jnp.float32),             # norm1/2/3
        "ln_b": jnp.zeros((LAYERS, 3, 1, EMB), jnp.float32),
        "lnf_w": jnp.ones((1, EMB), jnp.float32),
        "lnf_b": jnp.zeros((1, EMB), jnp.float32),
        "head_w": nrm_bf16(ks[13], (EMB, VOCAB)),
        "head_b": nrm(ks[14], (1, VOCAB)),
    }


# ---------------------------------- pure-JAX reference ----------------------------------
# Independent f32 formulation (per-batch, per-head slicing + concat) over the same
# (bf16-valued) weights — validates the flattened-batch / masked-head kernel structure.
def _ref_mha(q_in, kv_in, wqkv, bqkv, wo, bo, causal):
    sq, sk = q_in.shape[0], kv_in.shape[0]
    wqkv = wqkv.astype(jnp.float32)
    wo = wo.astype(jnp.float32)
    q = q_in @ wqkv[:, 0 * EMB:1 * EMB] + bqkv[:, 0 * EMB:1 * EMB]
    k = kv_in @ wqkv[:, 1 * EMB:2 * EMB] + bqkv[:, 1 * EMB:2 * EMB]
    v = kv_in @ wqkv[:, 2 * EMB:3 * EMB] + bqkv[:, 2 * EMB:3 * EMB]
    heads = []
    for h in range(HEADS):
        sl = slice(h * HEAD_DIM, (h + 1) * HEAD_DIM)
        s = (q[:, sl] * SCALE) @ k[:, sl].T
        if causal:
            mask = jnp.triu(jnp.ones((sq, sk), dtype=bool), k=1)
            s = jnp.where(mask, -jnp.inf, s)
        p = jax.nn.softmax(s, axis=-1)
        heads.append(p @ v[:, sl])
    o = jnp.concatenate(heads, axis=-1)
    return o @ wo + bo


def reference_forward(idx, params):
    B, S = idx.shape
    x = params["tok_emb"][idx] + params["pos_emb"][:, :S, :]
    outs = []
    for b in range(B):
        xb = x[b]
        mem = xb
        for l in range(LAYERS):
            a = _ref_mha(xb, xb, params["sa_qkv_w"][l], params["sa_qkv_b"][l],
                         params["sa_out_w"][l], params["sa_out_b"][l], causal=True)
            xb = _layer_norm(xb + a, params["ln_w"][l, 0], params["ln_b"][l, 0])
            a = _ref_mha(xb, mem, params["ca_qkv_w"][l], params["ca_qkv_b"][l],
                         params["ca_out_w"][l], params["ca_out_b"][l], causal=False)
            xb = _layer_norm(xb + a, params["ln_w"][l, 1], params["ln_b"][l, 1])
            h = jnp.maximum(xb @ params["ff1_w"][l].astype(jnp.float32) + params["ff1_b"][l], 0.0)
            f = h @ params["ff2_w"][l].astype(jnp.float32) + params["ff2_b"][l]
            xb = _layer_norm(xb + f, params["ln_w"][l, 2], params["ln_b"][l, 2])
        xb = _layer_norm(xb, params["lnf_w"], params["lnf_b"])
        outs.append(xb @ params["head_w"].astype(jnp.float32) + params["head_b"])
    return jnp.stack(outs, axis=0)


if __name__ == "__main__":
    key = jax.random.PRNGKey(0)
    pkey, ikey = jax.random.split(key)
    params = init_params(pkey)

    B, S = 2, 8
    idx = jax.random.randint(ikey, (B, S), 0, VOCAB, dtype=jnp.int32)

    forward = jax.jit(char_gpt_forward)
    logits = forward(idx, params)
    jax.block_until_ready(logits)
    assert logits.shape == (B, S, VOCAB)

    ref = reference_forward(idx, params)
    max_err = float(jnp.max(jnp.abs(logits - ref)))
    # bf16 MXU inputs vs. f32 reference over the same weight values: small extra margin.
    assert jnp.allclose(logits, ref, rtol=2e-2, atol=2e-2), max_err

    print("KERNEL_OK")
</pallas_src>

<mosaic_0001>
module attributes {stable_mosaic.version = 11 : i64} {
  func.func @chargpt_kernel(%arg0: memref<16x128xf32, #tpu.memory_space<vmem>>, %arg1: memref<16x16xf32, #tpu.memory_space<vmem>>, %arg2: memref<16x16xf32, #tpu.memory_space<vmem>>, %arg3: memref<4x1x128xf32, #tpu.memory_space<vmem>>, %arg4: memref<2x128x384xbf16, #tpu.memory_space<vmem>>, %arg5: memref<2x1x384xf32, #tpu.memory_space<vmem>>, %arg6: memref<2x128x128xbf16, #tpu.memory_space<vmem>>, %arg7: memref<2x1x128xf32, #tpu.memory_space<vmem>>, %arg8: memref<2x128x384xbf16, #tpu.memory_space<vmem>>, %arg9: memref<2x1x384xf32, #tpu.memory_space<vmem>>, %arg10: memref<2x128x128xbf16, #tpu.memory_space<vmem>>, %arg11: memref<2x1x128xf32, #tpu.memory_space<vmem>>, %arg12: memref<2x128x2048xbf16, #tpu.memory_space<vmem>>, %arg13: memref<2x1x2048xf32, #tpu.memory_space<vmem>>, %arg14: memref<2x2048x128xbf16, #tpu.memory_space<vmem>>, %arg15: memref<2x1x128xf32, #tpu.memory_space<vmem>>, %arg16: memref<2x3x1x128xf32, #tpu.memory_space<vmem>>, %arg17: memref<2x3x1x128xf32, #tpu.memory_space<vmem>>, %arg18: memref<1x128xf32, #tpu.memory_space<vmem>>, %arg19: memref<1x128xf32, #tpu.memory_space<vmem>>, %arg20: memref<128x128xbf16, #tpu.memory_space<vmem>>, %arg21: memref<1x128xf32, #tpu.memory_space<vmem>>, %arg22: memref<16x128xf32, #tpu.memory_space<vmem>>) attributes {dimension_semantics = [], scalar_prefetch = 0 : i64, scratch_operands = 0 : i64, tpu.core_type = #tpu.core_type<tc>} {
    %c0 = arith.constant 0 : index
    %c0_0 = arith.constant 0 : index
    %0 = vector.load %arg0[%c0, %c0_0] : memref<16x128xf32, #tpu.memory_space<vmem>>, vector<16x128xf32>
    %1 = arith.truncf %0 : vector<16x128xf32> to vector<16x128xbf16>
    %c0_1 = arith.constant 0 : index
    %c0_2 = arith.constant 0 : index
    %2 = vector.load %arg1[%c0_1, %c0_2] : memref<16x16xf32, #tpu.memory_space<vmem>>, vector<16x16xf32>
    %c0_3 = arith.constant 0 : index
    %c0_4 = arith.constant 0 : index
    %3 = vector.load %arg2[%c0_3, %c0_4] : memref<16x16xf32, #tpu.memory_space<vmem>>, vector<16x16xf32>
    %c0_5 = arith.constant 0 : index
    %c0_6 = arith.constant 0 : index
    %c0_7 = arith.constant 0 : index
    %4 = vector.load %arg3[%c0_5, %c0_6, %c0_7] : memref<4x1x128xf32, #tpu.memory_space<vmem>>, vector<4x1x128xf32>
    %c0_8 = arith.constant 0 : index
    %c0_9 = arith.constant 0 : index
    %c0_10 = arith.constant 0 : index
    %c0_11 = arith.constant 0 : index
    %5 = vector.load %arg16[%c0_8, %c0_9, %c0_10, %c0_11] : memref<2x3x1x128xf32, #tpu.memory_space<vmem>>, vector<1x3x1x128xf32>
    %6 = vector.shape_cast %5 : vector<1x3x1x128xf32> to vector<3x1x128xf32>
    %c0_12 = arith.constant 0 : index
    %c0_13 = arith.constant 0 : index
    %c0_14 = arith.constant 0 : index
    %c0_15 = arith.constant 0 : index
    %7 = vector.load %arg17[%c0_12, %c0_13, %c0_14, %c0_15] : memref<2x3x1x128xf32, #tpu.memory_space<vmem>>, vector<1x3x1x128xf32>
    %8 = vector.shape_cast %7 : vector<1x3x1x128xf32> to vector<3x1x128xf32>
    %9 = arith.truncf %0 : vector<16x128xf32> to vector<16x128xbf16>
    %c0_16 = arith.constant 0 : index
    %c0_17 = arith.constant 0 : index
    %c0_18 = arith.constant 0 : index
    %10 = vector.load %arg4[%c0_16, %c0_17, %c0_18] : memref<2x128x384xbf16, #tpu.memory_space<vmem>>, vector<1x128x384xbf16>
    %11 = vector.shape_cast %10 : vector<1x128x384xbf16> to vector<128x384xbf16>
    %cst = arith.constant dense<0.000000e+00> : vector<16x384xf32>
    %12 = tpu.matmul %9, %11, %cst {dimension_numbers = #tpu.dot_dimension_numbers<[1], [0], [0], [1], [0, 0, 1, 1], [], []>} : vector<16x128xbf16>, vector<128x384xbf16>, vector<16x384xf32> -> vector<16x384xf32>
    %c0_19 = arith.constant 0 : index
    %c0_20 = arith.constant 0 : index
    %c0_21 = arith.constant 0 : index
    %13 = vector.load %arg5[%c0_19, %c0_20, %c0_21] : memref<2x1x384xf32, #tpu.memory_space<vmem>>, vector<1x1x384xf32>
    %14 = vector.shape_cast %13 : vector<1x1x384xf32> to vector<1x384xf32>
    %15 = vector.broadcast %14 : vector<1x384xf32> to vector<16x384xf32>
    %16 = arith.addf %12, %15 : vector<16x384xf32>
    %17 = vector.extract_strided_slice %16 {offsets = [0, 0], sizes = [16, 128], strides = [1, 1]} : vector<16x384xf32> to vector<16x128xf32>
    %cst_22 = arith.constant 0.176776692 : f32
    %18 = vector.broadcast %cst_22 : f32 to vector<16x128xf32>
    %19 = arith.mulf %17, %18 : vector<16x128xf32>
    %20 = vector.extract_strided_slice %16 {offsets = [0, 128], sizes = [16, 128], strides = [1, 1]} : vector<16x384xf32> to vector<16x128xf32>
    %21 = vector.extract_strided_slice %16 {offsets = [0, 256], sizes = [16, 128], strides = [1, 1]} : vector<16x384xf32> to vector<16x128xf32>
    %c0_23 = arith.constant 0 : index
    %c0_24 = arith.constant 0 : index
    %c0_25 = arith.constant 0 : index
    %22 = vector.load %arg6[%c0_23, %c0_24, %c0_25] : memref<2x128x128xbf16, #tpu.memory_space<vmem>>, vector<1x128x128xbf16>
    %23 = vector.shape_cast %22 : vector<1x128x128xbf16> to vector<128x128xbf16>
    %c0_26 = arith.constant 0 : index
    %c0_27 = arith.constant 0 : index
    %c0_28 = arith.constant 0 : index
    %24 = vector.load %arg7[%c0_26, %c0_27, %c0_28] : memref<2x1x128xf32, #tpu.memory_space<vmem>>, vector<1x1x128xf32>
    %25 = vector.shape_cast %24 : vector<1x1x128xf32> to vector<1x128xf32>
    %26 = arith.truncf %20 : vector<16x128xf32> to vector<16x128xbf16>
    %27 = vector.extract_strided_slice %4 {offsets = [0, 0, 0], sizes = [1, 1, 128], strides = [1, 1, 1]} : vector<4x1x128xf32> to vector<1x1x128xf32>
    %28 = vector.shape_cast %27 : vector<1x1x128xf32> to vector<1x128xf32>
    %29 = vector.broadcast %28 : vector<1x128xf32> to vector<16x128xf32>
    %30 = arith.mulf %19, %29 : vector<16x128xf32>
    %31 = arith.truncf %30 : vector<16x128xf32> to vector<16x128xbf16>
    %cst_29 = arith.constant dense<0.000000e+00> : vector<16x16xf32>
    %32 = tpu.matmul %31, %26, %cst_29 {dimension_numbers = #tpu.dot_dimension_numbers<[1], [1], [0], [0], [0, 0, 1, 0], [], []>} : vector<16x128xbf16>, vector<16x128xbf16>, vector<16x16xf32> -> vector<16x16xf32>
    %33 = arith.addf %32, %2 : vector<16x16xf32>
    %cst_30 = arith.constant dense<0xFF800000> : vector<16xf32>
    %34 = vector.multi_reduction <maximumf>, %33, %cst_30 [1] : vector<16x16xf32> to vector<16xf32>
    %35 = vector.shape_cast %34 : vector<16xf32> to vector<16x1xf32>
    %36 = vector.broadcast %35 : vector<16x1xf32> to vector<16x16xf32>
    %37 = arith.subf %33, %36 : vector<16x16xf32>
    %38 = math.exp %37 : vector<16x16xf32>
    %cst_31 = arith.constant dense<0.000000e+00> : vector<16xf32>
    %39 = vector.multi_reduction <add>, %38, %cst_31 [1] : vector<16x16xf32> to vector<16xf32>
    %40 = vector.shape_cast %39 : vector<16xf32> to vector<16x1xf32>
    %41 = tpu.reciprocal %40 {approx = true} : vector<16x1xf32> -> vector<16x1xf32>
    %42 = vector.broadcast %41 : vector<16x1xf32> to vector<16x16xf32>
    %43 = arith.mulf %38, %42 : vector<16x16xf32>
    %44 = vector.broadcast %28 : vector<1x128xf32> to vector<16x128xf32>
    %45 = arith.mulf %21, %44 : vector<16x128xf32>
    %46 = arith.truncf %45 : vector<16x128xf32> to vector<16x128xbf16>
    %47 = arith.truncf %43 : vector<16x16xf32> to vector<16x16xbf16>
    %cst_32 = arith.constant dense<0.000000e+00> : vector<16x128xf32>
    %48 = tpu.matmul %47, %46, %cst_32 {dimension_numbers = #tpu.dot_dimension_numbers<[1], [0], [0], [1], [0, 0, 1, 1], [], []>} : vector<16x16xbf16>, vector<16x128xbf16>, vector<16x128xf32> -> vector<16x128xf32>
    %49 = vector.extract_strided_slice %4 {offsets = [1, 0, 0], sizes = [1, 1, 128], strides = [1, 1, 1]} : vector<4x1x128xf32> to vector<1x1x128xf32>
    %50 = vector.shape_cast %49 : vector<1x1x128xf32> to vector<1x128xf32>
    %51 = vector.broadcast %50 : vector<1x128xf32> to vector<16x128xf32>
    %52 = arith.mulf %19, %51 : vector<16x128xf32>
    %53 = arith.truncf %52 : vector<16x128xf32> to vector<16x128xbf16>
    %cst_33 = arith.constant dense<0.000000e+00> : vector<16x16xf32>
    %54 = tpu.matmul %53, %26, %cst_33 {dimension_numbers = #tpu.dot_dimension_numbers<[1], [1], [0], [0], [0, 0, 1, 0], [], []>} : vector<16x128xbf16>, vector<16x128xbf16>, vector<16x16xf32> -> vector<16x16xf32>
    %55 = arith.addf %54, %2 : vector<16x16xf32>
    %cst_34 = arith.constant dense<0xFF800000> : vector<16xf32>
    %56 = vector.multi_reduction <maximumf>, %55, %cst_34 [1] : vector<16x16xf32> to vector<16xf32>
    %57 = vector.shape_cast %56 : vector<16xf32> to vector<16x1xf32>
    %58 = vector.broadcast %57 : vector<16x1xf32> to vector<16x16xf32>
    %59 = arith.subf %55, %58 : vector<16x16xf32>
    %60 = math.exp %59 : vector<16x16xf32>
    %cst_35 = arith.constant dense<0.000000e+00> : vector<16xf32>
    %61 = vector.multi_reduction <add>, %60, %cst_35 [1] : vector<16x16xf32> to vector<16xf32>
    %62 = vector.shape_cast %61 : vector<16xf32> to vector<16x1xf32>
    %63 = tpu.reciprocal %62 {approx = true} : vector<16x1xf32> -> vector<16x1xf32>
    %64 = vector.broadcast %63 : vector<16x1xf32> to vector<16x16xf32>
    %65 = arith.mulf %60, %64 : vector<16x16xf32>
    %66 = vector.broadcast %50 : vector<1x128xf32> to vector<16x128xf32>
    %67 = arith.mulf %21, %66 : vector<16x128xf32>
    %68 = arith.truncf %67 : vector<16x128xf32> to vector<16x128xbf16>
    %69 = arith.truncf %65 : vector<16x16xf32> to vector<16x16xbf16>
    %cst_36 = arith.constant dense<0.000000e+00> : vector<16x128xf32>
    %70 = tpu.matmul %69, %68, %cst_36 {dimension_numbers = #tpu.dot_dimension_numbers<[1], [0], [0], [1], [0, 0, 1, 1], [], []>} : vector<16x16xbf16>, vector<16x128xbf16>, vector<16x128xf32> -> vector<16x128xf32>
    %71 = arith.addf %48, %70 : vector<16x128xf32>
    %72 = vector.extract_strided_slice %4 {offsets = [2, 0, 0], sizes = [1, 1, 128], strides = [1, 1, 1]} : vector<4x1x128xf32> to vector<1x1x128xf32>
    %73 = vector.shape_cast %72 : vector<1x1x128xf32> to vector<1x128xf32>
    %74 = vector.broadcast %73 : vector<1x128xf32> to vector<16x128xf32>
    %75 = arith.mulf %19, %74 : vector<16x128xf32>
    %76 = arith.truncf %75 : vector<16x128xf32> to vector<16x128xbf16>
    %cst_37 = arith.constant dense<0.000000e+00> : vector<16x16xf32>
    %77 = tpu.matmul %76, %26, %cst_37 {dimension_numbers = #tpu.dot_dimension_numbers<[1], [1], [0], [0], [0, 0, 1, 0], [], []>} : vector<16x128xbf16>, vector<16x128xbf16>, vector<16x16xf32> -> vector<16x16xf32>
    %78 = arith.addf %77, %2 : vector<16x16xf32>
    %cst_38 = arith.constant dense<0xFF800000> : vector<16xf32>
    %79 = vector.multi_reduction <maximumf>, %78, %cst_38 [1] : vector<16x16xf32> to vector<16xf32>
    %80 = vector.shape_cast %79 : vector<16xf32> to vector<16x1xf32>
    %81 = vector.broadcast %80 : vector<16x1xf32> to vector<16x16xf32>
    %82 = arith.subf %78, %81 : vector<16x16xf32>
    %83 = math.exp %82 : vector<16x16xf32>
    %cst_39 = arith.constant dense<0.000000e+00> : vector<16xf32>
    %84 = vector.multi_reduction <add>, %83, %cst_39 [1] : vector<16x16xf32> to vector<16xf32>
    %85 = vector.shape_cast %84 : vector<16xf32> to vector<16x1xf32>
    %86 = tpu.reciprocal %85 {approx = true} : vector<16x1xf32> -> vector<16x1xf32>
    %87 = vector.broadcast %86 : vector<16x1xf32> to vector<16x16xf32>
    %88 = arith.mulf %83, %87 : vector<16x16xf32>
    %89 = vector.broadcast %73 : vector<1x128xf32> to vector<16x128xf32>
    %90 = arith.mulf %21, %89 : vector<16x128xf32>
    %91 = arith.truncf %90 : vector<16x128xf32> to vector<16x128xbf16>
    %92 = arith.truncf %88 : vector<16x16xf32> to vector<16x16xbf16>
    %cst_40 = arith.constant dense<0.000000e+00> : vector<16x128xf32>
    %93 = tpu.matmul %92, %91, %cst_40 {dimension_numbers = #tpu.dot_dimension_numbers<[1], [0], [0], [1], [0, 0, 1, 1], [], []>} : vector<16x16xbf16>, vector<16x128xbf16>, vector<16x128xf32> -> vector<16x128xf32>
    %94 = arith.addf %71, %93 : vector<16x128xf32>
    %95 = vector.extract_strided_slice %4 {offsets = [3, 0, 0], sizes = [1, 1, 128], strides = [1, 1, 1]} : vector<4x1x128xf32> to vector<1x1x128xf32>
    %96 = vector.shape_cast %95 : vector<1x1x128xf32> to vector<1x128xf32>
    %97 = vector.broadcast %96 : vector<1x128xf32> to vector<16x128xf32>
    %98 = arith.mulf %19, %97 : vector<16x128xf32>
    %99 = arith.truncf %98 : vector<16x128xf32> to vector<16x128xbf16>
    %cst_41 = arith.constant dense<0.000000e+00> : vector<16x16xf32>
    %100 = tpu.matmul %99, %26, %cst_41 {dimension_numbers = #tpu.dot_dimension_numbers<[1], [1], [0], [0], [0, 0, 1, 0], [], []>} : vector<16x128xbf16>, vector<16x128xbf16>, vector<16x16xf32> -> vector<16x16xf32>
    %101 = arith.addf %100, %2 : vector<16x16xf32>
    %cst_42 = arith.constant dense<0xFF800000> : vector<16xf32>
    %102 = vector.multi_reduction <maximumf>, %101, %cst_42 [1] : vector<16x16xf32> to vector<16xf32>
    %103 = vector.shape_cast %102 : vector<16xf32> to vector<16x1xf32>
    %104 = vector.broadcast %103 : vector<16x1xf32> to vector<16x16xf32>
    %105 = arith.subf %101, %104 : vector<16x16xf32>
    %106 = math.exp %105 : vector<16x16xf32>
    %cst_43 = arith.constant dense<0.000000e+00> : vector<16xf32>
    %107 = vector.multi_reduction <add>, %106, %cst_43 [1] : vector<16x16xf32> to vector<16xf32>
    %108 = vector.shape_cast %107 : vector<16xf32> to vector<16x1xf32>
    %109 = tpu.reciprocal %108 {approx = true} : vector<16x1xf32> -> vector<16x1xf32>
    %110 = vector.broadcast %109 : vector<16x1xf32> to vector<16x16xf32>
    %111 = arith.mulf %106, %110 : vector<16x16xf32>
    %112 = vector.broadcast %96 : vector<1x128xf32> to vector<16x128xf32>
    %113 = arith.mulf %21, %112 : vector<16x128xf32>
    %114 = arith.truncf %113 : vector<16x128xf32> to vector<16x128xbf16>
    %115 = arith.truncf %111 : vector<16x16xf32> to vector<16x16xbf16>
    %cst_44 = arith.constant dense<0.000000e+00> : vector<16x128xf32>
    %116 = tpu.matmul %115, %114, %cst_44 {dimension_numbers = #tpu.dot_dimension_numbers<[1], [0], [0], [1], [0, 0, 1, 1], [], []>} : vector<16x16xbf16>, vector<16x128xbf16>, vector<16x128xf32> -> vector<16x128xf32>
    %117 = arith.addf %94, %116 : vector<16x128xf32>
    %118 = arith.truncf %117 : vector<16x128xf32> to vector<16x128xbf16>
    %cst_45 = arith.constant dense<0.000000e+00> : vector<16x128xf32>
    %119 = tpu.matmul %118, %23, %cst_45 {dimension_numbers = #tpu.dot_dimension_numbers<[1], [0], [0], [1], [0, 0, 1, 1], [], []>} : vector<16x128xbf16>, vector<128x128xbf16>, vector<16x128xf32> -> vector<16x128xf32>
    %120 = vector.broadcast %25 : vector<1x128xf32> to vector<16x128xf32>
    %121 = arith.addf %119, %120 : vector<16x128xf32>
    %122 = arith.addf %0, %121 : vector<16x128xf32>
    %123 = vector.extract_strided_slice %6 {offsets = [0, 0, 0], sizes = [1, 1, 128], strides = [1, 1, 1]} : vector<3x1x128xf32> to vector<1x1x128xf32>
    %124 = vector.shape_cast %123 : vector<1x1x128xf32> to vector<1x128xf32>
    %125 = vector.extract_strided_slice %8 {offsets = [0, 0, 0], sizes = [1, 1, 128], strides = [1, 1, 1]} : vector<3x1x128xf32> to vector<1x1x128xf32>
    %126 = vector.shape_cast %125 : vector<1x1x128xf32> to vector<1x128xf32>
    %cst_46 = arith.constant dense<0.000000e+00> : vector<16xf32>
    %127 = vector.multi_reduction <add>, %122, %cst_46 [1] : vector<16x128xf32> to vector<16xf32>
    %128 = vector.shape_cast %127 : vector<16xf32> to vector<16x1xf32>
    %cst_47 = arith.constant 1.280000e+02 : f32
    %129 = vector.broadcast %cst_47 : f32 to vector<16x1xf32>
    %130 = arith.divf %128, %129 : vector<16x1xf32>
    %131 = vector.broadcast %130 : vector<16x1xf32> to vector<16x128xf32>
    %132 = arith.subf %122, %131 : vector<16x128xf32>
    %133 = arith.mulf %132, %132 : vector<16x128xf32>
    %cst_48 = arith.constant dense<0.000000e+00> : vector<16xf32>
    %134 = vector.multi_reduction <add>, %133, %cst_48 [1] : vector<16x128xf32> to vector<16xf32>
    %135 = vector.shape_cast %134 : vector<16xf32> to vector<16x1xf32>
    %cst_49 = arith.constant 1.280000e+02 : f32
    %136 = vector.broadcast %cst_49 : f32 to vector<16x1xf32>
    %137 = arith.divf %135, %136 : vector<16x1xf32>
    %138 = vector.broadcast %130 : vector<16x1xf32> to vector<16x128xf32>
    %139 = arith.subf %122, %138 : vector<16x128xf32>
    %cst_50 = arith.constant 9.99999974E-6 : f32
    %140 = vector.broadcast %cst_50 : f32 to vector<16x1xf32>
    %141 = arith.addf %137, %140 : vector<16x1xf32>
    %142 = math.rsqrt %141 : vector<16x1xf32>
    %143 = vector.broadcast %142 : vector<16x1xf32> to vector<16x128xf32>
    %144 = arith.mulf %139, %143 : vector<16x128xf32>
    %145 = vector.broadcast %124 : vector<1x128xf32> to vector<16x128xf32>
    %146 = arith.mulf %144, %145 : vector<16x128xf32>
    %147 = vector.broadcast %126 : vector<1x128xf32> to vector<16x128xf32>
    %148 = arith.addf %146, %147 : vector<16x128xf32>
    %149 = arith.truncf %148 : vector<16x128xf32> to vector<16x128xbf16>
    %c0_51 = arith.constant 0 : index
    %c0_52 = arith.constant 0 : index
    %c0_53 = arith.constant 0 : index
    %150 = vector.load %arg8[%c0_51, %c0_52, %c0_53] : memref<2x128x384xbf16, #tpu.memory_space<vmem>>, vector<1x128x128xbf16>
    %151 = vector.shape_cast %150 : vector<1x128x128xbf16> to vector<128x128xbf16>
    %cst_54 = arith.constant dense<0.000000e+00> : vector<16x128xf32>
    %152 = tpu.matmul %149, %151, %cst_54 {dimension_numbers = #tpu.dot_dimension_numbers<[1], [0], [0], [1], [0, 0, 1, 1], [], []>} : vector<16x128xbf16>, vector<128x128xbf16>, vector<16x128xf32> -> vector<16x128xf32>
    %c0_55 = arith.constant 0 : index
    %c0_56 = arith.constant 0 : index
    %c0_57 = arith.constant 0 : index
    %153 = vector.load %arg9[%c0_55, %c0_56, %c0_57] : memref<2x1x384xf32, #tpu.memory_space<vmem>>, vector<1x1x128xf32>
    %154 = vector.shape_cast %153 : vector<1x1x128xf32> to vector<1x128xf32>
    %155 = vector.broadcast %154 : vector<1x128xf32> to vector<16x128xf32>
    %156 = arith.addf %152, %155 : vector<16x128xf32>
    %cst_58 = arith.constant 0.176776692 : f32
    %157 = vector.broadcast %cst_58 : f32 to vector<16x128xf32>
    %158 = arith.mulf %156, %157 : vector<16x128xf32>
    %c0_59 = arith.constant 0 : index
    %c0_60 = arith.constant 0 : index
    %c128 = arith.constant 128 : index
    %159 = vector.load %arg8[%c0_59, %c0_60, %c128] : memref<2x128x384xbf16, #tpu.memory_space<vmem>>, vector<1x128x256xbf16>
    %160 = vector.shape_cast %159 : vector<1x128x256xbf16> to vector<128x256xbf16>
    %cst_61 = arith.constant dense<0.000000e+00> : vector<16x256xf32>
    %161 = tpu.matmul %1, %160, %cst_61 {dimension_numbers = #tpu.dot_dimension_numbers<[1], [0], [0], [1], [0, 0, 1, 1], [], []>} : vector<16x128xbf16>, vector<128x256xbf16>, vector<16x256xf32> -> vector<16x256xf32>
    %c0_62 = arith.constant 0 : index
    %c0_63 = arith.constant 0 : index
    %c128_64 = arith.constant 128 : index
    %162 = vector.load %arg9[%c0_62, %c0_63, %c128_64] : memref<2x1x384xf32, #tpu.memory_space<vmem>>, vector<1x1x256xf32>
    %163 = vector.shape_cast %162 : vector<1x1x256xf32> to vector<1x256xf32>
    %164 = vector.broadcast %163 : vector<1x256xf32> to vector<16x256xf32>
    %165 = arith.addf %161, %164 : vector<16x256xf32>
    %166 = vector.extract_strided_slice %165 {offsets = [0, 0], sizes = [16, 128], strides = [1, 1]} : vector<16x256xf32> to vector<16x128xf32>
    %167 = vector.extract_strided_slice %165 {offsets = [0, 128], sizes = [16, 128], strides = [1, 1]} : vector<16x256xf32> to vector<16x128xf32>
    %c0_65 = arith.constant 0 : index
    %c0_66 = arith.constant 0 : index
    %c0_67 = arith.constant 0 : index
    %168 = vector.load %arg10[%c0_65, %c0_66, %c0_67] : memref<2x128x128xbf16, #tpu.memory_space<vmem>>, vector<1x128x128xbf16>
    %169 = vector.shape_cast %168 : vector<1x128x128xbf16> to vector<128x128xbf16>
    %c0_68 = arith.constant 0 : index
    %c0_69 = arith.constant 0 : index
    %c0_70 = arith.constant 0 : index
    %170 = vector.load %arg11[%c0_68, %c0_69, %c0_70] : memref<2x1x128xf32, #tpu.memory_space<vmem>>, vector<1x1x128xf32>
    %171 = vector.shape_cast %170 : vector<1x1x128xf32> to vector<1x128xf32>
    %172 = arith.truncf %166 : vector<16x128xf32> to vector<16x128xbf16>
    %173 = vector.extract_strided_slice %4 {offsets = [0, 0, 0], sizes = [1, 1, 128], strides = [1, 1, 1]} : vector<4x1x128xf32> to vector<1x1x128xf32>
    %174 = vector.shape_cast %173 : vector<1x1x128xf32> to vector<1x128xf32>
    %175 = vector.broadcast %174 : vector<1x128xf32> to vector<16x128xf32>
    %176 = arith.mulf %158, %175 : vector<16x128xf32>
    %177 = arith.truncf %176 : vector<16x128xf32> to vector<16x128xbf16>
    %cst_71 = arith.constant dense<0.000000e+00> : vector<16x16xf32>
    %178 = tpu.matmul %177, %172, %cst_71 {dimension_numbers = #tpu.dot_dimension_numbers<[1], [1], [0], [0], [0, 0, 1, 0], [], []>} : vector<16x128xbf16>, vector<16x128xbf16>, vector<16x16xf32> -> vector<16x16xf32>
    %179 = arith.addf %178, %3 : vector<16x16xf32>
    %cst_72 = arith.constant dense<0xFF800000> : vector<16xf32>
    %180 = vector.multi_reduction <maximumf>, %179, %cst_72 [1] : vector<16x16xf32> to vector<16xf32>
    %181 = vector.shape_cast %180 : vector<16xf32> to vector<16x1xf32>
    %182 = vector.broadcast %181 : vector<16x1xf32> to vector<16x16xf32>
    %183 = arith.subf %179, %182 : vector<16x16xf32>
    %184 = math.exp %183 : vector<16x16xf32>
    %cst_73 = arith.constant dense<0.000000e+00> : vector<16xf32>
    %185 = vector.multi_reduction <add>, %184, %cst_73 [1] : vector<16x16xf32> to vector<16xf32>
    %186 = vector.shape_cast %185 : vector<16xf32> to vector<16x1xf32>
    %187 = tpu.reciprocal %186 {approx = true} : vector<16x1xf32> -> vector<16x1xf32>
    %188 = vector.broadcast %187 : vector<16x1xf32> to vector<16x16xf32>
    %189 = arith.mulf %184, %188 : vector<16x16xf32>
    %190 = vector.broadcast %174 : vector<1x128xf32> to vector<16x128xf32>
    %191 = arith.mulf %167, %190 : vector<16x128xf32>
    %192 = arith.truncf %191 : vector<16x128xf32> to vector<16x128xbf16>
    %193 = arith.truncf %189 : vector<16x16xf32> to vector<16x16xbf16>
    %cst_74 = arith.constant dense<0.000000e+00> : vector<16x128xf32>
    %194 = tpu.matmul %193, %192, %cst_74 {dimension_numbers = #tpu.dot_dimension_numbers<[1], [0], [0], [1], [0, 0, 1, 1], [], []>} : vector<16x16xbf16>, vector<16x128xbf16>, vector<16x128xf32> -> vector<16x128xf32>
    %195 = vector.extract_strided_slice %4 {offsets = [1, 0, 0], sizes = [1, 1, 128], strides = [1, 1, 1]} : vector<4x1x128xf32> to vector<1x1x128xf32>
    %196 = vector.shape_cast %195 : vector<1x1x128xf32> to vector<1x128xf32>
    %197 = vector.broadcast %196 : vector<1x128xf32> to vector<16x128xf32>
    %198 = arith.mulf %158, %197 : vector<16x128xf32>
    %199 = arith.truncf %198 : vector<16x128xf32> to vector<16x128xbf16>
    %cst_75 = arith.constant dense<0.000000e+00> : vector<16x16xf32>
    %200 = tpu.matmul %199, %172, %cst_75 {dimension_numbers = #tpu.dot_dimension_numbers<[1], [1], [0], [0], [0, 0, 1, 0], [], []>} : vector<16x128xbf16>, vector<16x128xbf16>, vector<16x16xf32> -> vector<16x16xf32>
    %201 = arith.addf %200, %3 : vector<16x16xf32>
    %cst_76 = arith.constant dense<0xFF800000> : vector<16xf32>
    %202 = vector.multi_reduction <maximumf>, %201, %cst_76 [1] : vector<16x16xf32> to vector<16xf32>
    %203 = vector.shape_cast %202 : vector<16xf32> to vector<16x1xf32>
    %204 = vector.broadcast %203 : vector<16x1xf32> to vector<16x16xf32>
    %205 = arith.subf %201, %204 : vector<16x16xf32>
    %206 = math.exp %205 : vector<16x16xf32>
    %cst_77 = arith.constant dense<0.000000e+00> : vector<16xf32>
    %207 = vector.multi_reduction <add>, %206, %cst_77 [1] : vector<16x16xf32> to vector<16xf32>
    %208 = vector.shape_cast %207 : vector<16xf32> to vector<16x1xf32>
    %209 = tpu.reciprocal %208 {approx = true} : vector<16x1xf32> -> vector<16x1xf32>
    %210 = vector.broadcast %209 : vector<16x1xf32> to vector<16x16xf32>
    %211 = arith.mulf %206, %210 : vector<16x16xf32>
    %212 = vector.broadcast %196 : vector<1x128xf32> to vector<16x128xf32>
    %213 = arith.mulf %167, %212 : vector<16x128xf32>
    %214 = arith.truncf %213 : vector<16x128xf32> to vector<16x128xbf16>
    %215 = arith.truncf %211 : vector<16x16xf32> to vector<16x16xbf16>
    %cst_78 = arith.constant dense<0.000000e+00> : vector<16x128xf32>
    %216 = tpu.matmul %215, %214, %cst_78 {dimension_numbers = #tpu.dot_dimension_numbers<[1], [0], [0], [1], [0, 0, 1, 1], [], []>} : vector<16x16xbf16>, vector<16x128xbf16>, vector<16x128xf32> -> vector<16x128xf32>
    %217 = arith.addf %194, %216 : vector<16x128xf32>
    %218 = vector.extract_strided_slice %4 {offsets = [2, 0, 0], sizes = [1, 1, 128], strides = [1, 1, 1]} : vector<4x1x128xf32> to vector<1x1x128xf32>
    %219 = vector.shape_cast %218 : vector<1x1x128xf32> to vector<1x128xf32>
    %220 = vector.broadcast %219 : vector<1x128xf32> to vector<16x128xf32>
    %221 = arith.mulf %158, %220 : vector<16x128xf32>
    %222 = arith.truncf %221 : vector<16x128xf32> to vector<16x128xbf16>
    %cst_79 = arith.constant dense<0.000000e+00> : vector<16x16xf32>
    %223 = tpu.matmul %222, %172, %cst_79 {dimension_numbers = #tpu.dot_dimension_numbers<[1], [1], [0], [0], [0, 0, 1, 0], [], []>} : vector<16x128xbf16>, vector<16x128xbf16>, vector<16x16xf32> -> vector<16x16xf32>
    %224 = arith.addf %223, %3 : vector<16x16xf32>
    %cst_80 = arith.constant dense<0xFF800000> : vector<16xf32>
    %225 = vector.multi_reduction <maximumf>, %224, %cst_80 [1] : vector<16x16xf32> to vector<16xf32>
    %226 = vector.shape_cast %225 : vector<16xf32> to vector<16x1xf32>
    %227 = vector.broadcast %226 : vector<16x1xf32> to vector<16x16xf32>
    %228 = arith.subf %224, %227 : vector<16x16xf32>
    %229 = math.exp %228 : vector<16x16xf32>
    %cst_81 = arith.constant dense<0.000000e+00> : vector<16xf32>
    %230 = vector.multi_reduction <add>, %229, %cst_81 [1] : vector<16x16xf32> to vector<16xf32>
    %231 = vector.shape_cast %230 : vector<16xf32> to vector<16x1xf32>
    %232 = tpu.reciprocal %231 {approx = true} : vector<16x1xf32> -> vector<16x1xf32>
    %233 = vector.broadcast %232 : vector<16x1xf32> to vector<16x16xf32>
    %234 = arith.mulf %229, %233 : vector<16x16xf32>
    %235 = vector.broadcast %219 : vector<1x128xf32> to vector<16x128xf32>
    %236 = arith.mulf %167, %235 : vector<16x128xf32>
    %237 = arith.truncf %236 : vector<16x128xf32> to vector<16x128xbf16>
    %238 = arith.truncf %234 : vector<16x16xf32> to vector<16x16xbf16>
    %cst_82 = arith.constant dense<0.000000e+00> : vector<16x128xf32>
    %239 = tpu.matmul %238, %237, %cst_82 {dimension_numbers = #tpu.dot_dimension_numbers<[1], [0], [0], [1], [0, 0, 1, 1], [], []>} : vector<16x16xbf16>, vector<16x128xbf16>, vector<16x128xf32> -> vector<16x128xf32>
    %240 = arith.addf %217, %239 : vector<16x128xf32>
    %241 = vector.extract_strided_slice %4 {offsets = [3, 0, 0], sizes = [1, 1, 128], strides = [1, 1, 1]} : vector<4x1x128xf32> to vector<1x1x128xf32>
    %242 = vector.shape_cast %241 : vector<1x1x128xf32> to vector<1x128xf32>
    %243 = vector.broadcast %242 : vector<1x128xf32> to vector<16x128xf32>
    %244 = arith.mulf %158, %243 : vector<16x128xf32>
    %245 = arith.truncf %244 : vector<16x128xf32> to vector<16x128xbf16>
    %cst_83 = arith.constant dense<0.000000e+00> : vector<16x16xf32>
    %246 = tpu.matmul %245, %172, %cst_83 {dimension_numbers = #tpu.dot_dimension_numbers<[1], [1], [0], [0], [0, 0, 1, 0], [], []>} : vector<16x128xbf16>, vector<16x128xbf16>, vector<16x16xf32> -> vector<16x16xf32>
    %247 = arith.addf %246, %3 : vector<16x16xf32>
    %cst_84 = arith.constant dense<0xFF800000> : vector<16xf32>
    %248 = vector.multi_reduction <maximumf>, %247, %cst_84 [1] : vector<16x16xf32> to vector<16xf32>
    %249 = vector.shape_cast %248 : vector<16xf32> to vector<16x1xf32>
    %250 = vector.broadcast %249 : vector<16x1xf32> to vector<16x16xf32>
    %251 = arith.subf %247, %250 : vector<16x16xf32>
    %252 = math.exp %251 : vector<16x16xf32>
    %cst_85 = arith.constant dense<0.000000e+00> : vector<16xf32>
    %253 = vector.multi_reduction <add>, %252, %cst_85 [1] : vector<16x16xf32> to vector<16xf32>
    %254 = vector.shape_cast %253 : vector<16xf32> to vector<16x1xf32>
    %255 = tpu.reciprocal %254 {approx = true} : vector<16x1xf32> -> vector<16x1xf32>
    %256 = vector.broadcast %255 : vector<16x1xf32> to vector<16x16xf32>
    %257 = arith.mulf %252, %256 : vector<16x16xf32>
    %258 = vector.broadcast %242 : vector<1x128xf32> to vector<16x128xf32>
    %259 = arith.mulf %167, %258 : vector<16x128xf32>
    %260 = arith.truncf %259 : vector<16x128xf32> to vector<16x128xbf16>
    %261 = arith.truncf %257 : vector<16x16xf32> to vector<16x16xbf16>
    %cst_86 = arith.constant dense<0.000000e+00> : vector<16x128xf32>
    %262 = tpu.matmul %261, %260, %cst_86 {dimension_numbers = #tpu.dot_dimension_numbers<[1], [0], [0], [1], [0, 0, 1, 1], [], []>} : vector<16x16xbf16>, vector<16x128xbf16>, vector<16x128xf32> -> vector<16x128xf32>
    %263 = arith.addf %240, %262 : vector<16x128xf32>
    %264 = arith.truncf %263 : vector<16x128xf32> to vector<16x128xbf16>
    %cst_87 = arith.constant dense<0.000000e+00> : vector<16x128xf32>
    %265 = tpu.matmul %264, %169, %cst_87 {dimension_numbers = #tpu.dot_dimension_numbers<[1], [0], [0], [1], [0, 0, 1, 1], [], []>} : vector<16x128xbf16>, vector<128x128xbf16>, vector<16x128xf32> -> vector<16x128xf32>
    %266 = vector.broadcast %171 : vector<1x128xf32> to vector<16x128xf32>
    %267 = arith.addf %265, %266 : vector<16x128xf32>
    %268 = arith.addf %148, %267 : vector<16x128xf32>
    %269 = vector.extract_strided_slice %6 {offsets = [1, 0, 0], sizes = [1, 1, 128], strides = [1, 1, 1]} : vector<3x1x128xf32> to vector<1x1x128xf32>
    %270 = vector.shape_cast %269 : vector<1x1x128xf32> to vector<1x128xf32>
    %271 = vector.extract_strided_slice %8 {offsets = [1, 0, 0], sizes = [1, 1, 128], strides = [1, 1, 1]} : vector<3x1x128xf32> to vector<1x1x128xf32>
    %272 = vector.shape_cast %271 : vector<1x1x128xf32> to vector<1x128xf32>
    %cst_88 = arith.constant dense<0.000000e+00> : vector<16xf32>
    %273 = vector.multi_reduction <add>, %268, %cst_88 [1] : vector<16x128xf32> to vector<16xf32>
    %274 = vector.shape_cast %273 : vector<16xf32> to vector<16x1xf32>
    %cst_89 = arith.constant 1.280000e+02 : f32
    %275 = vector.broadcast %cst_89 : f32 to vector<16x1xf32>
    %276 = arith.divf %274, %275 : vector<16x1xf32>
    %277 = vector.broadcast %276 : vector<16x1xf32> to vector<16x128xf32>
    %278 = arith.subf %268, %277 : vector<16x128xf32>
    %279 = arith.mulf %278, %278 : vector<16x128xf32>
    %cst_90 = arith.constant dense<0.000000e+00> : vector<16xf32>
    %280 = vector.multi_reduction <add>, %279, %cst_90 [1] : vector<16x128xf32> to vector<16xf32>
    %281 = vector.shape_cast %280 : vector<16xf32> to vector<16x1xf32>
    %cst_91 = arith.constant 1.280000e+02 : f32
    %282 = vector.broadcast %cst_91 : f32 to vector<16x1xf32>
    %283 = arith.divf %281, %282 : vector<16x1xf32>
    %284 = vector.broadcast %276 : vector<16x1xf32> to vector<16x128xf32>
    %285 = arith.subf %268, %284 : vector<16x128xf32>
    %cst_92 = arith.constant 9.99999974E-6 : f32
    %286 = vector.broadcast %cst_92 : f32 to vector<16x1xf32>
    %287 = arith.addf %283, %286 : vector<16x1xf32>
    %288 = math.rsqrt %287 : vector<16x1xf32>
    %289 = vector.broadcast %288 : vector<16x1xf32> to vector<16x128xf32>
    %290 = arith.mulf %285, %289 : vector<16x128xf32>
    %291 = vector.broadcast %270 : vector<1x128xf32> to vector<16x128xf32>
    %292 = arith.mulf %290, %291 : vector<16x128xf32>
    %293 = vector.broadcast %272 : vector<1x128xf32> to vector<16x128xf32>
    %294 = arith.addf %292, %293 : vector<16x128xf32>
    %295 = arith.truncf %294 : vector<16x128xf32> to vector<16x128xbf16>
    %c0_93 = arith.constant 0 : index
    %c0_94 = arith.constant 0 : index
    %c0_95 = arith.constant 0 : index
    %296 = vector.load %arg12[%c0_93, %c0_94, %c0_95] : memref<2x128x2048xbf16, #tpu.memory_space<vmem>>, vector<1x128x2048xbf16>
    %297 = vector.shape_cast %296 : vector<1x128x2048xbf16> to vector<128x2048xbf16>
    %cst_96 = arith.constant dense<0.000000e+00> : vector<16x2048xf32>
    %298 = tpu.matmul %295, %297, %cst_96 {dimension_numbers = #tpu.dot_dimension_numbers<[1], [0], [0], [1], [0, 0, 1, 1], [], []>} : vector<16x128xbf16>, vector<128x2048xbf16>, vector<16x2048xf32> -> vector<16x2048xf32>
    %c0_97 = arith.constant 0 : index
    %c0_98 = arith.constant 0 : index
    %c0_99 = arith.constant 0 : index
    %299 = vector.load %arg13[%c0_97, %c0_98, %c0_99] : memref<2x1x2048xf32, #tpu.memory_space<vmem>>, vector<1x1x2048xf32>
    %300 = vector.shape_cast %299 : vector<1x1x2048xf32> to vector<1x2048xf32>
    %301 = vector.broadcast %300 : vector<1x2048xf32> to vector<16x2048xf32>
    %302 = arith.addf %298, %301 : vector<16x2048xf32>
    %cst_100 = arith.constant 0.000000e+00 : f32
    %303 = vector.broadcast %cst_100 : f32 to vector<16x2048xf32>
    %304 = arith.maximumf %302, %303 : vector<16x2048xf32>
    %305 = arith.truncf %304 : vector<16x2048xf32> to vector<16x2048xbf16>
    %c0_101 = arith.constant 0 : index
    %c0_102 = arith.constant 0 : index
    %c0_103 = arith.constant 0 : index
    %306 = vector.load %arg14[%c0_101, %c0_102, %c0_103] : memref<2x2048x128xbf16, #tpu.memory_space<vmem>>, vector<1x2048x128xbf16>
    %307 = vector.shape_cast %306 : vector<1x2048x128xbf16> to vector<2048x128xbf16>
    %cst_104 = arith.constant dense<0.000000e+00> : vector<16x128xf32>
    %308 = tpu.matmul %305, %307, %cst_104 {dimension_numbers = #tpu.dot_dimension_numbers<[1], [0], [0], [1], [0, 0, 1, 1], [], []>} : vector<16x2048xbf16>, vector<2048x128xbf16>, vector<16x128xf32> -> vector<16x128xf32>
    %c0_105 = arith.constant 0 : index
    %c0_106 = arith.constant 0 : index
    %c0_107 = arith.constant 0 : index
    %309 = vector.load %arg15[%c0_105, %c0_106, %c0_107] : memref<2x1x128xf32, #tpu.memory_space<vmem>>, vector<1x1x128xf32>
    %310 = vector.shape_cast %309 : vector<1x1x128xf32> to vector<1x128xf32>
    %311 = vector.broadcast %310 : vector<1x128xf32> to vector<16x128xf32>
    %312 = arith.addf %308, %311 : vector<16x128xf32>
    %313 = arith.addf %294, %312 : vector<16x128xf32>
    %314 = vector.extract_strided_slice %6 {offsets = [2, 0, 0], sizes = [1, 1, 128], strides = [1, 1, 1]} : vector<3x1x128xf32> to vector<1x1x128xf32>
    %315 = vector.shape_cast %314 : vector<1x1x128xf32> to vector<1x128xf32>
    %316 = vector.extract_strided_slice %8 {offsets = [2, 0, 0], sizes = [1, 1, 128], strides = [1, 1, 1]} : vector<3x1x128xf32> to vector<1x1x128xf32>
    %317 = vector.shape_cast %316 : vector<1x1x128xf32> to vector<1x128xf32>
    %cst_108 = arith.constant dense<0.000000e+00> : vector<16xf32>
    %318 = vector.multi_reduction <add>, %313, %cst_108 [1] : vector<16x128xf32> to vector<16xf32>
    %319 = vector.shape_cast %318 : vector<16xf32> to vector<16x1xf32>
    %cst_109 = arith.constant 1.280000e+02 : f32
    %320 = vector.broadcast %cst_109 : f32 to vector<16x1xf32>
    %321 = arith.divf %319, %320 : vector<16x1xf32>
    %322 = vector.broadcast %321 : vector<16x1xf32> to vector<16x128xf32>
    %323 = arith.subf %313, %322 : vector<16x128xf32>
    %324 = arith.mulf %323, %323 : vector<16x128xf32>
    %cst_110 = arith.constant dense<0.000000e+00> : vector<16xf32>
    %325 = vector.multi_reduction <add>, %324, %cst_110 [1] : vector<16x128xf32> to vector<16xf32>
    %326 = vector.shape_cast %325 : vector<16xf32> to vector<16x1xf32>
    %cst_111 = arith.constant 1.280000e+02 : f32
    %327 = vector.broadcast %cst_111 : f32 to vector<16x1xf32>
    %328 = arith.divf %326, %327 : vector<16x1xf32>
    %329 = vector.broadcast %321 : vector<16x1xf32> to vector<16x128xf32>
    %330 = arith.subf %313, %329 : vector<16x128xf32>
    %cst_112 = arith.constant 9.99999974E-6 : f32
    %331 = vector.broadcast %cst_112 : f32 to vector<16x1xf32>
    %332 = arith.addf %328, %331 : vector<16x1xf32>
    %333 = math.rsqrt %332 : vector<16x1xf32>
    %334 = vector.broadcast %333 : vector<16x1xf32> to vector<16x128xf32>
    %335 = arith.mulf %330, %334 : vector<16x128xf32>
    %336 = vector.broadcast %315 : vector<1x128xf32> to vector<16x128xf32>
    %337 = arith.mulf %335, %336 : vector<16x128xf32>
    %338 = vector.broadcast %317 : vector<1x128xf32> to vector<16x128xf32>
    %339 = arith.addf %337, %338 : vector<16x128xf32>
    %c1 = arith.constant 1 : index
    %c0_113 = arith.constant 0 : index
    %c0_114 = arith.constant 0 : index
    %c0_115 = arith.constant 0 : index
    %340 = vector.load %arg16[%c1, %c0_113, %c0_114, %c0_115] : memref<2x3x1x128xf32, #tpu.memory_space<vmem>>, vector<1x3x1x128xf32>
    %341 = vector.shape_cast %340 : vector<1x3x1x128xf32> to vector<3x1x128xf32>
    %c1_116 = arith.constant 1 : index
    %c0_117 = arith.constant 0 : index
    %c0_118 = arith.constant 0 : index
    %c0_119 = arith.constant 0 : index
    %342 = vector.load %arg17[%c1_116, %c0_117, %c0_118, %c0_119] : memref<2x3x1x128xf32, #tpu.memory_space<vmem>>, vector<1x3x1x128xf32>
    %343 = vector.shape_cast %342 : vector<1x3x1x128xf32> to vector<3x1x128xf32>
    %344 = arith.truncf %339 : vector<16x128xf32> to vector<16x128xbf16>
    %c1_120 = arith.constant 1 : index
    %c0_121 = arith.constant 0 : index
    %c0_122 = arith.constant 0 : index
    %345 = vector.load %arg4[%c1_120, %c0_121, %c0_122] : memref<2x128x384xbf16, #tpu.memory_space<vmem>>, vector<1x128x384xbf16>
    %346 = vector.shape_cast %345 : vector<1x128x384xbf16> to vector<128x384xbf16>
    %cst_123 = arith.constant dense<0.000000e+00> : vector<16x384xf32>
    %347 = tpu.matmul %344, %346, %cst_123 {dimension_numbers = #tpu.dot_dimension_numbers<[1], [0], [0], [1], [0, 0, 1, 1], [], []>} : vector<16x128xbf16>, vector<128x384xbf16>, vector<16x384xf32> -> vector<16x384xf32>
    %c1_124 = arith.constant 1 : index
    %c0_125 = arith.constant 0 : index
    %c0_126 = arith.constant 0 : index
    %348 = vector.load %arg5[%c1_124, %c0_125, %c0_126] : memref<2x1x384xf32, #tpu.memory_space<vmem>>, vector<1x1x384xf32>
    %349 = vector.shape_cast %348 : vector<1x1x384xf32> to vector<1x384xf32>
    %350 = vector.broadcast %349 : vector<1x384xf32> to vector<16x384xf32>
    %351 = arith.addf %347, %350 : vector<16x384xf32>
    %352 = vector.extract_strided_slice %351 {offsets = [0, 0], sizes = [16, 128], strides = [1, 1]} : vector<16x384xf32> to vector<16x128xf32>
    %cst_127 = arith.constant 0.176776692 : f32
    %353 = vector.broadcast %cst_127 : f32 to vector<16x128xf32>
    %354 = arith.mulf %352, %353 : vector<16x128xf32>
    %355 = vector.extract_strided_slice %351 {offsets = [0, 128], sizes = [16, 128], strides = [1, 1]} : vector<16x384xf32> to vector<16x128xf32>
    %356 = vector.extract_strided_slice %351 {offsets = [0, 256], sizes = [16, 128], strides = [1, 1]} : vector<16x384xf32> to vector<16x128xf32>
    %c1_128 = arith.constant 1 : index
    %c0_129 = arith.constant 0 : index
    %c0_130 = arith.constant 0 : index
    %357 = vector.load %arg6[%c1_128, %c0_129, %c0_130] : memref<2x128x128xbf16, #tpu.memory_space<vmem>>, vector<1x128x128xbf16>
    %358 = vector.shape_cast %357 : vector<1x128x128xbf16> to vector<128x128xbf16>
    %c1_131 = arith.constant 1 : index
    %c0_132 = arith.constant 0 : index
    %c0_133 = arith.constant 0 : index
    %359 = vector.load %arg7[%c1_131, %c0_132, %c0_133] : memref<2x1x128xf32, #tpu.memory_space<vmem>>, vector<1x1x128xf32>
    %360 = vector.shape_cast %359 : vector<1x1x128xf32> to vector<1x128xf32>
    %361 = arith.truncf %355 : vector<16x128xf32> to vector<16x128xbf16>
    %362 = vector.extract_strided_slice %4 {offsets = [0, 0, 0], sizes = [1, 1, 128], strides = [1, 1, 1]} : vector<4x1x128xf32> to vector<1x1x128xf32>
    %363 = vector.shape_cast %362 : vector<1x1x128xf32> to vector<1x128xf32>
    %364 = vector.broadcast %363 : vector<1x128xf32> to vector<16x128xf32>
    %365 = arith.mulf %354, %364 : vector<16x128xf32>
    %366 = arith.truncf %365 : vector<16x128xf32> to vector<16x128xbf16>
    %cst_134 = arith.constant dense<0.000000e+00> : vector<16x16xf32>
    %367 = tpu.matmul %366, %361, %cst_134 {dimension_numbers = #tpu.dot_dimension_numbers<[1], [1], [0], [0], [0, 0, 1, 0], [], []>} : vector<16x128xbf16>, vector<16x128xbf16>, vector<16x16xf32> -> vector<16x16xf32>
    %368 = arith.addf %367, %2 : vector<16x16xf32>
    %cst_135 = arith.constant dense<0xFF800000> : vector<16xf32>
    %369 = vector.multi_reduction <maximumf>, %368, %cst_135 [1] : vector<16x16xf32> to vector<16xf32>
    %370 = vector.shape_cast %369 : vector<16xf32> to vector<16x1xf32>
    %371 = vector.broadcast %370 : vector<16x1xf32> to vector<16x16xf32>
    %372 = arith.subf %368, %371 : vector<16x16xf32>
    %373 = math.exp %372 : vector<16x16xf32>
    %cst_136 = arith.constant dense<0.000000e+00> : vector<16xf32>
    %374 = vector.multi_reduction <add>, %373, %cst_136 [1] : vector<16x16xf32> to vector<16xf32>
    %375 = vector.shape_cast %374 : vector<16xf32> to vector<16x1xf32>
    %376 = tpu.reciprocal %375 {approx = true} : vector<16x1xf32> -> vector<16x1xf32>
    %377 = vector.broadcast %376 : vector<16x1xf32> to vector<16x16xf32>
    %378 = arith.mulf %373, %377 : vector<16x16xf32>
    %379 = vector.broadcast %363 : vector<1x128xf32> to vector<16x128xf32>
    %380 = arith.mulf %356, %379 : vector<16x128xf32>
    %381 = arith.truncf %380 : vector<16x128xf32> to vector<16x128xbf16>
    %382 = arith.truncf %378 : vector<16x16xf32> to vector<16x16xbf16>
    %cst_137 = arith.constant dense<0.000000e+00> : vector<16x128xf32>
    %383 = tpu.matmul %382, %381, %cst_137 {dimension_numbers = #tpu.dot_dimension_numbers<[1], [0], [0], [1], [0, 0, 1, 1], [], []>} : vector<16x16xbf16>, vector<16x128xbf16>, vector<16x128xf32> -> vector<16x128xf32>
    %384 = vector.extract_strided_slice %4 {offsets = [1, 0, 0], sizes = [1, 1, 128], strides = [1, 1, 1]} : vector<4x1x128xf32> to vector<1x1x128xf32>
    %385 = vector.shape_cast %384 : vector<1x1x128xf32> to vector<1x128xf32>
    %386 = vector.broadcast %385 : vector<1x128xf32> to vector<16x128xf32>
    %387 = arith.mulf %354, %386 : vector<16x128xf32>
    %388 = arith.truncf %387 : vector<16x128xf32> to vector<16x128xbf16>
    %cst_138 = arith.constant dense<0.000000e+00> : vector<16x16xf32>
    %389 = tpu.matmul %388, %361, %cst_138 {dimension_numbers = #tpu.dot_dimension_numbers<[1], [1], [0], [0], [0, 0, 1, 0], [], []>} : vector<16x128xbf16>, vector<16x128xbf16>, vector<16x16xf32> -> vector<16x16xf32>
    %390 = arith.addf %389, %2 : vector<16x16xf32>
    %cst_139 = arith.constant dense<0xFF800000> : vector<16xf32>
    %391 = vector.multi_reduction <maximumf>, %390, %cst_139 [1] : vector<16x16xf32> to vector<16xf32>
    %392 = vector.shape_cast %391 : vector<16xf32> to vector<16x1xf32>
    %393 = vector.broadcast %392 : vector<16x1xf32> to vector<16x16xf32>
    %394 = arith.subf %390, %393 : vector<16x16xf32>
    %395 = math.exp %394 : vector<16x16xf32>
    %cst_140 = arith.constant dense<0.000000e+00> : vector<16xf32>
    %396 = vector.multi_reduction <add>, %395, %cst_140 [1] : vector<16x16xf32> to vector<16xf32>
    %397 = vector.shape_cast %396 : vector<16xf32> to vector<16x1xf32>
    %398 = tpu.reciprocal %397 {approx = true} : vector<16x1xf32> -> vector<16x1xf32>
    %399 = vector.broadcast %398 : vector<16x1xf32> to vector<16x16xf32>
    %400 = arith.mulf %395, %399 : vector<16x16xf32>
    %401 = vector.broadcast %385 : vector<1x128xf32> to vector<16x128xf32>
    %402 = arith.mulf %356, %401 : vector<16x128xf32>
    %403 = arith.truncf %402 : vector<16x128xf32> to vector<16x128xbf16>
    %404 = arith.truncf %400 : vector<16x16xf32> to vector<16x16xbf16>
    %cst_141 = arith.constant dense<0.000000e+00> : vector<16x128xf32>
    %405 = tpu.matmul %404, %403, %cst_141 {dimension_numbers = #tpu.dot_dimension_numbers<[1], [0], [0], [1], [0, 0, 1, 1], [], []>} : vector<16x16xbf16>, vector<16x128xbf16>, vector<16x128xf32> -> vector<16x128xf32>
    %406 = arith.addf %383, %405 : vector<16x128xf32>
    %407 = vector.extract_strided_slice %4 {offsets = [2, 0, 0], sizes = [1, 1, 128], strides = [1, 1, 1]} : vector<4x1x128xf32> to vector<1x1x128xf32>
    %408 = vector.shape_cast %407 : vector<1x1x128xf32> to vector<1x128xf32>
    %409 = vector.broadcast %408 : vector<1x128xf32> to vector<16x128xf32>
    %410 = arith.mulf %354, %409 : vector<16x128xf32>
    %411 = arith.truncf %410 : vector<16x128xf32> to vector<16x128xbf16>
    %cst_142 = arith.constant dense<0.000000e+00> : vector<16x16xf32>
    %412 = tpu.matmul %411, %361, %cst_142 {dimension_numbers = #tpu.dot_dimension_numbers<[1], [1], [0], [0], [0, 0, 1, 0], [], []>} : vector<16x128xbf16>, vector<16x128xbf16>, vector<16x16xf32> -> vector<16x16xf32>
    %413 = arith.addf %412, %2 : vector<16x16xf32>
    %cst_143 = arith.constant dense<0xFF800000> : vector<16xf32>
    %414 = vector.multi_reduction <maximumf>, %413, %cst_143 [1] : vector<16x16xf32> to vector<16xf32>
    %415 = vector.shape_cast %414 : vector<16xf32> to vector<16x1xf32>
    %416 = vector.broadcast %415 : vector<16x1xf32> to vector<16x16xf32>
    %417 = arith.subf %413, %416 : vector<16x16xf32>
    %418 = math.exp %417 : vector<16x16xf32>
    %cst_144 = arith.constant dense<0.000000e+00> : vector<16xf32>
    %419 = vector.multi_reduction <add>, %418, %cst_144 [1] : vector<16x16xf32> to vector<16xf32>
    %420 = vector.shape_cast %419 : vector<16xf32> to vector<16x1xf32>
    %421 = tpu.reciprocal %420 {approx = true} : vector<16x1xf32> -> vector<16x1xf32>
    %422 = vector.broadcast %421 : vector<16x1xf32> to vector<16x16xf32>
    %423 = arith.mulf %418, %422 : vector<16x16xf32>
    %424 = vector.broadcast %408 : vector<1x128xf32> to vector<16x128xf32>
    %425 = arith.mulf %356, %424 : vector<16x128xf32>
    %426 = arith.truncf %425 : vector<16x128xf32> to vector<16x128xbf16>
    %427 = arith.truncf %423 : vector<16x16xf32> to vector<16x16xbf16>
    %cst_145 = arith.constant dense<0.000000e+00> : vector<16x128xf32>
    %428 = tpu.matmul %427, %426, %cst_145 {dimension_numbers = #tpu.dot_dimension_numbers<[1], [0], [0], [1], [0, 0, 1, 1], [], []>} : vector<16x16xbf16>, vector<16x128xbf16>, vector<16x128xf32> -> vector<16x128xf32>
    %429 = arith.addf %406, %428 : vector<16x128xf32>
    %430 = vector.extract_strided_slice %4 {offsets = [3, 0, 0], sizes = [1, 1, 128], strides = [1, 1, 1]} : vector<4x1x128xf32> to vector<1x1x128xf32>
    %431 = vector.shape_cast %430 : vector<1x1x128xf32> to vector<1x128xf32>
    %432 = vector.broadcast %431 : vector<1x128xf32> to vector<16x128xf32>
    %433 = arith.mulf %354, %432 : vector<16x128xf32>
    %434 = arith.truncf %433 : vector<16x128xf32> to vector<16x128xbf16>
    %cst_146 = arith.constant dense<0.000000e+00> : vector<16x16xf32>
    %435 = tpu.matmul %434, %361, %cst_146 {dimension_numbers = #tpu.dot_dimension_numbers<[1], [1], [0], [0], [0, 0, 1, 0], [], []>} : vector<16x128xbf16>, vector<16x128xbf16>, vector<16x16xf32> -> vector<16x16xf32>
    %436 = arith.addf %435, %2 : vector<16x16xf32>
    %cst_147 = arith.constant dense<0xFF800000> : vector<16xf32>
    %437 = vector.multi_reduction <maximumf>, %436, %cst_147 [1] : vector<16x16xf32> to vector<16xf32>
    %438 = vector.shape_cast %437 : vector<16xf32> to vector<16x1xf32>
    %439 = vector.broadcast %438 : vector<16x1xf32> to vector<16x16xf32>
    %440 = arith.subf %436, %439 : vector<16x16xf32>
    %441 = math.exp %440 : vector<16x16xf32>
    %cst_148 = arith.constant dense<0.000000e+00> : vector<16xf32>
    %442 = vector.multi_reduction <add>, %441, %cst_148 [1] : vector<16x16xf32> to vector<16xf32>
    %443 = vector.shape_cast %442 : vector<16xf32> to vector<16x1xf32>
    %444 = tpu.reciprocal %443 {approx = true} : vector<16x1xf32> -> vector<16x1xf32>
    %445 = vector.broadcast %444 : vector<16x1xf32> to vector<16x16xf32>
    %446 = arith.mulf %441, %445 : vector<16x16xf32>
    %447 = vector.broadcast %431 : vector<1x128xf32> to vector<16x128xf32>
    %448 = arith.mulf %356, %447 : vector<16x128xf32>
    %449 = arith.truncf %448 : vector<16x128xf32> to vector<16x128xbf16>
    %450 = arith.truncf %446 : vector<16x16xf32> to vector<16x16xbf16>
    %cst_149 = arith.constant dense<0.000000e+00> : vector<16x128xf32>
    %451 = tpu.matmul %450, %449, %cst_149 {dimension_numbers = #tpu.dot_dimension_numbers<[1], [0], [0], [1], [0, 0, 1, 1], [], []>} : vector<16x16xbf16>, vector<16x128xbf16>, vector<16x128xf32> -> vector<16x128xf32>
    %452 = arith.addf %429, %451 : vector<16x128xf32>
    %453 = arith.truncf %452 : vector<16x128xf32> to vector<16x128xbf16>
    %cst_150 = arith.constant dense<0.000000e+00> : vector<16x128xf32>
    %454 = tpu.matmul %453, %358, %cst_150 {dimension_numbers = #tpu.dot_dimension_numbers<[1], [0], [0], [1], [0, 0, 1, 1], [], []>} : vector<16x128xbf16>, vector<128x128xbf16>, vector<16x128xf32> -> vector<16x128xf32>
    %455 = vector.broadcast %360 : vector<1x128xf32> to vector<16x128xf32>
    %456 = arith.addf %454, %455 : vector<16x128xf32>
    %457 = arith.addf %339, %456 : vector<16x128xf32>
    %458 = vector.extract_strided_slice %341 {offsets = [0, 0, 0], sizes = [1, 1, 128], strides = [1, 1, 1]} : vector<3x1x128xf32> to vector<1x1x128xf32>
    %459 = vector.shape_cast %458 : vector<1x1x128xf32> to vector<1x128xf32>
    %460 = vector.extract_strided_slice %343 {offsets = [0, 0, 0], sizes = [1, 1, 128], strides = [1, 1, 1]} : vector<3x1x128xf32> to vector<1x1x128xf32>
    %461 = vector.shape_cast %460 : vector<1x1x128xf32> to vector<1x128xf32>
    %cst_151 = arith.constant dense<0.000000e+00> : vector<16xf32>
    %462 = vector.multi_reduction <add>, %457, %cst_151 [1] : vector<16x128xf32> to vector<16xf32>
    %463 = vector.shape_cast %462 : vector<16xf32> to vector<16x1xf32>
    %cst_152 = arith.constant 1.280000e+02 : f32
    %464 = vector.broadcast %cst_152 : f32 to vector<16x1xf32>
    %465 = arith.divf %463, %464 : vector<16x1xf32>
    %466 = vector.broadcast %465 : vector<16x1xf32> to vector<16x128xf32>
    %467 = arith.subf %457, %466 : vector<16x128xf32>
    %468 = arith.mulf %467, %467 : vector<16x128xf32>
    %cst_153 = arith.constant dense<0.000000e+00> : vector<16xf32>
    %469 = vector.multi_reduction <add>, %468, %cst_153 [1] : vector<16x128xf32> to vector<16xf32>
    %470 = vector.shape_cast %469 : vector<16xf32> to vector<16x1xf32>
    %cst_154 = arith.constant 1.280000e+02 : f32
    %471 = vector.broadcast %cst_154 : f32 to vector<16x1xf32>
    %472 = arith.divf %470, %471 : vector<16x1xf32>
    %473 = vector.broadcast %465 : vector<16x1xf32> to vector<16x128xf32>
    %474 = arith.subf %457, %473 : vector<16x128xf32>
    %cst_155 = arith.constant 9.99999974E-6 : f32
    %475 = vector.broadcast %cst_155 : f32 to vector<16x1xf32>
    %476 = arith.addf %472, %475 : vector<16x1xf32>
    %477 = math.rsqrt %476 : vector<16x1xf32>
    %478 = vector.broadcast %477 : vector<16x1xf32> to vector<16x128xf32>
    %479 = arith.mulf %474, %478 : vector<16x128xf32>
    %480 = vector.broadcast %459 : vector<1x128xf32> to vector<16x128xf32>
    %481 = arith.mulf %479, %480 : vector<16x128xf32>
    %482 = vector.broadcast %461 : vector<1x128xf32> to vector<16x128xf32>
    %483 = arith.addf %481, %482 : vector<16x128xf32>
    %484 = arith.truncf %483 : vector<16x128xf32> to vector<16x128xbf16>
    %c1_156 = arith.constant 1 : index
    %c0_157 = arith.constant 0 : index
    %c0_158 = arith.constant 0 : index
    %485 = vector.load %arg8[%c1_156, %c0_157, %c0_158] : memref<2x128x384xbf16, #tpu.memory_space<vmem>>, vector<1x128x128xbf16>
    %486 = vector.shape_cast %485 : vector<1x128x128xbf16> to vector<128x128xbf16>
    %cst_159 = arith.constant dense<0.000000e+00> : vector<16x128xf32>
    %487 = tpu.matmul %484, %486, %cst_159 {dimension_numbers = #tpu.dot_dimension_numbers<[1], [0], [0], [1], [0, 0, 1, 1], [], []>} : vector<16x128xbf16>, vector<128x128xbf16>, vector<16x128xf32> -> vector<16x128xf32>
    %c1_160 = arith.constant 1 : index
    %c0_161 = arith.constant 0 : index
    %c0_162 = arith.constant 0 : index
    %488 = vector.load %arg9[%c1_160, %c0_161, %c0_162] : memref<2x1x384xf32, #tpu.memory_space<vmem>>, vector<1x1x128xf32>
    %489 = vector.shape_cast %488 : vector<1x1x128xf32> to vector<1x128xf32>
    %490 = vector.broadcast %489 : vector<1x128xf32> to vector<16x128xf32>
    %491 = arith.addf %487, %490 : vector<16x128xf32>
    %cst_163 = arith.constant 0.176776692 : f32
    %492 = vector.broadcast %cst_163 : f32 to vector<16x128xf32>
    %493 = arith.mulf %491, %492 : vector<16x128xf32>
    %c1_164 = arith.constant 1 : index
    %c0_165 = arith.constant 0 : index
    %c128_166 = arith.constant 128 : index
    %494 = vector.load %arg8[%c1_164, %c0_165, %c128_166] : memref<2x128x384xbf16, #tpu.memory_space<vmem>>, vector<1x128x256xbf16>
    %495 = vector.shape_cast %494 : vector<1x128x256xbf16> to vector<128x256xbf16>
    %cst_167 = arith.constant dense<0.000000e+00> : vector<16x256xf32>
    %496 = tpu.matmul %1, %495, %cst_167 {dimension_numbers = #tpu.dot_dimension_numbers<[1], [0], [0], [1], [0, 0, 1, 1], [], []>} : vector<16x128xbf16>, vector<128x256xbf16>, vector<16x256xf32> -> vector<16x256xf32>
    %c1_168 = arith.constant 1 : index
    %c0_169 = arith.constant 0 : index
    %c128_170 = arith.constant 128 : index
    %497 = vector.load %arg9[%c1_168, %c0_169, %c128_170] : memref<2x1x384xf32, #tpu.memory_space<vmem>>, vector<1x1x256xf32>
    %498 = vector.shape_cast %497 : vector<1x1x256xf32> to vector<1x256xf32>
    %499 = vector.broadcast %498 : vector<1x256xf32> to vector<16x256xf32>
    %500 = arith.addf %496, %499 : vector<16x256xf32>
    %501 = vector.extract_strided_slice %500 {offsets = [0, 0], sizes = [16, 128], strides = [1, 1]} : vector<16x256xf32> to vector<16x128xf32>
    %502 = vector.extract_strided_slice %500 {offsets = [0, 128], sizes = [16, 128], strides = [1, 1]} : vector<16x256xf32> to vector<16x128xf32>
    %c1_171 = arith.constant 1 : index
    %c0_172 = arith.constant 0 : index
    %c0_173 = arith.constant 0 : index
    %503 = vector.load %arg10[%c1_171, %c0_172, %c0_173] : memref<2x128x128xbf16, #tpu.memory_space<vmem>>, vector<1x128x128xbf16>
    %504 = vector.shape_cast %503 : vector<1x128x128xbf16> to vector<128x128xbf16>
    %c1_174 = arith.constant 1 : index
    %c0_175 = arith.constant 0 : index
    %c0_176 = arith.constant 0 : index
    %505 = vector.load %arg11[%c1_174, %c0_175, %c0_176] : memref<2x1x128xf32, #tpu.memory_space<vmem>>, vector<1x1x128xf32>
    %506 = vector.shape_cast %505 : vector<1x1x128xf32> to vector<1x128xf32>
    %507 = arith.truncf %501 : vector<16x128xf32> to vector<16x128xbf16>
    %508 = vector.extract_strided_slice %4 {offsets = [0, 0, 0], sizes = [1, 1, 128], strides = [1, 1, 1]} : vector<4x1x128xf32> to vector<1x1x128xf32>
    %509 = vector.shape_cast %508 : vector<1x1x128xf32> to vector<1x128xf32>
    %510 = vector.broadcast %509 : vector<1x128xf32> to vector<16x128xf32>
    %511 = arith.mulf %493, %510 : vector<16x128xf32>
    %512 = arith.truncf %511 : vector<16x128xf32> to vector<16x128xbf16>
    %cst_177 = arith.constant dense<0.000000e+00> : vector<16x16xf32>
    %513 = tpu.matmul %512, %507, %cst_177 {dimension_numbers = #tpu.dot_dimension_numbers<[1], [1], [0], [0], [0, 0, 1, 0], [], []>} : vector<16x128xbf16>, vector<16x128xbf16>, vector<16x16xf32> -> vector<16x16xf32>
    %514 = arith.addf %513, %3 : vector<16x16xf32>
    %cst_178 = arith.constant dense<0xFF800000> : vector<16xf32>
    %515 = vector.multi_reduction <maximumf>, %514, %cst_178 [1] : vector<16x16xf32> to vector<16xf32>
    %516 = vector.shape_cast %515 : vector<16xf32> to vector<16x1xf32>
    %517 = vector.broadcast %516 : vector<16x1xf32> to vector<16x16xf32>
    %518 = arith.subf %514, %517 : vector<16x16xf32>
    %519 = math.exp %518 : vector<16x16xf32>
    %cst_179 = arith.constant dense<0.000000e+00> : vector<16xf32>
    %520 = vector.multi_reduction <add>, %519, %cst_179 [1] : vector<16x16xf32> to vector<16xf32>
    %521 = vector.shape_cast %520 : vector<16xf32> to vector<16x1xf32>
    %522 = tpu.reciprocal %521 {approx = true} : vector<16x1xf32> -> vector<16x1xf32>
    %523 = vector.broadcast %522 : vector<16x1xf32> to vector<16x16xf32>
    %524 = arith.mulf %519, %523 : vector<16x16xf32>
    %525 = vector.broadcast %509 : vector<1x128xf32> to vector<16x128xf32>
    %526 = arith.mulf %502, %525 : vector<16x128xf32>
    %527 = arith.truncf %526 : vector<16x128xf32> to vector<16x128xbf16>
    %528 = arith.truncf %524 : vector<16x16xf32> to vector<16x16xbf16>
    %cst_180 = arith.constant dense<0.000000e+00> : vector<16x128xf32>
    %529 = tpu.matmul %528, %527, %cst_180 {dimension_numbers = #tpu.dot_dimension_numbers<[1], [0], [0], [1], [0, 0, 1, 1], [], []>} : vector<16x16xbf16>, vector<16x128xbf16>, vector<16x128xf32> -> vector<16x128xf32>
    %530 = vector.extract_strided_slice %4 {offsets = [1, 0, 0], sizes = [1, 1, 128], strides = [1, 1, 1]} : vector<4x1x128xf32> to vector<1x1x128xf32>
    %531 = vector.shape_cast %530 : vector<1x1x128xf32> to vector<1x128xf32>
    %532 = vector.broadcast %531 : vector<1x128xf32> to vector<16x128xf32>
    %533 = arith.mulf %493, %532 : vector<16x128xf32>
    %534 = arith.truncf %533 : vector<16x128xf32> to vector<16x128xbf16>
    %cst_181 = arith.constant dense<0.000000e+00> : vector<16x16xf32>
    %535 = tpu.matmul %534, %507, %cst_181 {dimension_numbers = #tpu.dot_dimension_numbers<[1], [1], [0], [0], [0, 0, 1, 0], [], []>} : vector<16x128xbf16>, vector<16x128xbf16>, vector<16x16xf32> -> vector<16x16xf32>
    %536 = arith.addf %535, %3 : vector<16x16xf32>
    %cst_182 = arith.constant dense<0xFF800000> : vector<16xf32>
    %537 = vector.multi_reduction <maximumf>, %536, %cst_182 [1] : vector<16x16xf32> to vector<16xf32>
    %538 = vector.shape_cast %537 : vector<16xf32> to vector<16x1xf32>
    %539 = vector.broadcast %538 : vector<16x1xf32> to vector<16x16xf32>
    %540 = arith.subf %536, %539 : vector<16x16xf32>
    %541 = math.exp %540 : vector<16x16xf32>
    %cst_183 = arith.constant dense<0.000000e+00> : vector<16xf32>
    %542 = vector.multi_reduction <add>, %541, %cst_183 [1] : vector<16x16xf32> to vector<16xf32>
    %543 = vector.shape_cast %542 : vector<16xf32> to vector<16x1xf32>
    %544 = tpu.reciprocal %543 {approx = true} : vector<16x1xf32> -> vector<16x1xf32>
    %545 = vector.broadcast %544 : vector<16x1xf32> to vector<16x16xf32>
    %546 = arith.mulf %541, %545 : vector<16x16xf32>
    %547 = vector.broadcast %531 : vector<1x128xf32> to vector<16x128xf32>
    %548 = arith.mulf %502, %547 : vector<16x128xf32>
    %549 = arith.truncf %548 : vector<16x128xf32> to vector<16x128xbf16>
    %550 = arith.truncf %546 : vector<16x16xf32> to vector<16x16xbf16>
    %cst_184 = arith.constant dense<0.000000e+00> : vector<16x128xf32>
    %551 = tpu.matmul %550, %549, %cst_184 {dimension_numbers = #tpu.dot_dimension_numbers<[1], [0], [0], [1], [0, 0, 1, 1], [], []>} : vector<16x16xbf16>, vector<16x128xbf16>, vector<16x128xf32> -> vector<16x128xf32>
    %552 = arith.addf %529, %551 : vector<16x128xf32>
    %553 = vector.extract_strided_slice %4 {offsets = [2, 0, 0], sizes = [1, 1, 128], strides = [1, 1, 1]} : vector<4x1x128xf32> to vector<1x1x128xf32>
    %554 = vector.shape_cast %553 : vector<1x1x128xf32> to vector<1x128xf32>
    %555 = vector.broadcast %554 : vector<1x128xf32> to vector<16x128xf32>
    %556 = arith.mulf %493, %555 : vector<16x128xf32>
    %557 = arith.truncf %556 : vector<16x128xf32> to vector<16x128xbf16>
    %cst_185 = arith.constant dense<0.000000e+00> : vector<16x16xf32>
    %558 = tpu.matmul %557, %507, %cst_185 {dimension_numbers = #tpu.dot_dimension_numbers<[1], [1], [0], [0], [0, 0, 1, 0], [], []>} : vector<16x128xbf16>, vector<16x128xbf16>, vector<16x16xf32> -> vector<16x16xf32>
    %559 = arith.addf %558, %3 : vector<16x16xf32>
    %cst_186 = arith.constant dense<0xFF800000> : vector<16xf32>
    %560 = vector.multi_reduction <maximumf>, %559, %cst_186 [1] : vector<16x16xf32> to vector<16xf32>
    %561 = vector.shape_cast %560 : vector<16xf32> to vector<16x1xf32>
    %562 = vector.broadcast %561 : vector<16x1xf32> to vector<16x16xf32>
    %563 = arith.subf %559, %562 : vector<16x16xf32>
    %564 = math.exp %563 : vector<16x16xf32>
    %cst_187 = arith.constant dense<0.000000e+00> : vector<16xf32>
    %565 = vector.multi_reduction <add>, %564, %cst_187 [1] : vector<16x16xf32> to vector<16xf32>
    %566 = vector.shape_cast %565 : vector<16xf32> to vector<16x1xf32>
    %567 = tpu.reciprocal %566 {approx = true} : vector<16x1xf32> -> vector<16x1xf32>
    %568 = vector.broadcast %567 : vector<16x1xf32> to vector<16x16xf32>
    %569 = arith.mulf %564, %568 : vector<16x16xf32>
    %570 = vector.broadcast %554 : vector<1x128xf32> to vector<16x128xf32>
    %571 = arith.mulf %502, %570 : vector<16x128xf32>
    %572 = arith.truncf %571 : vector<16x128xf32> to vector<16x128xbf16>
    %573 = arith.truncf %569 : vector<16x16xf32> to vector<16x16xbf16>
    %cst_188 = arith.constant dense<0.000000e+00> : vector<16x128xf32>
    %574 = tpu.matmul %573, %572, %cst_188 {dimension_numbers = #tpu.dot_dimension_numbers<[1], [0], [0], [1], [0, 0, 1, 1], [], []>} : vector<16x16xbf16>, vector<16x128xbf16>, vector<16x128xf32> -> vector<16x128xf32>
    %575 = arith.addf %552, %574 : vector<16x128xf32>
    %576 = vector.extract_strided_slice %4 {offsets = [3, 0, 0], sizes = [1, 1, 128], strides = [1, 1, 1]} : vector<4x1x128xf32> to vector<1x1x128xf32>
    %577 = vector.shape_cast %576 : vector<1x1x128xf32> to vector<1x128xf32>
    %578 = vector.broadcast %577 : vector<1x128xf32> to vector<16x128xf32>
    %579 = arith.mulf %493, %578 : vector<16x128xf32>
    %580 = arith.truncf %579 : vector<16x128xf32> to vector<16x128xbf16>
    %cst_189 = arith.constant dense<0.000000e+00> : vector<16x16xf32>
    %581 = tpu.matmul %580, %507, %cst_189 {dimension_numbers = #tpu.dot_dimension_numbers<[1], [1], [0], [0], [0, 0, 1, 0], [], []>} : vector<16x128xbf16>, vector<16x128xbf16>, vector<16x16xf32> -> vector<16x16xf32>
    %582 = arith.addf %581, %3 : vector<16x16xf32>
    %cst_190 = arith.constant dense<0xFF800000> : vector<16xf32>
    %583 = vector.multi_reduction <maximumf>, %582, %cst_190 [1] : vector<16x16xf32> to vector<16xf32>
    %584 = vector.shape_cast %583 : vector<16xf32> to vector<16x1xf32>
    %585 = vector.broadcast %584 : vector<16x1xf32> to vector<16x16xf32>
    %586 = arith.subf %582, %585 : vector<16x16xf32>
    %587 = math.exp %586 : vector<16x16xf32>
    %cst_191 = arith.constant dense<0.000000e+00> : vector<16xf32>
    %588 = vector.multi_reduction <add>, %587, %cst_191 [1] : vector<16x16xf32> to vector<16xf32>
    %589 = vector.shape_cast %588 : vector<16xf32> to vector<16x1xf32>
    %590 = tpu.reciprocal %589 {approx = true} : vector<16x1xf32> -> vector<16x1xf32>
    %591 = vector.broadcast %590 : vector<16x1xf32> to vector<16x16xf32>
    %592 = arith.mulf %587, %591 : vector<16x16xf32>
    %593 = vector.broadcast %577 : vector<1x128xf32> to vector<16x128xf32>
    %594 = arith.mulf %502, %593 : vector<16x128xf32>
    %595 = arith.truncf %594 : vector<16x128xf32> to vector<16x128xbf16>
    %596 = arith.truncf %592 : vector<16x16xf32> to vector<16x16xbf16>
    %cst_192 = arith.constant dense<0.000000e+00> : vector<16x128xf32>
    %597 = tpu.matmul %596, %595, %cst_192 {dimension_numbers = #tpu.dot_dimension_numbers<[1], [0], [0], [1], [0, 0, 1, 1], [], []>} : vector<16x16xbf16>, vector<16x128xbf16>, vector<16x128xf32> -> vector<16x128xf32>
    %598 = arith.addf %575, %597 : vector<16x128xf32>
    %599 = arith.truncf %598 : vector<16x128xf32> to vector<16x128xbf16>
    %cst_193 = arith.constant dense<0.000000e+00> : vector<16x128xf32>
    %600 = tpu.matmul %599, %504, %cst_193 {dimension_numbers = #tpu.dot_dimension_numbers<[1], [0], [0], [1], [0, 0, 1, 1], [], []>} : vector<16x128xbf16>, vector<128x128xbf16>, vector<16x128xf32> -> vector<16x128xf32>
    %601 = vector.broadcast %506 : vector<1x128xf32> to vector<16x128xf32>
    %602 = arith.addf %600, %601 : vector<16x128xf32>
    %603 = arith.addf %483, %602 : vector<16x128xf32>
    %604 = vector.extract_strided_slice %341 {offsets = [1, 0, 0], sizes = [1, 1, 128], strides = [1, 1, 1]} : vector<3x1x128xf32> to vector<1x1x128xf32>
    %605 = vector.shape_cast %604 : vector<1x1x128xf32> to vector<1x128xf32>
    %606 = vector.extract_strided_slice %343 {offsets = [1, 0, 0], sizes = [1, 1, 128], strides = [1, 1, 1]} : vector<3x1x128xf32> to vector<1x1x128xf32>
    %607 = vector.shape_cast %606 : vector<1x1x128xf32> to vector<1x128xf32>
    %cst_194 = arith.constant dense<0.000000e+00> : vector<16xf32>
    %608 = vector.multi_reduction <add>, %603, %cst_194 [1] : vector<16x128xf32> to vector<16xf32>
    %609 = vector.shape_cast %608 : vector<16xf32> to vector<16x1xf32>
    %cst_195 = arith.constant 1.280000e+02 : f32
    %610 = vector.broadcast %cst_195 : f32 to vector<16x1xf32>
    %611 = arith.divf %609, %610 : vector<16x1xf32>
    %612 = vector.broadcast %611 : vector<16x1xf32> to vector<16x128xf32>
    %613 = arith.subf %603, %612 : vector<16x128xf32>
    %614 = arith.mulf %613, %613 : vector<16x128xf32>
    %cst_196 = arith.constant dense<0.000000e+00> : vector<16xf32>
    %615 = vector.multi_reduction <add>, %614, %cst_196 [1] : vector<16x128xf32> to vector<16xf32>
    %616 = vector.shape_cast %615 : vector<16xf32> to vector<16x1xf32>
    %cst_197 = arith.constant 1.280000e+02 : f32
    %617 = vector.broadcast %cst_197 : f32 to vector<16x1xf32>
    %618 = arith.divf %616, %617 : vector<16x1xf32>
    %619 = vector.broadcast %611 : vector<16x1xf32> to vector<16x128xf32>
    %620 = arith.subf %603, %619 : vector<16x128xf32>
    %cst_198 = arith.constant 9.99999974E-6 : f32
    %621 = vector.broadcast %cst_198 : f32 to vector<16x1xf32>
    %622 = arith.addf %618, %621 : vector<16x1xf32>
    %623 = math.rsqrt %622 : vector<16x1xf32>
    %624 = vector.broadcast %623 : vector<16x1xf32> to vector<16x128xf32>
    %625 = arith.mulf %620, %624 : vector<16x128xf32>
    %626 = vector.broadcast %605 : vector<1x128xf32> to vector<16x128xf32>
    %627 = arith.mulf %625, %626 : vector<16x128xf32>
    %628 = vector.broadcast %607 : vector<1x128xf32> to vector<16x128xf32>
    %629 = arith.addf %627, %628 : vector<16x128xf32>
    %630 = arith.truncf %629 : vector<16x128xf32> to vector<16x128xbf16>
    %c1_199 = arith.constant 1 : index
    %c0_200 = arith.constant 0 : index
    %c0_201 = arith.constant 0 : index
    %631 = vector.load %arg12[%c1_199, %c0_200, %c0_201] : memref<2x128x2048xbf16, #tpu.memory_space<vmem>>, vector<1x128x2048xbf16>
    %632 = vector.shape_cast %631 : vector<1x128x2048xbf16> to vector<128x2048xbf16>
    %cst_202 = arith.constant dense<0.000000e+00> : vector<16x2048xf32>
    %633 = tpu.matmul %630, %632, %cst_202 {dimension_numbers = #tpu.dot_dimension_numbers<[1], [0], [0], [1], [0, 0, 1, 1], [], []>} : vector<16x128xbf16>, vector<128x2048xbf16>, vector<16x2048xf32> -> vector<16x2048xf32>
    %c1_203 = arith.constant 1 : index
    %c0_204 = arith.constant 0 : index
    %c0_205 = arith.constant 0 : index
    %634 = vector.load %arg13[%c1_203, %c0_204, %c0_205] : memref<2x1x2048xf32, #tpu.memory_space<vmem>>, vector<1x1x2048xf32>
    %635 = vector.shape_cast %634 : vector<1x1x2048xf32> to vector<1x2048xf32>
    %636 = vector.broadcast %635 : vector<1x2048xf32> to vector<16x2048xf32>
    %637 = arith.addf %633, %636 : vector<16x2048xf32>
    %cst_206 = arith.constant 0.000000e+00 : f32
    %638 = vector.broadcast %cst_206 : f32 to vector<16x2048xf32>
    %639 = arith.maximumf %637, %638 : vector<16x2048xf32>
    %640 = arith.truncf %639 : vector<16x2048xf32> to vector<16x2048xbf16>
    %c1_207 = arith.constant 1 : index
    %c0_208 = arith.constant 0 : index
    %c0_209 = arith.constant 0 : index
    %641 = vector.load %arg14[%c1_207, %c0_208, %c0_209] : memref<2x2048x128xbf16, #tpu.memory_space<vmem>>, vector<1x2048x128xbf16>
    %642 = vector.shape_cast %641 : vector<1x2048x128xbf16> to vector<2048x128xbf16>
    %cst_210 = arith.constant dense<0.000000e+00> : vector<16x128xf32>
    %643 = tpu.matmul %640, %642, %cst_210 {dimension_numbers = #tpu.dot_dimension_numbers<[1], [0], [0], [1], [0, 0, 1, 1], [], []>} : vector<16x2048xbf16>, vector<2048x128xbf16>, vector<16x128xf32> -> vector<16x128xf32>
    %c1_211 = arith.constant 1 : index
    %c0_212 = arith.constant 0 : index
    %c0_213 = arith.constant 0 : index
    %644 = vector.load %arg15[%c1_211, %c0_212, %c0_213] : memref<2x1x128xf32, #tpu.memory_space<vmem>>, vector<1x1x128xf32>
    %645 = vector.shape_cast %644 : vector<1x1x128xf32> to vector<1x128xf32>
    %646 = vector.broadcast %645 : vector<1x128xf32> to vector<16x128xf32>
    %647 = arith.addf %643, %646 : vector<16x128xf32>
    %648 = arith.addf %629, %647 : vector<16x128xf32>
    %649 = vector.extract_strided_slice %341 {offsets = [2, 0, 0], sizes = [1, 1, 128], strides = [1, 1, 1]} : vector<3x1x128xf32> to vector<1x1x128xf32>
    %650 = vector.shape_cast %649 : vector<1x1x128xf32> to vector<1x128xf32>
    %651 = vector.extract_strided_slice %343 {offsets = [2, 0, 0], sizes = [1, 1, 128], strides = [1, 1, 1]} : vector<3x1x128xf32> to vector<1x1x128xf32>
    %652 = vector.shape_cast %651 : vector<1x1x128xf32> to vector<1x128xf32>
    %cst_214 = arith.constant dense<0.000000e+00> : vector<16xf32>
    %653 = vector.multi_reduction <add>, %648, %cst_214 [1] : vector<16x128xf32> to vector<16xf32>
    %654 = vector.shape_cast %653 : vector<16xf32> to vector<16x1xf32>
    %cst_215 = arith.constant 1.280000e+02 : f32
    %655 = vector.broadcast %cst_215 : f32 to vector<16x1xf32>
    %656 = arith.divf %654, %655 : vector<16x1xf32>
    %657 = vector.broadcast %656 : vector<16x1xf32> to vector<16x128xf32>
    %658 = arith.subf %648, %657 : vector<16x128xf32>
    %659 = arith.mulf %658, %658 : vector<16x128xf32>
    %cst_216 = arith.constant dense<0.000000e+00> : vector<16xf32>
    %660 = vector.multi_reduction <add>, %659, %cst_216 [1] : vector<16x128xf32> to vector<16xf32>
    %661 = vector.shape_cast %660 : vector<16xf32> to vector<16x1xf32>
    %cst_217 = arith.constant 1.280000e+02 : f32
    %662 = vector.broadcast %cst_217 : f32 to vector<16x1xf32>
    %663 = arith.divf %661, %662 : vector<16x1xf32>
    %664 = vector.broadcast %656 : vector<16x1xf32> to vector<16x128xf32>
    %665 = arith.subf %648, %664 : vector<16x128xf32>
    %cst_218 = arith.constant 9.99999974E-6 : f32
    %666 = vector.broadcast %cst_218 : f32 to vector<16x1xf32>
    %667 = arith.addf %663, %666 : vector<16x1xf32>
    %668 = math.rsqrt %667 : vector<16x1xf32>
    %669 = vector.broadcast %668 : vector<16x1xf32> to vector<16x128xf32>
    %670 = arith.mulf %665, %669 : vector<16x128xf32>
    %671 = vector.broadcast %650 : vector<1x128xf32> to vector<16x128xf32>
    %672 = arith.mulf %670, %671 : vector<16x128xf32>
    %673 = vector.broadcast %652 : vector<1x128xf32> to vector<16x128xf32>
    %674 = arith.addf %672, %673 : vector<16x128xf32>
    %c0_219 = arith.constant 0 : index
    %c0_220 = arith.constant 0 : index
    %675 = vector.load %arg18[%c0_219, %c0_220] : memref<1x128xf32, #tpu.memory_space<vmem>>, vector<1x128xf32>
    %c0_221 = arith.constant 0 : index
    %c0_222 = arith.constant 0 : index
    %676 = vector.load %arg19[%c0_221, %c0_222] : memref<1x128xf32, #tpu.memory_space<vmem>>, vector<1x128xf32>
    %cst_223 = arith.constant dense<0.000000e+00> : vector<16xf32>
    %677 = vector.multi_reduction <add>, %674, %cst_223 [1] : vector<16x128xf32> to vector<16xf32>
    %678 = vector.shape_cast %677 : vector<16xf32> to vector<16x1xf32>
    %cst_224 = arith.constant 1.280000e+02 : f32
    %679 = vector.broadcast %cst_224 : f32 to vector<16x1xf32>
    %680 = arith.divf %678, %679 : vector<16x1xf32>
    %681 = vector.broadcast %680 : vector<16x1xf32> to vector<16x128xf32>
    %682 = arith.subf %674, %681 : vector<16x128xf32>
    %683 = arith.mulf %682, %682 : vector<16x128xf32>
    %cst_225 = arith.constant dense<0.000000e+00> : vector<16xf32>
    %684 = vector.multi_reduction <add>, %683, %cst_225 [1] : vector<16x128xf32> to vector<16xf32>
    %685 = vector.shape_cast %684 : vector<16xf32> to vector<16x1xf32>
    %cst_226 = arith.constant 1.280000e+02 : f32
    %686 = vector.broadcast %cst_226 : f32 to vector<16x1xf32>
    %687 = arith.divf %685, %686 : vector<16x1xf32>
    %688 = vector.broadcast %680 : vector<16x1xf32> to vector<16x128xf32>
    %689 = arith.subf %674, %688 : vector<16x128xf32>
    %cst_227 = arith.constant 9.99999974E-6 : f32
    %690 = vector.broadcast %cst_227 : f32 to vector<16x1xf32>
    %691 = arith.addf %687, %690 : vector<16x1xf32>
    %692 = math.rsqrt %691 : vector<16x1xf32>
    %693 = vector.broadcast %692 : vector<16x1xf32> to vector<16x128xf32>
    %694 = arith.mulf %689, %693 : vector<16x128xf32>
    %695 = vector.broadcast %675 : vector<1x128xf32> to vector<16x128xf32>
    %696 = arith.mulf %694, %695 : vector<16x128xf32>
    %697 = vector.broadcast %676 : vector<1x128xf32> to vector<16x128xf32>
    %698 = arith.addf %696, %697 : vector<16x128xf32>
    %699 = arith.truncf %698 : vector<16x128xf32> to vector<16x128xbf16>
    %c0_228 = arith.constant 0 : index
    %c0_229 = arith.constant 0 : index
    %700 = vector.load %arg20[%c0_228, %c0_229] : memref<128x128xbf16, #tpu.memory_space<vmem>>, vector<128x128xbf16>
    %cst_230 = arith.constant dense<0.000000e+00> : vector<16x128xf32>
    %701 = tpu.matmul %699, %700, %cst_230 {dimension_numbers = #tpu.dot_dimension_numbers<[1], [0], [0], [1], [0, 0, 1, 1], [], []>} : vector<16x128xbf16>, vector<128x128xbf16>, vector<16x128xf32> -> vector<16x128xf32>
    %c0_231 = arith.constant 0 : index
    %c0_232 = arith.constant 0 : index
    %702 = vector.load %arg21[%c0_231, %c0_232] : memref<1x128xf32, #tpu.memory_space<vmem>>, vector<1x128xf32>
    %703 = vector.broadcast %702 : vector<1x128xf32> to vector<16x128xf32>
    %704 = arith.addf %701, %703 : vector<16x128xf32>
    %c0_233 = arith.constant 0 : index
    %c0_234 = arith.constant 0 : index
    %705 = vector.load %arg22[%c0_233, %c0_234] : memref<16x128xf32, #tpu.memory_space<vmem>>, vector<16x128xf32>
    tpu.vector_store %arg22[%c0_233, %c0_234], %704 {strides = array<i32>} : memref<16x128xf32, #tpu.memory_space<vmem>>, vector<16x128xf32>,
    return
  }
}

</mosaic_0001>

<llo_original>
// kernel: char_gpt_forward.1
$region0: #{char_gpt_forward.1}
  #allocation0 [shape = 'u32[]', space=smem, size = 0x4, offset = 0x4, fixed_abs, tag = 'smem constant byte address 0x4 - core index']
  #allocation1 [shape = 'u32[144,128]{1,0:T(1,128)}', space=vmem, size = 0x12000, scoped, tag = 'internal scratch']
  %s0 = inlined_call_operand.vmem [shape: f32[16,128], index: 0, kind: input, shape index: {}]
  %s1 = inlined_call_operand.vmem [shape: f32[16,16], index: 1, kind: input, shape index: {}]
  %s2 = inlined_call_operand.vmem [shape: f32[16,16], index: 2, kind: input, shape index: {}]
  %s3 = inlined_call_operand.vmem [shape: f32[4,1,128], index: 3, kind: input, shape index: {}]
  %s4 = inlined_call_operand.vmem [shape: bf16[2,128,384], index: 4, kind: input, shape index: {}]
  %s5 = inlined_call_operand.hbm [shape: f32[2,1,384], index: 5, kind: input, shape index: {}]
  %s6 = inlined_call_operand.vmem [shape: bf16[2,128,128], index: 6, kind: input, shape index: {}]
  %s7 = inlined_call_operand.vmem [shape: f32[2,1,128], index: 7, kind: input, shape index: {}]
  %s8 = inlined_call_operand.hbm [shape: bf16[2,128,384], index: 8, kind: input, shape index: {}]
  %s9 = inlined_call_operand.hbm [shape: f32[2,1,384], index: 9, kind: input, shape index: {}]
  %s10 = inlined_call_operand.hbm [shape: bf16[2,128,128], index: 10, kind: input, shape index: {}]
  %s11 = inlined_call_operand.hbm [shape: f32[2,1,128], index: 11, kind: input, shape index: {}]
  %s12 = inlined_call_operand.hbm [shape: bf16[2,128,2048], index: 12, kind: input, shape index: {}]
  %s13 = inlined_call_operand.vmem [shape: f32[2,1,2048], index: 13, kind: input, shape index: {}]
  %s14 = inlined_call_operand.hbm [shape: bf16[2,2048,128], index: 14, kind: input, shape index: {}]
  %s15 = inlined_call_operand.hbm [shape: f32[2,1,128], index: 15, kind: input, shape index: {}]
  %s16 = inlined_call_operand.hbm [shape: f32[2,3,1,128], index: 16, kind: input, shape index: {}]
  %s17 = inlined_call_operand.hbm [shape: f32[2,3,1,128], index: 17, kind: input, shape index: {}]
  %s18 = inlined_call_operand.vmem [shape: f32[1,128], index: 18, kind: input, shape index: {}]
  %s19 = inlined_call_operand.hbm [shape: f32[1,128], index: 19, kind: input, shape index: {}]
  %s20 = inlined_call_operand.vmem [shape: bf16[128,128], index: 20, kind: input, shape index: {}]
  %s21 = inlined_call_operand.vmem [shape: f32[1,128], index: 21, kind: input, shape index: {}]
  %s22 = inlined_call_operand.vmem [shape: f32[16,128], index: 22, kind: output, shape index: {}]
  %s23 = sld [smem:[#allocation0]]
  $region142: #{char_gpt_forward.1} parent=0
    _
  %s25 = ssub.s32 1, %s23
  %s26 = scalar_select 0, %s25, %s23
  $region1: #{char_gpt_forward.1} parent=0
    #allocation2 [shape = 'u8[3072]{0}', space=vmem, size = 0xc00, scoped, tag = 'input window, operand 5, single buffered']
    #allocation3 [shape = 's32[1]{0}', space=sflag, size = 0x4, scoped, tag = 'scoped memory for char_gpt_forward.1']
    #allocation4 [shape = 'u8[196608]{0}', space=vmem, size = 0x30000, scoped, tag = 'input window, operand 8, single buffered']
    #allocation5 [shape = 's32[1]{0}', space=sflag, size = 0x4, scoped, tag = 'scoped memory for char_gpt_forward.1']
    #allocation6 [shape = 'u8[3072]{0}', space=vmem, size = 0xc00, scoped, tag = 'input window, operand 9, single buffered']
    #allocation7 [shape = 'u8[65536]{0}', space=vmem, size = 0x10000, scoped, tag = 'input window, operand 10, single buffered']
    #allocation8 [shape = 's32[1]{0}', space=sflag, size = 0x4, scoped, tag = 'scoped memory for char_gpt_forward.1']
    #allocation9 [shape = 'u8[1024]{0}', space=vmem, size = 0x400, scoped, tag = 'input window, operand 11, single buffered']
    #allocation10 [shape = 'u8[1048576]{0}', space=vmem, size = 0x100000, scoped, tag = 'input window, operand 12, single buffered']
    #allocation11 [shape = 's32[1]{0}', space=sflag, size = 0x4, scoped, tag = 'scoped memory for char_gpt_forward.1']
    #allocation12 [shape = 'u8[1048576]{0}', space=vmem, size = 0x100000, scoped, tag = 'input window, operand 14, single buffered']
    #allocation13 [shape = 'u8[1024]{0}', space=vmem, size = 0x400, scoped, tag = 'input window, operand 15, single buffered']
    #allocation14 [shape = 's32[1]{0}', space=sflag, size = 0x4, scoped, tag = 'scoped memory for char_gpt_forward.1']
    #allocation15 [shape = 'u8[3072]{0}', space=vmem, size = 0xc00, scoped, tag = 'input window, operand 16, single buffered']
    #allocation16 [shape = 'u8[3072]{0}', space=vmem, size = 0xc00, scoped, tag = 'input window, operand 17, single buffered']
    #allocation17 [shape = 's32[1]{0}', space=sflag, size = 0x4, scoped, tag = 'scoped memory for char_gpt_forward.1']
    #allocation18 [shape = 'u8[512]{0}', space=vmem, size = 0x400, scoped, tag = 'input window, operand 19, single buffered']
    %27 = vsyncpa [#allocation3], 0
    %28 = vsyncpa [#allocation5], 0
    %29 = vsyncpa [#allocation8], 0
    %30 = vsyncpa [#allocation11], 0
    %31 = vsyncpa [#allocation14], 0
    %32 = vsyncpa [#allocation17], 0
    // Predicated region
    $region2: #{char_gpt_forward.1} parent=1 // pred_check
      _
    $region3: #{char_gpt_forward.1} parent=1 // pred_check_branch
      %34 = sbr.rel (0) target = $region5
    $region4: #{char_gpt_forward.1} parent=1 // pred_region
      _
    $region5: #{char_gpt_forward.1} parent=1 // pred_fallthru
      _
    // Predicated region
    $region6: #{char_gpt_forward.1} parent=1 // pred_check
      _
    $region7: #{char_gpt_forward.1} parent=1 // pred_check_branch
      %36 = sbr.rel (0) target = $region9
    $region8: #{char_gpt_forward.1} parent=1 // pred_region
      _
    $region9: #{char_gpt_forward.1} parent=1 // pred_fallthru
      _
    // Predicated region
    $region10: #{char_gpt_forward.1} parent=1 // pred_check
      _
    $region11: #{char_gpt_forward.1} parent=1 // pred_check_branch
      %38 = sbr.rel (0) target = $region13
    $region12: #{char_gpt_forward.1} parent=1 // pred_region
      _
    $region13: #{char_gpt_forward.1} parent=1 // pred_fallthru
      _
    // Predicated region
    $region14: #{char_gpt_forward.1} parent=1 // pred_check
      _
    $region15: #{char_gpt_forward.1} parent=1 // pred_check_branch
      %40 = sbr.rel (0) target = $region17
    $region16: #{char_gpt_forward.1} parent=1 // pred_region
      _
    $region17: #{char_gpt_forward.1} parent=1 // pred_fallthru
      _
    // Predicated region
    $region18: #{char_gpt_forward.1} parent=1 // pred_check
      _
    $region19: #{char_gpt_forward.1} parent=1 // pred_check_branch
      %42 = sbr.rel (0) target = $region21
    $region20: #{char_gpt_forward.1} parent=1 // pred_region
      _
    $region21: #{char_gpt_forward.1} parent=1 // pred_fallthru
      _
    // Predicated region
    $region22: #{char_gpt_forward.1} parent=1 // pred_check
      _
    $region23: #{char_gpt_forward.1} parent=1 // pred_check_branch
      %44 = sbr.rel (0) target = $region25
    $region24: #{char_gpt_forward.1} parent=1 // pred_region
      %s46 = ssub.s32 96, 96
      %47 = vsyncadd [#allocation3], %s46
      %s48 = sshll.u32 [#allocation2], 4
      %s49 = int_to_ptr.vmem [resolvable:$true] %s48
      %54 = dma.hbm_to_vmem [thread:$0]  %s5, 96, %s49, [#allocation3], 48, 48, 3
    $region25: #{char_gpt_forward.1} parent=1 // pred_fallthru
      _
    // Predicated region
    $region26: #{char_gpt_forward.1} parent=1 // pred_check
      _
    $region27: #{char_gpt_forward.1} parent=1 // pred_check_branch
      %56 = sbr.rel (0) target = $region29
    $region28: #{char_gpt_forward.1} parent=1 // pred_region
      _
    $region29: #{char_gpt_forward.1} parent=1 // pred_fallthru
      _
    // Predicated region
    $region30: #{char_gpt_forward.1} parent=1 // pred_check
      _
    $region31: #{char_gpt_forward.1} parent=1 // pred_check_branch
      %58 = sbr.rel (0) target = $region33
    $region32: #{char_gpt_forward.1} parent=1 // pred_region
      _
    $region33: #{char_gpt_forward.1} parent=1 // pred_fallthru
      _
    // Predicated region
    $region34: #{char_gpt_forward.1} parent=1 // pred_check
      _
    $region35: #{char_gpt_forward.1} parent=1 // pred_check_branch
      %60 = sbr.rel (0) target = $region37
    $region36: #{char_gpt_forward.1} parent=1 // pred_region
      %s62 = ssub.s32 6144, 6144
      %63 = vsyncadd [#allocation5], %s62
      %s64 = sshll.u32 [#allocation4], 4
      %s65 = int_to_ptr.vmem [resolvable:$true] %s64
      %70 = dma.hbm_to_vmem [thread:$0]  %s8, 6144, %s65, [#allocation5], 192, 192, 12
    $region37: #{char_gpt_forward.1} parent=1 // pred_fallthru
      _
    // Predicated region
    $region38: #{char_gpt_forward.1} parent=1 // pred_check
      _
    $region39: #{char_gpt_forward.1} parent=1 // pred_check_branch
      %72 = sbr.rel (0) target = $region41
    $region40: #{char_gpt_forward.1} parent=1 // pred_region
      %s74 = ssub.s32 96, 96
      %75 = vsyncadd [#allocation5], %s74
      %s76 = sshll.u32 [#allocation6], 4
      %s77 = int_to_ptr.vmem [resolvable:$true] %s76
      %82 = dma.hbm_to_vmem [thread:$0]  %s9, 96, %s77, [#allocation5], 48, 48, 3
    $region41: #{char_gpt_forward.1} parent=1 // pred_fallthru
      _
    // Predicated region
    $region42: #{char_gpt_forward.1} parent=1 // pred_check
      _
    $region43: #{char_gpt_forward.1} parent=1 // pred_check_branch
      %84 = sbr.rel (0) target = $region45
    $region44: #{char_gpt_forward.1} parent=1 // pred_region
      %s86 = ssub.s32 2048, 2048
      %87 = vsyncadd [#allocation8], %s86
      %s88 = sshll.u32 [#allocation7], 4
      %s89 = int_to_ptr.vmem [resolvable:$true] %s88
      %94 = dma.hbm_to_vmem [thread:$0]  %s10, 2048, %s89, [#allocation8], 64, 64, 4
    $region45: #{char_gpt_forward.1} parent=1 // pred_fallthru
      _
    // Predicated region
    $region46: #{char_gpt_forward.1} parent=1 // pred_check
      _
    $region47: #{char_gpt_forward.1} parent=1 // pred_check_branch
      %96 = sbr.rel (0) target = $region49
    $region48: #{char_gpt_forward.1} parent=1 // pred_region
      %s98 = ssub.s32 32, 32
      %99 = vsyncadd [#allocation8], %s98
      %s100 = sshll.u32 [#allocation9], 4
      %s101 = int_to_ptr.vmem [resolvable:$true] %s100
      %106 = dma.hbm_to_vmem [thread:$0]  %s11, 32, %s101, [#allocation8], 16, 16, 1
    $region49: #{char_gpt_forward.1} parent=1 // pred_fallthru
      _
    // Predicated region
    $region50: #{char_gpt_forward.1} parent=1 // pred_check
      _
    $region51: #{char_gpt_forward.1} parent=1 // pred_check_branch
      %108 = sbr.rel (0) target = $region53
    $region52: #{char_gpt_forward.1} parent=1 // pred_region
      %s110 = ssub.s32 32768, 32768
      %111 = vsyncadd [#allocation11], %s110
      %s112 = sshll.u32 [#allocation10], 4
      %s113 = int_to_ptr.vmem [resolvable:$true] %s112
      %118 = dma.hbm_to_vmem [thread:$0]  %s12, 32768, %s113, [#allocation11], 1024, 1024, 64
    $region53: #{char_gpt_forward.1} parent=1 // pred_fallthru
      _
    // Predicated region
    $region54: #{char_gpt_forward.1} parent=1 // pred_check
      _
    $region55: #{char_gpt_forward.1} parent=1 // pred_check_branch
      %120 = sbr.rel (0) target = $region57
    $region56: #{char_gpt_forward.1} parent=1 // pred_region
      _
    $region57: #{char_gpt_forward.1} parent=1 // pred_fallthru
      _
    // Predicated region
    $region58: #{char_gpt_forward.1} parent=1 // pred_check
      _
    $region59: #{char_gpt_forward.1} parent=1 // pred_check_branch
      %122 = sbr.rel (0) target = $region61
    $region60: #{char_gpt_forward.1} parent=1 // pred_region
      %s124 = ssub.s32 32768, 32768
      %125 = vsyncadd [#allocation11], %s124
      %s126 = sshll.u32 [#allocation12], 4
      %s127 = int_to_ptr.vmem [resolvable:$true] %s126
      %132 = dma.hbm_to_vmem [thread:$0]  %s14, 32768, %s127, [#allocation11], 64, 64, 4
    $region61: #{char_gpt_forward.1} parent=1 // pred_fallthru
      _
    // Predicated region
    $region62: #{char_gpt_forward.1} parent=1 // pred_check
      _
    $region63: #{char_gpt_forward.1} parent=1 // pred_check_branch
      %134 = sbr.rel (0) target = $region65
    $region64: #{char_gpt_forward.1} parent=1 // pred_region
      %s136 = ssub.s32 32, 32
      %137 = vsyncadd [#allocation14], %s136
      %s138 = sshll.u32 [#allocation13], 4
      %s139 = int_to_ptr.vmem [resolvable:$true] %s138
      %144 = dma.hbm_to_vmem [thread:$0]  %s15, 32, %s139, [#allocation14], 16, 16, 1
    $region65: #{char_gpt_forward.1} parent=1 // pred_fallthru
      _
    // Predicated region
    $region66: #{char_gpt_forward.1} parent=1 // pred_check
      _
    $region67: #{char_gpt_forward.1} parent=1 // pred_check_branch
      %146 = sbr.rel (0) target = $region69
    $region68: #{char_gpt_forward.1} parent=1 // pred_region
      %s148 = ssub.s32 96, 96
      %149 = vsyncadd [#allocation14], %s148
      %s150 = sshll.u32 [#allocation15], 4
      %s151 = int_to_ptr.vmem [resolvable:$true] %s150
      %156 = dma.hbm_to_vmem [thread:$0]  %s16, 96, %s151, [#allocation14], 16, 16, 1
    $region69: #{char_gpt_forward.1} parent=1 // pred_fallthru
      _
    // Predicated region
    $region70: #{char_gpt_forward.1} parent=1 // pred_check
      _
    $region71: #{char_gpt_forward.1} parent=1 // pred_check_branch
      %158 = sbr.rel (0) target = $region73
    $region72: #{char_gpt_forward.1} parent=1 // pred_region
      %s160 = ssub.s32 96, 96
      %161 = vsyncadd [#allocation17], %s160
      %s162 = sshll.u32 [#allocation16], 4
      %s163 = int_to_ptr.vmem [resolvable:$true] %s162
      %168 = dma.hbm_to_vmem [thread:$0]  %s17, 96, %s163, [#allocation17], 16, 16, 1
    $region73: #{char_gpt_forward.1} parent=1 // pred_fallthru
      _
    // Predicated region
    $region74: #{char_gpt_forward.1} parent=1 // pred_check
      _
    $region75: #{char_gpt_forward.1} parent=1 // pred_check_branch
      %170 = sbr.rel (0) target = $region77
    $region76: #{char_gpt_forward.1} parent=1 // pred_region
      _
    $region77: #{char_gpt_forward.1} parent=1 // pred_fallthru
      _
    // Predicated region
    $region78: #{char_gpt_forward.1} parent=1 // pred_check
      _
    $region79: #{char_gpt_forward.1} parent=1 // pred_check_branch
      %172 = sbr.rel (0) target = $region81
    $region80: #{char_gpt_forward.1} parent=1 // pred_region
      %s174 = ssub.s32 16, 16
      %175 = vsyncadd [#allocation17], %s174
      %s177 = sshll.u32 [#allocation18], 4
      %s178 = int_to_ptr.vmem [resolvable:$true] %s177
      %180 = dma.hbm_to_vmem [thread:$0]  %s19, 16, %s178, [#allocation17]
    $region81: #{char_gpt_forward.1} parent=1 // pred_fallthru
      _
    // Predicated region
    $region82: #{char_gpt_forward.1} parent=1 // pred_check
      _
    $region83: #{char_gpt_forward.1} parent=1 // pred_check_branch
      %182 = sbr.rel (0) target = $region85
    $region84: #{char_gpt_forward.1} parent=1 // pred_region
      _
    $region85: #{char_gpt_forward.1} parent=1 // pred_fallthru
      _
    // Predicated region
    $region86: #{char_gpt_forward.1} parent=1 // pred_check
      _
    $region87: #{char_gpt_forward.1} parent=1 // pred_check_branch
      %184 = sbr.rel (0) target = $region89
    $region88: #{char_gpt_forward.1} parent=1 // pred_region
      _
    $region89: #{char_gpt_forward.1} parent=1 // pred_fallthru
      _
    // Predicated region
    $region90: #{char_gpt_forward.1} parent=1 // pred_check
      _
    $region91: #{char_gpt_forward.1} parent=1 // pred_check_branch
      %186 = sbr.rel (0) target = $region93
    $region92: #{char_gpt_forward.1} parent=1 // pred_region
      %187 = dma.done [#allocation3], 96
    $region93: #{char_gpt_forward.1} parent=1 // pred_fallthru
      _
    // Predicated region
    $region94: #{char_gpt_forward.1} parent=1 // pred_check
      _
    $region95: #{char_gpt_forward.1} parent=1 // pred_check_branch
      %189 = sbr.rel (0) target = $region97
    $region96: #{char_gpt_forward.1} parent=1 // pred_region
      %190 = dma.done [#allocation5], 6144
    $region97: #{char_gpt_forward.1} parent=1 // pred_fallthru
      _
    // Predicated region
    $region98: #{char_gpt_forward.1} parent=1 // pred_check
      _
    $region99: #{char_gpt_forward.1} parent=1 // pred_check_branch
      %192 = sbr.rel (0) target = $region101
    $region100: #{char_gpt_forward.1} parent=1 // pred_region
      %193 = dma.done [#allocation5], 96
    $region101: #{char_gpt_forward.1} parent=1 // pred_fallthru
      _
    // Predicated region
    $region102: #{char_gpt_forward.1} parent=1 // pred_check
      _
    $region103: #{char_gpt_forward.1} parent=1 // pred_check_branch
      %195 = sbr.rel (0) target = $region105
    $region104: #{char_gpt_forward.1} parent=1 // pred_region
      %196 = dma.done [#allocation8], 2048
    $region105: #{char_gpt_forward.1} parent=1 // pred_fallthru
      _
    // Predicated region
    $region106: #{char_gpt_forward.1} parent=1 // pred_check
      _
    $region107: #{char_gpt_forward.1} parent=1 // pred_check_branch
      %198 = sbr.rel (0) target = $region109
    $region108: #{char_gpt_forward.1} parent=1 // pred_region
      %199 = dma.done [#allocation8], 32
    $region109: #{char_gpt_forward.1} parent=1 // pred_fallthru
      _
    // Predicated region
    $region110: #{char_gpt_forward.1} parent=1 // pred_check
      _
    $region111: #{char_gpt_forward.1} parent=1 // pred_check_branch
      %201 = sbr.rel (0) target = $region113
    $region112: #{char_gpt_forward.1} parent=1 // pred_region
      %202 = dma.done [#allocation11], 32768
    $region113: #{char_gpt_forward.1} parent=1 // pred_fallthru
      _
    // Predicated region
    $region114: #{char_gpt_forward.1} parent=1 // pred_check
      _
    $region115: #{char_gpt_forward.1} parent=1 // pred_check_branch
      %204 = sbr.rel (0) target = $region117
    $region116: #{char_gpt_forward.1} parent=1 // pred_region
      %205 = dma.done [#allocation11], 32768
    $region117: #{char_gpt_forward.1} parent=1 // pred_fallthru
      _
    // Predicated region
    $region118: #{char_gpt_forward.1} parent=1 // pred_check
      _
    $region119: #{char_gpt_forward.1} parent=1 // pred_check_branch
      %207 = sbr.rel (0) target = $region121
    $region120: #{char_gpt_forward.1} parent=1 // pred_region
      %208 = dma.done [#allocation14], 32
    $region121: #{char_gpt_forward.1} parent=1 // pred_fallthru
      _
    // Predicated region
    $region122: #{char_gpt_forward.1} parent=1 // pred_check
      _
    $region123: #{char_gpt_forward.1} parent=1 // pred_check_branch
      %210 = sbr.rel (0) target = $region125
    $region124: #{char_gpt_forward.1} parent=1 // pred_region
      %211 = dma.done [#allocation14], 96
    $region125: #{char_gpt_forward.1} parent=1 // pred_fallthru
      _
    // Predicated region
    $region126: #{char_gpt_forward.1} parent=1 // pred_check
      _
    $region127: #{char_gpt_forward.1} parent=1 // pred_check_branch
      %213 = sbr.rel (0) target = $region129
    $region128: #{char_gpt_forward.1} parent=1 // pred_region
      %214 = dma.done [#allocation17], 96
    $region129: #{char_gpt_forward.1} parent=1 // pred_fallthru
      _
    // Predicated region
    $region130: #{char_gpt_forward.1} parent=1 // pred_check
      _
    $region131: #{char_gpt_forward.1} parent=1 // pred_check_branch
      %216 = sbr.rel (0) target = $region133
    $region132: #{char_gpt_forward.1} parent=1 // pred_region
      %217 = dma.done [#allocation17], 16
    $region133: #{char_gpt_forward.1} parent=1 // pred_fallthru
      _
    %v219 = vld [vmem:[%s0] sm:$0xff]
    %v220 = vld [vmem:[%s0 + $0x8] sm:$0xff]
    %v221 = vpack.c.bf16 %v220, %v219
    %v222 = vld [vmem:[%s1] sm:$0xff]
    %v223 = vld [vmem:[%s1 + $0x8] sm:$0xff]
    %v224 = vld [vmem:[%s2] sm:$0xff]
    %v225 = vld [vmem:[%s2 + $0x8] sm:$0xff]
    %v226 = vld [vmem:[%s3] sm:$0x1]
    %v227 = vld [vmem:[%s3 + $0x1] sm:$0x1]
    %v228 = vld [vmem:[%s3 + $0x2] sm:$0x1]
    %v229 = vld [vmem:[%s3 + $0x3] sm:$0x1]
    %v230 = vld [vmem:[#allocation15] sm:$0x1]
    %v231 = vld [vmem:[#allocation15 + $0x1] sm:$0x1]
    %v232 = vld [vmem:[#allocation15 + $0x2] sm:$0x1]
    %v233 = vld [vmem:[#allocation16] sm:$0x1]
    %v234 = vld [vmem:[#allocation16 + $0x1] sm:$0x1]
    %v235 = vld [vmem:[#allocation16 + $0x2] sm:$0x1]
    %v236 = vld [vmem:[%s4] sm:$0xff]
    %v237 = vld [vmem:[%s4 + $0x8] sm:$0xf]
    %v238 = vld [vmem:[%s4 + $0xc] sm:$0xff]
    %v239 = vld [vmem:[%s4 + $0x14] sm:$0xf]
    %v240 = vld [vmem:[%s4 + $0x18] sm:$0xff]
    %v241 = vld [vmem:[%s4 + $0x20] sm:$0xf]
    %v242 = vld [vmem:[%s4 + $0x24] sm:$0xff]
    %v243 = vld [vmem:[%s4 + $0x2c] sm:$0xf]
    %v244 = vld [vmem:[%s4 + $0x30] sm:$0xff]
    %v245 = vld [vmem:[%s4 + $0x38] sm:$0xf]
    %v246 = vld [vmem:[%s4 + $0x3c] sm:$0xff]
    %v247 = vld [vmem:[%s4 + $0x44] sm:$0xf]
    %v248 = vld [vmem:[%s4 + $0x48] sm:$0xff]
    %v249 = vld [vmem:[%s4 + $0x50] sm:$0xf]
    %v250 = vld [vmem:[%s4 + $0x54] sm:$0xff]
    %v251 = vld [vmem:[%s4 + $0x5c] sm:$0xf]
    %v252 = vld [vmem:[%s4 + $0x60] sm:$0xff]
    %v253 = vld [vmem:[%s4 + $0x68] sm:$0xf]
    %v254 = vld [vmem:[%s4 + $0x6c] sm:$0xff]
    %v255 = vld [vmem:[%s4 + $0x74] sm:$0xf]
    %v256 = vld [vmem:[%s4 + $0x78] sm:$0xff]
    %v257 = vld [vmem:[%s4 + $0x80] sm:$0xf]
    %v258 = vld [vmem:[%s4 + $0x84] sm:$0xff]
    %v259 = vld [vmem:[%s4 + $0x8c] sm:$0xf]
    %v260 = vld [vmem:[%s4 + $0x90] sm:$0xff]
    %v261 = vld [vmem:[%s4 + $0x98] sm:$0xf]
    %v262 = vld [vmem:[%s4 + $0x9c] sm:$0xff]
    %v263 = vld [vmem:[%s4 + $0xa4] sm:$0xf]
    %v264 = vld [vmem:[%s4 + $0xa8] sm:$0xff]
    %v265 = vld [vmem:[%s4 + $0xb0] sm:$0xf]
    %v266 = vld [vmem:[%s4 + $0xb4] sm:$0xff]
    %v267 = vld [vmem:[%s4 + $0xbc] sm:$0xf]
    %v268 = vld [vmem:[#allocation2] sm:$0x7]
    %v270 = vlaneseq
    %v271 = vshrl.u32 %v270, 7
    %v272 = vsub.s32 0, %v271
    %v273 = vrot.slane %v268, %v272
    %v274 = vlaneseq
    %v275 = vshrl.u32 %v274, 7
    %v276 = vsub.s32 1, %v275
    %v277 = vrot.slane %v268, %v276
    %v278 = vlaneseq
    %v279 = vshrl.u32 %v278, 7
    %v280 = vsub.s32 2, %v279
    %v281 = vrot.slane %v268, %v280
    %v317 = vunpack.c.l.b16 %v236
    %v318 = vunpack.c.h.b16 %v236
    %v319 = vunpack.c.l.b16 %v237
    %v320 = vunpack.c.l.b16 %v238
    %v321 = vunpack.c.h.b16 %v238
    %v322 = vunpack.c.l.b16 %v239
    %v323 = vunpack.c.l.b16 %v240
    %v324 = vunpack.c.h.b16 %v240
    %v325 = vunpack.c.l.b16 %v241
    %v326 = vunpack.c.l.b16 %v242
    %v327 = vunpack.c.h.b16 %v242
    %v328 = vunpack.c.l.b16 %v243
    %v329 = vunpack.c.l.b16 %v244
    %v330 = vunpack.c.h.b16 %v244
    %v331 = vunpack.c.l.b16 %v245
    %v332 = vunpack.c.l.b16 %v246
    %v333 = vunpack.c.h.b16 %v246
    %v334 = vunpack.c.l.b16 %v247
    %v335 = vunpack.c.l.b16 %v248
    %v336 = vunpack.c.h.b16 %v248
    %v337 = vunpack.c.l.b16 %v249
    %v338 = vunpack.c.l.b16 %v250
    %v339 = vunpack.c.h.b16 %v250
    %v340 = vunpack.c.l.b16 %v251
    %v341 = vunpack.c.l.b16 %v252
    %v342 = vunpack.c.h.b16 %v252
    %v343 = vunpack.c.l.b16 %v253
    %v344 = vunpack.c.l.b16 %v254
    %v345 = vunpack.c.h.b16 %v254
    %v346 = vunpack.c.l.b16 %v255
    %v347 = vunpack.c.l.b16 %v256
    %v348 = vunpack.c.h.b16 %v256
    %v349 = vunpack.c.l.b16 %v257
    %v350 = vunpack.c.l.b16 %v258
    %v351 = vunpack.c.h.b16 %v258
    %v352 = vunpack.c.l.b16 %v259
    %v353 = vunpack.c.l.b16 %v260
    %v354 = vunpack.c.h.b16 %v260
    %v355 = vunpack.c.l.b16 %v261
    %v356 = vunpack.c.l.b16 %v262
    %v357 = vunpack.c.h.b16 %v262
    %v358 = vunpack.c.l.b16 %v263
    %v359 = vunpack.c.l.b16 %v264
    %v360 = vunpack.c.h.b16 %v264
    %v361 = vunpack.c.l.b16 %v265
    %v362 = vunpack.c.l.b16 %v266
    %v363 = vunpack.c.h.b16 %v266
    %v364 = vunpack.c.l.b16 %v267
    %v365 = vpack.c.b16 %v320, %v317
    %v366 = vpack.c.b16 %v321, %v318
    %v367 = vpack.c.b16 %v322, %v319
    %v368 = vpack.c.b16 %v326, %v323
    %v369 = vpack.c.b16 %v327, %v324
    %v370 = vpack.c.b16 %v328, %v325
    %v371 = vpack.c.b16 %v332, %v329
    %v372 = vpack.c.b16 %v333, %v330
    %v373 = vpack.c.b16 %v334, %v331
    %v374 = vpack.c.b16 %v338, %v335
    %v375 = vpack.c.b16 %v339, %v336
    %v376 = vpack.c.b16 %v340, %v337
    %v377 = vpack.c.b16 %v344, %v341
    %v378 = vpack.c.b16 %v345, %v342
    %v379 = vpack.c.b16 %v346, %v343
    %v380 = vpack.c.b16 %v350, %v347
    %v381 = vpack.c.b16 %v351, %v348
    %v382 = vpack.c.b16 %v352, %v349
    %v383 = vpack.c.b16 %v356, %v353
    %v384 = vpack.c.b16 %v357, %v354
    %v385 = vpack.c.b16 %v358, %v355
    %v386 = vpack.c.b16 %v362, %v359
    %v387 = vpack.c.b16 %v363, %v360
    %v388 = vpack.c.b16 %v364, %v361
    %413 = vmatprep.subr.bf16.mxu0 %v366
    %414 = vmatpush1.bf16.msra.mxu0 %v365
    %415 = vmatprep.subr.bf16.mxu0 %v369
    %416 = vmatpush1.bf16.msra.mxu0 %v368
    %417 = vmatprep.subr.bf16.mxu0 %v372
    %418 = vmatpush1.bf16.msra.mxu0 %v371
    %419 = vmatprep.subr.bf16.mxu0 %v375
    %420 = vmatpush1.bf16.msra.mxu0 %v374
    %421 = vmatprep.subr.bf16.mxu0 %v378
    %422 = vmatpush1.bf16.msra.mxu0 %v377
    %423 = vmatprep.subr.bf16.mxu0 %v381
    %424 = vmatpush1.bf16.msra.mxu0 %v380
    %425 = vmatprep.subr.bf16.mxu0 %v384
    %426 = vmatpush1.bf16.msra.mxu0 %v383
    %427 = vmatprep.subr.bf16.mxu0 %v387
    %428 = vmatpush1.bf16.msra.mxu0 %v386
    %429 = vmatprep.subr.bf16.mxu0 0
    %430 = vmatpush1.bf16.msra.mxu0 0
    %431 = vmatprep.subr.bf16.mxu0 0
    %432 = vmatpush1.bf16.msra.mxu0 0
    %433 = vmatprep.subr.bf16.mxu0 0
    %434 = vmatpush1.bf16.msra.mxu0 0
    %435 = vmatprep.subr.bf16.mxu0 0
    %436 = vmatpush1.bf16.msra.mxu0 0
    %437 = vmatprep.subr.bf16.mxu0 0
    %438 = vmatpush1.bf16.msra.mxu0 0
    %439 = vmatprep.subr.bf16.mxu0 0
    %440 = vmatpush1.bf16.msra.mxu0 0
    %441 = vmatprep.subr.bf16.mxu0 0
    %442 = vmatpush1.bf16.msra.mxu0 0
    %443 = vmatprep.subr.bf16.mxu0 0
    %444 = vmatpush1.bf16.msra.mxu0 0
    %445 = vmatprep.mubr.bf16.mxu0 0
    %446 = vmatmul.mubr.bf16.gmra.mrb[0].mxu0 %v221
    %v447 = vpop.f32.mrb[0].mxu0
    %v448 = vadd.f32 %v273, %v447
    %v449 = vpop.f32.mrb[0].mxu0
    %v450 = vadd.f32 %v277, %v449
    %v451 = vpop.f32.mrb[0].mxu0
    %v452 = vadd.f32 %v273, %v451
    %v453 = vpop.f32.mrb[0].mxu0
    %v454 = vadd.f32 %v277, %v453
    %455 = vdwg.mxu0
    %456 = vmatprep.subr.bf16.mxu0 0
    %457 = vmatpush1.bf16.msra.mxu0 %v367
    %458 = vmatprep.subr.bf16.mxu0 0
    %459 = vmatpush1.bf16.msra.mxu0 %v370
    %460 = vmatprep.subr.bf16.mxu0 0
    %461 = vmatpush1.bf16.msra.mxu0 %v373
    %462 = vmatprep.subr.bf16.mxu0 0
    %463 = vmatpush1.bf16.msra.mxu0 %v376
    %464 = vmatprep.subr.bf16.mxu0 0
    %465 = vmatpush1.bf16.msra.mxu0 %v379
    %466 = vmatprep.subr.bf16.mxu0 0
    %467 = vmatpush1.bf16.msra.mxu0 %v382
    %468 = vmatprep.subr.bf16.mxu0 0
    %469 = vmatpush1.bf16.msra.mxu0 %v385
    %470 = vmatprep.subr.bf16.mxu0 0
    %471 = vmatpush1.bf16.msra.mxu0 %v388
    %472 = vmatprep.subr.bf16.mxu0 0
    %473 = vmatpush1.bf16.msra.mxu0 0
    %474 = vmatprep.subr.bf16.mxu0 0
    %475 = vmatpush1.bf16.msra.mxu0 0
    %476 = vmatprep.subr.bf16.mxu0 0
    %477 = vmatpush1.bf16.msra.mxu0 0
    %478 = vmatprep.subr.bf16.mxu0 0
    %479 = vmatpush1.bf16.msra.mxu0 0
    %480 = vmatprep.subr.bf16.mxu0 0
    %481 = vmatpush1.bf16.msra.mxu0 0
    %482 = vmatprep.subr.bf16.mxu0 0
    %483 = vmatpush1.bf16.msra.mxu0 0
    %484 = vmatprep.subr.bf16.mxu0 0
    %485 = vmatpush1.bf16.msra.mxu0 0
    %486 = vmatprep.subr.bf16.mxu0 0
    %487 = vmatpush1.bf16.msra.mxu0 0
    %488 = vmatprep.mubr.bf16.mxu0 0
    %489 = vmatmul.mubr.bf16.gmra.mrb[0].mxu0 %v221
    %v490 = vpop.f32.mrb[0].mxu0
    %v491 = vadd.f32 %v281, %v490
    %v492 = vpop.f32.mrb[0].mxu0
    %v493 = vpop.f32.mrb[0].mxu0
    %v494 = vadd.f32 %v281, %v493
    %v495 = vpop.f32.mrb[0].mxu0
    %496 = vdwg.mxu0
    %v497 = vmul.f32 %v448, 0.17677669
    %v498 = vmul.f32 %v452, 0.17677669
    %v499 = vld [vmem:[%s6] sm:$0xf]
    %v500 = vld [vmem:[%s6 + $0x4] sm:$0xf]
    %v501 = vld [vmem:[%s6 + $0x8] sm:$0xf]
    %v502 = vld [vmem:[%s6 + $0xc] sm:$0xf]
    %v503 = vld [vmem:[%s6 + $0x10] sm:$0xf]
    %v504 = vld [vmem:[%s6 + $0x14] sm:$0xf]
    %v505 = vld [vmem:[%s6 + $0x18] sm:$0xf]
    %v506 = vld [vmem:[%s6 + $0x1c] sm:$0xf]
    %v507 = vld [vmem:[%s6 + $0x20] sm:$0xf]
    %v508 = vld [vmem:[%s6 + $0x24] sm:$0xf]
    %v509 = vld [vmem:[%s6 + $0x28] sm:$0xf]
    %v510 = vld [vmem:[%s6 + $0x2c] sm:$0xf]
    %v511 = vld [vmem:[%s6 + $0x30] sm:$0xf]
    %v512 = vld [vmem:[%s6 + $0x34] sm:$0xf]
    %v513 = vld [vmem:[%s6 + $0x38] sm:$0xf]
    %v514 = vld [vmem:[%s6 + $0x3c] sm:$0xf]
    %v515 = vld [vmem:[%s7] sm:$0x1]
    %v516 = vpack.c.bf16 %v454, %v450
    %v518 = vlaneseq
    %v519 = vshrl.u32 %v518, 7
    %v520 = vsub.s32 0, %v519
    %v521 = vrot.slane %v226, %v520
    %v523 = vmul.f32 %v497, %v521
    %v524 = vmul.f32 %v498, %v521
    %v525 = vpack.c.bf16 %v524, %v523
    %526 = vmatprep.subr.bf16.mxu0 0
    %527 = vmatpush1.bf16.xpose.msra.mxu0 %v516
    %528 = vmatprep.subr.bf16.mxu0 0
    %529 = vmatpush1.bf16.xpose.msra.mxu0 0
    %530 = vmatprep.subr.bf16.mxu0 0
    %531 = vmatpush1.bf16.xpose.msra.mxu0 0
    %532 = vmatprep.subr.bf16.mxu0 0
    %533 = vmatpush1.bf16.xpose.msra.mxu0 0
    %534 = vmatprep.subr.bf16.mxu0 0
    %535 = vmatpush1.bf16.xpose.msra.mxu0 0
    %536 = vmatprep.subr.bf16.mxu0 0
    %537 = vmatpush1.bf16.xpose.msra.mxu0 0
    %538 = vmatprep.subr.bf16.mxu0 0
    %539 = vmatpush1.bf16.xpose.msra.mxu0 0
    %540 = vmatprep.subr.bf16.mxu0 0
    %541 = vmatpush1.bf16.xpose.msra.mxu0 0
    %542 = vmatprep.subr.bf16.mxu0 0
    %543 = vmatpush1.bf16.xpose.msra.mxu0 0
    %544 = vmatprep.subr.bf16.mxu0 0
    %545 = vmatpush1.bf16.xpose.msra.mxu0 0
    %546 = vmatprep.subr.bf16.mxu0 0
    %547 = vmatpush1.bf16.xpose.msra.mxu0 0
    %548 = vmatprep.subr.bf16.mxu0 0
    %549 = vmatpush1.bf16.xpose.msra.mxu0 0
    %550 = vmatprep.subr.bf16.mxu0 0
    %551 = vmatpush1.bf16.xpose.msra.mxu0 0
    %552 = vmatprep.subr.bf16.mxu0 0
    %553 = vmatpush1.bf16.xpose.msra.mxu0 0
    %554 = vmatprep.subr.bf16.mxu0 0
    %555 = vmatpush1.bf16.xpose.msra.mxu0 0
    %556 = vmatprep.subr.bf16.mxu0 0
    %557 = vmatpush1.bf16.xpose.msra.mxu0 0
    %558 = vmatprep.mubr.bf16.mxu0 0
    %559 = vmatmul.mubr.bf16.gmra.mrb[0].mxu0 %v525
    %v560 = vpop.f32.mrb[0].mxu0
    %v561 = vadd.f32 %v222, %v560
    %v562 = vpop.f32.mrb[0].mxu0
    %v563 = vpop.f32.mrb[0].mxu0
    %v564 = vadd.f32 %v223, %v563
    %v565 = vpop.f32.mrb[0].mxu0
    %566 = vdwg.mxu0
    %vm567 = vcmask 130048
    %v568 = vsel %vm567, %v561, -inf
    %569 = vmax.xlane.f32.xlu0 %v568
    %v570 = vpop.xlane.xlu0 %569
    %v571 = vsel %vm567, %v564, -inf
    %572 = vmax.xlane.f32.xlu0 %v571
    %v573 = vpop.xlane.xlu0 %572
    %v574 = vsub.f32 %v561, %v570
    %v575 = vsub.f32 %v564, %v573
    %v576 = vmul.f32 %v574, 1.442695
    %v577 = vpow.pop %v576
    %v578 = vmul.f32 %v575, 1.442695
    %v579 = vpow.pop %v578
    %v580 = vsel %vm567, %v577, 0.0
    %581 = vadd.xlane.f32.xlu0 %v580
    %v582 = vpop.xlane.xlu0 %581
    %v583 = vsel %vm567, %v579, 0.0
    %584 = vadd.xlane.f32.xlu0 %v583
    %v585 = vpop.xlane.xlu0 %584
    %v586 = vrcp.pop %v582
    %v587 = vrcp.pop %v585
    %v588 = vmul.f32 %v577, %v586
    %v589 = vmul.f32 %v579, %v587
    %v590 = vmul.f32 %v491, %v521
    %v591 = vmul.f32 %v494, %v521
    %v592 = vpack.c.bf16 %v591, %v590
    %v593 = vpack.c.bf16 %v589, %v588
    %v595 = vlaneseq
    %v596 = vshrl.u32 %v595, 7
    %v597 = vsub.s32 0, %v596
    %v598 = vrot.slane %v227, %v597
    %v600 = vmul.f32 %v497, %v598
    %v601 = vmul.f32 %v498, %v598
    %v602 = vpack.c.bf16 %v601, %v600
    %603 = vmatprep.subr.bf16.mxu0 0
    %604 = vmatpush1.bf16.xpose.msra.mxu0 %v516
    %605 = vmatprep.subr.bf16.mxu0 0
    %606 = vmatpush1.bf16.xpose.msra.mxu0 0
    %607 = vmatprep.subr.bf16.mxu0 0
    %608 = vmatpush1.bf16.xpose.msra.mxu0 0
    %609 = vmatprep.subr.bf16.mxu0 0
    %610 = vmatpush1.bf16.xpose.msra.mxu0 0
    %611 = vmatprep.subr.bf16.mxu0 0
    %612 = vmatpush1.bf16.xpose.msra.mxu0 0
    %613 = vmatprep.subr.bf16.mxu0 0
    %614 = vmatpush1.bf16.xpose.msra.mxu0 0
    %615 = vmatprep.subr.bf16.mxu0 0
    %616 = vmatpush1.bf16.xpose.msra.mxu0 0
    %617 = vmatprep.subr.bf16.mxu0 0
    %618 = vmatpush1.bf16.xpose.msra.mxu0 0
    %619 = vmatprep.subr.bf16.mxu0 0
    %620 = vmatpush1.bf16.xpose.msra.mxu0 0
    %621 = vmatprep.subr.bf16.mxu0 0
    %622 = vmatpush1.bf16.xpose.msra.mxu0 0
    %623 = vmatprep.subr.bf16.mxu0 0
    %624 = vmatpush1.bf16.xpose.msra.mxu0 0
    %625 = vmatprep.subr.bf16.mxu0 0
    %626 = vmatpush1.bf16.xpose.msra.mxu0 0
    %627 = vmatprep.subr.bf16.mxu0 0
    %628 = vmatpush1.bf16.xpose.msra.mxu0 0
    %629 = vmatprep.subr.bf16.mxu0 0
    %630 = vmatpush1.bf16.xpose.msra.mxu0 0
    %631 = vmatprep.subr.bf16.mxu0 0
    %632 = vmatpush1.bf16.xpose.msra.mxu0 0
    %633 = vmatprep.subr.bf16.mxu0 0
    %634 = vmatpush1.bf16.xpose.msra.mxu0 0
    %635 = vmatprep.mubr.bf16.mxu0 0
    %636 = vmatmul.mubr.bf16.gmra.mrb[0].mxu0 %v602
    %v637 = vpop.f32.mrb[0].mxu0
    %v638 = vadd.f32 %v222, %v637
    %v639 = vpop.f32.mrb[0].mxu0
    %v640 = vpop.f32.mrb[0].mxu0
    %v641 = vadd.f32 %v223, %v640
    %v642 = vpop.f32.mrb[0].mxu0
    %643 = vdwg.mxu0
    %v644 = vsel %vm567, %v638, -inf
    %645 = vmax.xlane.f32.xlu0 %v644
    %v646 = vpop.xlane.xlu0 %645
    %v647 = vsel %vm567, %v641, -inf
    %648 = vmax.xlane.f32.xlu0 %v647
    %v649 = vpop.xlane.xlu0 %648
    %v650 = vsub.f32 %v638, %v646
    %v651 = vsub.f32 %v641, %v649
    %v652 = vmul.f32 %v650, 1.442695
    %v653 = vpow.pop %v652
    %v654 = vmul.f32 %v651, 1.442695
    %v655 = vpow.pop %v654
    %v656 = vsel %vm567, %v653, 0.0
    %657 = vadd.xlane.f32.xlu0 %v656
    %v658 = vpop.xlane.xlu0 %657
    %v659 = vsel %vm567, %v655, 0.0
    %660 = vadd.xlane.f32.xlu0 %v659
    %v661 = vpop.xlane.xlu0 %660
    %v662 = vrcp.pop %v658
    %v663 = vrcp.pop %v661
    %v664 = vmul.f32 %v653, %v662
    %v665 = vmul.f32 %v655, %v663
    %v666 = vmul.f32 %v491, %v598
    %v667 = vmul.f32 %v494, %v598
    %v668 = vpack.c.bf16 %v667, %v666
    %v669 = vpack.c.bf16 %v665, %v664
    %v671 = vsel %vm567, %v669, 0
    %673 = vmatprep.subr.bf16.mxu0 0
    %674 = vmatpush1.bf16.msra.mxu0 %v668
    %675 = vmatprep.subr.bf16.mxu0 0
    %676 = vmatpush1.bf16.msra.mxu0 0
    %677 = vmatprep.subr.bf16.mxu0 0
    %678 = vmatpush1.bf16.msra.mxu0 0
    %679 = vmatprep.subr.bf16.mxu0 0
    %680 = vmatpush1.bf16.msra.mxu0 0
    %681 = vmatprep.subr.bf16.mxu0 0
    %682 = vmatpush1.bf16.msra.mxu0 0
    %683 = vmatprep.subr.bf16.mxu0 0
    %684 = vmatpush1.bf16.msra.mxu0 0
    %685 = vmatprep.subr.bf16.mxu0 0
    %686 = vmatpush1.bf16.msra.mxu0 0
    %687 = vmatprep.subr.bf16.mxu0 0
    %688 = vmatpush1.bf16.msra.mxu0 0
    %689 = vmatprep.subr.bf16.mxu0 0
    %690 = vmatpush1.bf16.msra.mxu0 0
    %691 = vmatprep.subr.bf16.mxu0 0
    %692 = vmatpush1.bf16.msra.mxu0 0
    %693 = vmatprep.subr.bf16.mxu0 0
    %694 = vmatpush1.bf16.msra.mxu0 0
    %695 = vmatprep.subr.bf16.mxu0 0
    %696 = vmatpush1.bf16.msra.mxu0 0
    %697 = vmatprep.subr.bf16.mxu0 0
    %698 = vmatpush1.bf16.msra.mxu0 0
    %699 = vmatprep.subr.bf16.mxu0 0
    %700 = vmatpush1.bf16.msra.mxu0 0
    %701 = vmatprep.subr.bf16.mxu0 0
    %702 = vmatpush1.bf16.msra.mxu0 0
    %703 = vmatprep.subr.bf16.mxu0 0
    %704 = vmatpush1.bf16.msra.mxu0 0
    %705 = vmatprep.mubr.bf16.mxu0 0
    %706 = vmatmul.mubr.bf16.gmra.mrb[0].mxu0 %v671
    %v707 = vpop.f32.mrb[0].mxu0
    %v708 = vadd.f32 0.0, %v707
    %v709 = vpop.f32.mrb[0].mxu0
    %v710 = vpop.f32.mrb[0].mxu0
    %v711 = vadd.f32 0.0, %v710
    %v712 = vpop.f32.mrb[0].mxu0
    %713 = vdwg.mxu0
    %v715 = vsel %vm567, %v593, 0
    %717 = vmatprep.subr.bf16.mxu0 0
    %718 = vmatpush1.bf16.msra.mxu0 %v592
    %719 = vmatprep.subr.bf16.mxu0 0
    %720 = vmatpush1.bf16.msra.mxu0 0
    %721 = vmatprep.subr.bf16.mxu0 0
    %722 = vmatpush1.bf16.msra.mxu0 0
    %723 = vmatprep.subr.bf16.mxu0 0
    %724 = vmatpush1.bf16.msra.mxu0 0
    %725 = vmatprep.subr.bf16.mxu0 0
    %726 = vmatpush1.bf16.msra.mxu0 0
    %727 = vmatprep.subr.bf16.mxu0 0
    %728 = vmatpush1.bf16.msra.mxu0 0
    %729 = vmatprep.subr.bf16.mxu0 0
    %730 = vmatpush1.bf16.msra.mxu0 0
    %731 = vmatprep.subr.bf16.mxu0 0
    %732 = vmatpush1.bf16.msra.mxu0 0
    %733 = vmatprep.subr.bf16.mxu0 0
    %734 = vmatpush1.bf16.msra.mxu0 0
    %735 = vmatprep.subr.bf16.mxu0 0
    %736 = vmatpush1.bf16.msra.mxu0 0
    %737 = vmatprep.subr.bf16.mxu0 0
    %738 = vmatpush1.bf16.msra.mxu0 0
    %739 = vmatprep.subr.bf16.mxu0 0
    %740 = vmatpush1.bf16.msra.mxu0 0
    %741 = vmatprep.subr.bf16.mxu0 0
    %742 = vmatpush1.bf16.msra.mxu0 0
    %743 = vmatprep.subr.bf16.mxu0 0
    %744 = vmatpush1.bf16.msra.mxu0 0
    %745 = vmatprep.subr.bf16.mxu0 0
    %746 = vmatpush1.bf16.msra.mxu0 0
    %747 = vmatprep.subr.bf16.mxu0 0
    %748 = vmatpush1.bf16.msra.mxu0 0
    %749 = vmatprep.mubr.bf16.mxu0 0
    %750 = vmatmul.mubr.bf16.gmra.mrb[0].mxu0 %v715
    %v751 = vpop.f32.mrb[0].mxu0
    %v752 = vadd.f32 %v708, %v751
    %v753 = vpop.f32.mrb[0].mxu0
    %v754 = vpop.f32.mrb[0].mxu0
    %v755 = vadd.f32 %v711, %v754
    %v756 = vpop.f32.mrb[0].mxu0
    %757 = vdwg.mxu0
    %v759 = vlaneseq
    %v760 = vshrl.u32 %v759, 7
    %v761 = vsub.s32 0, %v760
    %v762 = vrot.slane %v228, %v761
    %v764 = vmul.f32 %v497, %v762
    %v765 = vmul.f32 %v498, %v762
    %v766 = vpack.c.bf16 %v765, %v764
    %767 = vmatprep.subr.bf16.mxu0 0
    %768 = vmatpush1.bf16.xpose.msra.mxu0 %v516
    %769 = vmatprep.subr.bf16.mxu0 0
    %770 = vmatpush1.bf16.xpose.msra.mxu0 0
    %771 = vmatprep.subr.bf16.mxu0 0
    %772 = vmatpush1.bf16.xpose.msra.mxu0 0
    %773 = vmatprep.subr.bf16.mxu0 0
    %774 = vmatpush1.bf16.xpose.msra.mxu0 0
    %775 = vmatprep.subr.bf16.mxu0 0
    %776 = vmatpush1.bf16.xpose.msra.mxu0 0
    %777 = vmatprep.subr.bf16.mxu0 0
    %778 = vmatpush1.bf16.xpose.msra.mxu0 0
    %779 = vmatprep.subr.bf16.mxu0 0
    %780 = vmatpush1.bf16.xpose.msra.mxu0 0
    %781 = vmatprep.subr.bf16.mxu0 0
    %782 = vmatpush1.bf16.xpose.msra.mxu0 0
    %783 = vmatprep.subr.bf16.mxu0 0
    %784 = vmatpush1.bf16.xpose.msra.mxu0 0
    %785 = vmatprep.subr.bf16.mxu0 0
    %786 = vmatpush1.bf16.xpose.msra.mxu0 0
    %787 = vmatprep.subr.bf16.mxu0 0
    %788 = vmatpush1.bf16.xpose.msra.mxu0 0
    %789 = vmatprep.subr.bf16.mxu0 0
    %790 = vmatpush1.bf16.xpose.msra.mxu0 0
    %791 = vmatprep.subr.bf16.mxu0 0
    %792 = vmatpush1.bf16.xpose.msra.mxu0 0
    %793 = vmatprep.subr.bf16.mxu0 0
    %794 = vmatpush1.bf16.xpose.msra.mxu0 0
    %795 = vmatprep.subr.bf16.mxu0 0
    %796 = vmatpush1.bf16.xpose.msra.mxu0 0
    %797 = vmatprep.subr.bf16.mxu0 0
    %798 = vmatpush1.bf16.xpose.msra.mxu0 0
    %799 = vmatprep.mubr.bf16.mxu0 0
    %800 = vmatmul.mubr.bf16.gmra.mrb[0].mxu0 %v766
    %v801 = vpop.f32.mrb[0].mxu0
    %v802 = vadd.f32 %v222, %v801
    %v803 = vpop.f32.mrb[0].mxu0
    %v804 = vpop.f32.mrb[0].mxu0
    %v805 = vadd.f32 %v223, %v804
    %v806 = vpop.f32.mrb[0].mxu0
    %807 = vdwg.mxu0
    %v808 = vsel %vm567, %v802, -inf
    %809 = vmax.xlane.f32.xlu0 %v808
    %v810 = vpop.xlane.xlu0 %809
    %v811 = vsel %vm567, %v805, -inf
    %812 = vmax.xlane.f32.xlu0 %v811
    %v813 = vpop.xlane.xlu0 %812
    %v814 = vsub.f32 %v802, %v810
    %v815 = vsub.f32 %v805, %v813
    %v816 = vmul.f32 %v814, 1.442695
    %v817 = vpow.pop %v816
    %v818 = vmul.f32 %v815, 1.442695
    %v819 = vpow.pop %v818
    %v820 = vsel %vm567, %v817, 0.0
    %821 = vadd.xlane.f32.xlu0 %v820
    %v822 = vpop.xlane.xlu0 %821
    %v823 = vsel %vm567, %v819, 0.0
    %824 = vadd.xlane.f32.xlu0 %v823
    %v825 = vpop.xlane.xlu0 %824
    %v826 = vrcp.pop %v822
    %v827 = vrcp.pop %v825
    %v828 = vmul.f32 %v817, %v826
    %v829 = vmul.f32 %v819, %v827
    %v830 = vmul.f32 %v491, %v762
    %v831 = vmul.f32 %v494, %v762
    %v832 = vpack.c.bf16 %v831, %v830
    %v833 = vpack.c.bf16 %v829, %v828
    %v835 = vsel %vm567, %v833, 0
    %837 = vmatprep.subr.bf16.mxu0 0
    %838 = vmatpush1.bf16.msra.mxu0 %v832
    %839 = vmatprep.subr.bf16.mxu0 0
    %840 = vmatpush1.bf16.msra.mxu0 0
    %841 = vmatprep.subr.bf16.mxu0 0
    %842 = vmatpush1.bf16.msra.mxu0 0
    %843 = vmatprep.subr.bf16.mxu0 0
    %844 = vmatpush1.bf16.msra.mxu0 0
    %845 = vmatprep.subr.bf16.mxu0 0
    %846 = vmatpush1.bf16.msra.mxu0 0
    %847 = vmatprep.subr.bf16.mxu0 0
    %848 = vmatpush1.bf16.msra.mxu0 0
    %849 = vmatprep.subr.bf16.mxu0 0
    %850 = vmatpush1.bf16.msra.mxu0 0
    %851 = vmatprep.subr.bf16.mxu0 0
    %852 = vmatpush1.bf16.msra.mxu0 0
    %853 = vmatprep.subr.bf16.mxu0 0
    %854 = vmatpush1.bf16.msra.mxu0 0
    %855 = vmatprep.subr.bf16.mxu0 0
    %856 = vmatpush1.bf16.msra.mxu0 0
    %857 = vmatprep.subr.bf16.mxu0 0
    %858 = vmatpush1.bf16.msra.mxu0 0
    %859 = vmatprep.subr.bf16.mxu0 0
    %860 = vmatpush1.bf16.msra.mxu0 0
    %861 = vmatprep.subr.bf16.mxu0 0
    %862 = vmatpush1.bf16.msra.mxu0 0
    %863 = vmatprep.subr.bf16.mxu0 0
    %864 = vmatpush1.bf16.msra.mxu0 0
    %865 = vmatprep.subr.bf16.mxu0 0
    %866 = vmatpush1.bf16.msra.mxu0 0
    %867 = vmatprep.subr.bf16.mxu0 0
    %868 = vmatpush1.bf16.msra.mxu0 0
    %869 = vmatprep.mubr.bf16.mxu0 0
    %870 = vmatmul.mubr.bf16.gmra.mrb[0].mxu0 %v835
    %v871 = vpop.f32.mrb[0].mxu0
    %v872 = vadd.f32 0.0, %v871
    %v873 = vpop.f32.mrb[0].mxu0
    %v874 = vpop.f32.mrb[0].mxu0
    %v875 = vadd.f32 0.0, %v874
    %v876 = vpop.f32.mrb[0].mxu0
    %877 = vdwg.mxu0
    %v878 = vadd.f32 %v752, %v872
    %v879 = vadd.f32 %v755, %v875
    %v881 = vlaneseq
    %v882 = vshrl.u32 %v881, 7
    %v883 = vsub.s32 0, %v882
    %v884 = vrot.slane %v229, %v883
    %v886 = vmul.f32 %v497, %v884
    %v887 = vmul.f32 %v498, %v884
    %v888 = vpack.c.bf16 %v887, %v886
    %889 = vmatprep.subr.bf16.mxu0 0
    %890 = vmatpush1.bf16.xpose.msra.mxu0 %v516
    %891 = vmatprep.subr.bf16.mxu0 0
    %892 = vmatpush1.bf16.xpose.msra.mxu0 0
    %893 = vmatprep.subr.bf16.mxu0 0
    %894 = vmatpush1.bf16.xpose.msra.mxu0 0
    %895 = vmatprep.subr.bf16.mxu0 0
    %896 = vmatpush1.bf16.xpose.msra.mxu0 0
    %897 = vmatprep.subr.bf16.mxu0 0
    %898 = vmatpush1.bf16.xpose.msra.mxu0 0
    %899 = vmatprep.subr.bf16.mxu0 0
    %900 = vmatpush1.bf16.xpose.msra.mxu0 0
    %901 = vmatprep.subr.bf16.mxu0 0
    %902 = vmatpush1.bf16.xpose.msra.mxu0 0
    %903 = vmatprep.subr.bf16.mxu0 0
    %904 = vmatpush1.bf16.xpose.msra.mxu0 0
    %905 = vmatprep.subr.bf16.mxu0 0
    %906 = vmatpush1.bf16.xpose.msra.mxu0 0
    %907 = vmatprep.subr.bf16.mxu0 0
    %908 = vmatpush1.bf16.xpose.msra.mxu0 0
    %909 = vmatprep.subr.bf16.mxu0 0
    %910 = vmatpush1.bf16.xpose.msra.mxu0 0
    %911 = vmatprep.subr.bf16.mxu0 0
    %912 = vmatpush1.bf16.xpose.msra.mxu0 0
    %913 = vmatprep.subr.bf16.mxu0 0
    %914 = vmatpush1.bf16.xpose.msra.mxu0 0
    %915 = vmatprep.subr.bf16.mxu0 0
    %916 = vmatpush1.bf16.xpose.msra.mxu0 0
    %917 = vmatprep.subr.bf16.mxu0 0
    %918 = vmatpush1.bf16.xpose.msra.mxu0 0
    %919 = vmatprep.subr.bf16.mxu0 0
    %920 = vmatpush1.bf16.xpose.msra.mxu0 0
    %921 = vmatprep.mubr.bf16.mxu0 0
    %922 = vmatmul.mubr.bf16.gmra.mrb[0].mxu0 %v888
    %v923 = vpop.f32.mrb[0].mxu0
    %v924 = vadd.f32 %v222, %v923
    %v925 = vpop.f32.mrb[0].mxu0
    %v926 = vpop.f32.mrb[0].mxu0
    %v927 = vadd.f32 %v223, %v926
    %v928 = vpop.f32.mrb[0].mxu0
    %929 = vdwg.mxu0
    %v930 = vsel %vm567, %v924, -inf
    %931 = vmax.xlane.f32.xlu0 %v930
    %v932 = vpop.xlane.xlu0 %931
    %v933 = vsel %vm567, %v927, -inf
    %934 = vmax.xlane.f32.xlu0 %v933
    %v935 = vpop.xlane.xlu0 %934
    %v936 = vsub.f32 %v924, %v932
    %v937 = vsub.f32 %v927, %v935
    %v938 = vmul.f32 %v936, 1.442695
    %v939 = vpow.pop %v938
    %v940 = vmul.f32 %v937, 1.442695
    %v941 = vpow.pop %v940
    %v942 = vsel %vm567, %v939, 0.0
    %943 = vadd.xlane.f32.xlu0 %v942
    %v944 = vpop.xlane.xlu0 %943
    %v945 = vsel %vm567, %v941, 0.0
    %946 = vadd.xlane.f32.xlu0 %v945
    %v947 = vpop.xlane.xlu0 %946
    %v948 = vrcp.pop %v944
    %v949 = vrcp.pop %v947
    %v950 = vmul.f32 %v939, %v948
    %v951 = vmul.f32 %v941, %v949
    %v952 = vmul.f32 %v491, %v884
    %v953 = vmul.f32 %v494, %v884
    %v954 = vpack.c.bf16 %v953, %v952
    %v955 = vpack.c.bf16 %v951, %v950
    %v957 = vsel %vm567, %v955, 0
    %959 = vmatprep.subr.bf16.mxu0 0
    %960 = vmatpush1.bf16.msra.mxu0 %v954
    %961 = vmatprep.subr.bf16.mxu0 0
    %962 = vmatpush1.bf16.msra.mxu0 0
    %963 = vmatprep.subr.bf16.mxu0 0
    %964 = vmatpush1.bf16.msra.mxu0 0
    %965 = vmatprep.subr.bf16.mxu0 0
    %966 = vmatpush1.bf16.msra.mxu0 0
    %967 = vmatprep.subr.bf16.mxu0 0
    %968 = vmatpush1.bf16.msra.mxu0 0
    %969 = vmatprep.subr.bf16.mxu0 0
    %970 = vmatpush1.bf16.msra.mxu0 0
    %971 = vmatprep.subr.bf16.mxu0 0
    %972 = vmatpush1.bf16.msra.mxu0 0
    %973 = vmatprep.subr.bf16.mxu0 0
    %974 = vmatpush1.bf16.msra.mxu0 0
    %975 = vmatprep.subr.bf16.mxu0 0
    %976 = vmatpush1.bf16.msra.mxu0 0
    %977 = vmatprep.subr.bf16.mxu0 0
    %978 = vmatpush1.bf16.msra.mxu0 0
    %979 = vmatprep.subr.bf16.mxu0 0
    %980 = vmatpush1.bf16.msra.mxu0 0
    %981 = vmatprep.subr.bf16.mxu0 0
    %982 = vmatpush1.bf16.msra.mxu0 0
    %983 = vmatprep.subr.bf16.mxu0 0
    %984 = vmatpush1.bf16.msra.mxu0 0
    %985 = vmatprep.subr.bf16.mxu0 0
    %986 = vmatpush1.bf16.msra.mxu0 0
    %987 = vmatprep.subr.bf16.mxu0 0
    %988 = vmatpush1.bf16.msra.mxu0 0
    %989 = vmatprep.subr.bf16.mxu0 0
    %990 = vmatpush1.bf16.msra.mxu0 0
    %991 = vmatprep.mubr.bf16.mxu0 0
    %992 = vmatmul.mubr.bf16.gmra.mrb[0].mxu0 %v957
    %v993 = vpop.f32.mrb[0].mxu0
    %v994 = vadd.f32 0.0, %v993
    %v995 = vpop.f32.mrb[0].mxu0
    %v996 = vpop.f32.mrb[0].mxu0
    %v997 = vadd.f32 0.0, %v996
    %v998 = vpop.f32.mrb[0].mxu0
    %999 = vdwg.mxu0
    %v1000 = vadd.f32 %v878, %v994
    %v1001 = vadd.f32 %v879, %v997
    %v1002 = vpack.c.bf16 %v1001, %v1000
    %v1004 = vlaneseq
    %v1005 = vshrl.u32 %v1004, 7
    %v1006 = vsub.s32 0, %v1005
    %v1007 = vrot.slane %v515, %v1006
    %v1025 = vunpack.c.l.b16 %v499
    %v1026 = vunpack.c.l.b16 %v500
    %v1027 = vunpack.c.l.b16 %v501
    %v1028 = vunpack.c.l.b16 %v502
    %v1029 = vunpack.c.l.b16 %v503
    %v1030 = vunpack.c.l.b16 %v504
    %v1031 = vunpack.c.l.b16 %v505
    %v1032 = vunpack.c.l.b16 %v506
    %v1033 = vunpack.c.l.b16 %v507
    %v1034 = vunpack.c.l.b16 %v508
    %v1035 = vunpack.c.l.b16 %v509
    %v1036 = vunpack.c.l.b16 %v510
    %v1037 = vunpack.c.l.b16 %v511
    %v1038 = vunpack.c.l.b16 %v512
    %v1039 = vunpack.c.l.b16 %v513
    %v1040 = vunpack.c.l.b16 %v514
    %v1041 = vpack.c.b16 %v1026, %v1025
    %v1042 = vpack.c.b16 %v1028, %v1027
    %v1043 = vpack.c.b16 %v1030, %v1029
    %v1044 = vpack.c.b16 %v1032, %v1031
    %v1045 = vpack.c.b16 %v1034, %v1033
    %v1046 = vpack.c.b16 %v1036, %v1035
    %v1047 = vpack.c.b16 %v1038, %v1037
    %v1048 = vpack.c.b16 %v1040, %v1039
    %1057 = vmatprep.subr.bf16.mxu0 0
    %1058 = vmatpush1.bf16.msra.mxu0 %v1041
    %1059 = vmatprep.subr.bf16.mxu0 0
    %1060 = vmatpush1.bf16.msra.mxu0 %v1042
    %1061 = vmatprep.subr.bf16.mxu0 0
    %1062 = vmatpush1.bf16.msra.mxu0 %v1043
    %1063 = vmatprep.subr.bf16.mxu0 0
    %1064 = vmatpush1.bf16.msra.mxu0 %v1044
    %1065 = vmatprep.subr.bf16.mxu0 0
    %1066 = vmatpush1.bf16.msra.mxu0 %v1045
    %1067 = vmatprep.subr.bf16.mxu0 0
    %1068 = vmatpush1.bf16.msra.mxu0 %v1046
    %1069 = vmatprep.subr.bf16.mxu0 0
    %1070 = vmatpush1.bf16.msra.mxu0 %v1047
    %1071 = vmatprep.subr.bf16.mxu0 0
    %1072 = vmatpush1.bf16.msra.mxu0 %v1048
    %1073 = vmatprep.subr.bf16.mxu0 0
    %1074 = vmatpush1.bf16.msra.mxu0 0
    %1075 = vmatprep.subr.bf16.mxu0 0
    %1076 = vmatpush1.bf16.msra.mxu0 0
    %1077 = vmatprep.subr.bf16.mxu0 0
    %1078 = vmatpush1.bf16.msra.mxu0 0
    %1079 = vmatprep.subr.bf16.mxu0 0
    %1080 = vmatpush1.bf16.msra.mxu0 0
    %1081 = vmatprep.subr.bf16.mxu0 0
    %1082 = vmatpush1.bf16.msra.mxu0 0
    %1083 = vmatprep.subr.bf16.mxu0 0
    %1084 = vmatpush1.bf16.msra.mxu0 0
    %1085 = vmatprep.subr.bf16.mxu0 0
    %1086 = vmatpush1.bf16.msra.mxu0 0
    %1087 = vmatprep.subr.bf16.mxu0 0
    %1088 = vmatpush1.bf16.msra.mxu0 0
    %1089 = vmatprep.mubr.bf16.mxu0 0
    %1090 = vmatmul.mubr.bf16.gmra.mrb[0].mxu0 %v1002
    %v1091 = vpop.f32.mrb[0].mxu0
    %v1092 = vadd.f32 %v1007, %v1091
    %v1093 = vpop.f32.mrb[0].mxu0
    %v1094 = vpop.f32.mrb[0].mxu0
    %v1095 = vadd.f32 %v1007, %v1094
    %v1096 = vpop.f32.mrb[0].mxu0
    %1097 = vdwg.mxu0
    %v1098 = vadd.f32 %v219, %v1092
    %v1099 = vadd.f32 %v220, %v1095
    %1100 = vadd.xlane.f32.xlu0 %v1098
    %v1101 = vpop.xlane.xlu0 %1100
    %1102 = vadd.xlane.f32.xlu0 %v1099
    %v1103 = vpop.xlane.xlu0 %1102
    %v1104 = vrcp.pop 128.0
    %v1105 = vmul.f32 %v1101, %v1104
    %v1106 = vmul.f32 %v1103, %v1104
    %v1107 = vsub.f32 %v1098, %v1105
    %v1108 = vsub.f32 %v1099, %v1106
    %v1109 = vmul.f32 %v1107, %v1107
    %v1110 = vmul.f32 %v1108, %v1108
    %1111 = vadd.xlane.f32.xlu0 %v1109
    %v1112 = vpop.xlane.xlu0 %1111
    %1113 = vadd.xlane.f32.xlu0 %v1110
    %v1114 = vpop.xlane.xlu0 %1113
    %v1115 = vmul.f32 %v1112, %v1104
    %v1116 = vmul.f32 %v1114, %v1104
    %v1117 = vadd.f32 %v1115, 1e-05
    %v1118 = vadd.f32 %v1116, 1e-05
    %v1119 = vrsqrt.pop %v1117
    %v1120 = vrsqrt.pop %v1118
    %v1121 = vmul.f32 %v1107, %v1119
    %v1122 = vmul.f32 %v1108, %v1120
    %v1124 = vlaneseq
    %v1125 = vshrl.u32 %v1124, 7
    %v1126 = vsub.s32 0, %v1125
    %v1127 = vrot.slane %v230, %v1126
    %v1129 = vmul.f32 %v1121, %v1127
    %v1130 = vmul.f32 %v1122, %v1127
    %v1132 = vlaneseq
    %v1133 = vshrl.u32 %v1132, 7
    %v1134 = vsub.s32 0, %v1133
    %v1135 = vrot.slane %v233, %v1134
    %v1137 = vadd.f32 %v1129, %v1135
    %v1138 = vadd.f32 %v1130, %v1135
    %v1139 = vpack.c.bf16 %v1138, %v1137
    %v1140 = vld [vmem:[#allocation4] sm:$0xf]
    %v1141 = vld [vmem:[#allocation4 + $0xc] sm:$0xf]
    %v1142 = vld [vmem:[#allocation4 + $0x18] sm:$0xf]
    %v1143 = vld [vmem:[#allocation4 + $0x24] sm:$0xf]
    %v1144 = vld [vmem:[#allocation4 + $0x30] sm:$0xf]
    %v1145 = vld [vmem:[#allocation4 + $0x3c] sm:$0xf]
    %v1146 = vld [vmem:[#allocation4 + $0x48] sm:$0xf]
    %v1147 = vld [vmem:[#allocation4 + $0x54] sm:$0xf]
    %v1148 = vld [vmem:[#allocation4 + $0x60] sm:$0xf]
    %v1149 = vld [vmem:[#allocation4 + $0x6c] sm:$0xf]
    %v1150 = vld [vmem:[#allocation4 + $0x78] sm:$0xf]
    %v1151 = vld [vmem:[#allocation4 + $0x84] sm:$0xf]
    %v1152 = vld [vmem:[#allocation4 + $0x90] sm:$0xf]
    %v1153 = vld [vmem:[#allocation4 + $0x9c] sm:$0xf]
    %v1154 = vld [vmem:[#allocation4 + $0xa8] sm:$0xf]
    %v1155 = vld [vmem:[#allocation4 + $0xb4] sm:$0xf]
    %v1156 = vld [vmem:[#allocation6] sm:$0x1]
    %v1158 = vlaneseq
    %v1159 = vshrl.u32 %v1158, 7
    %v1160 = vsub.s32 0, %v1159
    %v1161 = vrot.slane %v1156, %v1160
    %v1179 = vunpack.c.l.b16 %v1140
    %v1180 = vunpack.c.l.b16 %v1141
    %v1181 = vunpack.c.l.b16 %v1142
    %v1182 = vunpack.c.l.b16 %v1143
    %v1183 = vunpack.c.l.b16 %v1144
    %v1184 = vunpack.c.l.b16 %v1145
    %v1185 = vunpack.c.l.b16 %v1146
    %v1186 = vunpack.c.l.b16 %v1147
    %v1187 = vunpack.c.l.b16 %v1148
    %v1188 = vunpack.c.l.b16 %v1149
    %v1189 = vunpack.c.l.b16 %v1150
    %v1190 = vunpack.c.l.b16 %v1151
    %v1191 = vunpack.c.l.b16 %v1152
    %v1192 = vunpack.c.l.b16 %v1153
    %v1193 = vunpack.c.l.b16 %v1154
    %v1194 = vunpack.c.l.b16 %v1155
    %v1195 = vpack.c.b16 %v1180, %v1179
    %v1196 = vpack.c.b16 %v1182, %v1181
    %v1197 = vpack.c.b16 %v1184, %v1183
    %v1198 = vpack.c.b16 %v1186, %v1185
    %v1199 = vpack.c.b16 %v1188, %v1187
    %v1200 = vpack.c.b16 %v1190, %v1189
    %v1201 = vpack.c.b16 %v1192, %v1191
    %v1202 = vpack.c.b16 %v1194, %v1193
    %1211 = vmatprep.subr.bf16.mxu0 0
    %1212 = vmatpush1.bf16.msra.mxu0 %v1195
    %1213 = vmatprep.subr.bf16.mxu0 0
    %1214 = vmatpush1.bf16.msra.mxu0 %v1196
    %1215 = vmatprep.subr.bf16.mxu0 0
    %1216 = vmatpush1.bf16.msra.mxu0 %v1197
    %1217 = vmatprep.subr.bf16.mxu0 0
    %1218 = vmatpush1.bf16.msra.mxu0 %v1198
    %1219 = vmatprep.subr.bf16.mxu0 0
    %1220 = vmatpush1.bf16.msra.mxu0 %v1199
    %1221 = vmatprep.subr.bf16.mxu0 0
    %1222 = vmatpush1.bf16.msra.mxu0 %v1200
    %1223 = vmatprep.subr.bf16.mxu0 0
    %1224 = vmatpush1.bf16.msra.mxu0 %v1201
    %1225 = vmatprep.subr.bf16.mxu0 0
    %1226 = vmatpush1.bf16.msra.mxu0 %v1202
    %1227 = vmatprep.subr.bf16.mxu0 0
    %1228 = vmatpush1.bf16.msra.mxu0 0
    %1229 = vmatprep.subr.bf16.mxu0 0
    %1230 = vmatpush1.bf16.msra.mxu0 0
    %1231 = vmatprep.subr.bf16.mxu0 0
    %1232 = vmatpush1.bf16.msra.mxu0 0
    %1233 = vmatprep.subr.bf16.mxu0 0
    %1234 = vmatpush1.bf16.msra.mxu0 0
    %1235 = vmatprep.subr.bf16.mxu0 0
    %1236 = vmatpush1.bf16.msra.mxu0 0
    %1237 = vmatprep.subr.bf16.mxu0 0
    %1238 = vmatpush1.bf16.msra.mxu0 0
    %1239 = vmatprep.subr.bf16.mxu0 0
    %1240 = vmatpush1.bf16.msra.mxu0 0
    %1241 = vmatprep.subr.bf16.mxu0 0
    %1242 = vmatpush1.bf16.msra.mxu0 0
    %1243 = vmatprep.mubr.bf16.mxu0 0
    %1244 = vmatmul.mubr.bf16.gmra.mrb[0].mxu0 %v1139
    %v1245 = vpop.f32.mrb[0].mxu0
    %v1246 = vadd.f32 %v1161, %v1245
    %v1247 = vpop.f32.mrb[0].mxu0
    %v1248 = vpop.f32.mrb[0].mxu0
    %v1249 = vadd.f32 %v1161, %v1248
    %v1250 = vpop.f32.mrb[0].mxu0
    %1251 = vdwg.mxu0
    %v1252 = vmul.f32 %v1246, 0.17677669
    %v1253 = vmul.f32 %v1249, 0.17677669
    %v1254 = vld [vmem:[#allocation4 + $0x4] sm:$0xff]
    %v1255 = vld [vmem:[#allocation4 + $0x10] sm:$0xff]
    %v1256 = vld [vmem:[#allocation4 + $0x1c] sm:$0xff]
    %v1257 = vld [vmem:[#allocation4 + $0x28] sm:$0xff]
    %v1258 = vld [vmem:[#allocation4 + $0x34] sm:$0xff]
    %v1259 = vld [vmem:[#allocation4 + $0x40] sm:$0xff]
    %v1260 = vld [vmem:[#allocation4 + $0x4c] sm:$0xff]
    %v1261 = vld [vmem:[#allocation4 + $0x58] sm:$0xff]
    %v1262 = vld [vmem:[#allocation4 + $0x64] sm:$0xff]
    %v1263 = vld [vmem:[#allocation4 + $0x70] sm:$0xff]
    %v1264 = vld [vmem:[#allocation4 + $0x7c] sm:$0xff]
    %v1265 = vld [vmem:[#allocation4 + $0x88] sm:$0xff]
    %v1266 = vld [vmem:[#allocation4 + $0x94] sm:$0xff]
    %v1267 = vld [vmem:[#allocation4 + $0xa0] sm:$0xff]
    %v1268 = vld [vmem:[#allocation4 + $0xac] sm:$0xff]
    %v1269 = vld [vmem:[#allocation4 + $0xb8] sm:$0xff]
    %v1270 = vld [vmem:[#allocation6 + $0x1] sm:$0x3]
    %v1272 = vlaneseq
    %v1273 = vshrl.u32 %v1272, 7
    %v1274 = vsub.s32 0, %v1273
    %v1275 = vrot.slane %v1270, %v1274
    %v1276 = vlaneseq
    %v1277 = vshrl.u32 %v1276, 7
    %v1278 = vsub.s32 1, %v1277
    %v1279 = vrot.slane %v1270, %v1278
    %v1298 = vunpack.c.l.b16 %v1254
    %v1299 = vunpack.c.h.b16 %v1254
    %v1300 = vunpack.c.l.b16 %v1255
    %v1301 = vunpack.c.h.b16 %v1255
    %v1302 = vunpack.c.l.b16 %v1256
    %v1303 = vunpack.c.h.b16 %v1256
    %v1304 = vunpack.c.l.b16 %v1257
    %v1305 = vunpack.c.h.b16 %v1257
    %v1306 = vunpack.c.l.b16 %v1258
    %v1307 = vunpack.c.h.b16 %v1258
    %v1308 = vunpack.c.l.b16 %v1259
    %v1309 = vunpack.c.h.b16 %v1259
    %v1310 = vunpack.c.l.b16 %v1260
    %v1311 = vunpack.c.h.b16 %v1260
    %v1312 = vunpack.c.l.b16 %v1261
    %v1313 = vunpack.c.h.b16 %v1261
    %v1314 = vunpack.c.l.b16 %v1262
    %v1315 = vunpack.c.h.b16 %v1262
    %v1316 = vunpack.c.l.b16 %v1263
    %v1317 = vunpack.c.h.b16 %v1263
    %v1318 = vunpack.c.l.b16 %v1264
    %v1319 = vunpack.c.h.b16 %v1264
    %v1320 = vunpack.c.l.b16 %v1265
    %v1321 = vunpack.c.h.b16 %v1265
    %v1322 = vunpack.c.l.b16 %v1266
    %v1323 = vunpack.c.h.b16 %v1266
    %v1324 = vunpack.c.l.b16 %v1267
    %v1325 = vunpack.c.h.b16 %v1267
    %v1326 = vunpack.c.l.b16 %v1268
    %v1327 = vunpack.c.h.b16 %v1268
    %v1328 = vunpack.c.l.b16 %v1269
    %v1329 = vunpack.c.h.b16 %v1269
    %v1330 = vpack.c.b16 %v1300, %v1298
    %v1331 = vpack.c.b16 %v1301, %v1299
    %v1332 = vpack.c.b16 %v1304, %v1302
    %v1333 = vpack.c.b16 %v1305, %v1303
    %v1334 = vpack.c.b16 %v1308, %v1306
    %v1335 = vpack.c.b16 %v1309, %v1307
    %v1336 = vpack.c.b16 %v1312, %v1310
    %v1337 = vpack.c.b16 %v1313, %v1311
    %v1338 = vpack.c.b16 %v1316, %v1314
    %v1339 = vpack.c.b16 %v1317, %v1315
    %v1340 = vpack.c.b16 %v1320, %v1318
    %v1341 = vpack.c.b16 %v1321, %v1319
    %v1342 = vpack.c.b16 %v1324, %v1322
    %v1343 = vpack.c.b16 %v1325, %v1323
    %v1344 = vpack.c.b16 %v1328, %v1326
    %v1345 = vpack.c.b16 %v1329, %v1327
    %1362 = vmatprep.subr.bf16.mxu0 %v1331
    %1363 = vmatpush1.bf16.msra.mxu0 %v1330
    %1364 = vmatprep.subr.bf16.mxu0 %v1333
    %1365 = vmatpush1.bf16.msra.mxu0 %v1332
    %1366 = vmatprep.subr.bf16.mxu0 %v1335
    %1367 = vmatpush1.bf16.msra.mxu0 %v1334
    %1368 = vmatprep.subr.bf16.mxu0 %v1337
    %1369 = vmatpush1.bf16.msra.mxu0 %v1336
    %1370 = vmatprep.subr.bf16.mxu0 %v1339
    %1371 = vmatpush1.bf16.msra.mxu0 %v1338
    %1372 = vmatprep.subr.bf16.mxu0 %v1341
    %1373 = vmatpush1.bf16.msra.mxu0 %v1340
    %1374 = vmatprep.subr.bf16.mxu0 %v1343
    %1375 = vmatpush1.bf16.msra.mxu0 %v1342
    %1376 = vmatprep.subr.bf16.mxu0 %v1345
    %1377 = vmatpush1.bf16.msra.mxu0 %v1344
    %1378 = vmatprep.subr.bf16.mxu0 0
    %1379 = vmatpush1.bf16.msra.mxu0 0
    %1380 = vmatprep.subr.bf16.mxu0 0
    %1381 = vmatpush1.bf16.msra.mxu0 0
    %1382 = vmatprep.subr.bf16.mxu0 0
    %1383 = vmatpush1.bf16.msra.mxu0 0
    %1384 = vmatprep.subr.bf16.mxu0 0
    %1385 = vmatpush1.bf16.msra.mxu0 0
    %1386 = vmatprep.subr.bf16.mxu0 0
    %1387 = vmatpush1.bf16.msra.mxu0 0
    %1388 = vmatprep.subr.bf16.mxu0 0
    %1389 = vmatpush1.bf16.msra.mxu0 0
    %1390 = vmatprep.subr.bf16.mxu0 0
    %1391 = vmatpush1.bf16.msra.mxu0 0
    %1392 = vmatprep.subr.bf16.mxu0 0
    %1393 = vmatpush1.bf16.msra.mxu0 0
    %1394 = vmatprep.mubr.bf16.mxu0 0
    %1395 = vmatmul.mubr.bf16.gmra.mrb[0].mxu0 %v221
    %v1396 = vpop.f32.mrb[0].mxu0
    %v1397 = vadd.f32 %v1275, %v1396
    %v1398 = vpop.f32.mrb[0].mxu0
    %v1399 = vadd.f32 %v1279, %v1398
    %v1400 = vpop.f32.mrb[0].mxu0
    %v1401 = vadd.f32 %v1275, %v1400
    %v1402 = vpop.f32.mrb[0].mxu0
    %v1403 = vadd.f32 %v1279, %v1402
    %1404 = vdwg.mxu0
    %v1405 = vld [vmem:[#allocation7] sm:$0xf]
    %v1406 = vld [vmem:[#allocation7 + $0x4] sm:$0xf]
    %v1407 = vld [vmem:[#allocation7 + $0x8] sm:$0xf]
    %v1408 = vld [vmem:[#allocation7 + $0xc] sm:$0xf]
    %v1409 = vld [vmem:[#allocation7 + $0x10] sm:$0xf]
    %v1410 = vld [vmem:[#allocation7 + $0x14] sm:$0xf]
    %v1411 = vld [vmem:[#allocation7 + $0x18] sm:$0xf]
    %v1412 = vld [vmem:[#allocation7 + $0x1c] sm:$0xf]
    %v1413 = vld [vmem:[#allocation7 + $0x20] sm:$0xf]
    %v1414 = vld [vmem:[#allocation7 + $0x24] sm:$0xf]
    %v1415 = vld [vmem:[#allocation7 + $0x28] sm:$0xf]
    %v1416 = vld [vmem:[#allocation7 + $0x2c] sm:$0xf]
    %v1417 = vld [vmem:[#allocation7 + $0x30] sm:$0xf]
    %v1418 = vld [vmem:[#allocation7 + $0x34] sm:$0xf]
    %v1419 = vld [vmem:[#allocation7 + $0x38] sm:$0xf]
    %v1420 = vld [vmem:[#allocation7 + $0x3c] sm:$0xf]
    %v1421 = vld [vmem:[#allocation9] sm:$0x1]
    %v1422 = vpack.c.bf16 %v1401, %v1397
    %v1423 = vmul.f32 %v1252, %v521
    %v1424 = vmul.f32 %v1253, %v521
    %v1425 = vpack.c.bf16 %v1424, %v1423
    %1426 = vmatprep.subr.bf16.mxu0 0
    %1427 = vmatpush1.bf16.xpose.msra.mxu0 %v1422
    %1428 = vmatprep.subr.bf16.mxu0 0
    %1429 = vmatpush1.bf16.xpose.msra.mxu0 0
    %1430 = vmatprep.subr.bf16.mxu0 0
    %1431 = vmatpush1.bf16.xpose.msra.mxu0 0
    %1432 = vmatprep.subr.bf16.mxu0 0
    %1433 = vmatpush1.bf16.xpose.msra.mxu0 0
    %1434 = vmatprep.subr.bf16.mxu0 0
    %1435 = vmatpush1.bf16.xpose.msra.mxu0 0
    %1436 = vmatprep.subr.bf16.mxu0 0
    %1437 = vmatpush1.bf16.xpose.msra.mxu0 0
    %1438 = vmatprep.subr.bf16.mxu0 0
    %1439 = vmatpush1.bf16.xpose.msra.mxu0 0
    %1440 = vmatprep.subr.bf16.mxu0 0
    %1441 = vmatpush1.bf16.xpose.msra.mxu0 0
    %1442 = vmatprep.subr.bf16.mxu0 0
    %1443 = vmatpush1.bf16.xpose.msra.mxu0 0
    %1444 = vmatprep.subr.bf16.mxu0 0
    %1445 = vmatpush1.bf16.xpose.msra.mxu0 0
    %1446 = vmatprep.subr.bf16.mxu0 0
    %1447 = vmatpush1.bf16.xpose.msra.mxu0 0
    %1448 = vmatprep.subr.bf16.mxu0 0
    %1449 = vmatpush1.bf16.xpose.msra.mxu0 0
    %1450 = vmatprep.subr.bf16.mxu0 0
    %1451 = vmatpush1.bf16.xpose.msra.mxu0 0
    %1452 = vmatprep.subr.bf16.mxu0 0
    %1453 = vmatpush1.bf16.xpose.msra.mxu0 0
    %1454 = vmatprep.subr.bf16.mxu0 0
    %1455 = vmatpush1.bf16.xpose.msra.mxu0 0
    %1456 = vmatprep.subr.bf16.mxu0 0
    %1457 = vmatpush1.bf16.xpose.msra.mxu0 0
    %1458 = vmatprep.mubr.bf16.mxu0 0
    %1459 = vmatmul.mubr.bf16.gmra.mrb[0].mxu0 %v1425
    %v1460 = vpop.f32.mrb[0].mxu0
    %v1461 = vadd.f32 %v224, %v1460
    %v1462 = vpop.f32.mrb[0].mxu0
    %v1463 = vpop.f32.mrb[0].mxu0
    %v1464 = vadd.f32 %v225, %v1463
    %v1465 = vpop.f32.mrb[0].mxu0
    %1466 = vdwg.mxu0
    %v1467 = vsel %vm567, %v1461, -inf
    %1468 = vmax.xlane.f32.xlu0 %v1467
    %v1469 = vpop.xlane.xlu0 %1468
    %v1470 = vsel %vm567, %v1464, -inf
    %1471 = vmax.xlane.f32.xlu0 %v1470
    %v1472 = vpop.xlane.xlu0 %1471
    %v1473 = vsub.f32 %v1461, %v1469
    %v1474 = vsub.f32 %v1464, %v1472
    %v1475 = vmul.f32 %v1473, 1.442695
    %v1476 = vpow.pop %v1475
    %v1477 = vmul.f32 %v1474, 1.442695
    %v1478 = vpow.pop %v1477
    %v1479 = vsel %vm567, %v1476, 0.0
    %1480 = vadd.xlane.f32.xlu0 %v1479
    %v1481 = vpop.xlane.xlu0 %1480
    %v1482 = vsel %vm567, %v1478, 0.0
    %1483 = vadd.xlane.f32.xlu0 %v1482
    %v1484 = vpop.xlane.xlu0 %1483
    %v1485 = vrcp.pop %v1481
    %v1486 = vrcp.pop %v1484
    %v1487 = vmul.f32 %v1476, %v1485
    %v1488 = vmul.f32 %v1478, %v1486
    %v1489 = vmul.f32 %v1399, %v521
    %v1490 = vmul.f32 %v1403, %v521
    %v1491 = vpack.c.bf16 %v1490, %v1489
    %v1492 = vpack.c.bf16 %v1488, %v1487
    %v1493 = vmul.f32 %v1252, %v598
    %v1494 = vmul.f32 %v1253, %v598
    %v1495 = vpack.c.bf16 %v1494, %v1493
    %1496 = vmatprep.subr.bf16.mxu0 0
    %1497 = vmatpush1.bf16.xpose.msra.mxu0 %v1422
    %1498 = vmatprep.subr.bf16.mxu0 0
    %1499 = vmatpush1.bf16.xpose.msra.mxu0 0
    %1500 = vmatprep.subr.bf16.mxu0 0
    %1501 = vmatpush1.bf16.xpose.msra.mxu0 0
    %1502 = vmatprep.subr.bf16.mxu0 0
    %1503 = vmatpush1.bf16.xpose.msra.mxu0 0
    %1504 = vmatprep.subr.bf16.mxu0 0
    %1505 = vmatpush1.bf16.xpose.msra.mxu0 0
    %1506 = vmatprep.subr.bf16.mxu0 0
    %1507 = vmatpush1.bf16.xpose.msra.mxu0 0
    %1508 = vmatprep.subr.bf16.mxu0 0
    %1509 = vmatpush1.bf16.xpose.msra.mxu0 0
    %1510 = vmatprep.subr.bf16.mxu0 0
    %1511 = vmatpush1.bf16.xpose.msra.mxu0 0
    %1512 = vmatprep.subr.bf16.mxu0 0
    %1513 = vmatpush1.bf16.xpose.msra.mxu0 0
    %1514 = vmatprep.subr.bf16.mxu0 0
    %1515 = vmatpush1.bf16.xpose.msra.mxu0 0
    %1516 = vmatprep.subr.bf16.mxu0 0
    %1517 = vmatpush1.bf16.xpose.msra.mxu0 0
    %1518 = vmatprep.subr.bf16.mxu0 0
    %1519 = vmatpush1.bf16.xpose.msra.mxu0 0
    %1520 = vmatprep.subr.bf16.mxu0 0
    %1521 = vmatpush1.bf16.xpose.msra.mxu0 0
    %1522 = vmatprep.subr.bf16.mxu0 0
    %1523 = vmatpush1.bf16.xpose.msra.mxu0 0
    %1524 = vmatprep.subr.bf16.mxu0 0
    %1525 = vmatpush1.bf16.xpose.msra.mxu0 0
    %1526 = vmatprep.subr.bf16.mxu0 0
    %1527 = vmatpush1.bf16.xpose.msra.mxu0 0
    %1528 = vmatprep.mubr.bf16.mxu0 0
    %1529 = vmatmul.mubr.bf16.gmra.mrb[0].mxu0 %v1495
    %v1530 = vpop.f32.mrb[0].mxu0
    %v1531 = vadd.f32 %v224, %v1530
    %v1532 = vpop.f32.mrb[0].mxu0
    %v1533 = vpop.f32.mrb[0].mxu0
    %v1534 = vadd.f32 %v225, %v1533
    %v1535 = vpop.f32.mrb[0].mxu0
    %1536 = vdwg.mxu0
    %v1537 = vsel %vm567, %v1531, -inf
    %1538 = vmax.xlane.f32.xlu0 %v1537
    %v1539 = vpop.xlane.xlu0 %1538
    %v1540 = vsel %vm567, %v1534, -inf
    %1541 = vmax.xlane.f32.xlu0 %v1540
    %v1542 = vpop.xlane.xlu0 %1541
    %v1543 = vsub.f32 %v1531, %v1539
    %v1544 = vsub.f32 %v1534, %v1542
    %v1545 = vmul.f32 %v1543, 1.442695
    %v1546 = vpow.pop %v1545
    %v1547 = vmul.f32 %v1544, 1.442695
    %v1548 = vpow.pop %v1547
    %v1549 = vsel %vm567, %v1546, 0.0
    %1550 = vadd.xlane.f32.xlu0 %v1549
    %v1551 = vpop.xlane.xlu0 %1550
    %v1552 = vsel %vm567, %v1548, 0.0
    %1553 = vadd.xlane.f32.xlu0 %v1552
    %v1554 = vpop.xlane.xlu0 %1553
    %v1555 = vrcp.pop %v1551
    %v1556 = vrcp.pop %v1554
    %v1557 = vmul.f32 %v1546, %v1555
    %v1558 = vmul.f32 %v1548, %v1556
    %v1559 = vmul.f32 %v1399, %v598
    %v1560 = vmul.f32 %v1403, %v598
    %v1561 = vpack.c.bf16 %v1560, %v1559
    %v1562 = vpack.c.bf16 %v1558, %v1557
    %v1564 = vsel %vm567, %v1562, 0
    %1566 = vmatprep.subr.bf16.mxu0 0
    %1567 = vmatpush1.bf16.msra.mxu0 %v1561
    %1568 = vmatprep.subr.bf16.mxu0 0
    %1569 = vmatpush1.bf16.msra.mxu0 0
    %1570 = vmatprep.subr.bf16.mxu0 0
    %1571 = vmatpush1.bf16.msra.mxu0 0
    %1572 = vmatprep.subr.bf16.mxu0 0
    %1573 = vmatpush1.bf16.msra.mxu0 0
    %1574 = vmatprep.subr.bf16.mxu0 0
    %1575 = vmatpush1.bf16.msra.mxu0 0
    %1576 = vmatprep.subr.bf16.mxu0 0
    %1577 = vmatpush1.bf16.msra.mxu0 0
    %1578 = vmatprep.subr.bf16.mxu0 0
    %1579 = vmatpush1.bf16.msra.mxu0 0
    %1580 = vmatprep.subr.bf16.mxu0 0
    %1581 = vmatpush1.bf16.msra.mxu0 0
    %1582 = vmatprep.subr.bf16.mxu0 0
    %1583 = vmatpush1.bf16.msra.mxu0 0
    %1584 = vmatprep.subr.bf16.mxu0 0
    %1585 = vmatpush1.bf16.msra.mxu0 0
    %1586 = vmatprep.subr.bf16.mxu0 0
    %1587 = vmatpush1.bf16.msra.mxu0 0
    %1588 = vmatprep.subr.bf16.mxu0 0
    %1589 = vmatpush1.bf16.msra.mxu0 0
    %1590 = vmatprep.subr.bf16.mxu0 0
    %1591 = vmatpush1.bf16.msra.mxu0 0
    %1592 = vmatprep.subr.bf16.mxu0 0
    %1593 = vmatpush1.bf16.msra.mxu0 0
    %1594 = vmatprep.subr.bf16.mxu0 0
    %1595 = vmatpush1.bf16.msra.mxu0 0
    %1596 = vmatprep.subr.bf16.mxu0 0
    %1597 = vmatpush1.bf16.msra.mxu0 0
    %1598 = vmatprep.mubr.bf16.mxu0 0
    %1599 = vmatmul.mubr.bf16.gmra.mrb[0].mxu0 %v1564
    %v1600 = vpop.f32.mrb[0].mxu0
    %v1601 = vadd.f32 0.0, %v1600
    %v1602 = vpop.f32.mrb[0].mxu0
    %v1603 = vpop.f32.mrb[0].mxu0
    %v1604 = vadd.f32 0.0, %v1603
    %v1605 = vpop.f32.mrb[0].mxu0
    %1606 = vdwg.mxu0
    %v1608 = vsel %vm567, %v1492, 0
    %1610 = vmatprep.subr.bf16.mxu0 0
    %1611 = vmatpush1.bf16.msra.mxu0 %v1491
    %1612 = vmatprep.subr.bf16.mxu0 0
    %1613 = vmatpush1.bf16.msra.mxu0 0
    %1614 = vmatprep.subr.bf16.mxu0 0
    %1615 = vmatpush1.bf16.msra.mxu0 0
    %1616 = vmatprep.subr.bf16.mxu0 0
    %1617 = vmatpush1.bf16.msra.mxu0 0
    %1618 = vmatprep.subr.bf16.mxu0 0
    %1619 = vmatpush1.bf16.msra.mxu0 0
    %1620 = vmatprep.subr.bf16.mxu0 0
    %1621 = vmatpush1.bf16.msra.mxu0 0
    %1622 = vmatprep.subr.bf16.mxu0 0
    %1623 = vmatpush1.bf16.msra.mxu0 0
    %1624 = vmatprep.subr.bf16.mxu0 0
    %1625 = vmatpush1.bf16.msra.mxu0 0
    %1626 = vmatprep.subr.bf16.mxu0 0
    %1627 = vmatpush1.bf16.msra.mxu0 0
    %1628 = vmatprep.subr.bf16.mxu0 0
    %1629 = vmatpush1.bf16.msra.mxu0 0
    %1630 = vmatprep.subr.bf16.mxu0 0
    %1631 = vmatpush1.bf16.msra.mxu0 0
    %1632 = vmatprep.subr.bf16.mxu0 0
    %1633 = vmatpush1.bf16.msra.mxu0 0
    %1634 = vmatprep.subr.bf16.mxu0 0
    %1635 = vmatpush1.bf16.msra.mxu0 0
    %1636 = vmatprep.subr.bf16.mxu0 0
    %1637 = vmatpush1.bf16.msra.mxu0 0
    %1638 = vmatprep.subr.bf16.mxu0 0
    %1639 = vmatpush1.bf16.msra.mxu0 0
    %1640 = vmatprep.subr.bf16.mxu0 0
    %1641 = vmatpush1.bf16.msra.mxu0 0
    %1642 = vmatprep.mubr.bf16.mxu0 0
    %1643 = vmatmul.mubr.bf16.gmra.mrb[0].mxu0 %v1608
    %v1644 = vpop.f32.mrb[0].mxu0
    %v1645 = vadd.f32 %v1601, %v1644
    %v1646 = vpop.f32.mrb[0].mxu0
    %v1647 = vpop.f32.mrb[0].mxu0
    %v1648 = vadd.f32 %v1604, %v1647
    %v1649 = vpop.f32.mrb[0].mxu0
    %1650 = vdwg.mxu0
    %v1651 = vmul.f32 %v1252, %v762
    %v1652 = vmul.f32 %v1253, %v762
    %v1653 = vpack.c.bf16 %v1652, %v1651
    %1654 = vmatprep.subr.bf16.mxu0 0
    %1655 = vmatpush1.bf16.xpose.msra.mxu0 %v1422
    %1656 = vmatprep.subr.bf16.mxu0 0
    %1657 = vmatpush1.bf16.xpose.msra.mxu0 0
    %1658 = vmatprep.subr.bf16.mxu0 0
    %1659 = vmatpush1.bf16.xpose.msra.mxu0 0
    %1660 = vmatprep.subr.bf16.mxu0 0
    %1661 = vmatpush1.bf16.xpose.msra.mxu0 0
    %1662 = vmatprep.subr.bf16.mxu0 0
    %1663 = vmatpush1.bf16.xpose.msra.mxu0 0
    %1664 = vmatprep.subr.bf16.mxu0 0
    %1665 = vmatpush1.bf16.xpose.msra.mxu0 0
    %1666 = vmatprep.subr.bf16.mxu0 0
    %1667 = vmatpush1.bf16.xpose.msra.mxu0 0
    %1668 = vmatprep.subr.bf16.mxu0 0
    %1669 = vmatpush1.bf16.xpose.msra.mxu0 0
    %1670 = vmatprep.subr.bf16.mxu0 0
    %1671 = vmatpush1.bf16.xpose.msra.mxu0 0
    %1672 = vmatprep.subr.bf16.mxu0 0
    %1673 = vmatpush1.bf16.xpose.msra.mxu0 0
    %1674 = vmatprep.subr.bf16.mxu0 0
    %1675 = vmatpush1.bf16.xpose.msra.mxu0 0
    %1676 = vmatprep.subr.bf16.mxu0 0
    %1677 = vmatpush1.bf16.xpose.msra.mxu0 0
    %1678 = vmatprep.subr.bf16.mxu0 0
    %1679 = vmatpush1.bf16.xpose.msra.mxu0 0
    %1680 = vmatprep.subr.bf16.mxu0 0
    %1681 = vmatpush1.bf16.xpose.msra.mxu0 0
    %1682 = vmatprep.subr.bf16.mxu0 0
    %1683 = vmatpush1.bf16.xpose.msra.mxu0 0
    %1684 = vmatprep.subr.bf16.mxu0 0
    %1685 = vmatpush1.bf16.xpose.msra.mxu0 0
    %1686 = vmatprep.mubr.bf16.mxu0 0
    %1687 = vmatmul.mubr.bf16.gmra.mrb[0].mxu0 %v1653
    %v1688 = vpop.f32.mrb[0].mxu0
    %v1689 = vadd.f32 %v224, %v1688
    %v1690 = vpop.f32.mrb[0].mxu0
    %v1691 = vpop.f32.mrb[0].mxu0
    %v1692 = vadd.f32 %v225, %v1691
    %v1693 = vpop.f32.mrb[0].mxu0
    %1694 = vdwg.mxu0
    %v1695 = vsel %vm567, %v1689, -inf
    %1696 = vmax.xlane.f32.xlu0 %v1695
    %v1697 = vpop.xlane.xlu0 %1696
    %v1698 = vsel %vm567, %v1692, -inf
    %1699 = vmax.xlane.f32.xlu0 %v1698
    %v1700 = vpop.xlane.xlu0 %1699
    %v1701 = vsub.f32 %v1689, %v1697
    %v1702 = vsub.f32 %v1692, %v1700
    %v1703 = vmul.f32 %v1701, 1.442695
    %v1704 = vpow.pop %v1703
    %v1705 = vmul.f32 %v1702, 1.442695
    %v1706 = vpow.pop %v1705
    %v1707 = vsel %vm567, %v1704, 0.0
    %1708 = vadd.xlane.f32.xlu0 %v1707
    %v1709 = vpop.xlane.xlu0 %1708
    %v1710 = vsel %vm567, %v1706, 0.0
    %1711 = vadd.xlane.f32.xlu0 %v1710
    %v1712 = vpop.xlane.xlu0 %1711
    %v1713 = vrcp.pop %v1709
    %v1714 = vrcp.pop %v1712
    %v1715 = vmul.f32 %v1704, %v1713
    %v1716 = vmul.f32 %v1706, %v1714
    %v1717 = vmul.f32 %v1399, %v762
    %v1718 = vmul.f32 %v1403, %v762
    %v1719 = vpack.c.bf16 %v1718, %v1717
    %v1720 = vpack.c.bf16 %v1716, %v1715
    %v1722 = vsel %vm567, %v1720, 0
    %1724 = vmatprep.subr.bf16.mxu0 0
    %1725 = vmatpush1.bf16.msra.mxu0 %v1719
    %1726 = vmatprep.subr.bf16.mxu0 0
    %1727 = vmatpush1.bf16.msra.mxu0 0
    %1728 = vmatprep.subr.bf16.mxu0 0
    %1729 = vmatpush1.bf16.msra.mxu0 0
    %1730 = vmatprep.subr.bf16.mxu0 0
    %1731 = vmatpush1.bf16.msra.mxu0 0
    %1732 = vmatprep.subr.bf16.mxu0 0
    %1733 = vmatpush1.bf16.msra.mxu0 0
    %1734 = vmatprep.subr.bf16.mxu0 0
    %1735 = vmatpush1.bf16.msra.mxu0 0
    %1736 = vmatprep.subr.bf16.mxu0 0
    %1737 = vmatpush1.bf16.msra.mxu0 0
    %1738 = vmatprep.subr.bf16.mxu0 0
    %1739 = vmatpush1.bf16.msra.mxu0 0
    %1740 = vmatprep.subr.bf16.mxu0 0
    %1741 = vmatpush1.bf16.msra.mxu0 0
    %1742 = vmatprep.subr.bf16.mxu0 0
    %1743 = vmatpush1.bf16.msra.mxu0 0
    %1744 = vmatprep.subr.bf16.mxu0 0
    %1745 = vmatpush1.bf16.msra.mxu0 0
    %1746 = vmatprep.subr.bf16.mxu0 0
    %1747 = vmatpush1.bf16.msra.mxu0 0
    %1748 = vmatprep.subr.bf16.mxu0 0
    %1749 = vmatpush1.bf16.msra.mxu0 0
    %1750 = vmatprep.subr.bf16.mxu0 0
    %1751 = vmatpush1.bf16.msra.mxu0 0
    %1752 = vmatprep.subr.bf16.mxu0 0
    %1753 = vmatpush1.bf16.msra.mxu0 0
    %1754 = vmatprep.subr.bf16.mxu0 0
    %1755 = vmatpush1.bf16.msra.mxu0 0
    %1756 = vmatprep.mubr.bf16.mxu0 0
    %1757 = vmatmul.mubr.bf16.gmra.mrb[0].mxu0 %v1722
    %v1758 = vpop.f32.mrb[0].mxu0
    %v1759 = vadd.f32 0.0, %v1758
    %v1760 = vpop.f32.mrb[0].mxu0
    %v1761 = vpop.f32.mrb[0].mxu0
    %v1762 = vadd.f32 0.0, %v1761
    %v1763 = vpop.f32.mrb[0].mxu0
    %1764 = vdwg.mxu0
    %v1765 = vadd.f32 %v1645, %v1759
    %v1766 = vadd.f32 %v1648, %v1762
    %v1767 = vmul.f32 %v1252, %v884
    %v1768 = vmul.f32 %v1253, %v884
    %v1769 = vpack.c.bf16 %v1768, %v1767
    %1770 = vmatprep.subr.bf16.mxu0 0
    %1771 = vmatpush1.bf16.xpose.msra.mxu0 %v1422
    %1772 = vmatprep.subr.bf16.mxu0 0
    %1773 = vmatpush1.bf16.xpose.msra.mxu0 0
    %1774 = vmatprep.subr.bf16.mxu0 0
    %1775 = vmatpush1.bf16.xpose.msra.mxu0 0
    %1776 = vmatprep.subr.bf16.mxu0 0
    %1777 = vmatpush1.bf16.xpose.msra.mxu0 0
    %1778 = vmatprep.subr.bf16.mxu0 0
    %1779 = vmatpush1.bf16.xpose.msra.mxu0 0
    %1780 = vmatprep.subr.bf16.mxu0 0
    %1781 = vmatpush1.bf16.xpose.msra.mxu0 0
    %1782 = vmatprep.subr.bf16.mxu0 0
    %1783 = vmatpush1.bf16.xpose.msra.mxu0 0
    %1784 = vmatprep.subr.bf16.mxu0 0
    %1785 = vmatpush1.bf16.xpose.msra.mxu0 0
    %1786 = vmatprep.subr.bf16.mxu0 0
    %1787 = vmatpush1.bf16.xpose.msra.mxu0 0
    %1788 = vmatprep.subr.bf16.mxu0 0
    %1789 = vmatpush1.bf16.xpose.msra.mxu0 0
    %1790 = vmatprep.subr.bf16.mxu0 0
    %1791 = vmatpush1.bf16.xpose.msra.mxu0 0
    %1792 = vmatprep.subr.bf16.mxu0 0
    %1793 = vmatpush1.bf16.xpose.msra.mxu0 0
    %1794 = vmatprep.subr.bf16.mxu0 0
    %1795 = vmatpush1.bf16.xpose.msra.mxu0 0
    %1796 = vmatprep.subr.bf16.mxu0 0
    %1797 = vmatpush1.bf16.xpose.msra.mxu0 0
    %1798 = vmatprep.subr.bf16.mxu0 0
    %1799 = vmatpush1.bf16.xpose.msra.mxu0 0
    %1800 = vmatprep.subr.bf16.mxu0 0
    %1801 = vmatpush1.bf16.xpose.msra.mxu0 0
    %1802 = vmatprep.mubr.bf16.mxu0 0
    %1803 = vmatmul.mubr.bf16.gmra.mrb[0].mxu0 %v1769
    %v1804 = vpop.f32.mrb[0].mxu0
    %v1805 = vadd.f32 %v224, %v1804
    %v1806 = vpop.f32.mrb[0].mxu0
    %v1807 = vpop.f32.mrb[0].mxu0
    %v1808 = vadd.f32 %v225, %v1807
    %v1809 = vpop.f32.mrb[0].mxu0
    %1810 = vdwg.mxu0
    %v1811 = vsel %vm567, %v1805, -inf
    %1812 = vmax.xlane.f32.xlu0 %v1811
    %v1813 = vpop.xlane.xlu0 %1812
    %v1814 = vsel %vm567, %v1808, -inf
    %1815 = vmax.xlane.f32.xlu0 %v1814
    %v1816 = vpop.xlane.xlu0 %1815
    %v1817 = vsub.f32 %v1805, %v1813
    %v1818 = vsub.f32 %v1808, %v1816
    %v1819 = vmul.f32 %v1817, 1.442695
    %v1820 = vpow.pop %v1819
    %v1821 = vmul.f32 %v1818, 1.442695
    %v1822 = vpow.pop %v1821
    %v1823 = vsel %vm567, %v1820, 0.0
    %1824 = vadd.xlane.f32.xlu0 %v1823
    %v1825 = vpop.xlane.xlu0 %1824
    %v1826 = vsel %vm567, %v1822, 0.0
    %1827 = vadd.xlane.f32.xlu0 %v1826
    %v1828 = vpop.xlane.xlu0 %1827
    %v1829 = vrcp.pop %v1825
    %v1830 = vrcp.pop %v1828
    %v1831 = vmul.f32 %v1820, %v1829
    %v1832 = vmul.f32 %v1822, %v1830
    %v1833 = vmul.f32 %v1399, %v884
    %v1834 = vmul.f32 %v1403, %v884
    %v1835 = vpack.c.bf16 %v1834, %v1833
    %v1836 = vpack.c.bf16 %v1832, %v1831
    %v1838 = vsel %vm567, %v1836, 0
    %1840 = vmatprep.subr.bf16.mxu0 0
    %1841 = vmatpush1.bf16.msra.mxu0 %v1835
    %1842 = vmatprep.subr.bf16.mxu0 0
    %1843 = vmatpush1.bf16.msra.mxu0 0
    %1844 = vmatprep.subr.bf16.mxu0 0
    %1845 = vmatpush1.bf16.msra.mxu0 0
    %1846 = vmatprep.subr.bf16.mxu0 0
    %1847 = vmatpush1.bf16.msra.mxu0 0
    %1848 = vmatprep.subr.bf16.mxu0 0
    %1849 = vmatpush1.bf16.msra.mxu0 0
    %1850 = vmatprep.subr.bf16.mxu0 0
    %1851 = vmatpush1.bf16.msra.mxu0 0
    %1852 = vmatprep.subr.bf16.mxu0 0
    %1853 = vmatpush1.bf16.msra.mxu0 0
    %1854 = vmatprep.subr.bf16.mxu0 0
    %1855 = vmatpush1.bf16.msra.mxu0 0
    %1856 = vmatprep.subr.bf16.mxu0 0
    %1857 = vmatpush1.bf16.msra.mxu0 0
    %1858 = vmatprep.subr.bf16.mxu0 0
    %1859 = vmatpush1.bf16.msra.mxu0 0
    %1860 = vmatprep.subr.bf16.mxu0 0
    %1861 = vmatpush1.bf16.msra.mxu0 0
    %1862 = vmatprep.subr.bf16.mxu0 0
    %1863 = vmatpush1.bf16.msra.mxu0 0
    %1864 = vmatprep.subr.bf16.mxu0 0
    %1865 = vmatpush1.bf16.msra.mxu0 0
    %1866 = vmatprep.subr.bf16.mxu0 0
    %1867 = vmatpush1.bf16.msra.mxu0 0
    %1868 = vmatprep.subr.bf16.mxu0 0
    %1869 = vmatpush1.bf16.msra.mxu0 0
    %1870 = vmatprep.subr.bf16.mxu0 0
    %1871 = vmatpush1.bf16.msra.mxu0 0
    %1872 = vmatprep.mubr.bf16.mxu0 0
    %1873 = vmatmul.mubr.bf16.gmra.mrb[0].mxu0 %v1838
    %v1874 = vpop.f32.mrb[0].mxu0
    %v1875 = vadd.f32 0.0, %v1874
    %v1876 = vpop.f32.mrb[0].mxu0
    %v1877 = vpop.f32.mrb[0].mxu0
    %v1878 = vadd.f32 0.0, %v1877
    %v1879 = vpop.f32.mrb[0].mxu0
    %1880 = vdwg.mxu0
    %v1881 = vadd.f32 %v1765, %v1875
    %v1882 = vadd.f32 %v1766, %v1878
    %v1883 = vpack.c.bf16 %v1882, %v1881
    %v1885 = vlaneseq
    %v1886 = vshrl.u32 %v1885, 7
    %v1887 = vsub.s32 0, %v1886
    %v1888 = vrot.slane %v1421, %v1887
    %v1906 = vunpack.c.l.b16 %v1405
    %v1907 = vunpack.c.l.b16 %v1406
    %v1908 = vunpack.c.l.b16 %v1407
    %v1909 = vunpack.c.l.b16 %v1408
    %v1910 = vunpack.c.l.b16 %v1409
    %v1911 = vunpack.c.l.b16 %v1410
    %v1912 = vunpack.c.l.b16 %v1411
    %v1913 = vunpack.c.l.b16 %v1412
    %v1914 = vunpack.c.l.b16 %v1413
    %v1915 = vunpack.c.l.b16 %v1414
    %v1916 = vunpack.c.l.b16 %v1415
    %v1917 = vunpack.c.l.b16 %v1416
    %v1918 = vunpack.c.l.b16 %v1417
    %v1919 = vunpack.c.l.b16 %v1418
    %v1920 = vunpack.c.l.b16 %v1419
    %v1921 = vunpack.c.l.b16 %v1420
    %v1922 = vpack.c.b16 %v1907, %v1906
    %v1923 = vpack.c.b16 %v1909, %v1908
    %v1924 = vpack.c.b16 %v1911, %v1910
    %v1925 = vpack.c.b16 %v1913, %v1912
    %v1926 = vpack.c.b16 %v1915, %v1914
    %v1927 = vpack.c.b16 %v1917, %v1916
    %v1928 = vpack.c.b16 %v1919, %v1918
    %v1929 = vpack.c.b16 %v1921, %v1920
    %1938 = vmatprep.subr.bf16.mxu0 0
    %1939 = vmatpush1.bf16.msra.mxu0 %v1922
    %1940 = vmatprep.subr.bf16.mxu0 0
    %1941 = vmatpush1.bf16.msra.mxu0 %v1923
    %1942 = vmatprep.subr.bf16.mxu0 0
    %1943 = vmatpush1.bf16.msra.mxu0 %v1924
    %1944 = vmatprep.subr.bf16.mxu0 0
    %1945 = vmatpush1.bf16.msra.mxu0 %v1925
    %1946 = vmatprep.subr.bf16.mxu0 0
    %1947 = vmatpush1.bf16.msra.mxu0 %v1926
    %1948 = vmatprep.subr.bf16.mxu0 0
    %1949 = vmatpush1.bf16.msra.mxu0 %v1927
    %1950 = vmatprep.subr.bf16.mxu0 0
    %1951 = vmatpush1.bf16.msra.mxu0 %v1928
    %1952 = vmatprep.subr.bf16.mxu0 0
    %1953 = vmatpush1.bf16.msra.mxu0 %v1929
    %1954 = vmatprep.subr.bf16.mxu0 0
    %1955 = vmatpush1.bf16.msra.mxu0 0
    %1956 = vmatprep.subr.bf16.mxu0 0
    %1957 = vmatpush1.bf16.msra.mxu0 0
    %1958 = vmatprep.subr.bf16.mxu0 0
    %1959 = vmatpush1.bf16.msra.mxu0 0
    %1960 = vmatprep.subr.bf16.mxu0 0
    %1961 = vmatpush1.bf16.msra.mxu0 0
    %1962 = vmatprep.subr.bf16.mxu0 0
    %1963 = vmatpush1.bf16.msra.mxu0 0
    %1964 = vmatprep.subr.bf16.mxu0 0
    %1965 = vmatpush1.bf16.msra.mxu0 0
    %1966 = vmatprep.subr.bf16.mxu0 0
    %1967 = vmatpush1.bf16.msra.mxu0 0
    %1968 = vmatprep.subr.bf16.mxu0 0
    %1969 = vmatpush1.bf16.msra.mxu0 0
    %1970 = vmatprep.mubr.bf16.mxu0 0
    %1971 = vmatmul.mubr.bf16.gmra.mrb[0].mxu0 %v1883
    %v1972 = vpop.f32.mrb[0].mxu0
    %v1973 = vadd.f32 %v1888, %v1972
    %v1974 = vpop.f32.mrb[0].mxu0
    %v1975 = vpop.f32.mrb[0].mxu0
    %v1976 = vadd.f32 %v1888, %v1975
    %v1977 = vpop.f32.mrb[0].mxu0
    %1978 = vdwg.mxu0
    %v1979 = vadd.f32 %v1137, %v1973
    %v1980 = vadd.f32 %v1138, %v1976
    %1981 = vadd.xlane.f32.xlu0 %v1979
    %v1982 = vpop.xlane.xlu0 %1981
    %1983 = vadd.xlane.f32.xlu0 %v1980
    %v1984 = vpop.xlane.xlu0 %1983
    %v1985 = vmul.f32 %v1982, %v1104
    %v1986 = vmul.f32 %v1984, %v1104
    %v1987 = vsub.f32 %v1979, %v1985
    %v1988 = vsub.f32 %v1980, %v1986
    %v1989 = vmul.f32 %v1987, %v1987
    %v1990 = vmul.f32 %v1988, %v1988
    %1991 = vadd.xlane.f32.xlu0 %v1989
    %v1992 = vpop.xlane.xlu0 %1991
    %1993 = vadd.xlane.f32.xlu0 %v1990
    %v1994 = vpop.xlane.xlu0 %1993
    %v1995 = vmul.f32 %v1992, %v1104
    %v1996 = vmul.f32 %v1994, %v1104
    %v1997 = vadd.f32 %v1995, 1e-05
    %v1998 = vadd.f32 %v1996, 1e-05
    %v1999 = vrsqrt.pop %v1997
    %v2000 = vrsqrt.pop %v1998
    %v2001 = vmul.f32 %v1987, %v1999
    %v2002 = vmul.f32 %v1988, %v2000
    %v2004 = vlaneseq
    %v2005 = vshrl.u32 %v2004, 7
    %v2006 = vsub.s32 0, %v2005
    %v2007 = vrot.slane %v231, %v2006
    %v2009 = vmul.f32 %v2001, %v2007
    %v2010 = vmul.f32 %v2002, %v2007
    %v2012 = vlaneseq
    %v2013 = vshrl.u32 %v2012, 7
    %v2014 = vsub.s32 0, %v2013
    %v2015 = vrot.slane %v234, %v2014
    %v2017 = vadd.f32 %v2009, %v2015
    %v2018 = vadd.f32 %v2010, %v2015
    %v2019 = vpack.c.bf16 %v2018, %v2017
    %v2020 = vld [vmem:[#allocation10] sm:$0xff]
    %v2021 = vld [vmem:[#allocation10 + $0x8] sm:$0xff]
    %v2022 = vld [vmem:[#allocation10 + $0x10] sm:$0xff]
    %v2023 = vld [vmem:[#allocation10 + $0x18] sm:$0xff]
    %v2024 = vld [vmem:[#allocation10 + $0x20] sm:$0xff]
    %v2025 = vld [vmem:[#allocation10 + $0x28] sm:$0xff]
    %v2026 = vld [vmem:[#allocation10 + $0x30] sm:$0xff]
    %v2027 = vld [vmem:[#allocation10 + $0x38] sm:$0xff]
    %v2028 = vld [vmem:[#allocation10 + $0x40] sm:$0xff]
    %v2029 = vld [vmem:[#allocation10 + $0x48] sm:$0xff]
    %v2030 = vld [vmem:[#allocation10 + $0x50] sm:$0xff]
    %v2031 = vld [vmem:[#allocation10 + $0x58] sm:$0xff]
    %v2032 = vld [vmem:[#allocation10 + $0x60] sm:$0xff]
    %v2033 = vld [vmem:[#allocation10 + $0x68] sm:$0xff]
    %v2034 = vld [vmem:[#allocation10 + $0x70] sm:$0xff]
    %v2035 = vld [vmem:[#allocation10 + $0x78] sm:$0xff]
    %v2036 = vld [vmem:[#allocation10 + $0x80] sm:$0xff]
    %v2037 = vld [vmem:[#allocation10 + $0x88] sm:$0xff]
    %v2038 = vld [vmem:[#allocation10 + $0x90] sm:$0xff]
    %v2039 = vld [vmem:[#allocation10 + $0x98] sm:$0xff]
    %v2040 = vld [vmem:[#allocation10 + $0xa0] sm:$0xff]
    %v2041 = vld [vmem:[#allocation10 + $0xa8] sm:$0xff]
    %v2042 = vld [vmem:[#allocation10 + $0xb0] sm:$0xff]
    %v2043 = vld [vmem:[#allocation10 + $0xb8] sm:$0xff]
    %v2044 = vld [vmem:[#allocation10 + $0xc0] sm:$0xff]
    %v2045 = vld [vmem:[#allocation10 + $0xc8] sm:$0xff]
    %v2046 = vld [vmem:[#allocation10 + $0xd0] sm:$0xff]
    %v2047 = vld [vmem:[#allocation10 + $0xd8] sm:$0xff]
    %v2048 = vld [vmem:[#allocation10 + $0xe0] sm:$0xff]
    %v2049 = vld [vmem:[#allocation10 + $0xe8] sm:$0xff]
    %v2050 = vld [vmem:[#allocation10 + $0xf0] sm:$0xff]
    %v2051 = vld [vmem:[#allocation10 + $0xf8] sm:$0xff]
    %v2052 = vld [vmem:[#allocation10 + $0x100] sm:$0xff]
    %v2053 = vld [vmem:[#allocation10 + $0x108] sm:$0xff]
    %v2054 = vld [vmem:[#allocation10 + $0x110] sm:$0xff]
    %v2055 = vld [vmem:[#allocation10 + $0x118] sm:$0xff]
    %v2056 = vld [vmem:[#allocation10 + $0x120] sm:$0xff]
    %v2057 = vld [vmem:[#allocation10 + $0x128] sm:$0xff]
    %v2058 = vld [vmem:[#allocation10 + $0x130] sm:$0xff]
    %v2059 = vld [vmem:[#allocation10 + $0x138] sm:$0xff]
    %v2060 = vld [vmem:[#allocation10 + $0x140] sm:$0xff]
    %v2061 = vld [vmem:[#allocation10 + $0x148] sm:$0xff]
    %v2062 = vld [vmem:[#allocation10 + $0x150] sm:$0xff]
    %v2063 = vld [vmem:[#allocation10 + $0x158] sm:$0xff]
    %v2064 = vld [vmem:[#allocation10 + $0x160] sm:$0xff]
    %v2065 = vld [vmem:[#allocation10 + $0x168] sm:$0xff]
    %v2066 = vld [vmem:[#allocation10 + $0x170] sm:$0xff]
    %v2067 = vld [vmem:[#allocation10 + $0x178] sm:$0xff]
    %v2068 = vld [vmem:[#allocation10 + $0x180] sm:$0xff]
    %v2069 = vld [vmem:[#allocation10 + $0x188] sm:$0xff]
    %v2070 = vld [vmem:[#allocation10 + $0x190] sm:$0xff]
    %v2071 = vld [vmem:[#allocation10 + $0x198] sm:$0xff]
    %v2072 = vld [vmem:[#allocation10 + $0x1a0] sm:$0xff]
    %v2073 = vld [vmem:[#allocation10 + $0x1a8] sm:$0xff]
    %v2074 = vld [vmem:[#allocation10 + $0x1b0] sm:$0xff]
    %v2075 = vld [vmem:[#allocation10 + $0x1b8] sm:$0xff]
    %v2076 = vld [vmem:[#allocation10 + $0x1c0] sm:$0xff]
    %v2077 = vld [vmem:[#allocation10 + $0x1c8] sm:$0xff]
    %v2078 = vld [vmem:[#allocation10 + $0x1d0] sm:$0xff]
    %v2079 = vld [vmem:[#allocation10 + $0x1d8] sm:$0xff]
    %v2080 = vld [vmem:[#allocation10 + $0x1e0] sm:$0xff]
    %v2081 = vld [vmem:[#allocation10 + $0x1e8] sm:$0xff]
    %v2082 = vld [vmem:[#allocation10 + $0x1f0] sm:$0xff]
    %v2083 = vld [vmem:[#allocation10 + $0x1f8] sm:$0xff]
    %v2084 = vld [vmem:[#allocation10 + $0x200] sm:$0xff]
    %v2085 = vld [vmem:[#allocation10 + $0x208] sm:$0xff]
    %v2086 = vld [vmem:[#allocation10 + $0x210] sm:$0xff]
    %v2087 = vld [vmem:[#allocation10 + $0x218] sm:$0xff]
    %v2088 = vld [vmem:[#allocation10 + $0x220] sm:$0xff]
    %v2089 = vld [vmem:[#allocation10 + $0x228] sm:$0xff]
    %v2090 = vld [vmem:[#allocation10 + $0x230] sm:$0xff]
    %v2091 = vld [vmem:[#allocation10 + $0x238] sm:$0xff]
    %v2092 = vld [vmem:[#allocation10 + $0x240] sm:$0xff]
    %v2093 = vld [vmem:[#allocation10 + $0x248] sm:$0xff]
    %v2094 = vld [vmem:[#allocation10 + $0x250] sm:$0xff]
    %v2095 = vld [vmem:[#allocation10 + $0x258] sm:$0xff]
    %v2096 = vld [vmem:[#allocation10 + $0x260] sm:$0xff]
    %v2097 = vld [vmem:[#allocation10 + $0x268] sm:$0xff]
    %v2098 = vld [vmem:[#allocation10 + $0x270] sm:$0xff]
    %v2099 = vld [vmem:[#allocation10 + $0x278] sm:$0xff]
    %v2100 = vld [vmem:[#allocation10 + $0x280] sm:$0xff]
    %v2101 = vld [vmem:[#allocation10 + $0x288] sm:$0xff]
    %v2102 = vld [vmem:[#allocation10 + $0x290] sm:$0xff]
    %v2103 = vld [vmem:[#allocation10 + $0x298] sm:$0xff]
    %v2104 = vld [vmem:[#allocation10 + $0x2a0] sm:$0xff]
    %v2105 = vld [vmem:[#allocation10 + $0x2a8] sm:$0xff]
    %v2106 = vld [vmem:[#allocation10 + $0x2b0] sm:$0xff]
    %v2107 = vld [vmem:[#allocation10 + $0x2b8] sm:$0xff]
    %v2108 = vld [vmem:[#allocation10 + $0x2c0] sm:$0xff]
    %v2109 = vld [vmem:[#allocation10 + $0x2c8] sm:$0xff]
    %v2110 = vld [vmem:[#allocation10 + $0x2d0] sm:$0xff]
    %v2111 = vld [vmem:[#allocation10 + $0x2d8] sm:$0xff]
    %v2112 = vld [vmem:[#allocation10 + $0x2e0] sm:$0xff]
    %v2113 = vld [vmem:[#allocation10 + $0x2e8] sm:$0xff]
    %v2114 = vld [vmem:[#allocation10 + $0x2f0] sm:$0xff]
    %v2115 = vld [vmem:[#allocation10 + $0x2f8] sm:$0xff]
    %v2116 = vld [vmem:[#allocation10 + $0x300] sm:$0xff]
    %v2117 = vld [vmem:[#allocation10 + $0x308] sm:$0xff]
    %v2118 = vld [vmem:[#allocation10 + $0x310] sm:$0xff]
    %v2119 = vld [vmem:[#allocation10 + $0x318] sm:$0xff]
    %v2120 = vld [vmem:[#allocation10 + $0x320] sm:$0xff]
    %v2121 = vld [vmem:[#allocation10 + $0x328] sm:$0xff]
    %v2122 = vld [vmem:[#allocation10 + $0x330] sm:$0xff]
    %v2123 = vld [vmem:[#allocation10 + $0x338] sm:$0xff]
    %v2124 = vld [vmem:[#allocation10 + $0x340] sm:$0xff]
    %v2125 = vld [vmem:[#allocation10 + $0x348] sm:$0xff]
    %v2126 = vld [vmem:[#allocation10 + $0x350] sm:$0xff]
    %v2127 = vld [vmem:[#allocation10 + $0x358] sm:$0xff]
    %v2128 = vld [vmem:[#allocation10 + $0x360] sm:$0xff]
    %v2129 = vld [vmem:[#allocation10 + $0x368] sm:$0xff]
    %v2130 = vld [vmem:[#allocation10 + $0x370] sm:$0xff]
    %v2131 = vld [vmem:[#allocation10 + $0x378] sm:$0xff]
    %v2132 = vld [vmem:[#allocation10 + $0x380] sm:$0xff]
    %v2133 = vld [vmem:[#allocation10 + $0x388] sm:$0xff]
    %v2134 = vld [vmem:[#allocation10 + $0x390] sm:$0xff]
    %v2135 = vld [vmem:[#allocation10 + $0x398] sm:$0xff]
    %v2136 = vld [vmem:[#allocation10 + $0x3a0] sm:$0xff]
    %v2137 = vld [vmem:[#allocation10 + $0x3a8] sm:$0xff]
    %v2138 = vld [vmem:[#allocation10 + $0x3b0] sm:$0xff]
    %v2139 = vld [vmem:[#allocation10 + $0x3b8] sm:$0xff]
    %v2140 = vld [vmem:[#allocation10 + $0x3c0] sm:$0xff]
    %v2141 = vld [vmem:[#allocation10 + $0x3c8] sm:$0xff]
    %v2142 = vld [vmem:[#allocation10 + $0x3d0] sm:$0xff]
    %v2143 = vld [vmem:[#allocation10 + $0x3d8] sm:$0xff]
    %v2144 = vld [vmem:[#allocation10 + $0x3e0] sm:$0xff]
    %v2145 = vld [vmem:[#allocation10 + $0x3e8] sm:$0xff]
    %v2146 = vld [vmem:[#allocation10 + $0x3f0] sm:$0xff]
    %v2147 = vld [vmem:[#allocation10 + $0x3f8] sm:$0xff]
    %v2148 = vld [vmem:[%s13] sm:$0xff]
    %v2149 = vld [vmem:[%s13 + $0x8] sm:$0xff]
    %v2152 = vlaneseq
    %v2153 = vshrl.u32 %v2152, 7
    %v2154 = vsub.s32 0, %v2153
    %v2155 = vrot.slane %v2148, %v2154
    %v2156 = vlaneseq
    %v2157 = vshrl.u32 %v2156, 7
    %v2158 = vsub.s32 1, %v2157
    %v2159 = vrot.slane %v2148, %v2158
    %v2160 = vlaneseq
    %v2161 = vshrl.u32 %v2160, 7
    %v2162 = vsub.s32 2, %v2161
    %v2163 = vrot.slane %v2148, %v2162
    %v2164 = vlaneseq
    %v2165 = vshrl.u32 %v2164, 7
    %v2166 = vsub.s32 3, %v2165
    %v2167 = vrot.slane %v2148, %v2166
    %v2168 = vlaneseq
    %v2169 = vshrl.u32 %v2168, 7
    %v2170 = vsub.s32 4, %v2169
    %v2171 = vrot.slane %v2148, %v2170
    %v2172 = vlaneseq
    %v2173 = vshrl.u32 %v2172, 7
    %v2174 = vsub.s32 5, %v2173
    %v2175 = vrot.slane %v2148, %v2174
    %v2176 = vlaneseq
    %v2177 = vshrl.u32 %v2176, 7
    %v2178 = vsub.s32 6, %v2177
    %v2179 = vrot.slane %v2148, %v2178
    %v2180 = vlaneseq
    %v2181 = vshrl.u32 %v2180, 7
    %v2182 = vsub.s32 7, %v2181
    %v2183 = vrot.slane %v2148, %v2182
    %v2184 = vlaneseq
    %v2185 = vshrl.u32 %v2184, 7
    %v2186 = vsub.s32 0, %v2185
    %v2187 = vrot.slane %v2149, %v2186
    %v2188 = vlaneseq
    %v2189 = vshrl.u32 %v2188, 7
    %v2190 = vsub.s32 1, %v2189
    %v2191 = vrot.slane %v2149, %v2190
    %v2192 = vlaneseq
    %v2193 = vshrl.u32 %v2192, 7
    %v2194 = vsub.s32 2, %v2193
    %v2195 = vrot.slane %v2149, %v2194
    %v2196 = vlaneseq
    %v2197 = vshrl.u32 %v2196, 7
    %v2198 = vsub.s32 3, %v2197
    %v2199 = vrot.slane %v2149, %v2198
    %v2200 = vlaneseq
    %v2201 = vshrl.u32 %v2200, 7
    %v2202 = vsub.s32 4, %v2201
    %v2203 = vrot.slane %v2149, %v2202
    %v2204 = vlaneseq
    %v2205 = vshrl.u32 %v2204, 7
    %v2206 = vsub.s32 5, %v2205
    %v2207 = vrot.slane %v2149, %v2206
    %v2208 = vlaneseq
    %v2209 = vshrl.u32 %v2208, 7
    %v2210 = vsub.s32 6, %v2209
    %v2211 = vrot.slane %v2149, %v2210
    %v2212 = vlaneseq
    %v2213 = vshrl.u32 %v2212, 7
    %v2214 = vsub.s32 7, %v2213
    %v2215 = vrot.slane %v2149, %v2214
    %v2360 = vunpack.c.l.b16 %v2020
    %v2361 = vunpack.c.h.b16 %v2020
    %v2362 = vunpack.c.l.b16 %v2021
    %v2363 = vunpack.c.h.b16 %v2021
    %v2364 = vunpack.c.l.b16 %v2022
    %v2365 = vunpack.c.h.b16 %v2022
    %v2366 = vunpack.c.l.b16 %v2023
    %v2367 = vunpack.c.h.b16 %v2023
    %v2368 = vunpack.c.l.b16 %v2024
    %v2369 = vunpack.c.h.b16 %v2024
    %v2370 = vunpack.c.l.b16 %v2025
    %v2371 = vunpack.c.h.b16 %v2025
    %v2372 = vunpack.c.l.b16 %v2026
    %v2373 = vunpack.c.h.b16 %v2026
    %v2374 = vunpack.c.l.b16 %v2027
    %v2375 = vunpack.c.h.b16 %v2027
    %v2376 = vunpack.c.l.b16 %v2028
    %v2377 = vunpack.c.h.b16 %v2028
    %v2378 = vunpack.c.l.b16 %v2029
    %v2379 = vunpack.c.h.b16 %v2029
    %v2380 = vunpack.c.l.b16 %v2030
    %v2381 = vunpack.c.h.b16 %v2030
    %v2382 = vunpack.c.l.b16 %v2031
    %v2383 = vunpack.c.h.b16 %v2031
    %v2384 = vunpack.c.l.b16 %v2032
    %v2385 = vunpack.c.h.b16 %v2032
    %v2386 = vunpack.c.l.b16 %v2033
    %v2387 = vunpack.c.h.b16 %v2033
    %v2388 = vunpack.c.l.b16 %v2034
    %v2389 = vunpack.c.h.b16 %v2034
    %v2390 = vunpack.c.l.b16 %v2035
    %v2391 = vunpack.c.h.b16 %v2035
    %v2392 = vunpack.c.l.b16 %v2036
    %v2393 = vunpack.c.h.b16 %v2036
    %v2394 = vunpack.c.l.b16 %v2037
    %v2395 = vunpack.c.h.b16 %v2037
    %v2396 = vunpack.c.l.b16 %v2038
    %v2397 = vunpack.c.h.b16 %v2038
    %v2398 = vunpack.c.l.b16 %v2039
    %v2399 = vunpack.c.h.b16 %v2039
    %v2400 = vunpack.c.l.b16 %v2040
    %v2401 = vunpack.c.h.b16 %v2040
    %v2402 = vunpack.c.l.b16 %v2041
    %v2403 = vunpack.c.h.b16 %v2041
    %v2404 = vunpack.c.l.b16 %v2042
    %v2405 = vunpack.c.h.b16 %v2042
    %v2406 = vunpack.c.l.b16 %v2043
    %v2407 = vunpack.c.h.b16 %v2043
    %v2408 = vunpack.c.l.b16 %v2044
    %v2409 = vunpack.c.h.b16 %v2044
    %v2410 = vunpack.c.l.b16 %v2045
    %v2411 = vunpack.c.h.b16 %v2045
    %v2412 = vunpack.c.l.b16 %v2046
    %v2413 = vunpack.c.h.b16 %v2046
    %v2414 = vunpack.c.l.b16 %v2047
    %v2415 = vunpack.c.h.b16 %v2047
    %v2416 = vunpack.c.l.b16 %v2048
    %v2417 = vunpack.c.h.b16 %v2048
    %v2418 = vunpack.c.l.b16 %v2049
    %v2419 = vunpack.c.h.b16 %v2049
    %v2420 = vunpack.c.l.b16 %v2050
    %v2421 = vunpack.c.h.b16 %v2050
    %v2422 = vunpack.c.l.b16 %v2051
    %v2423 = vunpack.c.h.b16 %v2051
    %v2424 = vunpack.c.l.b16 %v2052
    %v2425 = vunpack.c.h.b16 %v2052
    %v2426 = vunpack.c.l.b16 %v2053
    %v2427 = vunpack.c.h.b16 %v2053
    %v2428 = vunpack.c.l.b16 %v2054
    %v2429 = vunpack.c.h.b16 %v2054
    %v2430 = vunpack.c.l.b16 %v2055
    %v2431 = vunpack.c.h.b16 %v2055
    %v2432 = vunpack.c.l.b16 %v2056
    %v2433 = vunpack.c.h.b16 %v2056
    %v2434 = vunpack.c.l.b16 %v2057
    %v2435 = vunpack.c.h.b16 %v2057
    %v2436 = vunpack.c.l.b16 %v2058
    %v2437 = vunpack.c.h.b16 %v2058
    %v2438 = vunpack.c.l.b16 %v2059
    %v2439 = vunpack.c.h.b16 %v2059
    %v2440 = vunpack.c.l.b16 %v2060
    %v2441 = vunpack.c.h.b16 %v2060
    %v2442 = vunpack.c.l.b16 %v2061
    %v2443 = vunpack.c.h.b16 %v2061
    %v2444 = vunpack.c.l.b16 %v2062
    %v2445 = vunpack.c.h.b16 %v2062
    %v2446 = vunpack.c.l.b16 %v2063
    %v2447 = vunpack.c.h.b16 %v2063
    %v2448 = vunpack.c.l.b16 %v2064
    %v2449 = vunpack.c.h.b16 %v2064
    %v2450 = vunpack.c.l.b16 %v2065
    %v2451 = vunpack.c.h.b16 %v2065
    %v2452 = vunpack.c.l.b16 %v2066
    %v2453 = vunpack.c.h.b16 %v2066
    %v2454 = vunpack.c.l.b16 %v2067
    %v2455 = vunpack.c.h.b16 %v2067
    %v2456 = vunpack.c.l.b16 %v2068
    %v2457 = vunpack.c.h.b16 %v2068
    %v2458 = vunpack.c.l.b16 %v2069
    %v2459 = vunpack.c.h.b16 %v2069
    %v2460 = vunpack.c.l.b16 %v2070
    %v2461 = vunpack.c.h.b16 %v2070
    %v2462 = vunpack.c.l.b16 %v2071
    %v2463 = vunpack.c.h.b16 %v2071
    %v2464 = vunpack.c.l.b16 %v2072
    %v2465 = vunpack.c.h.b16 %v2072
    %v2466 = vunpack.c.l.b16 %v2073
    %v2467 = vunpack.c.h.b16 %v2073
    %v2468 = vunpack.c.l.b16 %v2074
    %v2469 = vunpack.c.h.b16 %v2074
    %v2470 = vunpack.c.l.b16 %v2075
    %v2471 = vunpack.c.h.b16 %v2075
    %v2472 = vunpack.c.l.b16 %v2076
    %v2473 = vunpack.c.h.b16 %v2076
    %v2474 = vunpack.c.l.b16 %v2077
    %v2475 = vunpack.c.h.b16 %v2077
    %v2476 = vunpack.c.l.b16 %v2078
    %v2477 = vunpack.c.h.b16 %v2078
    %v2478 = vunpack.c.l.b16 %v2079
    %v2479 = vunpack.c.h.b16 %v2079
    %v2480 = vunpack.c.l.b16 %v2080
    %v2481 = vunpack.c.h.b16 %v2080
    %v2482 = vunpack.c.l.b16 %v2081
    %v2483 = vunpack.c.h.b16 %v2081
    %v2484 = vunpack.c.l.b16 %v2082
    %v2485 = vunpack.c.h.b16 %v2082
    %v2486 = vunpack.c.l.b16 %v2083
    %v2487 = vunpack.c.h.b16 %v2083
    %v2488 = vunpack.c.l.b16 %v2084
    %v2489 = vunpack.c.h.b16 %v2084
    %v2490 = vunpack.c.l.b16 %v2085
    %v2491 = vunpack.c.h.b16 %v2085
    %v2492 = vunpack.c.l.b16 %v2086
    %v2493 = vunpack.c.h.b16 %v2086
    %v2494 = vunpack.c.l.b16 %v2087
    %v2495 = vunpack.c.h.b16 %v2087
    %v2496 = vunpack.c.l.b16 %v2088
    %v2497 = vunpack.c.h.b16 %v2088
    %v2498 = vunpack.c.l.b16 %v2089
    %v2499 = vunpack.c.h.b16 %v2089
    %v2500 = vunpack.c.l.b16 %v2090
    %v2501 = vunpack.c.h.b16 %v2090
    %v2502 = vunpack.c.l.b16 %v2091
    %v2503 = vunpack.c.h.b16 %v2091
    %v2504 = vunpack.c.l.b16 %v2092
    %v2505 = vunpack.c.h.b16 %v2092
    %v2506 = vunpack.c.l.b16 %v2093
    %v2507 = vunpack.c.h.b16 %v2093
    %v2508 = vunpack.c.l.b16 %v2094
    %v2509 = vunpack.c.h.b16 %v2094
    %v2510 = vunpack.c.l.b16 %v2095
    %v2511 = vunpack.c.h.b16 %v2095
    %v2512 = vunpack.c.l.b16 %v2096
    %v2513 = vunpack.c.h.b16 %v2096
    %v2514 = vunpack.c.l.b16 %v2097
    %v2515 = vunpack.c.h.b16 %v2097
    %v2516 = vunpack.c.l.b16 %v2098
    %v2517 = vunpack.c.h.b16 %v2098
    %v2518 = vunpack.c.l.b16 %v2099
    %v2519 = vunpack.c.h.b16 %v2099
    %v2520 = vunpack.c.l.b16 %v2100
    %v2521 = vunpack.c.h.b16 %v2100
    %v2522 = vunpack.c.l.b16 %v2101
    %v2523 = vunpack.c.h.b16 %v2101
    %v2524 = vunpack.c.l.b16 %v2102
    %v2525 = vunpack.c.h.b16 %v2102
    %v2526 = vunpack.c.l.b16 %v2103
    %v2527 = vunpack.c.h.b16 %v2103
    %v2528 = vunpack.c.l.b16 %v2104
    %v2529 = vunpack.c.h.b16 %v2104
    %v2530 = vunpack.c.l.b16 %v2105
    %v2531 = vunpack.c.h.b16 %v2105
    %v2532 = vunpack.c.l.b16 %v2106
    %v2533 = vunpack.c.h.b16 %v2106
    %v2534 = vunpack.c.l.b16 %v2107
    %v2535 = vunpack.c.h.b16 %v2107
    %v2536 = vunpack.c.l.b16 %v2108
    %v2537 = vunpack.c.h.b16 %v2108
    %v2538 = vunpack.c.l.b16 %v2109
    %v2539 = vunpack.c.h.b16 %v2109
    %v2540 = vunpack.c.l.b16 %v2110
    %v2541 = vunpack.c.h.b16 %v2110
    %v2542 = vunpack.c.l.b16 %v2111
    %v2543 = vunpack.c.h.b16 %v2111
    %v2544 = vunpack.c.l.b16 %v2112
    %v2545 = vunpack.c.h.b16 %v2112
    %v2546 = vunpack.c.l.b16 %v2113
    %v2547 = vunpack.c.h.b16 %v2113
    %v2548 = vunpack.c.l.b16 %v2114
    %v2549 = vunpack.c.h.b16 %v2114
    %v2550 = vunpack.c.l.b16 %v2115
    %v2551 = vunpack.c.h.b16 %v2115
    %v2552 = vunpack.c.l.b16 %v2116
    %v2553 = vunpack.c.h.b16 %v2116
    %v2554 = vunpack.c.l.b16 %v2117
    %v2555 = vunpack.c.h.b16 %v2117
    %v2556 = vunpack.c.l.b16 %v2118
    %v2557 = vunpack.c.h.b16 %v2118
    %v2558 = vunpack.c.l.b16 %v2119
    %v2559 = vunpack.c.h.b16 %v2119
    %v2560 = vunpack.c.l.b16 %v2120
    %v2561 = vunpack.c.h.b16 %v2120
    %v2562 = vunpack.c.l.b16 %v2121
    %v2563 = vunpack.c.h.b16 %v2121
    %v2564 = vunpack.c.l.b16 %v2122
    %v2565 = vunpack.c.h.b16 %v2122
    %v2566 = vunpack.c.l.b16 %v2123
    %v2567 = vunpack.c.h.b16 %v2123
    %v2568 = vunpack.c.l.b16 %v2124
    %v2569 = vunpack.c.h.b16 %v2124
    %v2570 = vunpack.c.l.b16 %v2125
    %v2571 = vunpack.c.h.b16 %v2125
    %v2572 = vunpack.c.l.b16 %v2126
    %v2573 = vunpack.c.h.b16 %v2126
    %v2574 = vunpack.c.l.b16 %v2127
    %v2575 = vunpack.c.h.b16 %v2127
    %v2576 = vunpack.c.l.b16 %v2128
    %v2577 = vunpack.c.h.b16 %v2128
    %v2578 = vunpack.c.l.b16 %v2129
    %v2579 = vunpack.c.h.b16 %v2129
    %v2580 = vunpack.c.l.b16 %v2130
    %v2581 = vunpack.c.h.b16 %v2130
    %v2582 = vunpack.c.l.b16 %v2131
    %v2583 = vunpack.c.h.b16 %v2131
    %v2584 = vunpack.c.l.b16 %v2132
    %v2585 = vunpack.c.h.b16 %v2132
    %v2586 = vunpack.c.l.b16 %v2133
    %v2587 = vunpack.c.h.b16 %v2133
    %v2588 = vunpack.c.l.b16 %v2134
    %v2589 = vunpack.c.h.b16 %v2134
    %v2590 = vunpack.c.l.b16 %v2135
    %v2591 = vunpack.c.h.b16 %v2135
    %v2592 = vunpack.c.l.b16 %v2136
    %v2593 = vunpack.c.h.b16 %v2136
    %v2594 = vunpack.c.l.b16 %v2137
    %v2595 = vunpack.c.h.b16 %v2137
    %v2596 = vunpack.c.l.b16 %v2138
    %v2597 = vunpack.c.h.b16 %v2138
    %v2598 = vunpack.c.l.b16 %v2139
    %v2599 = vunpack.c.h.b16 %v2139
    %v2600 = vunpack.c.l.b16 %v2140
    %v2601 = vunpack.c.h.b16 %v2140
    %v2602 = vunpack.c.l.b16 %v2141
    %v2603 = vunpack.c.h.b16 %v2141
    %v2604 = vunpack.c.l.b16 %v2142
    %v2605 = vunpack.c.h.b16 %v2142
    %v2606 = vunpack.c.l.b16 %v2143
    %v2607 = vunpack.c.h.b16 %v2143
    %v2608 = vunpack.c.l.b16 %v2144
    %v2609 = vunpack.c.h.b16 %v2144
    %v2610 = vunpack.c.l.b16 %v2145
    %v2611 = vunpack.c.h.b16 %v2145
    %v2612 = vunpack.c.l.b16 %v2146
    %v2613 = vunpack.c.h.b16 %v2146
    %v2614 = vunpack.c.l.b16 %v2147
    %v2615 = vunpack.c.h.b16 %v2147
    %v2616 = vpack.c.b16 %v2376, %v2360
    %v2617 = vpack.c.b16 %v2377, %v2361
    %v2618 = vpack.c.b16 %v2378, %v2362
    %v2619 = vpack.c.b16 %v2379, %v2363
    %v2620 = vpack.c.b16 %v2380, %v2364
    %v2621 = vpack.c.b16 %v2381, %v2365
    %v2622 = vpack.c.b16 %v2382, %v2366
    %v2623 = vpack.c.b16 %v2383, %v2367
    %v2624 = vpack.c.b16 %v2384, %v2368
    %v2625 = vpack.c.b16 %v2385, %v2369
    %v2626 = vpack.c.b16 %v2386, %v2370
    %v2627 = vpack.c.b16 %v2387, %v2371
    %v2628 = vpack.c.b16 %v2388, %v2372
    %v2629 = vpack.c.b16 %v2389, %v2373
    %v2630 = vpack.c.b16 %v2390, %v2374
    %v2631 = vpack.c.b16 %v2391, %v2375
    %v2632 = vpack.c.b16 %v2408, %v2392
    %v2633 = vpack.c.b16 %v2409, %v2393
    %v2634 = vpack.c.b16 %v2410, %v2394
    %v2635 = vpack.c.b16 %v2411, %v2395
    %v2636 = vpack.c.b16 %v2412, %v2396
    %v2637 = vpack.c.b16 %v2413, %v2397
    %v2638 = vpack.c.b16 %v2414, %v2398
    %v2639 = vpack.c.b16 %v2415, %v2399
    %v2640 = vpack.c.b16 %v2416, %v2400
    %v2641 = vpack.c.b16 %v2417, %v2401
    %v2642 = vpack.c.b16 %v2418, %v2402
    %v2643 = vpack.c.b16 %v2419, %v2403
    %v2644 = vpack.c.b16 %v2420, %v2404
    %v2645 = vpack.c.b16 %v2421, %v2405
    %v2646 = vpack.c.b16 %v2422, %v2406
    %v2647 = vpack.c.b16 %v2423, %v2407
    %v2648 = vpack.c.b16 %v2440, %v2424
    %v2649 = vpack.c.b16 %v2441, %v2425
    %v2650 = vpack.c.b16 %v2442, %v2426
    %v2651 = vpack.c.b16 %v2443, %v2427
    %v2652 = vpack.c.b16 %v2444, %v2428
    %v2653 = vpack.c.b16 %v2445, %v2429
    %v2654 = vpack.c.b16 %v2446, %v2430
    %v2655 = vpack.c.b16 %v2447, %v2431
    %v2656 = vpack.c.b16 %v2448, %v2432
    %v2657 = vpack.c.b16 %v2449, %v2433
    %v2658 = vpack.c.b16 %v2450, %v2434
    %v2659 = vpack.c.b16 %v2451, %v2435
    %v2660 = vpack.c.b16 %v2452, %v2436
    %v2661 = vpack.c.b16 %v2453, %v2437
    %v2662 = vpack.c.b16 %v2454, %v2438
    %v2663 = vpack.c.b16 %v2455, %v2439
    %v2664 = vpack.c.b16 %v2472, %v2456
    %v2665 = vpack.c.b16 %v2473, %v2457
    %v2666 = vpack.c.b16 %v2474, %v2458
    %v2667 = vpack.c.b16 %v2475, %v2459
    %v2668 = vpack.c.b16 %v2476, %v2460
    %v2669 = vpack.c.b16 %v2477, %v2461
    %v2670 = vpack.c.b16 %v2478, %v2462
    %v2671 = vpack.c.b16 %v2479, %v2463
    %v2672 = vpack.c.b16 %v2480, %v2464
    %v2673 = vpack.c.b16 %v2481, %v2465
    %v2674 = vpack.c.b16 %v2482, %v2466
    %v2675 = vpack.c.b16 %v2483, %v2467
    %v2676 = vpack.c.b16 %v2484, %v2468
    %v2677 = vpack.c.b16 %v2485, %v2469
    %v2678 = vpack.c.b16 %v2486, %v2470
    %v2679 = vpack.c.b16 %v2487, %v2471
    %v2680 = vpack.c.b16 %v2504, %v2488
    %v2681 = vpack.c.b16 %v2505, %v2489
    %v2682 = vpack.c.b16 %v2506, %v2490
    %v2683 = vpack.c.b16 %v2507, %v2491
    %v2684 = vpack.c.b16 %v2508, %v2492
    %v2685 = vpack.c.b16 %v2509, %v2493
    %v2686 = vpack.c.b16 %v2510, %v2494
    %v2687 = vpack.c.b16 %v2511, %v2495
    %v2688 = vpack.c.b16 %v2512, %v2496
    %v2689 = vpack.c.b16 %v2513, %v2497
    %v2690 = vpack.c.b16 %v2514, %v2498
    %v2691 = vpack.c.b16 %v2515, %v2499
    %v2692 = vpack.c.b16 %v2516, %v2500
    %v2693 = vpack.c.b16 %v2517, %v2501
    %v2694 = vpack.c.b16 %v2518, %v2502
    %v2695 = vpack.c.b16 %v2519, %v2503
    %v2696 = vpack.c.b16 %v2536, %v2520
    %v2697 = vpack.c.b16 %v2537, %v2521
    %v2698 = vpack.c.b16 %v2538, %v2522
    %v2699 = vpack.c.b16 %v2539, %v2523
    %v2700 = vpack.c.b16 %v2540, %v2524
    %v2701 = vpack.c.b16 %v2541, %v2525
    %v2702 = vpack.c.b16 %v2542, %v2526
    %v2703 = vpack.c.b16 %v2543, %v2527
    %v2704 = vpack.c.b16 %v2544, %v2528
    %v2705 = vpack.c.b16 %v2545, %v2529
    %v2706 = vpack.c.b16 %v2546, %v2530
    %v2707 = vpack.c.b16 %v2547, %v2531
    %v2708 = vpack.c.b16 %v2548, %v2532
    %v2709 = vpack.c.b16 %v2549, %v2533
    %v2710 = vpack.c.b16 %v2550, %v2534
    %v2711 = vpack.c.b16 %v2551, %v2535
    %v2712 = vpack.c.b16 %v2568, %v2552
    %v2713 = vpack.c.b16 %v2569, %v2553
    %v2714 = vpack.c.b16 %v2570, %v2554
    %v2715 = vpack.c.b16 %v2571, %v2555
    %v2716 = vpack.c.b16 %v2572, %v2556
    %v2717 = vpack.c.b16 %v2573, %v2557
    %v2718 = vpack.c.b16 %v2574, %v2558
    %v2719 = vpack.c.b16 %v2575, %v2559
    %v2720 = vpack.c.b16 %v2576, %v2560
    %v2721 = vpack.c.b16 %v2577, %v2561
    %v2722 = vpack.c.b16 %v2578, %v2562
    %v2723 = vpack.c.b16 %v2579, %v2563
    %v2724 = vpack.c.b16 %v2580, %v2564
    %v2725 = vpack.c.b16 %v2581, %v2565
    %v2726 = vpack.c.b16 %v2582, %v2566
    %v2727 = vpack.c.b16 %v2583, %v2567
    %v2728 = vpack.c.b16 %v2600, %v2584
    %v2729 = vpack.c.b16 %v2601, %v2585
    %v2730 = vpack.c.b16 %v2602, %v2586
    %v2731 = vpack.c.b16 %v2603, %v2587
    %v2732 = vpack.c.b16 %v2604, %v2588
    %v2733 = vpack.c.b16 %v2605, %v2589
    %v2734 = vpack.c.b16 %v2606, %v2590
    %v2735 = vpack.c.b16 %v2607, %v2591
    %v2736 = vpack.c.b16 %v2608, %v2592
    %v2737 = vpack.c.b16 %v2609, %v2593
    %v2738 = vpack.c.b16 %v2610, %v2594
    %v2739 = vpack.c.b16 %v2611, %v2595
    %v2740 = vpack.c.b16 %v2612, %v2596
    %v2741 = vpack.c.b16 %v2613, %v2597
    %v2742 = vpack.c.b16 %v2614, %v2598
    %v2743 = vpack.c.b16 %v2615, %v2599
    %2872 = vmatprep.subr.bf16.mxu0 %v2617
    %2873 = vmatpush1.bf16.msra.mxu0 %v2616
    %2874 = vmatprep.subr.bf16.mxu0 %v2633
    %2875 = vmatpush1.bf16.msra.mxu0 %v2632
    %2876 = vmatprep.subr.bf16.mxu0 %v2649
    %2877 = vmatpush1.bf16.msra.mxu0 %v2648
    %2878 = vmatprep.subr.bf16.mxu0 %v2665
    %2879 = vmatpush1.bf16.msra.mxu0 %v2664
    %2880 = vmatprep.subr.bf16.mxu0 %v2681
    %2881 = vmatpush1.bf16.msra.mxu0 %v2680
    %2882 = vmatprep.subr.bf16.mxu0 %v2697
    %2883 = vmatpush1.bf16.msra.mxu0 %v2696
    %2884 = vmatprep.subr.bf16.mxu0 %v2713
    %2885 = vmatpush1.bf16.msra.mxu0 %v2712
    %2886 = vmatprep.subr.bf16.mxu0 %v2729
    %2887 = vmatpush1.bf16.msra.mxu0 %v2728
    %2888 = vmatprep.subr.bf16.mxu0 0
    %2889 = vmatpush1.bf16.msra.mxu0 0
    %2890 = vmatprep.subr.bf16.mxu0 0
    %2891 = vmatpush1.bf16.msra.mxu0 0
    %2892 = vmatprep.subr.bf16.mxu0 0
    %2893 = vmatpush1.bf16.msra.mxu0 0
    %2894 = vmatprep.subr.bf16.mxu0 0
    %2895 = vmatpush1.bf16.msra.mxu0 0
    %2896 = vmatprep.subr.bf16.mxu0 0
    %2897 = vmatpush1.bf16.msra.mxu0 0
    %2898 = vmatprep.subr.bf16.mxu0 0
    %2899 = vmatpush1.bf16.msra.mxu0 0
    %2900 = vmatprep.subr.bf16.mxu0 0
    %2901 = vmatpush1.bf16.msra.mxu0 0
    %2902 = vmatprep.subr.bf16.mxu0 0
    %2903 = vmatpush1.bf16.msra.mxu0 0
    %2904 = vmatprep.mubr.bf16.mxu0 0
    %2905 = vmatmul.mubr.bf16.gmra.mrb[0].mxu0 %v2019
    %v2906 = vpop.f32.mrb[0].mxu0
    %v2907 = vadd.f32 %v2155, %v2906
    %v2908 = vpop.f32.mrb[0].mxu0
    %v2909 = vadd.f32 %v2159, %v2908
    %v2910 = vpop.f32.mrb[0].mxu0
    %v2911 = vadd.f32 %v2155, %v2910
    %v2912 = vpop.f32.mrb[0].mxu0
    %v2913 = vadd.f32 %v2159, %v2912
    %2914 = vdwg.mxu0
    %2915 = vmatprep.subr.bf16.mxu0 %v2619
    %2916 = vmatpush1.bf16.msra.mxu0 %v2618
    %2917 = vmatprep.subr.bf16.mxu0 %v2635
    %2918 = vmatpush1.bf16.msra.mxu0 %v2634
    %2919 = vmatprep.subr.bf16.mxu0 %v2651
    %2920 = vmatpush1.bf16.msra.mxu0 %v2650
    %2921 = vmatprep.subr.bf16.mxu0 %v2667
    %2922 = vmatpush1.bf16.msra.mxu0 %v2666
    %2923 = vmatprep.subr.bf16.mxu0 %v2683
    %2924 = vmatpush1.bf16.msra.mxu0 %v2682
    %2925 = vmatprep.subr.bf16.mxu0 %v2699
    %2926 = vmatpush1.bf16.msra.mxu0 %v2698
    %2927 = vmatprep.subr.bf16.mxu0 %v2715
    %2928 = vmatpush1.bf16.msra.mxu0 %v2714
    %2929 = vmatprep.subr.bf16.mxu0 %v2731
    %2930 = vmatpush1.bf16.msra.mxu0 %v2730
    %2931 = vmatprep.subr.bf16.mxu0 0
    %2932 = vmatpush1.bf16.msra.mxu0 0
    %2933 = vmatprep.subr.bf16.mxu0 0
    %2934 = vmatpush1.bf16.msra.mxu0 0
    %2935 = vmatprep.subr.bf16.mxu0 0
    %2936 = vmatpush1.bf16.msra.mxu0 0
    %2937 = vmatprep.subr.bf16.mxu0 0
    %2938 = vmatpush1.bf16.msra.mxu0 0
    %2939 = vmatprep.subr.bf16.mxu0 0
    %2940 = vmatpush1.bf16.msra.mxu0 0
    %2941 = vmatprep.subr.bf16.mxu0 0
    %2942 = vmatpush1.bf16.msra.mxu0 0
    %2943 = vmatprep.subr.bf16.mxu0 0
    %2944 = vmatpush1.bf16.msra.mxu0 0
    %2945 = vmatprep.subr.bf16.mxu0 0
    %2946 = vmatpush1.bf16.msra.mxu0 0
    %2947 = vmatprep.mubr.bf16.mxu0 0
    %2948 = vmatmul.mubr.bf16.gmra.mrb[0].mxu0 %v2019
    %v2949 = vpop.f32.mrb[0].mxu0
    %v2950 = vadd.f32 %v2163, %v2949
    %v2951 = vpop.f32.mrb[0].mxu0
    %v2952 = vadd.f32 %v2167, %v2951
    %v2953 = vpop.f32.mrb[0].mxu0
    %v2954 = vadd.f32 %v2163, %v2953
    %v2955 = vpop.f32.mrb[0].mxu0
    %v2956 = vadd.f32 %v2167, %v2955
    %2957 = vdwg.mxu0
    %2958 = vmatprep.subr.bf16.mxu0 %v2621
    %2959 = vmatpush1.bf16.msra.mxu0 %v2620
    %2960 = vmatprep.subr.bf16.mxu0 %v2637
    %2961 = vmatpush1.bf16.msra.mxu0 %v2636
    %2962 = vmatprep.subr.bf16.mxu0 %v2653
    %2963 = vmatpush1.bf16.msra.mxu0 %v2652
    %2964 = vmatprep.subr.bf16.mxu0 %v2669
    %2965 = vmatpush1.bf16.msra.mxu0 %v2668
    %2966 = vmatprep.subr.bf16.mxu0 %v2685
    %2967 = vmatpush1.bf16.msra.mxu0 %v2684
    %2968 = vmatprep.subr.bf16.mxu0 %v2701
    %2969 = vmatpush1.bf16.msra.mxu0 %v2700
    %2970 = vmatprep.subr.bf16.mxu0 %v2717
    %2971 = vmatpush1.bf16.msra.mxu0 %v2716
    %2972 = vmatprep.subr.bf16.mxu0 %v2733
    %2973 = vmatpush1.bf16.msra.mxu0 %v2732
    %2974 = vmatprep.subr.bf16.mxu0 0
    %2975 = vmatpush1.bf16.msra.mxu0 0
    %2976 = vmatprep.subr.bf16.mxu0 0
    %2977 = vmatpush1.bf16.msra.mxu0 0
    %2978 = vmatprep.subr.bf16.mxu0 0
    %2979 = vmatpush1.bf16.msra.mxu0 0
    %2980 = vmatprep.subr.bf16.mxu0 0
    %2981 = vmatpush1.bf16.msra.mxu0 0
    %2982 = vmatprep.subr.bf16.mxu0 0
    %2983 = vmatpush1.bf16.msra.mxu0 0
    %2984 = vmatprep.subr.bf16.mxu0 0
    %2985 = vmatpush1.bf16.msra.mxu0 0
    %2986 = vmatprep.subr.bf16.mxu0 0
    %2987 = vmatpush1.bf16.msra.mxu0 0
    %2988 = vmatprep.subr.bf16.mxu0 0
    %2989 = vmatpush1.bf16.msra.mxu0 0
    %2990 = vmatprep.mubr.bf16.mxu0 0
    %2991 = vmatmul.mubr.bf16.gmra.mrb[0].mxu0 %v2019
    %v2992 = vpop.f32.mrb[0].mxu0
    %v2993 = vadd.f32 %v2171, %v2992
    %v2994 = vpop.f32.mrb[0].mxu0
    %v2995 = vadd.f32 %v2175, %v2994
    %v2996 = vpop.f32.mrb[0].mxu0
    %v2997 = vadd.f32 %v2171, %v2996
    %v2998 = vpop.f32.mrb[0].mxu0
    %v2999 = vadd.f32 %v2175, %v2998
    %3000 = vdwg.mxu0
    %3001 = vmatprep.subr.bf16.mxu0 %v2623
    %3002 = vmatpush1.bf16.msra.mxu0 %v2622
    %3003 = vmatprep.subr.bf16.mxu0 %v2639
    %3004 = vmatpush1.bf16.msra.mxu0 %v2638
    %3005 = vmatprep.subr.bf16.mxu0 %v2655
    %3006 = vmatpush1.bf16.msra.mxu0 %v2654
    %3007 = vmatprep.subr.bf16.mxu0 %v2671
    %3008 = vmatpush1.bf16.msra.mxu0 %v2670
    %3009 = vmatprep.subr.bf16.mxu0 %v2687
    %3010 = vmatpush1.bf16.msra.mxu0 %v2686
    %3011 = vmatprep.subr.bf16.mxu0 %v2703
    %3012 = vmatpush1.bf16.msra.mxu0 %v2702
    %3013 = vmatprep.subr.bf16.mxu0 %v2719
    %3014 = vmatpush1.bf16.msra.mxu0 %v2718
    %3015 = vmatprep.subr.bf16.mxu0 %v2735
    %3016 = vmatpush1.bf16.msra.mxu0 %v2734
    %3017 = vmatprep.subr.bf16.mxu0 0
    %3018 = vmatpush1.bf16.msra.mxu0 0
    %3019 = vmatprep.subr.bf16.mxu0 0
    %3020 = vmatpush1.bf16.msra.mxu0 0
    %3021 = vmatprep.subr.bf16.mxu0 0
    %3022 = vmatpush1.bf16.msra.mxu0 0
    %3023 = vmatprep.subr.bf16.mxu0 0
    %3024 = vmatpush1.bf16.msra.mxu0 0
    %3025 = vmatprep.subr.bf16.mxu0 0
    %3026 = vmatpush1.bf16.msra.mxu0 0
    %3027 = vmatprep.subr.bf16.mxu0 0
    %3028 = vmatpush1.bf16.msra.mxu0 0
    %3029 = vmatprep.subr.bf16.mxu0 0
    %3030 = vmatpush1.bf16.msra.mxu0 0
    %3031 = vmatprep.subr.bf16.mxu0 0
    %3032 = vmatpush1.bf16.msra.mxu0 0
    %3033 = vmatprep.mubr.bf16.mxu0 0
    %3034 = vmatmul.mubr.bf16.gmra.mrb[0].mxu0 %v2019
    %v3035 = vpop.f32.mrb[0].mxu0
    %v3036 = vadd.f32 %v2179, %v3035
    %v3037 = vpop.f32.mrb[0].mxu0
    %v3038 = vadd.f32 %v2183, %v3037
    %v3039 = vpop.f32.mrb[0].mxu0
    %v3040 = vadd.f32 %v2179, %v3039
    %v3041 = vpop.f32.mrb[0].mxu0
    %v3042 = vadd.f32 %v2183, %v3041
    %3043 = vdwg.mxu0
    %3044 = vmatprep.subr.bf16.mxu0 %v2625
    %3045 = vmatpush1.bf16.msra.mxu0 %v2624
    %3046 = vmatprep.subr.bf16.mxu0 %v2641
    %3047 = vmatpush1.bf16.msra.mxu0 %v2640
    %3048 = vmatprep.subr.bf16.mxu0 %v2657
    %3049 = vmatpush1.bf16.msra.mxu0 %v2656
    %3050 = vmatprep.subr.bf16.mxu0 %v2673
    %3051 = vmatpush1.bf16.msra.mxu0 %v2672
    %3052 = vmatprep.subr.bf16.mxu0 %v2689
    %3053 = vmatpush1.bf16.msra.mxu0 %v2688
    %3054 = vmatprep.subr.bf16.mxu0 %v2705
    %3055 = vmatpush1.bf16.msra.mxu0 %v2704
    %3056 = vmatprep.subr.bf16.mxu0 %v2721
    %3057 = vmatpush1.bf16.msra.mxu0 %v2720
    %3058 = vmatprep.subr.bf16.mxu0 %v2737
    %3059 = vmatpush1.bf16.msra.mxu0 %v2736
    %3060 = vmatprep.subr.bf16.mxu0 0
    %3061 = vmatpush1.bf16.msra.mxu0 0
    %3062 = vmatprep.subr.bf16.mxu0 0
    %3063 = vmatpush1.bf16.msra.mxu0 0
    %3064 = vmatprep.subr.bf16.mxu0 0
    %3065 = vmatpush1.bf16.msra.mxu0 0
    %3066 = vmatprep.subr.bf16.mxu0 0
    %3067 = vmatpush1.bf16.msra.mxu0 0
    %3068 = vmatprep.subr.bf16.mxu0 0
    %3069 = vmatpush1.bf16.msra.mxu0 0
    %3070 = vmatprep.subr.bf16.mxu0 0
    %3071 = vmatpush1.bf16.msra.mxu0 0
    %3072 = vmatprep.subr.bf16.mxu0 0
    %3073 = vmatpush1.bf16.msra.mxu0 0
    %3074 = vmatprep.subr.bf16.mxu0 0
    %3075 = vmatpush1.bf16.msra.mxu0 0
    %3076 = vmatprep.mubr.bf16.mxu0 0
    %3077 = vmatmul.mubr.bf16.gmra.mrb[0].mxu0 %v2019
    %v3078 = vpop.f32.mrb[0].mxu0
    %v3079 = vadd.f32 %v2187, %v3078
    %v3080 = vpop.f32.mrb[0].mxu0
    %v3081 = vadd.f32 %v2191, %v3080
    %v3082 = vpop.f32.mrb[0].mxu0
    %v3083 = vadd.f32 %v2187, %v3082
    %v3084 = vpop.f32.mrb[0].mxu0
    %v3085 = vadd.f32 %v2191, %v3084
    %3086 = vdwg.mxu0
    %3087 = vmatprep.subr.bf16.mxu0 %v2627
    %3088 = vmatpush1.bf16.msra.mxu0 %v2626
    %3089 = vmatprep.subr.bf16.mxu0 %v2643
    %3090 = vmatpush1.bf16.msra.mxu0 %v2642
    %3091 = vmatprep.subr.bf16.mxu0 %v2659
    %3092 = vmatpush1.bf16.msra.mxu0 %v2658
    %3093 = vmatprep.subr.bf16.mxu0 %v2675
    %3094 = vmatpush1.bf16.msra.mxu0 %v2674
    %3095 = vmatprep.subr.bf16.mxu0 %v2691
    %3096 = vmatpush1.bf16.msra.mxu0 %v2690
    %3097 = vmatprep.subr.bf16.mxu0 %v2707
    %3098 = vmatpush1.bf16.msra.mxu0 %v2706
    %3099 = vmatprep.subr.bf16.mxu0 %v2723
    %3100 = vmatpush1.bf16.msra.mxu0 %v2722
    %3101 = vmatprep.subr.bf16.mxu0 %v2739
    %3102 = vmatpush1.bf16.msra.mxu0 %v2738
    %3103 = vmatprep.subr.bf16.mxu0 0
    %3104 = vmatpush1.bf16.msra.mxu0 0
    %3105 = vmatprep.subr.bf16.mxu0 0
    %3106 = vmatpush1.bf16.msra.mxu0 0
    %3107 = vmatprep.subr.bf16.mxu0 0
    %3108 = vmatpush1.bf16.msra.mxu0 0
    %3109 = vmatprep.subr.bf16.mxu0 0
    %3110 = vmatpush1.bf16.msra.mxu0 0
    %3111 = vmatprep.subr.bf16.mxu0 0
    %3112 = vmatpush1.bf16.msra.mxu0 0
    %3113 = vmatprep.subr.bf16.mxu0 0
    %3114 = vmatpush1.bf16.msra.mxu0 0
    %3115 = vmatprep.subr.bf16.mxu0 0
    %3116 = vmatpush1.bf16.msra.mxu0 0
    %3117 = vmatprep.subr.bf16.mxu0 0
    %3118 = vmatpush1.bf16.msra.mxu0 0
    %3119 = vmatprep.mubr.bf16.mxu0 0
    %3120 = vmatmul.mubr.bf16.gmra.mrb[0].mxu0 %v2019
    %v3121 = vpop.f32.mrb[0].mxu0
    %v3122 = vadd.f32 %v2195, %v3121
    %v3123 = vpop.f32.mrb[0].mxu0
    %v3124 = vadd.f32 %v2199, %v3123
    %v3125 = vpop.f32.mrb[0].mxu0
    %v3126 = vadd.f32 %v2195, %v3125
    %v3127 = vpop.f32.mrb[0].mxu0
    %v3128 = vadd.f32 %v2199, %v3127
    %3129 = vdwg.mxu0
    %3130 = vmatprep.subr.bf16.mxu0 %v2629
    %3131 = vmatpush1.bf16.msra.mxu0 %v2628
    %3132 = vmatprep.subr.bf16.mxu0 %v2645
    %3133 = vmatpush1.bf16.msra.mxu0 %v2644
    %3134 = vmatprep.subr.bf16.mxu0 %v2661
    %3135 = vmatpush1.bf16.msra.mxu0 %v2660
    %3136 = vmatprep.subr.bf16.mxu0 %v2677
    %3137 = vmatpush1.bf16.msra.mxu0 %v2676
    %3138 = vmatprep.subr.bf16.mxu0 %v2693
    %3139 = vmatpush1.bf16.msra.mxu0 %v2692
    %3140 = vmatprep.subr.bf16.mxu0 %v2709
    %3141 = vmatpush1.bf16.msra.mxu0 %v2708
    %3142 = vmatprep.subr.bf16.mxu0 %v2725
    %3143 = vmatpush1.bf16.msra.mxu0 %v2724
    %3144 = vmatprep.subr.bf16.mxu0 %v2741
    %3145 = vmatpush1.bf16.msra.mxu0 %v2740
    %3146 = vmatprep.subr.bf16.mxu0 0
    %3147 = vmatpush1.bf16.msra.mxu0 0
    %3148 = vmatprep.subr.bf16.mxu0 0
    %3149 = vmatpush1.bf16.msra.mxu0 0
    %3150 = vmatprep.subr.bf16.mxu0 0
    %3151 = vmatpush1.bf16.msra.mxu0 0
    %3152 = vmatprep.subr.bf16.mxu0 0
    %3153 = vmatpush1.bf16.msra.mxu0 0
    %3154 = vmatprep.subr.bf16.mxu0 0
    %3155 = vmatpush1.bf16.msra.mxu0 0
    %3156 = vmatprep.subr.bf16.mxu0 0
    %3157 = vmatpush1.bf16.msra.mxu0 0
    %3158 = vmatprep.subr.bf16.mxu0 0
    %3159 = vmatpush1.bf16.msra.mxu0 0
    %3160 = vmatprep.subr.bf16.mxu0 0
    %3161 = vmatpush1.bf16.msra.mxu0 0
    %3162 = vmatprep.mubr.bf16.mxu0 0
    %3163 = vmatmul.mubr.bf16.gmra.mrb[0].mxu0 %v2019
    %v3164 = vpop.f32.mrb[0].mxu0
    %v3165 = vadd.f32 %v2203, %v3164
    %v3166 = vpop.f32.mrb[0].mxu0
    %v3167 = vadd.f32 %v2207, %v3166
    %v3168 = vpop.f32.mrb[0].mxu0
    %v3169 = vadd.f32 %v2203, %v3168
    %v3170 = vpop.f32.mrb[0].mxu0
    %v3171 = vadd.f32 %v2207, %v3170
    %3172 = vdwg.mxu0
    %3173 = vmatprep.subr.bf16.mxu0 %v2631
    %3174 = vmatpush1.bf16.msra.mxu0 %v2630
    %3175 = vmatprep.subr.bf16.mxu0 %v2647
    %3176 = vmatpush1.bf16.msra.mxu0 %v2646
    %3177 = vmatprep.subr.bf16.mxu0 %v2663
    %3178 = vmatpush1.bf16.msra.mxu0 %v2662
    %3179 = vmatprep.subr.bf16.mxu0 %v2679
    %3180 = vmatpush1.bf16.msra.mxu0 %v2678
    %3181 = vmatprep.subr.bf16.mxu0 %v2695
    %3182 = vmatpush1.bf16.msra.mxu0 %v2694
    %3183 = vmatprep.subr.bf16.mxu0 %v2711
    %3184 = vmatpush1.bf16.msra.mxu0 %v2710
    %3185 = vmatprep.subr.bf16.mxu0 %v2727
    %3186 = vmatpush1.bf16.msra.mxu0 %v2726
    %3187 = vmatprep.subr.bf16.mxu0 %v2743
    %3188 = vmatpush1.bf16.msra.mxu0 %v2742
    %3189 = vmatprep.subr.bf16.mxu0 0
    %3190 = vmatpush1.bf16.msra.mxu0 0
    %3191 = vmatprep.subr.bf16.mxu0 0
    %3192 = vmatpush1.bf16.msra.mxu0 0
    %3193 = vmatprep.subr.bf16.mxu0 0
    %3194 = vmatpush1.bf16.msra.mxu0 0
    %3195 = vmatprep.subr.bf16.mxu0 0
    %3196 = vmatpush1.bf16.msra.mxu0 0
    %3197 = vmatprep.subr.bf16.mxu0 0
    %3198 = vmatpush1.bf16.msra.mxu0 0
    %3199 = vmatprep.subr.bf16.mxu0 0
    %3200 = vmatpush1.bf16.msra.mxu0 0
    %3201 = vmatprep.subr.bf16.mxu0 0
    %3202 = vmatpush1.bf16.msra.mxu0 0
    %3203 = vmatprep.subr.bf16.mxu0 0
    %3204 = vmatpush1.bf16.msra.mxu0 0
    %3205 = vmatprep.mubr.bf16.mxu0 0
    %3206 = vmatmul.mubr.bf16.gmra.mrb[0].mxu0 %v2019
    %v3207 = vpop.f32.mrb[0].mxu0
    %v3208 = vadd.f32 %v2211, %v3207
    %v3209 = vpop.f32.mrb[0].mxu0
    %v3210 = vadd.f32 %v2215, %v3209
    %v3211 = vpop.f32.mrb[0].mxu0
    %v3212 = vadd.f32 %v2211, %v3211
    %v3213 = vpop.f32.mrb[0].mxu0
    %v3214 = vadd.f32 %v2215, %v3213
    %3215 = vdwg.mxu0
    %v3216 = vmax.f32 %v2907, 0.0
    %v3217 = vmax.f32 %v2909, 0.0
    %v3218 = vmax.f32 %v2950, 0.0
    %v3219 = vmax.f32 %v2952, 0.0
    %v3220 = vmax.f32 %v2993, 0.0
    %v3221 = vmax.f32 %v2995, 0.0
    %v3222 = vmax.f32 %v3036, 0.0
    %v3223 = vmax.f32 %v3038, 0.0
    %v3224 = vmax.f32 %v3079, 0.0
    %v3225 = vmax.f32 %v3081, 0.0
    %v3226 = vmax.f32 %v3122, 0.0
    %v3227 = vmax.f32 %v3124, 0.0
    %v3228 = vmax.f32 %v3165, 0.0
    %v3229 = vmax.f32 %v3167, 0.0
    %v3230 = vmax.f32 %v3208, 0.0
    %v3231 = vmax.f32 %v3210, 0.0
    %v3232 = vmax.f32 %v2911, 0.0
    %v3233 = vmax.f32 %v2913, 0.0
    %v3234 = vmax.f32 %v2954, 0.0
    %v3235 = vmax.f32 %v2956, 0.0
    %v3236 = vmax.f32 %v2997, 0.0
    %v3237 = vmax.f32 %v2999, 0.0
    %v3238 = vmax.f32 %v3040, 0.0
    %v3239 = vmax.f32 %v3042, 0.0
    %v3240 = vmax.f32 %v3083, 0.0
    %v3241 = vmax.f32 %v3085, 0.0
    %v3242 = vmax.f32 %v3126, 0.0
    %v3243 = vmax.f32 %v3128, 0.0
    %v3244 = vmax.f32 %v3169, 0.0
    %v3245 = vmax.f32 %v3171, 0.0
    %v3246 = vmax.f32 %v3212, 0.0
    %v3247 = vmax.f32 %v3214, 0.0
    %v3248 = vpack.c.bf16 %v3232, %v3216
    %v3249 = vpack.c.bf16 %v3233, %v3217
    %v3250 = vpack.c.bf16 %v3234, %v3218
    %v3251 = vpack.c.bf16 %v3235, %v3219
    %v3252 = vpack.c.bf16 %v3236, %v3220
    %v3253 = vpack.c.bf16 %v3237, %v3221
    %v3254 = vpack.c.bf16 %v3238, %v3222
    %v3255 = vpack.c.bf16 %v3239, %v3223
    %v3256 = vpack.c.bf16 %v3240, %v3224
    %v3257 = vpack.c.bf16 %v3241, %v3225
    %v3258 = vpack.c.bf16 %v3242, %v3226
    %v3259 = vpack.c.bf16 %v3243, %v3227
    %v3260 = vpack.c.bf16 %v3244, %v3228
    %v3261 = vpack.c.bf16 %v3245, %v3229
    %v3262 = vpack.c.bf16 %v3246, %v3230
    %v3263 = vpack.c.bf16 %v3247, %v3231
    %v3264 = vld [vmem:[#allocation12] sm:$0xf]
    %v3265 = vld [vmem:[#allocation12 + $0x4] sm:$0xf]
    %v3266 = vld [vmem:[#allocation12 + $0x8] sm:$0xf]
    %v3267 = vld [vmem:[#allocation12 + $0xc] sm:$0xf]
    %v3268 = vld [vmem:[#allocation12 + $0x10] sm:$0xf]
    %v3269 = vld [vmem:[#allocation12 + $0x14] sm:$0xf]
    %v3270 = vld [vmem:[#allocation12 + $0x18] sm:$0xf]
    %v3271 = vld [vmem:[#allocation12 + $0x1c] sm:$0xf]
    %v3272 = vld [vmem:[#allocation12 + $0x20] sm:$0xf]
    %v3273 = vld [vmem:[#allocation12 + $0x24] sm:$0xf]
    %v3274 = vld [vmem:[#allocation12 + $0x28] sm:$0xf]
    %v3275 = vld [vmem:[#allocation12 + $0x2c] sm:$0xf]
    %v3276 = vld [vmem:[#allocation12 + $0x30] sm:$0xf]
    %v3277 = vld [vmem:[#allocation12 + $0x34] sm:$0xf]
    %v3278 = vld [vmem:[#allocation12 + $0x38] sm:$0xf]
    %v3279 = vld [vmem:[#allocation12 + $0x3c] sm:$0xf]
    %v3280 = vld [vmem:[#allocation12 + $0x40] sm:$0xf]
    %v3281 = vld [vmem:[#allocation12 + $0x44] sm:$0xf]
    %v3282 = vld [vmem:[#allocation12 + $0x48] sm:$0xf]
    %v3283 = vld [vmem:[#allocation12 + $0x4c] sm:$0xf]
    %v3284 = vld [vmem:[#allocation12 + $0x50] sm:$0xf]
    %v3285 = vld [vmem:[#allocation12 + $0x54] sm:$0xf]
    %v3286 = vld [vmem:[#allocation12 + $0x58] sm:$0xf]
    %v3287 = vld [vmem:[#allocation12 + $0x5c] sm:$0xf]
    %v3288 = vld [vmem:[#allocation12 + $0x60] sm:$0xf]
    %v3289 = vld [vmem:[#allocation12 + $0x64] sm:$0xf]
    %v3290 = vld [vmem:[#allocation12 + $0x68] sm:$0xf]
    %v3291 = vld [vmem:[#allocation12 + $0x6c] sm:$0xf]
    %v3292 = vld [vmem:[#allocation12 + $0x70] sm:$0xf]
    %v3293 = vld [vmem:[#allocation12 + $0x74] sm:$0xf]
    %v3294 = vld [vmem:[#allocation12 + $0x78] sm:$0xf]
    %v3295 = vld [vmem:[#allocation12 + $0x7c] sm:$0xf]
    %v3296 = vld [vmem:[#allocation12 + $0x80] sm:$0xf]
    %v3297 = vld [vmem:[#allocation12 + $0x84] sm:$0xf]
    %v3298 = vld [vmem:[#allocation12 + $0x88] sm:$0xf]
    %v3299 = vld [vmem:[#allocation12 + $0x8c] sm:$0xf]
    %v3300 = vld [vmem:[#allocation12 + $0x90] sm:$0xf]
    %v3301 = vld [vmem:[#allocation12 + $0x94] sm:$0xf]
    %v3302 = vld [vmem:[#allocation12 + $0x98] sm:$0xf]
    %v3303 = vld [vmem:[#allocation12 + $0x9c] sm:$0xf]
    %v3304 = vld [vmem:[#allocation12 + $0xa0] sm:$0xf]
    %v3305 = vld [vmem:[#allocation12 + $0xa4] sm:$0xf]
    %v3306 = vld [vmem:[#allocation12 + $0xa8] sm:$0xf]
    %v3307 = vld [vmem:[#allocation12 + $0xac] sm:$0xf]
    %v3308 = vld [vmem:[#allocation12 + $0xb0] sm:$0xf]
    %v3309 = vld [vmem:[#allocation12 + $0xb4] sm:$0xf]
    %v3310 = vld [vmem:[#allocation12 + $0xb8] sm:$0xf]
    %v3311 = vld [vmem:[#allocation12 + $0xbc] sm:$0xf]
    %v3312 = vld [vmem:[#allocation12 + $0xc0] sm:$0xf]
    %v3313 = vld [vmem:[#allocation12 + $0xc4] sm:$0xf]
    %v3314 = vld [vmem:[#allocation12 + $0xc8] sm:$0xf]
    %v3315 = vld [vmem:[#allocation12 + $0xcc] sm:$0xf]
    %v3316 = vld [vmem:[#allocation12 + $0xd0] sm:$0xf]
    %v3317 = vld [vmem:[#allocation12 + $0xd4] sm:$0xf]
    %v3318 = vld [vmem:[#allocation12 + $0xd8] sm:$0xf]
    %v3319 = vld [vmem:[#allocation12 + $0xdc] sm:$0xf]
    %v3320 = vld [vmem:[#allocation12 + $0xe0] sm:$0xf]
    %v3321 = vld [vmem:[#allocation12 + $0xe4] sm:$0xf]
    %v3322 = vld [vmem:[#allocation12 + $0xe8] sm:$0xf]
    %v3323 = vld [vmem:[#allocation12 + $0xec] sm:$0xf]
    %v3324 = vld [vmem:[#allocation12 + $0xf0] sm:$0xf]
    %v3325 = vld [vmem:[#allocation12 + $0xf4] sm:$0xf]
    %v3326 = vld [vmem:[#allocation12 + $0xf8] sm:$0xf]
    %v3327 = vld [vmem:[#allocation12 + $0xfc] sm:$0xf]
    %v3328 = vld [vmem:[#allocation12 + $0x100] sm:$0xf]
    %v3329 = vld [vmem:[#allocation12 + $0x104] sm:$0xf]
    %v3330 = vld [vmem:[#allocation12 + $0x108] sm:$0xf]
    %v3331 = vld [vmem:[#allocation12 + $0x10c] sm:$0xf]
    %v3332 = vld [vmem:[#allocation12 + $0x110] sm:$0xf]
    %v3333 = vld [vmem:[#allocation12 + $0x114] sm:$0xf]
    %v3334 = vld [vmem:[#allocation12 + $0x118] sm:$0xf]
    %v3335 = vld [vmem:[#allocation12 + $0x11c] sm:$0xf]
    %v3336 = vld [vmem:[#allocation12 + $0x120] sm:$0xf]
    %v3337 = vld [vmem:[#allocation12 + $0x124] sm:$0xf]
    %v3338 = vld [vmem:[#allocation12 + $0x128] sm:$0xf]
    %v3339 = vld [vmem:[#allocation12 + $0x12c] sm:$0xf]
    %v3340 = vld [vmem:[#allocation12 + $0x130] sm:$0xf]
    %v3341 = vld [vmem:[#allocation12 + $0x134] sm:$0xf]
    %v3342 = vld [vmem:[#allocation12 + $0x138] sm:$0xf]
    %v3343 = vld [vmem:[#allocation12 + $0x13c] sm:$0xf]
    %v3344 = vld [vmem:[#allocation12 + $0x140] sm:$0xf]
    %v3345 = vld [vmem:[#allocation12 + $0x144] sm:$0xf]
    %v3346 = vld [vmem:[#allocation12 + $0x148] sm:$0xf]
    %v3347 = vld [vmem:[#allocation12 + $0x14c] sm:$0xf]
    %v3348 = vld [vmem:[#allocation12 + $0x150] sm:$0xf]
    %v3349 = vld [vmem:[#allocation12 + $0x154] sm:$0xf]
    %v3350 = vld [vmem:[#allocation12 + $0x158] sm:$0xf]
    %v3351 = vld [vmem:[#allocation12 + $0x15c] sm:$0xf]
    %v3352 = vld [vmem:[#allocation12 + $0x160] sm:$0xf]
    %v3353 = vld [vmem:[#allocation12 + $0x164] sm:$0xf]
    %v3354 = vld [vmem:[#allocation12 + $0x168] sm:$0xf]
    %v3355 = vld [vmem:[#allocation12 + $0x16c] sm:$0xf]
    %v3356 = vld [vmem:[#allocation12 + $0x170] sm:$0xf]
    %v3357 = vld [vmem:[#allocation12 + $0x174] sm:$0xf]
    %v3358 = vld [vmem:[#allocation12 + $0x178] sm:$0xf]
    %v3359 = vld [vmem:[#allocation12 + $0x17c] sm:$0xf]
    %v3360 = vld [vmem:[#allocation12 + $0x180] sm:$0xf]
    %v3361 = vld [vmem:[#allocation12 + $0x184] sm:$0xf]
    %v3362 = vld [vmem:[#allocation12 + $0x188] sm:$0xf]
    %v3363 = vld [vmem:[#allocation12 + $0x18c] sm:$0xf]
    %v3364 = vld [vmem:[#allocation12 + $0x190] sm:$0xf]
    %v3365 = vld [vmem:[#allocation12 + $0x194] sm:$0xf]
    %v3366 = vld [vmem:[#allocation12 + $0x198] sm:$0xf]
    %v3367 = vld [vmem:[#allocation12 + $0x19c] sm:$0xf]
    %v3368 = vld [vmem:[#allocation12 + $0x1a0] sm:$0xf]
    %v3369 = vld [vmem:[#allocation12 + $0x1a4] sm:$0xf]
    %v3370 = vld [vmem:[#allocation12 + $0x1a8] sm:$0xf]
    %v3371 = vld [vmem:[#allocation12 + $0x1ac] sm:$0xf]
    %v3372 = vld [vmem:[#allocation12 + $0x1b0] sm:$0xf]
    %v3373 = vld [vmem:[#allocation12 + $0x1b4] sm:$0xf]
    %v3374 = vld [vmem:[#allocation12 + $0x1b8] sm:$0xf]
    %v3375 = vld [vmem:[#allocation12 + $0x1bc] sm:$0xf]
    %v3376 = vld [vmem:[#allocation12 + $0x1c0] sm:$0xf]
    %v3377 = vld [vmem:[#allocation12 + $0x1c4] sm:$0xf]
    %v3378 = vld [vmem:[#allocation12 + $0x1c8] sm:$0xf]
    %v3379 = vld [vmem:[#allocation12 + $0x1cc] sm:$0xf]
    %v3380 = vld [vmem:[#allocation12 + $0x1d0] sm:$0xf]
    %v3381 = vld [vmem:[#allocation12 + $0x1d4] sm:$0xf]
    %v3382 = vld [vmem:[#allocation12 + $0x1d8] sm:$0xf]
    %v3383 = vld [vmem:[#allocation12 + $0x1dc] sm:$0xf]
    %v3384 = vld [vmem:[#allocation12 + $0x1e0] sm:$0xf]
    %v3385 = vld [vmem:[#allocation12 + $0x1e4] sm:$0xf]
    %v3386 = vld [vmem:[#allocation12 + $0x1e8] sm:$0xf]
    %v3387 = vld [vmem:[#allocation12 + $0x1ec] sm:$0xf]
    %v3388 = vld [vmem:[#allocation12 + $0x1f0] sm:$0xf]
    %v3389 = vld [vmem:[#allocation12 + $0x1f4] sm:$0xf]
    %v3390 = vld [vmem:[#allocation12 + $0x1f8] sm:$0xf]
    %v3391 = vld [vmem:[#allocation12 + $0x1fc] sm:$0xf]
    %v3392 = vld [vmem:[#allocation12 + $0x200] sm:$0xf]
    %v3393 = vld [vmem:[#allocation12 + $0x204] sm:$0xf]
    %v3394 = vld [vmem:[#allocation12 + $0x208] sm:$0xf]
    %v3395 = vld [vmem:[#allocation12 + $0x20c] sm:$0xf]
    %v3396 = vld [vmem:[#allocation12 + $0x210] sm:$0xf]
    %v3397 = vld [vmem:[#allocation12 + $0x214] sm:$0xf]
    %v3398 = vld [vmem:[#allocation12 + $0x218] sm:$0xf]
    %v3399 = vld [vmem:[#allocation12 + $0x21c] sm:$0xf]
    %v3400 = vld [vmem:[#allocation12 + $0x220] sm:$0xf]
    %v3401 = vld [vmem:[#allocation12 + $0x224] sm:$0xf]
    %v3402 = vld [vmem:[#allocation12 + $0x228] sm:$0xf]
    %v3403 = vld [vmem:[#allocation12 + $0x22c] sm:$0xf]
    %v3404 = vld [vmem:[#allocation12 + $0x230] sm:$0xf]
    %v3405 = vld [vmem:[#allocation12 + $0x234] sm:$0xf]
    %v3406 = vld [vmem:[#allocation12 + $0x238] sm:$0xf]
    %v3407 = vld [vmem:[#allocation12 + $0x23c] sm:$0xf]
    %v3408 = vld [vmem:[#allocation12 + $0x240] sm:$0xf]
    %v3409 = vld [vmem:[#allocation12 + $0x244] sm:$0xf]
    %v3410 = vld [vmem:[#allocation12 + $0x248] sm:$0xf]
    %v3411 = vld [vmem:[#allocation12 + $0x24c] sm:$0xf]
    %v3412 = vld [vmem:[#allocation12 + $0x250] sm:$0xf]
    %v3413 = vld [vmem:[#allocation12 + $0x254] sm:$0xf]
    %v3414 = vld [vmem:[#allocation12 + $0x258] sm:$0xf]
    %v3415 = vld [vmem:[#allocation12 + $0x25c] sm:$0xf]
    %v3416 = vld [vmem:[#allocation12 + $0x260] sm:$0xf]
    %v3417 = vld [vmem:[#allocation12 + $0x264] sm:$0xf]
    %v3418 = vld [vmem:[#allocation12 + $0x268] sm:$0xf]
    %v3419 = vld [vmem:[#allocation12 + $0x26c] sm:$0xf]
    %v3420 = vld [vmem:[#allocation12 + $0x270] sm:$0xf]
    %v3421 = vld [vmem:[#allocation12 + $0x274] sm:$0xf]
    %v3422 = vld [vmem:[#allocation12 + $0x278] sm:$0xf]
    %v3423 = vld [vmem:[#allocation12 + $0x27c] sm:$0xf]
    %v3424 = vld [vmem:[#allocation12 + $0x280] sm:$0xf]
    %v3425 = vld [vmem:[#allocation12 + $0x284] sm:$0xf]
    %v3426 = vld [vmem:[#allocation12 + $0x288] sm:$0xf]
    %v3427 = vld [vmem:[#allocation12 + $0x28c] sm:$0xf]
    %v3428 = vld [vmem:[#allocation12 + $0x290] sm:$0xf]
    %v3429 = vld [vmem:[#allocation12 + $0x294] sm:$0xf]
    %v3430 = vld [vmem:[#allocation12 + $0x298] sm:$0xf]
    %v3431 = vld [vmem:[#allocation12 + $0x29c] sm:$0xf]
    %v3432 = vld [vmem:[#allocation12 + $0x2a0] sm:$0xf]
    %v3433 = vld [vmem:[#allocation12 + $0x2a4] sm:$0xf]
    %v3434 = vld [vmem:[#allocation12 + $0x2a8] sm:$0xf]
    %v3435 = vld [vmem:[#allocation12 + $0x2ac] sm:$0xf]
    %v3436 = vld [vmem:[#allocation12 + $0x2b0] sm:$0xf]
    %v3437 = vld [vmem:[#allocation12 + $0x2b4] sm:$0xf]
    %v3438 = vld [vmem:[#allocation12 + $0x2b8] sm:$0xf]
    %v3439 = vld [vmem:[#allocation12 + $0x2bc] sm:$0xf]
    %v3440 = vld [vmem:[#allocation12 + $0x2c0] sm:$0xf]
    %v3441 = vld [vmem:[#allocation12 + $0x2c4] sm:$0xf]
    %v3442 = vld [vmem:[#allocation12 + $0x2c8] sm:$0xf]
    %v3443 = vld [vmem:[#allocation12 + $0x2cc] sm:$0xf]
    %v3444 = vld [vmem:[#allocation12 + $0x2d0] sm:$0xf]
    %v3445 = vld [vmem:[#allocation12 + $0x2d4] sm:$0xf]
    %v3446 = vld [vmem:[#allocation12 + $0x2d8] sm:$0xf]
    %v3447 = vld [vmem:[#allocation12 + $0x2dc] sm:$0xf]
    %v3448 = vld [vmem:[#allocation12 + $0x2e0] sm:$0xf]
    %v3449 = vld [vmem:[#allocation12 + $0x2e4] sm:$0xf]
    %v3450 = vld [vmem:[#allocation12 + $0x2e8] sm:$0xf]
    %v3451 = vld [vmem:[#allocation12 + $0x2ec] sm:$0xf]
    %v3452 = vld [vmem:[#allocation12 + $0x2f0] sm:$0xf]
    %v3453 = vld [vmem:[#allocation12 + $0x2f4] sm:$0xf]
    %v3454 = vld [vmem:[#allocation12 + $0x2f8] sm:$0xf]
    %v3455 = vld [vmem:[#allocation12 + $0x2fc] sm:$0xf]
    %v3456 = vld [vmem:[#allocation12 + $0x300] sm:$0xf]
    %v3457 = vld [vmem:[#allocation12 + $0x304] sm:$0xf]
    %v3458 = vld [vmem:[#allocation12 + $0x308] sm:$0xf]
    %v3459 = vld [vmem:[#allocation12 + $0x30c] sm:$0xf]
    %v3460 = vld [vmem:[#allocation12 + $0x310] sm:$0xf]
    %v3461 = vld [vmem:[#allocation12 + $0x314] sm:$0xf]
    %v3462 = vld [vmem:[#allocation12 + $0x318] sm:$0xf]
    %v3463 = vld [vmem:[#allocation12 + $0x31c] sm:$0xf]
    %v3464 = vld [vmem:[#allocation12 + $0x320] sm:$0xf]
    %v3465 = vld [vmem:[#allocation12 + $0x324] sm:$0xf]
    %v3466 = vld [vmem:[#allocation12 + $0x328] sm:$0xf]
    %v3467 = vld [vmem:[#allocation12 + $0x32c] sm:$0xf]
    %v3468 = vld [vmem:[#allocation12 + $0x330] sm:$0xf]
    %v3469 = vld [vmem:[#allocation12 + $0x334] sm:$0xf]
    %v3470 = vld [vmem:[#allocation12 + $0x338] sm:$0xf]
    %v3471 = vld [vmem:[#allocation12 + $0x33c] sm:$0xf]
    %v3472 = vld [vmem:[#allocation12 + $0x340] sm:$0xf]
    %v3473 = vld [vmem:[#allocation12 + $0x344] sm:$0xf]
    %v3474 = vld [vmem:[#allocation12 + $0x348] sm:$0xf]
    %v3475 = vld [vmem:[#allocation12 + $0x34c] sm:$0xf]
    %v3476 = vld [vmem:[#allocation12 + $0x350] sm:$0xf]
    %v3477 = vld [vmem:[#allocation12 + $0x354] sm:$0xf]
    %v3478 = vld [vmem:[#allocation12 + $0x358] sm:$0xf]
    %v3479 = vld [vmem:[#allocation12 + $0x35c] sm:$0xf]
    %v3480 = vld [vmem:[#allocation12 + $0x360] sm:$0xf]
    %v3481 = vld [vmem:[#allocation12 + $0x364] sm:$0xf]
    %v3482 = vld [vmem:[#allocation12 + $0x368] sm:$0xf]
    %v3483 = vld [vmem:[#allocation12 + $0x36c] sm:$0xf]
    %v3484 = vld [vmem:[#allocation12 + $0x370] sm:$0xf]
    %v3485 = vld [vmem:[#allocation12 + $0x374] sm:$0xf]
    %v3486 = vld [vmem:[#allocation12 + $0x378] sm:$0xf]
    %v3487 = vld [vmem:[#allocation12 + $0x37c] sm:$0xf]
    %v3488 = vld [vmem:[#allocation12 + $0x380] sm:$0xf]
    %v3489 = vld [vmem:[#allocation12 + $0x384] sm:$0xf]
    %v3490 = vld [vmem:[#allocation12 + $0x388] sm:$0xf]
    %v3491 = vld [vmem:[#allocation12 + $0x38c] sm:$0xf]
    %v3492 = vld [vmem:[#allocation12 + $0x390] sm:$0xf]
    %v3493 = vld [vmem:[#allocation12 + $0x394] sm:$0xf]
    %v3494 = vld [vmem:[#allocation12 + $0x398] sm:$0xf]
    %v3495 = vld [vmem:[#allocation12 + $0x39c] sm:$0xf]
    %v3496 = vld [vmem:[#allocation12 + $0x3a0] sm:$0xf]
    %v3497 = vld [vmem:[#allocation12 + $0x3a4] sm:$0xf]
    %v3498 = vld [vmem:[#allocation12 + $0x3a8] sm:$0xf]
    %v3499 = vld [vmem:[#allocation12 + $0x3ac] sm:$0xf]
    %v3500 = vld [vmem:[#allocation12 + $0x3b0] sm:$0xf]
    %v3501 = vld [vmem:[#allocation12 + $0x3b4] sm:$0xf]
    %v3502 = vld [vmem:[#allocation12 + $0x3b8] sm:$0xf]
    %v3503 = vld [vmem:[#allocation12 + $0x3bc] sm:$0xf]
    %v3504 = vld [vmem:[#allocation12 + $0x3c0] sm:$0xf]
    %v3505 = vld [vmem:[#allocation12 + $0x3c4] sm:$0xf]
    %v3506 = vld [vmem:[#allocation12 + $0x3c8] sm:$0xf]
    %v3507 = vld [vmem:[#allocation12 + $0x3cc] sm:$0xf]
    %v3508 = vld [vmem:[#allocation12 + $0x3d0] sm:$0xf]
    %v3509 = vld [vmem:[#allocation12 + $0x3d4] sm:$0xf]
    %v3510 = vld [vmem:[#allocation12 + $0x3d8] sm:$0xf]
    %v3511 = vld [vmem:[#allocation12 + $0x3dc] sm:$0xf]
    %v3512 = vld [vmem:[#allocation12 + $0x3e0] sm:$0xf]
    %v3513 = vld [vmem:[#allocation12 + $0x3e4] sm:$0xf]
    %v3514 = vld [vmem:[#allocation12 + $0x3e8] sm:$0xf]
    %v3515 = vld [vmem:[#allocation12 + $0x3ec] sm:$0xf]
    %v3516 = vld [vmem:[#allocation12 + $0x3f0] sm:$0xf]
    %v3517 = vld [vmem:[#allocation12 + $0x3f4] sm:$0xf]
    %v3518 = vld [vmem:[#allocation12 + $0x3f8] sm:$0xf]
    %v3519 = vld [vmem:[#allocation12 + $0x3fc] sm:$0xf]
    %v3520 = vld [vmem:[#allocation13] sm:$0x1]
    %v3522 = vlaneseq
    %v3523 = vshrl.u32 %v3522, 7
    %v3524 = vsub.s32 0, %v3523
    %v3525 = vrot.slane %v3520, %v3524
    %v3783 = vunpack.c.l.b16 %v3264
    %v3784 = vunpack.c.l.b16 %v3265
    %v3785 = vunpack.c.l.b16 %v3266
    %v3786 = vunpack.c.l.b16 %v3267
    %v3787 = vunpack.c.l.b16 %v3268
    %v3788 = vunpack.c.l.b16 %v3269
    %v3789 = vunpack.c.l.b16 %v3270
    %v3790 = vunpack.c.l.b16 %v3271
    %v3791 = vunpack.c.l.b16 %v3272
    %v3792 = vunpack.c.l.b16 %v3273
    %v3793 = vunpack.c.l.b16 %v3274
    %v3794 = vunpack.c.l.b16 %v3275
    %v3795 = vunpack.c.l.b16 %v3276
    %v3796 = vunpack.c.l.b16 %v3277
    %v3797 = vunpack.c.l.b16 %v3278
    %v3798 = vunpack.c.l.b16 %v3279
    %v3799 = vunpack.c.l.b16 %v3280
    %v3800 = vunpack.c.l.b16 %v3281
    %v3801 = vunpack.c.l.b16 %v3282
    %v3802 = vunpack.c.l.b16 %v3283
    %v3803 = vunpack.c.l.b16 %v3284
    %v3804 = vunpack.c.l.b16 %v3285
    %v3805 = vunpack.c.l.b16 %v3286
    %v3806 = vunpack.c.l.b16 %v3287
    %v3807 = vunpack.c.l.b16 %v3288
    %v3808 = vunpack.c.l.b16 %v3289
    %v3809 = vunpack.c.l.b16 %v3290
    %v3810 = vunpack.c.l.b16 %v3291
    %v3811 = vunpack.c.l.b16 %v3292
    %v3812 = vunpack.c.l.b16 %v3293
    %v3813 = vunpack.c.l.b16 %v3294
    %v3814 = vunpack.c.l.b16 %v3295
    %v3815 = vunpack.c.l.b16 %v3296
    %v3816 = vunpack.c.l.b16 %v3297
    %v3817 = vunpack.c.l.b16 %v3298
    %v3818 = vunpack.c.l.b16 %v3299
    %v3819 = vunpack.c.l.b16 %v3300
    %v3820 = vunpack.c.l.b16 %v3301
    %v3821 = vunpack.c.l.b16 %v3302
    %v3822 = vunpack.c.l.b16 %v3303
    %v3823 = vunpack.c.l.b16 %v3304
    %v3824 = vunpack.c.l.b16 %v3305
    %v3825 = vunpack.c.l.b16 %v3306
    %v3826 = vunpack.c.l.b16 %v3307
    %v3827 = vunpack.c.l.b16 %v3308
    %v3828 = vunpack.c.l.b16 %v3309
    %v3829 = vunpack.c.l.b16 %v3310
    %v3830 = vunpack.c.l.b16 %v3311
    %v3831 = vunpack.c.l.b16 %v3312
    %v3832 = vunpack.c.l.b16 %v3313
    %v3833 = vunpack.c.l.b16 %v3314
    %v3834 = vunpack.c.l.b16 %v3315
    %v3835 = vunpack.c.l.b16 %v3316
    %v3836 = vunpack.c.l.b16 %v3317
    %v3837 = vunpack.c.l.b16 %v3318
    %v3838 = vunpack.c.l.b16 %v3319
    %v3839 = vunpack.c.l.b16 %v3320
    %v3840 = vunpack.c.l.b16 %v3321
    %v3841 = vunpack.c.l.b16 %v3322
    %v3842 = vunpack.c.l.b16 %v3323
    %v3843 = vunpack.c.l.b16 %v3324
    %v3844 = vunpack.c.l.b16 %v3325
    %v3845 = vunpack.c.l.b16 %v3326
    %v3846 = vunpack.c.l.b16 %v3327
    %v3847 = vunpack.c.l.b16 %v3328
    %v3848 = vunpack.c.l.b16 %v3329
    %v3849 = vunpack.c.l.b16 %v3330
    %v3850 = vunpack.c.l.b16 %v3331
    %v3851 = vunpack.c.l.b16 %v3332
    %v3852 = vunpack.c.l.b16 %v3333
    %v3853 = vunpack.c.l.b16 %v3334
    %v3854 = vunpack.c.l.b16 %v3335
    %v3855 = vunpack.c.l.b16 %v3336
    %v3856 = vunpack.c.l.b16 %v3337
    %v3857 = vunpack.c.l.b16 %v3338
    %v3858 = vunpack.c.l.b16 %v3339
    %v3859 = vunpack.c.l.b16 %v3340
    %v3860 = vunpack.c.l.b16 %v3341
    %v3861 = vunpack.c.l.b16 %v3342
    %v3862 = vunpack.c.l.b16 %v3343
    %v3863 = vunpack.c.l.b16 %v3344
    %v3864 = vunpack.c.l.b16 %v3345
    %v3865 = vunpack.c.l.b16 %v3346
    %v3866 = vunpack.c.l.b16 %v3347
    %v3867 = vunpack.c.l.b16 %v3348
    %v3868 = vunpack.c.l.b16 %v3349
    %v3869 = vunpack.c.l.b16 %v3350
    %v3870 = vunpack.c.l.b16 %v3351
    %v3871 = vunpack.c.l.b16 %v3352
    %v3872 = vunpack.c.l.b16 %v3353
    %v3873 = vunpack.c.l.b16 %v3354
    %v3874 = vunpack.c.l.b16 %v3355
    %v3875 = vunpack.c.l.b16 %v3356
    %v3876 = vunpack.c.l.b16 %v3357
    %v3877 = vunpack.c.l.b16 %v3358
    %v3878 = vunpack.c.l.b16 %v3359
    %v3879 = vunpack.c.l.b16 %v3360
    %v3880 = vunpack.c.l.b16 %v3361
    %v3881 = vunpack.c.l.b16 %v3362
    %v3882 = vunpack.c.l.b16 %v3363
    %v3883 = vunpack.c.l.b16 %v3364
    %v3884 = vunpack.c.l.b16 %v3365
    %v3885 = vunpack.c.l.b16 %v3366
    %v3886 = vunpack.c.l.b16 %v3367
    %v3887 = vunpack.c.l.b16 %v3368
    %v3888 = vunpack.c.l.b16 %v3369
    %v3889 = vunpack.c.l.b16 %v3370
    %v3890 = vunpack.c.l.b16 %v3371
    %v3891 = vunpack.c.l.b16 %v3372
    %v3892 = vunpack.c.l.b16 %v3373
    %v3893 = vunpack.c.l.b16 %v3374
    %v3894 = vunpack.c.l.b16 %v3375
    %v3895 = vunpack.c.l.b16 %v3376
    %v3896 = vunpack.c.l.b16 %v3377
    %v3897 = vunpack.c.l.b16 %v3378
    %v3898 = vunpack.c.l.b16 %v3379
    %v3899 = vunpack.c.l.b16 %v3380
    %v3900 = vunpack.c.l.b16 %v3381
    %v3901 = vunpack.c.l.b16 %v3382
    %v3902 = vunpack.c.l.b16 %v3383
    %v3903 = vunpack.c.l.b16 %v3384
    %v3904 = vunpack.c.l.b16 %v3385
    %v3905 = vunpack.c.l.b16 %v3386
    %v3906 = vunpack.c.l.b16 %v3387
    %v3907 = vunpack.c.l.b16 %v3388
    %v3908 = vunpack.c.l.b16 %v3389
    %v3909 = vunpack.c.l.b16 %v3390
    %v3910 = vunpack.c.l.b16 %v3391
    %v3911 = vunpack.c.l.b16 %v3392
    %v3912 = vunpack.c.l.b16 %v3393
    %v3913 = vunpack.c.l.b16 %v3394
    %v3914 = vunpack.c.l.b16 %v3395
    %v3915 = vunpack.c.l.b16 %v3396
    %v3916 = vunpack.c.l.b16 %v3397
    %v3917 = vunpack.c.l.b16 %v3398
    %v3918 = vunpack.c.l.b16 %v3399
    %v3919 = vunpack.c.l.b16 %v3400
    %v3920 = vunpack.c.l.b16 %v3401
    %v3921 = vunpack.c.l.b16 %v3402
    %v3922 = vunpack.c.l.b16 %v3403
    %v3923 = vunpack.c.l.b16 %v3404
    %v3924 = vunpack.c.l.b16 %v3405
    %v3925 = vunpack.c.l.b16 %v3406
    %v3926 = vunpack.c.l.b16 %v3407
    %v3927 = vunpack.c.l.b16 %v3408
    %v3928 = vunpack.c.l.b16 %v3409
    %v3929 = vunpack.c.l.b16 %v3410
    %v3930 = vunpack.c.l.b16 %v3411
    %v3931 = vunpack.c.l.b16 %v3412
    %v3932 = vunpack.c.l.b16 %v3413
    %v3933 = vunpack.c.l.b16 %v3414
    %v3934 = vunpack.c.l.b16 %v3415
    %v3935 = vunpack.c.l.b16 %v3416
    %v3936 = vunpack.c.l.b16 %v3417
    %v3937 = vunpack.c.l.b16 %v3418
    %v3938 = vunpack.c.l.b16 %v3419
    %v3939 = vunpack.c.l.b16 %v3420
    %v3940 = vunpack.c.l.b16 %v3421
    %v3941 = vunpack.c.l.b16 %v3422
    %v3942 = vunpack.c.l.b16 %v3423
    %v3943 = vunpack.c.l.b16 %v3424
    %v3944 = vunpack.c.l.b16 %v3425
    %v3945 = vunpack.c.l.b16 %v3426
    %v3946 = vunpack.c.l.b16 %v3427
    %v3947 = vunpack.c.l.b16 %v3428
    %v3948 = vunpack.c.l.b16 %v3429
    %v3949 = vunpack.c.l.b16 %v3430
    %v3950 = vunpack.c.l.b16 %v3431
    %v3951 = vunpack.c.l.b16 %v3432
    %v3952 = vunpack.c.l.b16 %v3433
    %v3953 = vunpack.c.l.b16 %v3434
    %v3954 = vunpack.c.l.b16 %v3435
    %v3955 = vunpack.c.l.b16 %v3436
    %v3956 = vunpack.c.l.b16 %v3437
    %v3957 = vunpack.c.l.b16 %v3438
    %v3958 = vunpack.c.l.b16 %v3439
    %v3959 = vunpack.c.l.b16 %v3440
    %v3960 = vunpack.c.l.b16 %v3441
    %v3961 = vunpack.c.l.b16 %v3442
    %v3962 = vunpack.c.l.b16 %v3443
    %v3963 = vunpack.c.l.b16 %v3444
    %v3964 = vunpack.c.l.b16 %v3445
    %v3965 = vunpack.c.l.b16 %v3446
    %v3966 = vunpack.c.l.b16 %v3447
    %v3967 = vunpack.c.l.b16 %v3448
    %v3968 = vunpack.c.l.b16 %v3449
    %v3969 = vunpack.c.l.b16 %v3450
    %v3970 = vunpack.c.l.b16 %v3451
    %v3971 = vunpack.c.l.b16 %v3452
    %v3972 = vunpack.c.l.b16 %v3453
    %v3973 = vunpack.c.l.b16 %v3454
    %v3974 = vunpack.c.l.b16 %v3455
    %v3975 = vunpack.c.l.b16 %v3456
    %v3976 = vunpack.c.l.b16 %v3457
    %v3977 = vunpack.c.l.b16 %v3458
    %v3978 = vunpack.c.l.b16 %v3459
    %v3979 = vunpack.c.l.b16 %v3460
    %v3980 = vunpack.c.l.b16 %v3461
    %v3981 = vunpack.c.l.b16 %v3462
    %v3982 = vunpack.c.l.b16 %v3463
    %v3983 = vunpack.c.l.b16 %v3464
    %v3984 = vunpack.c.l.b16 %v3465
    %v3985 = vunpack.c.l.b16 %v3466
    %v3986 = vunpack.c.l.b16 %v3467
    %v3987 = vunpack.c.l.b16 %v3468
    %v3988 = vunpack.c.l.b16 %v3469
    %v3989 = vunpack.c.l.b16 %v3470
    %v3990 = vunpack.c.l.b16 %v3471
    %v3991 = vunpack.c.l.b16 %v3472
    %v3992 = vunpack.c.l.b16 %v3473
    %v3993 = vunpack.c.l.b16 %v3474
    %v3994 = vunpack.c.l.b16 %v3475
    %v3995 = vunpack.c.l.b16 %v3476
    %v3996 = vunpack.c.l.b16 %v3477
    %v3997 = vunpack.c.l.b16 %v3478
    %v3998 = vunpack.c.l.b16 %v3479
    %v3999 = vunpack.c.l.b16 %v3480
    %v4000 = vunpack.c.l.b16 %v3481
    %v4001 = vunpack.c.l.b16 %v3482
    %v4002 = vunpack.c.l.b16 %v3483
    %v4003 = vunpack.c.l.b16 %v3484
    %v4004 = vunpack.c.l.b16 %v3485
    %v4005 = vunpack.c.l.b16 %v3486
    %v4006 = vunpack.c.l.b16 %v3487
    %v4007 = vunpack.c.l.b16 %v3488
    %v4008 = vunpack.c.l.b16 %v3489
    %v4009 = vunpack.c.l.b16 %v3490
    %v4010 = vunpack.c.l.b16 %v3491
    %v4011 = vunpack.c.l.b16 %v3492
    %v4012 = vunpack.c.l.b16 %v3493
    %v4013 = vunpack.c.l.b16 %v3494
    %v4014 = vunpack.c.l.b16 %v3495
    %v4015 = vunpack.c.l.b16 %v3496
    %v4016 = vunpack.c.l.b16 %v3497
    %v4017 = vunpack.c.l.b16 %v3498
    %v4018 = vunpack.c.l.b16 %v3499
    %v4019 = vunpack.c.l.b16 %v3500
    %v4020 = vunpack.c.l.b16 %v3501
    %v4021 = vunpack.c.l.b16 %v3502
    %v4022 = vunpack.c.l.b16 %v3503
    %v4023 = vunpack.c.l.b16 %v3504
    %v4024 = vunpack.c.l.b16 %v3505
    %v4025 = vunpack.c.l.b16 %v3506
    %v4026 = vunpack.c.l.b16 %v3507
    %v4027 = vunpack.c.l.b16 %v3508
    %v4028 = vunpack.c.l.b16 %v3509
    %v4029 = vunpack.c.l.b16 %v3510
    %v4030 = vunpack.c.l.b16 %v3511
    %v4031 = vunpack.c.l.b16 %v3512
    %v4032 = vunpack.c.l.b16 %v3513
    %v4033 = vunpack.c.l.b16 %v3514
    %v4034 = vunpack.c.l.b16 %v3515
    %v4035 = vunpack.c.l.b16 %v3516
    %v4036 = vunpack.c.l.b16 %v3517
    %v4037 = vunpack.c.l.b16 %v3518
    %v4038 = vunpack.c.l.b16 %v3519
    %v4039 = vpack.c.b16 %v3784, %v3783
    %v4040 = vpack.c.b16 %v3786, %v3785
    %v4041 = vpack.c.b16 %v3788, %v3787
    %v4042 = vpack.c.b16 %v3790, %v3789
    %v4043 = vpack.c.b16 %v3792, %v3791
    %v4044 = vpack.c.b16 %v3794, %v3793
    %v4045 = vpack.c.b16 %v3796, %v3795
    %v4046 = vpack.c.b16 %v3798, %v3797
    %v4047 = vpack.c.b16 %v3800, %v3799
    %v4048 = vpack.c.b16 %v3802, %v3801
    %v4049 = vpack.c.b16 %v3804, %v3803
    %v4050 = vpack.c.b16 %v3806, %v3805
    %v4051 = vpack.c.b16 %v3808, %v3807
    %v4052 = vpack.c.b16 %v3810, %v3809
    %v4053 = vpack.c.b16 %v3812, %v3811
    %v4054 = vpack.c.b16 %v3814, %v3813
    %v4055 = vpack.c.b16 %v3816, %v3815
    %v4056 = vpack.c.b16 %v3818, %v3817
    %v4057 = vpack.c.b16 %v3820, %v3819
    %v4058 = vpack.c.b16 %v3822, %v3821
    %v4059 = vpack.c.b16 %v3824, %v3823
    %v4060 = vpack.c.b16 %v3826, %v3825
    %v4061 = vpack.c.b16 %v3828, %v3827
    %v4062 = vpack.c.b16 %v3830, %v3829
    %v4063 = vpack.c.b16 %v3832, %v3831
    %v4064 = vpack.c.b16 %v3834, %v3833
    %v4065 = vpack.c.b16 %v3836, %v3835
    %v4066 = vpack.c.b16 %v3838, %v3837
    %v4067 = vpack.c.b16 %v3840, %v3839
    %v4068 = vpack.c.b16 %v3842, %v3841
    %v4069 = vpack.c.b16 %v3844, %v3843
    %v4070 = vpack.c.b16 %v3846, %v3845
    %v4071 = vpack.c.b16 %v3848, %v3847
    %v4072 = vpack.c.b16 %v3850, %v3849
    %v4073 = vpack.c.b16 %v3852, %v3851
    %v4074 = vpack.c.b16 %v3854, %v3853
    %v4075 = vpack.c.b16 %v3856, %v3855
    %v4076 = vpack.c.b16 %v3858, %v3857
    %v4077 = vpack.c.b16 %v3860, %v3859
    %v4078 = vpack.c.b16 %v3862, %v3861
    %v4079 = vpack.c.b16 %v3864, %v3863
    %v4080 = vpack.c.b16 %v3866, %v3865
    %v4081 = vpack.c.b16 %v3868, %v3867
    %v4082 = vpack.c.b16 %v3870, %v3869
    %v4083 = vpack.c.b16 %v3872, %v3871
    %v4084 = vpack.c.b16 %v3874, %v3873
    %v4085 = vpack.c.b16 %v3876, %v3875
    %v4086 = vpack.c.b16 %v3878, %v3877
    %v4087 = vpack.c.b16 %v3880, %v3879
    %v4088 = vpack.c.b16 %v3882, %v3881
    %v4089 = vpack.c.b16 %v3884, %v3883
    %v4090 = vpack.c.b16 %v3886, %v3885
    %v4091 = vpack.c.b16 %v3888, %v3887
    %v4092 = vpack.c.b16 %v3890, %v3889
    %v4093 = vpack.c.b16 %v3892, %v3891
    %v4094 = vpack.c.b16 %v3894, %v3893
    %v4095 = vpack.c.b16 %v3896, %v3895
    %v4096 = vpack.c.b16 %v3898, %v3897
    %v4097 = vpack.c.b16 %v3900, %v3899
    %v4098 = vpack.c.b16 %v3902, %v3901
    %v4099 = vpack.c.b16 %v3904, %v3903
    %v4100 = vpack.c.b16 %v3906, %v3905
    %v4101 = vpack.c.b16 %v3908, %v3907
    %v4102 = vpack.c.b16 %v3910, %v3909
    %v4103 = vpack.c.b16 %v3912, %v3911
    %v4104 = vpack.c.b16 %v3914, %v3913
    %v4105 = vpack.c.b16 %v3916, %v3915
    %v4106 = vpack.c.b16 %v3918, %v3917
    %v4107 = vpack.c.b16 %v3920, %v3919
    %v4108 = vpack.c.b16 %v3922, %v3921
    %v4109 = vpack.c.b16 %v3924, %v3923
    %v4110 = vpack.c.b16 %v3926, %v3925
    %v4111 = vpack.c.b16 %v3928, %v3927
    %v4112 = vpack.c.b16 %v3930, %v3929
    %v4113 = vpack.c.b16 %v3932, %v3931
    %v4114 = vpack.c.b16 %v3934, %v3933
    %v4115 = vpack.c.b16 %v3936, %v3935
    %v4116 = vpack.c.b16 %v3938, %v3937
    %v4117 = vpack.c.b16 %v3940, %v3939
    %v4118 = vpack.c.b16 %v3942, %v3941
    %v4119 = vpack.c.b16 %v3944, %v3943
    %v4120 = vpack.c.b16 %v3946, %v3945
    %v4121 = vpack.c.b16 %v3948, %v3947
    %v4122 = vpack.c.b16 %v3950, %v3949
    %v4123 = vpack.c.b16 %v3952, %v3951
    %v4124 = vpack.c.b16 %v3954, %v3953
    %v4125 = vpack.c.b16 %v3956, %v3955
    %v4126 = vpack.c.b16 %v3958, %v3957
    %v4127 = vpack.c.b16 %v3960, %v3959
    %v4128 = vpack.c.b16 %v3962, %v3961
    %v4129 = vpack.c.b16 %v3964, %v3963
    %v4130 = vpack.c.b16 %v3966, %v3965
    %v4131 = vpack.c.b16 %v3968, %v3967
    %v4132 = vpack.c.b16 %v3970, %v3969
    %v4133 = vpack.c.b16 %v3972, %v3971
    %v4134 = vpack.c.b16 %v3974, %v3973
    %v4135 = vpack.c.b16 %v3976, %v3975
    %v4136 = vpack.c.b16 %v3978, %v3977
    %v4137 = vpack.c.b16 %v3980, %v3979
    %v4138 = vpack.c.b16 %v3982, %v3981
    %v4139 = vpack.c.b16 %v3984, %v3983
    %v4140 = vpack.c.b16 %v3986, %v3985
    %v4141 = vpack.c.b16 %v3988, %v3987
    %v4142 = vpack.c.b16 %v3990, %v3989
    %v4143 = vpack.c.b16 %v3992, %v3991
    %v4144 = vpack.c.b16 %v3994, %v3993
    %v4145 = vpack.c.b16 %v3996, %v3995
    %v4146 = vpack.c.b16 %v3998, %v3997
    %v4147 = vpack.c.b16 %v4000, %v3999
    %v4148 = vpack.c.b16 %v4002, %v4001
    %v4149 = vpack.c.b16 %v4004, %v4003
    %v4150 = vpack.c.b16 %v4006, %v4005
    %v4151 = vpack.c.b16 %v4008, %v4007
    %v4152 = vpack.c.b16 %v4010, %v4009
    %v4153 = vpack.c.b16 %v4012, %v4011
    %v4154 = vpack.c.b16 %v4014, %v4013
    %v4155 = vpack.c.b16 %v4016, %v4015
    %v4156 = vpack.c.b16 %v4018, %v4017
    %v4157 = vpack.c.b16 %v4020, %v4019
    %v4158 = vpack.c.b16 %v4022, %v4021
    %v4159 = vpack.c.b16 %v4024, %v4023
    %v4160 = vpack.c.b16 %v4026, %v4025
    %v4161 = vpack.c.b16 %v4028, %v4027
    %v4162 = vpack.c.b16 %v4030, %v4029
    %v4163 = vpack.c.b16 %v4032, %v4031
    %v4164 = vpack.c.b16 %v4034, %v4033
    %v4165 = vpack.c.b16 %v4036, %v4035
    %v4166 = vpack.c.b16 %v4038, %v4037
    %4295 = vmatprep.subr.bf16.mxu0 0
    %4296 = vmatpush1.bf16.msra.mxu0 %v4039
    %4297 = vmatprep.subr.bf16.mxu0 0
    %4298 = vmatpush1.bf16.msra.mxu0 %v4040
    %4299 = vmatprep.subr.bf16.mxu0 0
    %4300 = vmatpush1.bf16.msra.mxu0 %v4041
    %4301 = vmatprep.subr.bf16.mxu0 0
    %4302 = vmatpush1.bf16.msra.mxu0 %v4042
    %4303 = vmatprep.subr.bf16.mxu0 0
    %4304 = vmatpush1.bf16.msra.mxu0 %v4043
    %4305 = vmatprep.subr.bf16.mxu0 0
    %4306 = vmatpush1.bf16.msra.mxu0 %v4044
    %4307 = vmatprep.subr.bf16.mxu0 0
    %4308 = vmatpush1.bf16.msra.mxu0 %v4045
    %4309 = vmatprep.subr.bf16.mxu0 0
    %4310 = vmatpush1.bf16.msra.mxu0 %v4046
    %4311 = vmatprep.subr.bf16.mxu0 0
    %4312 = vmatpush1.bf16.msra.mxu0 %v4047
    %4313 = vmatprep.subr.bf16.mxu0 0
    %4314 = vmatpush1.bf16.msra.mxu0 %v4048
    %4315 = vmatprep.subr.bf16.mxu0 0
    %4316 = vmatpush1.bf16.msra.mxu0 %v4049
    %4317 = vmatprep.subr.bf16.mxu0 0
    %4318 = vmatpush1.bf16.msra.mxu0 %v4050
    %4319 = vmatprep.subr.bf16.mxu0 0
    %4320 = vmatpush1.bf16.msra.mxu0 %v4051
    %4321 = vmatprep.subr.bf16.mxu0 0
    %4322 = vmatpush1.bf16.msra.mxu0 %v4052
    %4323 = vmatprep.subr.bf16.mxu0 0
    %4324 = vmatpush1.bf16.msra.mxu0 %v4053
    %4325 = vmatprep.subr.bf16.mxu0 0
    %4326 = vmatpush1.bf16.msra.mxu0 %v4054
    %4327 = vmatprep.mubr.bf16.mxu0 %v3249
    %4328 = vmatmul.mubr.bf16.gmra.mrb[0].mxu0 %v3248
    %v4329 = vpop.f32.mrb[0].mxu0
    %v4330 = vadd.f32 %v3525, %v4329
    %v4331 = vpop.f32.mrb[0].mxu0
    %v4332 = vpop.f32.mrb[0].mxu0
    %v4333 = vadd.f32 %v3525, %v4332
    %v4334 = vpop.f32.mrb[0].mxu0
    %4335 = vdwg.mxu0
    %4336 = vmatprep.subr.bf16.mxu0 0
    %4337 = vmatpush1.bf16.msra.mxu0 %v4055
    %4338 = vmatprep.subr.bf16.mxu0 0
    %4339 = vmatpush1.bf16.msra.mxu0 %v4056
    %4340 = vmatprep.subr.bf16.mxu0 0
    %4341 = vmatpush1.bf16.msra.mxu0 %v4057
    %4342 = vmatprep.subr.bf16.mxu0 0
    %4343 = vmatpush1.bf16.msra.mxu0 %v4058
    %4344 = vmatprep.subr.bf16.mxu0 0
    %4345 = vmatpush1.bf16.msra.mxu0 %v4059
    %4346 = vmatprep.subr.bf16.mxu0 0
    %4347 = vmatpush1.bf16.msra.mxu0 %v4060
    %4348 = vmatprep.subr.bf16.mxu0 0
    %4349 = vmatpush1.bf16.msra.mxu0 %v4061
    %4350 = vmatprep.subr.bf16.mxu0 0
    %4351 = vmatpush1.bf16.msra.mxu0 %v4062
    %4352 = vmatprep.subr.bf16.mxu0 0
    %4353 = vmatpush1.bf16.msra.mxu0 %v4063
    %4354 = vmatprep.subr.bf16.mxu0 0
    %4355 = vmatpush1.bf16.msra.mxu0 %v4064
    %4356 = vmatprep.subr.bf16.mxu0 0
    %4357 = vmatpush1.bf16.msra.mxu0 %v4065
    %4358 = vmatprep.subr.bf16.mxu0 0
    %4359 = vmatpush1.bf16.msra.mxu0 %v4066
    %4360 = vmatprep.subr.bf16.mxu0 0
    %4361 = vmatpush1.bf16.msra.mxu0 %v4067
    %4362 = vmatprep.subr.bf16.mxu0 0
    %4363 = vmatpush1.bf16.msra.mxu0 %v4068
    %4364 = vmatprep.subr.bf16.mxu0 0
    %4365 = vmatpush1.bf16.msra.mxu0 %v4069
    %4366 = vmatprep.subr.bf16.mxu0 0
    %4367 = vmatpush1.bf16.msra.mxu0 %v4070
    %4368 = vmatprep.mubr.bf16.mxu0 %v3251
    %4369 = vmatmul.mubr.bf16.gmra.mrb[0].mxu0 %v3250
    %v4370 = vpop.f32.mrb[0].mxu0
    %v4371 = vadd.f32 %v4330, %v4370
    %v4372 = vpop.f32.mrb[0].mxu0
    %v4373 = vpop.f32.mrb[0].mxu0
    %v4374 = vadd.f32 %v4333, %v4373
    %v4375 = vpop.f32.mrb[0].mxu0
    %4376 = vdwg.mxu0
    %4377 = vmatprep.subr.bf16.mxu0 0
    %4378 = vmatpush1.bf16.msra.mxu0 %v4071
    %4379 = vmatprep.subr.bf16.mxu0 0
    %4380 = vmatpush1.bf16.msra.mxu0 %v4072
    %4381 = vmatprep.subr.bf16.mxu0 0
    %4382 = vmatpush1.bf16.msra.mxu0 %v4073
    %4383 = vmatprep.subr.bf16.mxu0 0
    %4384 = vmatpush1.bf16.msra.mxu0 %v4074
    %4385 = vmatprep.subr.bf16.mxu0 0
    %4386 = vmatpush1.bf16.msra.mxu0 %v4075
    %4387 = vmatprep.subr.bf16.mxu0 0
    %4388 = vmatpush1.bf16.msra.mxu0 %v4076
    %4389 = vmatprep.subr.bf16.mxu0 0
    %4390 = vmatpush1.bf16.msra.mxu0 %v4077
    %4391 = vmatprep.subr.bf16.mxu0 0
    %4392 = vmatpush1.bf16.msra.mxu0 %v4078
    %4393 = vmatprep.subr.bf16.mxu0 0
    %4394 = vmatpush1.bf16.msra.mxu0 %v4079
    %4395 = vmatprep.subr.bf16.mxu0 0
    %4396 = vmatpush1.bf16.msra.mxu0 %v4080
    %4397 = vmatprep.subr.bf16.mxu0 0
    %4398 = vmatpush1.bf16.msra.mxu0 %v4081
    %4399 = vmatprep.subr.bf16.mxu0 0
    %4400 = vmatpush1.bf16.msra.mxu0 %v4082
    %4401 = vmatprep.subr.bf16.mxu0 0
    %4402 = vmatpush1.bf16.msra.mxu0 %v4083
    %4403 = vmatprep.subr.bf16.mxu0 0
    %4404 = vmatpush1.bf16.msra.mxu0 %v4084
    %4405 = vmatprep.subr.bf16.mxu0 0
    %4406 = vmatpush1.bf16.msra.mxu0 %v4085
    %4407 = vmatprep.subr.bf16.mxu0 0
    %4408 = vmatpush1.bf16.msra.mxu0 %v4086
    %4409 = vmatprep.mubr.bf16.mxu0 %v3253
    %4410 = vmatmul.mubr.bf16.gmra.mrb[0].mxu0 %v3252
    %v4411 = vpop.f32.mrb[0].mxu0
    %v4412 = vadd.f32 %v4371, %v4411
    %v4413 = vpop.f32.mrb[0].mxu0
    %v4414 = vpop.f32.mrb[0].mxu0
    %v4415 = vadd.f32 %v4374, %v4414
    %v4416 = vpop.f32.mrb[0].mxu0
    %4417 = vdwg.mxu0
    %4418 = vmatprep.subr.bf16.mxu0 0
    %4419 = vmatpush1.bf16.msra.mxu0 %v4087
    %4420 = vmatprep.subr.bf16.mxu0 0
    %4421 = vmatpush1.bf16.msra.mxu0 %v4088
    %4422 = vmatprep.subr.bf16.mxu0 0
    %4423 = vmatpush1.bf16.msra.mxu0 %v4089
    %4424 = vmatprep.subr.bf16.mxu0 0
    %4425 = vmatpush1.bf16.msra.mxu0 %v4090
    %4426 = vmatprep.subr.bf16.mxu0 0
    %4427 = vmatpush1.bf16.msra.mxu0 %v4091
    %4428 = vmatprep.subr.bf16.mxu0 0
    %4429 = vmatpush1.bf16.msra.mxu0 %v4092
    %4430 = vmatprep.subr.bf16.mxu0 0
    %4431 = vmatpush1.bf16.msra.mxu0 %v4093
    %4432 = vmatprep.subr.bf16.mxu0 0
    %4433 = vmatpush1.bf16.msra.mxu0 %v4094
    %4434 = vmatprep.subr.bf16.mxu0 0
    %4435 = vmatpush1.bf16.msra.mxu0 %v4095
    %4436 = vmatprep.subr.bf16.mxu0 0
    %4437 = vmatpush1.bf16.msra.mxu0 %v4096
    %4438 = vmatprep.subr.bf16.mxu0 0
    %4439 = vmatpush1.bf16.msra.mxu0 %v4097
    %4440 = vmatprep.subr.bf16.mxu0 0
    %4441 = vmatpush1.bf16.msra.mxu0 %v4098
    %4442 = vmatprep.subr.bf16.mxu0 0
    %4443 = vmatpush1.bf16.msra.mxu0 %v4099
    %4444 = vmatprep.subr.bf16.mxu0 0
    %4445 = vmatpush1.bf16.msra.mxu0 %v4100
    %4446 = vmatprep.subr.bf16.mxu0 0
    %4447 = vmatpush1.bf16.msra.mxu0 %v4101
    %4448 = vmatprep.subr.bf16.mxu0 0
    %4449 = vmatpush1.bf16.msra.mxu0 %v4102
    %4450 = vmatprep.mubr.bf16.mxu0 %v3255
    %4451 = vmatmul.mubr.bf16.gmra.mrb[0].mxu0 %v3254
    %v4452 = vpop.f32.mrb[0].mxu0
    %v4453 = vadd.f32 %v4412, %v4452
    %v4454 = vpop.f32.mrb[0].mxu0
    %v4455 = vpop.f32.mrb[0].mxu0
    %v4456 = vadd.f32 %v4415, %v4455
    %v4457 = vpop.f32.mrb[0].mxu0
    %4458 = vdwg.mxu0
    %4459 = vmatprep.subr.bf16.mxu0 0
    %4460 = vmatpush1.bf16.msra.mxu0 %v4103
    %4461 = vmatprep.subr.bf16.mxu0 0
    %4462 = vmatpush1.bf16.msra.mxu0 %v4104
    %4463 = vmatprep.subr.bf16.mxu0 0
    %4464 = vmatpush1.bf16.msra.mxu0 %v4105
    %4465 = vmatprep.subr.bf16.mxu0 0
    %4466 = vmatpush1.bf16.msra.mxu0 %v4106
    %4467 = vmatprep.subr.bf16.mxu0 0
    %4468 = vmatpush1.bf16.msra.mxu0 %v4107
    %4469 = vmatprep.subr.bf16.mxu0 0
    %4470 = vmatpush1.bf16.msra.mxu0 %v4108
    %4471 = vmatprep.subr.bf16.mxu0 0
    %4472 = vmatpush1.bf16.msra.mxu0 %v4109
    %4473 = vmatprep.subr.bf16.mxu0 0
    %4474 = vmatpush1.bf16.msra.mxu0 %v4110
    %4475 = vmatprep.subr.bf16.mxu0 0
    %4476 = vmatpush1.bf16.msra.mxu0 %v4111
    %4477 = vmatprep.subr.bf16.mxu0 0
    %4478 = vmatpush1.bf16.msra.mxu0 %v4112
    %4479 = vmatprep.subr.bf16.mxu0 0
    %4480 = vmatpush1.bf16.msra.mxu0 %v4113
    %4481 = vmatprep.subr.bf16.mxu0 0
    %4482 = vmatpush1.bf16.msra.mxu0 %v4114
    %4483 = vmatprep.subr.bf16.mxu0 0
    %4484 = vmatpush1.bf16.msra.mxu0 %v4115
    %4485 = vmatprep.subr.bf16.mxu0 0
    %4486 = vmatpush1.bf16.msra.mxu0 %v4116
    %4487 = vmatprep.subr.bf16.mxu0 0
    %4488 = vmatpush1.bf16.msra.mxu0 %v4117
    %4489 = vmatprep.subr.bf16.mxu0 0
    %4490 = vmatpush1.bf16.msra.mxu0 %v4118
    %4491 = vmatprep.mubr.bf16.mxu0 %v3257
    %4492 = vmatmul.mubr.bf16.gmra.mrb[0].mxu0 %v3256
    %v4493 = vpop.f32.mrb[0].mxu0
    %v4494 = vadd.f32 %v4453, %v4493
    %v4495 = vpop.f32.mrb[0].mxu0
    %v4496 = vpop.f32.mrb[0].mxu0
    %v4497 = vadd.f32 %v4456, %v4496
    %v4498 = vpop.f32.mrb[0].mxu0
    %4499 = vdwg.mxu0
    %4500 = vmatprep.subr.bf16.mxu0 0
    %4501 = vmatpush1.bf16.msra.mxu0 %v4119
    %4502 = vmatprep.subr.bf16.mxu0 0
    %4503 = vmatpush1.bf16.msra.mxu0 %v4120
    %4504 = vmatprep.subr.bf16.mxu0 0
    %4505 = vmatpush1.bf16.msra.mxu0 %v4121
    %4506 = vmatprep.subr.bf16.mxu0 0
    %4507 = vmatpush1.bf16.msra.mxu0 %v4122
    %4508 = vmatprep.subr.bf16.mxu0 0
    %4509 = vmatpush1.bf16.msra.mxu0 %v4123
    %4510 = vmatprep.subr.bf16.mxu0 0
    %4511 = vmatpush1.bf16.msra.mxu0 %v4124
    %4512 = vmatprep.subr.bf16.mxu0 0
    %4513 = vmatpush1.bf16.msra.mxu0 %v4125
    %4514 = vmatprep.subr.bf16.mxu0 0
    %4515 = vmatpush1.bf16.msra.mxu0 %v4126
    %4516 = vmatprep.subr.bf16.mxu0 0
    %4517 = vmatpush1.bf16.msra.mxu0 %v4127
    %4518 = vmatprep.subr.bf16.mxu0 0
    %4519 = vmatpush1.bf16.msra.mxu0 %v4128
    %4520 = vmatprep.subr.bf16.mxu0 0
    %4521 = vmatpush1.bf16.msra.mxu0 %v4129
    %4522 = vmatprep.subr.bf16.mxu0 0
    %4523 = vmatpush1.bf16.msra.mxu0 %v4130
    %4524 = vmatprep.subr.bf16.mxu0 0
    %4525 = vmatpush1.bf16.msra.mxu0 %v4131
    %4526 = vmatprep.subr.bf16.mxu0 0
    %4527 = vmatpush1.bf16.msra.mxu0 %v4132
    %4528 = vmatprep.subr.bf16.mxu0 0
    %4529 = vmatpush1.bf16.msra.mxu0 %v4133
    %4530 = vmatprep.subr.bf16.mxu0 0
    %4531 = vmatpush1.bf16.msra.mxu0 %v4134
    %4532 = vmatprep.mubr.bf16.mxu0 %v3259
    %4533 = vmatmul.mubr.bf16.gmra.mrb[0].mxu0 %v3258
    %v4534 = vpop.f32.mrb[0].mxu0
    %v4535 = vadd.f32 %v4494, %v4534
    %v4536 = vpop.f32.mrb[0].mxu0
    %v4537 = vpop.f32.mrb[0].mxu0
    %v4538 = vadd.f32 %v4497, %v4537
    %v4539 = vpop.f32.mrb[0].mxu0
    %4540 = vdwg.mxu0
    %4541 = vmatprep.subr.bf16.mxu0 0
    %4542 = vmatpush1.bf16.msra.mxu0 %v4135
    %4543 = vmatprep.subr.bf16.mxu0 0
    %4544 = vmatpush1.bf16.msra.mxu0 %v4136
    %4545 = vmatprep.subr.bf16.mxu0 0
    %4546 = vmatpush1.bf16.msra.mxu0 %v4137
    %4547 = vmatprep.subr.bf16.mxu0 0
    %4548 = vmatpush1.bf16.msra.mxu0 %v4138
    %4549 = vmatprep.subr.bf16.mxu0 0
    %4550 = vmatpush1.bf16.msra.mxu0 %v4139
    %4551 = vmatprep.subr.bf16.mxu0 0
    %4552 = vmatpush1.bf16.msra.mxu0 %v4140
    %4553 = vmatprep.subr.bf16.mxu0 0
    %4554 = vmatpush1.bf16.msra.mxu0 %v4141
    %4555 = vmatprep.subr.bf16.mxu0 0
    %4556 = vmatpush1.bf16.msra.mxu0 %v4142
    %4557 = vmatprep.subr.bf16.mxu0 0
    %4558 = vmatpush1.bf16.msra.mxu0 %v4143
    %4559 = vmatprep.subr.bf16.mxu0 0
    %4560 = vmatpush1.bf16.msra.mxu0 %v4144
    %4561 = vmatprep.subr.bf16.mxu0 0
    %4562 = vmatpush1.bf16.msra.mxu0 %v4145
    %4563 = vmatprep.subr.bf16.mxu0 0
    %4564 = vmatpush1.bf16.msra.mxu0 %v4146
    %4565 = vmatprep.subr.bf16.mxu0 0
    %4566 = vmatpush1.bf16.msra.mxu0 %v4147
    %4567 = vmatprep.subr.bf16.mxu0 0
    %4568 = vmatpush1.bf16.msra.mxu0 %v4148
    %4569 = vmatprep.subr.bf16.mxu0 0
    %4570 = vmatpush1.bf16.msra.mxu0 %v4149
    %4571 = vmatprep.subr.bf16.mxu0 0
    %4572 = vmatpush1.bf16.msra.mxu0 %v4150
    %4573 = vmatprep.mubr.bf16.mxu0 %v3261
    %4574 = vmatmul.mubr.bf16.gmra.mrb[0].mxu0 %v3260
    %v4575 = vpop.f32.mrb[0].mxu0
    %v4576 = vadd.f32 %v4535, %v4575
    %v4577 = vpop.f32.mrb[0].mxu0
    %v4578 = vpop.f32.mrb[0].mxu0
    %v4579 = vadd.f32 %v4538, %v4578
    %v4580 = vpop.f32.mrb[0].mxu0
    %4581 = vdwg.mxu0
    %4582 = vmatprep.subr.bf16.mxu0 0
    %4583 = vmatpush1.bf16.msra.mxu0 %v4151
    %4584 = vmatprep.subr.bf16.mxu0 0
    %4585 = vmatpush1.bf16.msra.mxu0 %v4152
    %4586 = vmatprep.subr.bf16.mxu0 0
    %4587 = vmatpush1.bf16.msra.mxu0 %v4153
    %4588 = vmatprep.subr.bf16.mxu0 0
    %4589 = vmatpush1.bf16.msra.mxu0 %v4154
    %4590 = vmatprep.subr.bf16.mxu0 0
    %4591 = vmatpush1.bf16.msra.mxu0 %v4155
    %4592 = vmatprep.subr.bf16.mxu0 0
    %4593 = vmatpush1.bf16.msra.mxu0 %v4156
    %4594 = vmatprep.subr.bf16.mxu0 0
    %4595 = vmatpush1.bf16.msra.mxu0 %v4157
    %4596 = vmatprep.subr.bf16.mxu0 0
    %4597 = vmatpush1.bf16.msra.mxu0 %v4158
    %4598 = vmatprep.subr.bf16.mxu0 0
    %4599 = vmatpush1.bf16.msra.mxu0 %v4159
    %4600 = vmatprep.subr.bf16.mxu0 0
    %4601 = vmatpush1.bf16.msra.mxu0 %v4160
    %4602 = vmatprep.subr.bf16.mxu0 0
    %4603 = vmatpush1.bf16.msra.mxu0 %v4161
    %4604 = vmatprep.subr.bf16.mxu0 0
    %4605 = vmatpush1.bf16.msra.mxu0 %v4162
    %4606 = vmatprep.subr.bf16.mxu0 0
    %4607 = vmatpush1.bf16.msra.mxu0 %v4163
    %4608 = vmatprep.subr.bf16.mxu0 0
    %4609 = vmatpush1.bf16.msra.mxu0 %v4164
    %4610 = vmatprep.subr.bf16.mxu0 0
    %4611 = vmatpush1.bf16.msra.mxu0 %v4165
    %4612 = vmatprep.subr.bf16.mxu0 0
    %4613 = vmatpush1.bf16.msra.mxu0 %v4166
    %4614 = vmatprep.mubr.bf16.mxu0 %v3263
    %4615 = vmatmul.mubr.bf16.gmra.mrb[0].mxu0 %v3262
    %v4616 = vpop.f32.mrb[0].mxu0
    %v4617 = vadd.f32 %v4576, %v4616
    %v4618 = vpop.f32.mrb[0].mxu0
    %v4619 = vpop.f32.mrb[0].mxu0
    %v4620 = vadd.f32 %v4579, %v4619
    %v4621 = vpop.f32.mrb[0].mxu0
    %4622 = vdwg.mxu0
    %v4623 = vadd.f32 %v2017, %v4617
    %v4624 = vadd.f32 %v2018, %v4620
    %4625 = vadd.xlane.f32.xlu0 %v4623
    %v4626 = vpop.xlane.xlu0 %4625
    %4627 = vadd.xlane.f32.xlu0 %v4624
    %v4628 = vpop.xlane.xlu0 %4627
    %v4629 = vmul.f32 %v4626, %v1104
    %v4630 = vmul.f32 %v4628, %v1104
    %v4631 = vsub.f32 %v4623, %v4629
    %v4632 = vsub.f32 %v4624, %v4630
    %v4633 = vmul.f32 %v4631, %v4631
    %v4634 = vmul.f32 %v4632, %v4632
    %4635 = vadd.xlane.f32.xlu0 %v4633
    %v4636 = vpop.xlane.xlu0 %4635
    %4637 = vadd.xlane.f32.xlu0 %v4634
    %v4638 = vpop.xlane.xlu0 %4637
    %v4639 = vmul.f32 %v4636, %v1104
    %v4640 = vmul.f32 %v4638, %v1104
    %v4641 = vadd.f32 %v4639, 1e-05
    %v4642 = vadd.f32 %v4640, 1e-05
    %v4643 = vrsqrt.pop %v4641
    %v4644 = vrsqrt.pop %v4642
    %v4645 = vmul.f32 %v4631, %v4643
    %v4646 = vmul.f32 %v4632, %v4644
    %v4648 = vlaneseq
    %v4649 = vshrl.u32 %v4648, 7
    %v4650 = vsub.s32 0, %v4649
    %v4651 = vrot.slane %v232, %v4650
    %v4653 = vmul.f32 %v4645, %v4651
    %v4654 = vmul.f32 %v4646, %v4651
    %v4656 = vlaneseq
    %v4657 = vshrl.u32 %v4656, 7
    %v4658 = vsub.s32 0, %v4657
    %v4659 = vrot.slane %v235, %v4658
    %v4661 = vadd.f32 %v4653, %v4659
    %v4662 = vadd.f32 %v4654, %v4659
    %s4663 = scalar_lea.vmem [#allocation15], 3
    %v4664 = vld [vmem:[%s4663] sm:$0x1]
    %v4665 = vld [vmem:[%s4663 + $0x1] sm:$0x1]
    %v4666 = vld [vmem:[%s4663 + $0x2] sm:$0x1]
    %s4667 = scalar_lea.vmem [#allocation16], 3
    %v4668 = vld [vmem:[%s4667] sm:$0x1]
    %v4669 = vld [vmem:[%s4667 + $0x1] sm:$0x1]
    %v4670 = vld [vmem:[%s4667 + $0x2] sm:$0x1]
    %v4671 = vpack.c.bf16 %v4662, %v4661
    %s4672 = scalar_lea.vmem %s4, 192
    %v4673 = vld [vmem:[%s4672] sm:$0xff]
    %v4674 = vld [vmem:[%s4672 + $0x8] sm:$0xf]
    %v4675 = vld [vmem:[%s4672 + $0xc] sm:$0xff]
    %v4676 = vld [vmem:[%s4672 + $0x14] sm:$0xf]
    %v4677 = vld [vmem:[%s4672 + $0x18] sm:$0xff]
    %v4678 = vld [vmem:[%s4672 + $0x20] sm:$0xf]
    %v4679 = vld [vmem:[%s4672 + $0x24] sm:$0xff]
    %v4680 = vld [vmem:[%s4672 + $0x2c] sm:$0xf]
    %v4681 = vld [vmem:[%s4672 + $0x30] sm:$0xff]
    %v4682 = vld [vmem:[%s4672 + $0x38] sm:$0xf]
    %v4683 = vld [vmem:[%s4672 + $0x3c] sm:$0xff]
    %v4684 = vld [vmem:[%s4672 + $0x44] sm:$0xf]
    %v4685 = vld [vmem:[%s4672 + $0x48] sm:$0xff]
    %v4686 = vld [vmem:[%s4672 + $0x50] sm:$0xf]
    %v4687 = vld [vmem:[%s4672 + $0x54] sm:$0xff]
    %v4688 = vld [vmem:[%s4672 + $0x5c] sm:$0xf]
    %v4689 = vld [vmem:[%s4672 + $0x60] sm:$0xff]
    %v4690 = vld [vmem:[%s4672 + $0x68] sm:$0xf]
    %v4691 = vld [vmem:[%s4672 + $0x6c] sm:$0xff]
    %v4692 = vld [vmem:[%s4672 + $0x74] sm:$0xf]
    %v4693 = vld [vmem:[%s4672 + $0x78] sm:$0xff]
    %v4694 = vld [vmem:[%s4672 + $0x80] sm:$0xf]
    %v4695 = vld [vmem:[%s4672 + $0x84] sm:$0xff]
    %v4696 = vld [vmem:[%s4672 + $0x8c] sm:$0xf]
    %v4697 = vld [vmem:[%s4672 + $0x90] sm:$0xff]
    %v4698 = vld [vmem:[%s4672 + $0x98] sm:$0xf]
    %v4699 = vld [vmem:[%s4672 + $0x9c] sm:$0xff]
    %v4700 = vld [vmem:[%s4672 + $0xa4] sm:$0xf]
    %v4701 = vld [vmem:[%s4672 + $0xa8] sm:$0xff]
    %v4702 = vld [vmem:[%s4672 + $0xb0] sm:$0xf]
    %v4703 = vld [vmem:[%s4672 + $0xb4] sm:$0xff]
    %v4704 = vld [vmem:[%s4672 + $0xbc] sm:$0xf]
    %s4705 = scalar_lea.vmem [#allocation2], 3
    %v4706 = vld [vmem:[%s4705] sm:$0x7]
    %v4708 = vlaneseq
    %v4709 = vshrl.u32 %v4708, 7
    %v4710 = vsub.s32 0, %v4709
    %v4711 = vrot.slane %v4706, %v4710
    %v4712 = vlaneseq
    %v4713 = vshrl.u32 %v4712, 7
    %v4714 = vsub.s32 1, %v4713
    %v4715 = vrot.slane %v4706, %v4714
    %v4716 = vlaneseq
    %v4717 = vshrl.u32 %v4716, 7
    %v4718 = vsub.s32 2, %v4717
    %v4719 = vrot.slane %v4706, %v4718
    %v4755 = vunpack.c.l.b16 %v4673
    %v4756 = vunpack.c.h.b16 %v4673
    %v4757 = vunpack.c.l.b16 %v4674
    %v4758 = vunpack.c.l.b16 %v4675
    %v4759 = vunpack.c.h.b16 %v4675
    %v4760 = vunpack.c.l.b16 %v4676
    %v4761 = vunpack.c.l.b16 %v4677
    %v4762 = vunpack.c.h.b16 %v4677
    %v4763 = vunpack.c.l.b16 %v4678
    %v4764 = vunpack.c.l.b16 %v4679
    %v4765 = vunpack.c.h.b16 %v4679
    %v4766 = vunpack.c.l.b16 %v4680
    %v4767 = vunpack.c.l.b16 %v4681
    %v4768 = vunpack.c.h.b16 %v4681
    %v4769 = vunpack.c.l.b16 %v4682
    %v4770 = vunpack.c.l.b16 %v4683
    %v4771 = vunpack.c.h.b16 %v4683
    %v4772 = vunpack.c.l.b16 %v4684
    %v4773 = vunpack.c.l.b16 %v4685
    %v4774 = vunpack.c.h.b16 %v4685
    %v4775 = vunpack.c.l.b16 %v4686
    %v4776 = vunpack.c.l.b16 %v4687
    %v4777 = vunpack.c.h.b16 %v4687
    %v4778 = vunpack.c.l.b16 %v4688
    %v4779 = vunpack.c.l.b16 %v4689
    %v4780 = vunpack.c.h.b16 %v4689
    %v4781 = vunpack.c.l.b16 %v4690
    %v4782 = vunpack.c.l.b16 %v4691
    %v4783 = vunpack.c.h.b16 %v4691
    %v4784 = vunpack.c.l.b16 %v4692
    %v4785 = vunpack.c.l.b16 %v4693
    %v4786 = vunpack.c.h.b16 %v4693
    %v4787 = vunpack.c.l.b16 %v4694
    %v4788 = vunpack.c.l.b16 %v4695
    %v4789 = vunpack.c.h.b16 %v4695
    %v4790 = vunpack.c.l.b16 %v4696
    %v4791 = vunpack.c.l.b16 %v4697
    %v4792 = vunpack.c.h.b16 %v4697
    %v4793 = vunpack.c.l.b16 %v4698
    %v4794 = vunpack.c.l.b16 %v4699
    %v4795 = vunpack.c.h.b16 %v4699
    %v4796 = vunpack.c.l.b16 %v4700
    %v4797 = vunpack.c.l.b16 %v4701
    %v4798 = vunpack.c.h.b16 %v4701
    %v4799 = vunpack.c.l.b16 %v4702
    %v4800 = vunpack.c.l.b16 %v4703
    %v4801 = vunpack.c.h.b16 %v4703
    %v4802 = vunpack.c.l.b16 %v4704
    %v4803 = vpack.c.b16 %v4758, %v4755
    %v4804 = vpack.c.b16 %v4759, %v4756
    %v4805 = vpack.c.b16 %v4760, %v4757
    %v4806 = vpack.c.b16 %v4764, %v4761
    %v4807 = vpack.c.b16 %v4765, %v4762
    %v4808 = vpack.c.b16 %v4766, %v4763
    %v4809 = vpack.c.b16 %v4770, %v4767
    %v4810 = vpack.c.b16 %v4771, %v4768
    %v4811 = vpack.c.b16 %v4772, %v4769
    %v4812 = vpack.c.b16 %v4776, %v4773
    %v4813 = vpack.c.b16 %v4777, %v4774
    %v4814 = vpack.c.b16 %v4778, %v4775
    %v4815 = vpack.c.b16 %v4782, %v4779
    %v4816 = vpack.c.b16 %v4783, %v4780
    %v4817 = vpack.c.b16 %v4784, %v4781
    %v4818 = vpack.c.b16 %v4788, %v4785
    %v4819 = vpack.c.b16 %v4789, %v4786
    %v4820 = vpack.c.b16 %v4790, %v4787
    %v4821 = vpack.c.b16 %v4794, %v4791
    %v4822 = vpack.c.b16 %v4795, %v4792
    %v4823 = vpack.c.b16 %v4796, %v4793
    %v4824 = vpack.c.b16 %v4800, %v4797
    %v4825 = vpack.c.b16 %v4801, %v4798
    %v4826 = vpack.c.b16 %v4802, %v4799
    %4851 = vmatprep.subr.bf16.mxu0 %v4804
    %4852 = vmatpush1.bf16.msra.mxu0 %v4803
    %4853 = vmatprep.subr.bf16.mxu0 %v4807
    %4854 = vmatpush1.bf16.msra.mxu0 %v4806
    %4855 = vmatprep.subr.bf16.mxu0 %v4810
    %4856 = vmatpush1.bf16.msra.mxu0 %v4809
    %4857 = vmatprep.subr.bf16.mxu0 %v4813
    %4858 = vmatpush1.bf16.msra.mxu0 %v4812
    %4859 = vmatprep.subr.bf16.mxu0 %v4816
    %4860 = vmatpush1.bf16.msra.mxu0 %v4815
    %4861 = vmatprep.subr.bf16.mxu0 %v4819
    %4862 = vmatpush1.bf16.msra.mxu0 %v4818
    %4863 = vmatprep.subr.bf16.mxu0 %v4822
    %4864 = vmatpush1.bf16.msra.mxu0 %v4821
    %4865 = vmatprep.subr.bf16.mxu0 %v4825
    %4866 = vmatpush1.bf16.msra.mxu0 %v4824
    %4867 = vmatprep.subr.bf16.mxu0 0
    %4868 = vmatpush1.bf16.msra.mxu0 0
    %4869 = vmatprep.subr.bf16.mxu0 0
    %4870 = vmatpush1.bf16.msra.mxu0 0
    %4871 = vmatprep.subr.bf16.mxu0 0
    %4872 = vmatpush1.bf16.msra.mxu0 0
    %4873 = vmatprep.subr.bf16.mxu0 0
    %4874 = vmatpush1.bf16.msra.mxu0 0
    %4875 = vmatprep.subr.bf16.mxu0 0
    %4876 = vmatpush1.bf16.msra.mxu0 0
    %4877 = vmatprep.subr.bf16.mxu0 0
    %4878 = vmatpush1.bf16.msra.mxu0 0
    %4879 = vmatprep.subr.bf16.mxu0 0
    %4880 = vmatpush1.bf16.msra.mxu0 0
    %4881 = vmatprep.subr.bf16.mxu0 0
    %4882 = vmatpush1.bf16.msra.mxu0 0
    %4883 = vmatprep.mubr.bf16.mxu0 0
    %4884 = vmatmul.mubr.bf16.gmra.mrb[0].mxu0 %v4671
    %v4885 = vpop.f32.mrb[0].mxu0
    %v4886 = vadd.f32 %v4711, %v4885
    %v4887 = vpop.f32.mrb[0].mxu0
    %v4888 = vadd.f32 %v4715, %v4887
    %v4889 = vpop.f32.mrb[0].mxu0
    %v4890 = vadd.f32 %v4711, %v4889
    %v4891 = vpop.f32.mrb[0].mxu0
    %v4892 = vadd.f32 %v4715, %v4891
    %4893 = vdwg.mxu0
    %4894 = vmatprep.subr.bf16.mxu0 0
    %4895 = vmatpush1.bf16.msra.mxu0 %v4805
    %4896 = vmatprep.subr.bf16.mxu0 0
    %4897 = vmatpush1.bf16.msra.mxu0 %v4808
    %4898 = vmatprep.subr.bf16.mxu0 0
    %4899 = vmatpush1.bf16.msra.mxu0 %v4811
    %4900 = vmatprep.subr.bf16.mxu0 0
    %4901 = vmatpush1.bf16.msra.mxu0 %v4814
    %4902 = vmatprep.subr.bf16.mxu0 0
    %4903 = vmatpush1.bf16.msra.mxu0 %v4817
    %4904 = vmatprep.subr.bf16.mxu0 0
    %4905 = vmatpush1.bf16.msra.mxu0 %v4820
    %4906 = vmatprep.subr.bf16.mxu0 0
    %4907 = vmatpush1.bf16.msra.mxu0 %v4823
    %4908 = vmatprep.subr.bf16.mxu0 0
    %4909 = vmatpush1.bf16.msra.mxu0 %v4826
    %4910 = vmatprep.subr.bf16.mxu0 0
    %4911 = vmatpush1.bf16.msra.mxu0 0
    %4912 = vmatprep.subr.bf16.mxu0 0
    %4913 = vmatpush1.bf16.msra.mxu0 0
    %4914 = vmatprep.subr.bf16.mxu0 0
    %4915 = vmatpush1.bf16.msra.mxu0 0
    %4916 = vmatprep.subr.bf16.mxu0 0
    %4917 = vmatpush1.bf16.msra.mxu0 0
    %4918 = vmatprep.subr.bf16.mxu0 0
    %4919 = vmatpush1.bf16.msra.mxu0 0
    %4920 = vmatprep.subr.bf16.mxu0 0
    %4921 = vmatpush1.bf16.msra.mxu0 0
    %4922 = vmatprep.subr.bf16.mxu0 0
    %4923 = vmatpush1.bf16.msra.mxu0 0
    %4924 = vmatprep.subr.bf16.mxu0 0
    %4925 = vmatpush1.bf16.msra.mxu0 0
    %4926 = vmatprep.mubr.bf16.mxu0 0
    %4927 = vmatmul.mubr.bf16.gmra.mrb[0].mxu0 %v4671
    %v4928 = vpop.f32.mrb[0].mxu0
    %v4929 = vadd.f32 %v4719, %v4928
    %v4930 = vpop.f32.mrb[0].mxu0
    %v4931 = vpop.f32.mrb[0].mxu0
    %v4932 = vadd.f32 %v4719, %v4931
    %v4933 = vpop.f32.mrb[0].mxu0
    %4934 = vdwg.mxu0
    %v4935 = vmul.f32 %v4886, 0.17677669
    %v4936 = vmul.f32 %v4890, 0.17677669
    %s4937 = scalar_lea.vmem %s6, 64
    %v4938 = vld [vmem:[%s4937] sm:$0xf]
    %v4939 = vld [vmem:[%s4937 + $0x4] sm:$0xf]
    %v4940 = vld [vmem:[%s4937 + $0x8] sm:$0xf]
    %v4941 = vld [vmem:[%s4937 + $0xc] sm:$0xf]
    %v4942 = vld [vmem:[%s4937 + $0x10] sm:$0xf]
    %v4943 = vld [vmem:[%s4937 + $0x14] sm:$0xf]
    %v4944 = vld [vmem:[%s4937 + $0x18] sm:$0xf]
    %v4945 = vld [vmem:[%s4937 + $0x1c] sm:$0xf]
    %v4946 = vld [vmem:[%s4937 + $0x20] sm:$0xf]
    %v4947 = vld [vmem:[%s4937 + $0x24] sm:$0xf]
    %v4948 = vld [vmem:[%s4937 + $0x28] sm:$0xf]
    %v4949 = vld [vmem:[%s4937 + $0x2c] sm:$0xf]
    %v4950 = vld [vmem:[%s4937 + $0x30] sm:$0xf]
    %v4951 = vld [vmem:[%s4937 + $0x34] sm:$0xf]
    %v4952 = vld [vmem:[%s4937 + $0x38] sm:$0xf]
    %v4953 = vld [vmem:[%s4937 + $0x3c] sm:$0xf]
    %s4954 = scalar_lea.vmem %s7, 1
    %v4955 = vld [vmem:[%s4954] sm:$0x1]
    %v4956 = vpack.c.bf16 %v4892, %v4888
    %v4957 = vmul.f32 %v4935, %v521
    %v4958 = vmul.f32 %v4936, %v521
    %v4959 = vpack.c.bf16 %v4958, %v4957
    %4960 = vmatprep.subr.bf16.mxu0 0
    %4961 = vmatpush1.bf16.xpose.msra.mxu0 %v4956
    %4962 = vmatprep.subr.bf16.mxu0 0
    %4963 = vmatpush1.bf16.xpose.msra.mxu0 0
    %4964 = vmatprep.subr.bf16.mxu0 0
    %4965 = vmatpush1.bf16.xpose.msra.mxu0 0
    %4966 = vmatprep.subr.bf16.mxu0 0
    %4967 = vmatpush1.bf16.xpose.msra.mxu0 0
    %4968 = vmatprep.subr.bf16.mxu0 0
    %4969 = vmatpush1.bf16.xpose.msra.mxu0 0
    %4970 = vmatprep.subr.bf16.mxu0 0
    %4971 = vmatpush1.bf16.xpose.msra.mxu0 0
    %4972 = vmatprep.subr.bf16.mxu0 0
    %4973 = vmatpush1.bf16.xpose.msra.mxu0 0
    %4974 = vmatprep.subr.bf16.mxu0 0
    %4975 = vmatpush1.bf16.xpose.msra.mxu0 0
    %4976 = vmatprep.subr.bf16.mxu0 0
    %4977 = vmatpush1.bf16.xpose.msra.mxu0 0
    %4978 = vmatprep.subr.bf16.mxu0 0
    %4979 = vmatpush1.bf16.xpose.msra.mxu0 0
    %4980 = vmatprep.subr.bf16.mxu0 0
    %4981 = vmatpush1.bf16.xpose.msra.mxu0 0
    %4982 = vmatprep.subr.bf16.mxu0 0
    %4983 = vmatpush1.bf16.xpose.msra.mxu0 0
    %4984 = vmatprep.subr.bf16.mxu0 0
    %4985 = vmatpush1.bf16.xpose.msra.mxu0 0
    %4986 = vmatprep.subr.bf16.mxu0 0
    %4987 = vmatpush1.bf16.xpose.msra.mxu0 0
    %4988 = vmatprep.subr.bf16.mxu0 0
    %4989 = vmatpush1.bf16.xpose.msra.mxu0 0
    %4990 = vmatprep.subr.bf16.mxu0 0
    %4991 = vmatpush1.bf16.xpose.msra.mxu0 0
    %4992 = vmatprep.mubr.bf16.mxu0 0
    %4993 = vmatmul.mubr.bf16.gmra.mrb[0].mxu0 %v4959
    %v4994 = vpop.f32.mrb[0].mxu0
    %v4995 = vadd.f32 %v222, %v4994
    %v4996 = vpop.f32.mrb[0].mxu0
    %v4997 = vpop.f32.mrb[0].mxu0
    %v4998 = vadd.f32 %v223, %v4997
    %v4999 = vpop.f32.mrb[0].mxu0
    %5000 = vdwg.mxu0
    %v5001 = vsel %vm567, %v4995, -inf
    %5002 = vmax.xlane.f32.xlu0 %v5001
    %v5003 = vpop.xlane.xlu0 %5002
    %v5004 = vsel %vm567, %v4998, -inf
    %5005 = vmax.xlane.f32.xlu0 %v5004
    %v5006 = vpop.xlane.xlu0 %5005
    %v5007 = vsub.f32 %v4995, %v5003
    %v5008 = vsub.f32 %v4998, %v5006
    %v5009 = vmul.f32 %v5007, 1.442695
    %v5010 = vpow.pop %v5009
    %v5011 = vmul.f32 %v5008, 1.442695
    %v5012 = vpow.pop %v5011
    %v5013 = vsel %vm567, %v5010, 0.0
    %5014 = vadd.xlane.f32.xlu0 %v5013
    %v5015 = vpop.xlane.xlu0 %5014
    %v5016 = vsel %vm567, %v5012, 0.0
    %5017 = vadd.xlane.f32.xlu0 %v5016
    %v5018 = vpop.xlane.xlu0 %5017
    %v5019 = vrcp.pop %v5015
    %v5020 = vrcp.pop %v5018
    %v5021 = vmul.f32 %v5010, %v5019
    %v5022 = vmul.f32 %v5012, %v5020
    %v5023 = vmul.f32 %v4929, %v521
    %v5024 = vmul.f32 %v4932, %v521
    %v5025 = vpack.c.bf16 %v5024, %v5023
    %v5026 = vpack.c.bf16 %v5022, %v5021
    %v5027 = vmul.f32 %v4935, %v598
    %v5028 = vmul.f32 %v4936, %v598
    %v5029 = vpack.c.bf16 %v5028, %v5027
    %5030 = vmatprep.subr.bf16.mxu0 0
    %5031 = vmatpush1.bf16.xpose.msra.mxu0 %v4956
    %5032 = vmatprep.subr.bf16.mxu0 0
    %5033 = vmatpush1.bf16.xpose.msra.mxu0 0
    %5034 = vmatprep.subr.bf16.mxu0 0
    %5035 = vmatpush1.bf16.xpose.msra.mxu0 0
    %5036 = vmatprep.subr.bf16.mxu0 0
    %5037 = vmatpush1.bf16.xpose.msra.mxu0 0
    %5038 = vmatprep.subr.bf16.mxu0 0
    %5039 = vmatpush1.bf16.xpose.msra.mxu0 0
    %5040 = vmatprep.subr.bf16.mxu0 0
    %5041 = vmatpush1.bf16.xpose.msra.mxu0 0
    %5042 = vmatprep.subr.bf16.mxu0 0
    %5043 = vmatpush1.bf16.xpose.msra.mxu0 0
    %5044 = vmatprep.subr.bf16.mxu0 0
    %5045 = vmatpush1.bf16.xpose.msra.mxu0 0
    %5046 = vmatprep.subr.bf16.mxu0 0
    %5047 = vmatpush1.bf16.xpose.msra.mxu0 0
    %5048 = vmatprep.subr.bf16.mxu0 0
    %5049 = vmatpush1.bf16.xpose.msra.mxu0 0
    %5050 = vmatprep.subr.bf16.mxu0 0
    %5051 = vmatpush1.bf16.xpose.msra.mxu0 0
    %5052 = vmatprep.subr.bf16.mxu0 0
    %5053 = vmatpush1.bf16.xpose.msra.mxu0 0
    %5054 = vmatprep.subr.bf16.mxu0 0
    %5055 = vmatpush1.bf16.xpose.msra.mxu0 0
    %5056 = vmatprep.subr.bf16.mxu0 0
    %5057 = vmatpush1.bf16.xpose.msra.mxu0 0
    %5058 = vmatprep.subr.bf16.mxu0 0
    %5059 = vmatpush1.bf16.xpose.msra.mxu0 0
    %5060 = vmatprep.subr.bf16.mxu0 0
    %5061 = vmatpush1.bf16.xpose.msra.mxu0 0
    %5062 = vmatprep.mubr.bf16.mxu0 0
    %5063 = vmatmul.mubr.bf16.gmra.mrb[0].mxu0 %v5029
    %v5064 = vpop.f32.mrb[0].mxu0
    %v5065 = vadd.f32 %v222, %v5064
    %v5066 = vpop.f32.mrb[0].mxu0
    %v5067 = vpop.f32.mrb[0].mxu0
    %v5068 = vadd.f32 %v223, %v5067
    %v5069 = vpop.f32.mrb[0].mxu0
    %5070 = vdwg.mxu0
    %v5071 = vsel %vm567, %v5065, -inf
    %5072 = vmax.xlane.f32.xlu0 %v5071
    %v5073 = vpop.xlane.xlu0 %5072
    %v5074 = vsel %vm567, %v5068, -inf
    %5075 = vmax.xlane.f32.xlu0 %v5074
    %v5076 = vpop.xlane.xlu0 %5075
    %v5077 = vsub.f32 %v5065, %v5073
    %v5078 = vsub.f32 %v5068, %v5076
    %v5079 = vmul.f32 %v5077, 1.442695
    %v5080 = vpow.pop %v5079
    %v5081 = vmul.f32 %v5078, 1.442695
    %v5082 = vpow.pop %v5081
    %v5083 = vsel %vm567, %v5080, 0.0
    %5084 = vadd.xlane.f32.xlu0 %v5083
    %v5085 = vpop.xlane.xlu0 %5084
    %v5086 = vsel %vm567, %v5082, 0.0
    %5087 = vadd.xlane.f32.xlu0 %v5086
    %v5088 = vpop.xlane.xlu0 %5087
    %v5089 = vrcp.pop %v5085
    %v5090 = vrcp.pop %v5088
    %v5091 = vmul.f32 %v5080, %v5089
    %v5092 = vmul.f32 %v5082, %v5090
    %v5093 = vmul.f32 %v4929, %v598
    %v5094 = vmul.f32 %v4932, %v598
    %v5095 = vpack.c.bf16 %v5094, %v5093
    %v5096 = vpack.c.bf16 %v5092, %v5091
    %v5098 = vsel %vm567, %v5096, 0
    %5100 = vmatprep.subr.bf16.mxu0 0
    %5101 = vmatpush1.bf16.msra.mxu0 %v5095
    %5102 = vmatprep.subr.bf16.mxu0 0
    %5103 = vmatpush1.bf16.msra.mxu0 0
    %5104 = vmatprep.subr.bf16.mxu0 0
    %5105 = vmatpush1.bf16.msra.mxu0 0
    %5106 = vmatprep.subr.bf16.mxu0 0
    %5107 = vmatpush1.bf16.msra.mxu0 0
    %5108 = vmatprep.subr.bf16.mxu0 0
    %5109 = vmatpush1.bf16.msra.mxu0 0
    %5110 = vmatprep.subr.bf16.mxu0 0
    %5111 = vmatpush1.bf16.msra.mxu0 0
    %5112 = vmatprep.subr.bf16.mxu0 0
    %5113 = vmatpush1.bf16.msra.mxu0 0
    %5114 = vmatprep.subr.bf16.mxu0 0
    %5115 = vmatpush1.bf16.msra.mxu0 0
    %5116 = vmatprep.subr.bf16.mxu0 0
    %5117 = vmatpush1.bf16.msra.mxu0 0
    %5118 = vmatprep.subr.bf16.mxu0 0
    %5119 = vmatpush1.bf16.msra.mxu0 0
    %5120 = vmatprep.subr.bf16.mxu0 0
    %5121 = vmatpush1.bf16.msra.mxu0 0
    %5122 = vmatprep.subr.bf16.mxu0 0
    %5123 = vmatpush1.bf16.msra.mxu0 0
    %5124 = vmatprep.subr.bf16.mxu0 0
    %5125 = vmatpush1.bf16.msra.mxu0 0
    %5126 = vmatprep.subr.bf16.mxu0 0
    %5127 = vmatpush1.bf16.msra.mxu0 0
    %5128 = vmatprep.subr.bf16.mxu0 0
    %5129 = vmatpush1.bf16.msra.mxu0 0
    %5130 = vmatprep.subr.bf16.mxu0 0
    %5131 = vmatpush1.bf16.msra.mxu0 0
    %5132 = vmatprep.mubr.bf16.mxu0 0
    %5133 = vmatmul.mubr.bf16.gmra.mrb[0].mxu0 %v5098
    %v5134 = vpop.f32.mrb[0].mxu0
    %v5135 = vadd.f32 0.0, %v5134
    %v5136 = vpop.f32.mrb[0].mxu0
    %v5137 = vpop.f32.mrb[0].mxu0
    %v5138 = vadd.f32 0.0, %v5137
    %v5139 = vpop.f32.mrb[0].mxu0
    %5140 = vdwg.mxu0
    %v5142 = vsel %vm567, %v5026, 0
    %5144 = vmatprep.subr.bf16.mxu0 0
    %5145 = vmatpush1.bf16.msra.mxu0 %v5025
    %5146 = vmatprep.subr.bf16.mxu0 0
    %5147 = vmatpush1.bf16.msra.mxu0 0
    %5148 = vmatprep.subr.bf16.mxu0 0
    %5149 = vmatpush1.bf16.msra.mxu0 0
    %5150 = vmatprep.subr.bf16.mxu0 0
    %5151 = vmatpush1.bf16.msra.mxu0 0
    %5152 = vmatprep.subr.bf16.mxu0 0
    %5153 = vmatpush1.bf16.msra.mxu0 0
    %5154 = vmatprep.subr.bf16.mxu0 0
    %5155 = vmatpush1.bf16.msra.mxu0 0
    %5156 = vmatprep.subr.bf16.mxu0 0
    %5157 = vmatpush1.bf16.msra.mxu0 0
    %5158 = vmatprep.subr.bf16.mxu0 0
    %5159 = vmatpush1.bf16.msra.mxu0 0
    %5160 = vmatprep.subr.bf16.mxu0 0
    %5161 = vmatpush1.bf16.msra.mxu0 0
    %5162 = vmatprep.subr.bf16.mxu0 0
    %5163 = vmatpush1.bf16.msra.mxu0 0
    %5164 = vmatprep.subr.bf16.mxu0 0
    %5165 = vmatpush1.bf16.msra.mxu0 0
    %5166 = vmatprep.subr.bf16.mxu0 0
    %5167 = vmatpush1.bf16.msra.mxu0 0
    %5168 = vmatprep.subr.bf16.mxu0 0
    %5169 = vmatpush1.bf16.msra.mxu0 0
    %5170 = vmatprep.subr.bf16.mxu0 0
    %5171 = vmatpush1.bf16.msra.mxu0 0
    %5172 = vmatprep.subr.bf16.mxu0 0
    %5173 = vmatpush1.bf16.msra.mxu0 0
    %5174 = vmatprep.subr.bf16.mxu0 0
    %5175 = vmatpush1.bf16.msra.mxu0 0
    %5176 = vmatprep.mubr.bf16.mxu0 0
    %5177 = vmatmul.mubr.bf16.gmra.mrb[0].mxu0 %v5142
    %v5178 = vpop.f32.mrb[0].mxu0
    %v5179 = vadd.f32 %v5135, %v5178
    %v5180 = vpop.f32.mrb[0].mxu0
    %v5181 = vpop.f32.mrb[0].mxu0
    %v5182 = vadd.f32 %v5138, %v5181
    %v5183 = vpop.f32.mrb[0].mxu0
    %5184 = vdwg.mxu0
    %v5185 = vmul.f32 %v4935, %v762
    %v5186 = vmul.f32 %v4936, %v762
    %v5187 = vpack.c.bf16 %v5186, %v5185
    %5188 = vmatprep.subr.bf16.mxu0 0
    %5189 = vmatpush1.bf16.xpose.msra.mxu0 %v4956
    %5190 = vmatprep.subr.bf16.mxu0 0
    %5191 = vmatpush1.bf16.xpose.msra.mxu0 0
    %5192 = vmatprep.subr.bf16.mxu0 0
    %5193 = vmatpush1.bf16.xpose.msra.mxu0 0
    %5194 = vmatprep.subr.bf16.mxu0 0
    %5195 = vmatpush1.bf16.xpose.msra.mxu0 0
    %5196 = vmatprep.subr.bf16.mxu0 0
    %5197 = vmatpush1.bf16.xpose.msra.mxu0 0
    %5198 = vmatprep.subr.bf16.mxu0 0
    %5199 = vmatpush1.bf16.xpose.msra.mxu0 0
    %5200 = vmatprep.subr.bf16.mxu0 0
    %5201 = vmatpush1.bf16.xpose.msra.mxu0 0
    %5202 = vmatprep.subr.bf16.mxu0 0
    %5203 = vmatpush1.bf16.xpose.msra.mxu0 0
    %5204 = vmatprep.subr.bf16.mxu0 0
    %5205 = vmatpush1.bf16.xpose.msra.mxu0 0
    %5206 = vmatprep.subr.bf16.mxu0 0
    %5207 = vmatpush1.bf16.xpose.msra.mxu0 0
    %5208 = vmatprep.subr.bf16.mxu0 0
    %5209 = vmatpush1.bf16.xpose.msra.mxu0 0
    %5210 = vmatprep.subr.bf16.mxu0 0
    %5211 = vmatpush1.bf16.xpose.msra.mxu0 0
    %5212 = vmatprep.subr.bf16.mxu0 0
    %5213 = vmatpush1.bf16.xpose.msra.mxu0 0
    %5214 = vmatprep.subr.bf16.mxu0 0
    %5215 = vmatpush1.bf16.xpose.msra.mxu0 0
    %5216 = vmatprep.subr.bf16.mxu0 0
    %5217 = vmatpush1.bf16.xpose.msra.mxu0 0
    %5218 = vmatprep.subr.bf16.mxu0 0
    %5219 = vmatpush1.bf16.xpose.msra.mxu0 0
    %5220 = vmatprep.mubr.bf16.mxu0 0
    %5221 = vmatmul.mubr.bf16.gmra.mrb[0].mxu0 %v5187
    %v5222 = vpop.f32.mrb[0].mxu0
    %v5223 = vadd.f32 %v222, %v5222
    %v5224 = vpop.f32.mrb[0].mxu0
    %v5225 = vpop.f32.mrb[0].mxu0
    %v5226 = vadd.f32 %v223, %v5225
    %v5227 = vpop.f32.mrb[0].mxu0
    %5228 = vdwg.mxu0
    %v5229 = vsel %vm567, %v5223, -inf
    %5230 = vmax.xlane.f32.xlu0 %v5229
    %v5231 = vpop.xlane.xlu0 %5230
    %v5232 = vsel %vm567, %v5226, -inf
    %5233 = vmax.xlane.f32.xlu0 %v5232
    %v5234 = vpop.xlane.xlu0 %5233
    %v5235 = vsub.f32 %v5223, %v5231
    %v5236 = vsub.f32 %v5226, %v5234
    %v5237 = vmul.f32 %v5235, 1.442695
    %v5238 = vpow.pop %v5237
    %v5239 = vmul.f32 %v5236, 1.442695
    %v5240 = vpow.pop %v5239
    %v5241 = vsel %vm567, %v5238, 0.0
    %5242 = vadd.xlane.f32.xlu0 %v5241
    %v5243 = vpop.xlane.xlu0 %5242
    %v5244 = vsel %vm567, %v5240, 0.0
    %5245 = vadd.xlane.f32.xlu0 %v5244
    %v5246 = vpop.xlane.xlu0 %5245
    %v5247 = vrcp.pop %v5243
    %v5248 = vrcp.pop %v5246
    %v5249 = vmul.f32 %v5238, %v5247
    %v5250 = vmul.f32 %v5240, %v5248
    %v5251 = vmul.f32 %v4929, %v762
    %v5252 = vmul.f32 %v4932, %v762
    %v5253 = vpack.c.bf16 %v5252, %v5251
    %v5254 = vpack.c.bf16 %v5250, %v5249
    %v5256 = vsel %vm567, %v5254, 0
    %5258 = vmatprep.subr.bf16.mxu0 0
    %5259 = vmatpush1.bf16.msra.mxu0 %v5253
    %5260 = vmatprep.subr.bf16.mxu0 0
    %5261 = vmatpush1.bf16.msra.mxu0 0
    %5262 = vmatprep.subr.bf16.mxu0 0
    %5263 = vmatpush1.bf16.msra.mxu0 0
    %5264 = vmatprep.subr.bf16.mxu0 0
    %5265 = vmatpush1.bf16.msra.mxu0 0
    %5266 = vmatprep.subr.bf16.mxu0 0
    %5267 = vmatpush1.bf16.msra.mxu0 0
    %5268 = vmatprep.subr.bf16.mxu0 0
    %5269 = vmatpush1.bf16.msra.mxu0 0
    %5270 = vmatprep.subr.bf16.mxu0 0
    %5271 = vmatpush1.bf16.msra.mxu0 0
    %5272 = vmatprep.subr.bf16.mxu0 0
    %5273 = vmatpush1.bf16.msra.mxu0 0
    %5274 = vmatprep.subr.bf16.mxu0 0
    %5275 = vmatpush1.bf16.msra.mxu0 0
    %5276 = vmatprep.subr.bf16.mxu0 0
    %5277 = vmatpush1.bf16.msra.mxu0 0
    %5278 = vmatprep.subr.bf16.mxu0 0
    %5279 = vmatpush1.bf16.msra.mxu0 0
    %5280 = vmatprep.subr.bf16.mxu0 0
    %5281 = vmatpush1.bf16.msra.mxu0 0
    %5282 = vmatprep.subr.bf16.mxu0 0
    %5283 = vmatpush1.bf16.msra.mxu0 0
    %5284 = vmatprep.subr.bf16.mxu0 0
    %5285 = vmatpush1.bf16.msra.mxu0 0
    %5286 = vmatprep.subr.bf16.mxu0 0
    %5287 = vmatpush1.bf16.msra.mxu0 0
    %5288 = vmatprep.subr.bf16.mxu0 0
    %5289 = vmatpush1.bf16.msra.mxu0 0
    %5290 = vmatprep.mubr.bf16.mxu0 0
    %5291 = vmatmul.mubr.bf16.gmra.mrb[0].mxu0 %v5256
    %v5292 = vpop.f32.mrb[0].mxu0
    %v5293 = vadd.f32 0.0, %v5292
    %v5294 = vpop.f32.mrb[0].mxu0
    %v5295 = vpop.f32.mrb[0].mxu0
    %v5296 = vadd.f32 0.0, %v5295
    %v5297 = vpop.f32.mrb[0].mxu0
    %5298 = vdwg.mxu0
    %v5299 = vadd.f32 %v5179, %v5293
    %v5300 = vadd.f32 %v5182, %v5296
    %v5301 = vmul.f32 %v4935, %v884
    %v5302 = vmul.f32 %v4936, %v884
    %v5303 = vpack.c.bf16 %v5302, %v5301
    %5304 = vmatprep.subr.bf16.mxu0 0
    %5305 = vmatpush1.bf16.xpose.msra.mxu0 %v4956
    %5306 = vmatprep.subr.bf16.mxu0 0
    %5307 = vmatpush1.bf16.xpose.msra.mxu0 0
    %5308 = vmatprep.subr.bf16.mxu0 0
    %5309 = vmatpush1.bf16.xpose.msra.mxu0 0
    %5310 = vmatprep.subr.bf16.mxu0 0
    %5311 = vmatpush1.bf16.xpose.msra.mxu0 0
    %5312 = vmatprep.subr.bf16.mxu0 0
    %5313 = vmatpush1.bf16.xpose.msra.mxu0 0
    %5314 = vmatprep.subr.bf16.mxu0 0
    %5315 = vmatpush1.bf16.xpose.msra.mxu0 0
    %5316 = vmatprep.subr.bf16.mxu0 0
    %5317 = vmatpush1.bf16.xpose.msra.mxu0 0
    %5318 = vmatprep.subr.bf16.mxu0 0
    %5319 = vmatpush1.bf16.xpose.msra.mxu0 0
    %5320 = vmatprep.subr.bf16.mxu0 0
    %5321 = vmatpush1.bf16.xpose.msra.mxu0 0
    %5322 = vmatprep.subr.bf16.mxu0 0
    %5323 = vmatpush1.bf16.xpose.msra.mxu0 0
    %5324 = vmatprep.subr.bf16.mxu0 0
    %5325 = vmatpush1.bf16.xpose.msra.mxu0 0
    %5326 = vmatprep.subr.bf16.mxu0 0
    %5327 = vmatpush1.bf16.xpose.msra.mxu0 0
    %5328 = vmatprep.subr.bf16.mxu0 0
    %5329 = vmatpush1.bf16.xpose.msra.mxu0 0
    %5330 = vmatprep.subr.bf16.mxu0 0
    %5331 = vmatpush1.bf16.xpose.msra.mxu0 0
    %5332 = vmatprep.subr.bf16.mxu0 0
    %5333 = vmatpush1.bf16.xpose.msra.mxu0 0
    %5334 = vmatprep.subr.bf16.mxu0 0
    %5335 = vmatpush1.bf16.xpose.msra.mxu0 0
    %5336 = vmatprep.mubr.bf16.mxu0 0
    %5337 = vmatmul.mubr.bf16.gmra.mrb[0].mxu0 %v5303
    %v5338 = vpop.f32.mrb[0].mxu0
    %v5339 = vadd.f32 %v222, %v5338
    %v5340 = vpop.f32.mrb[0].mxu0
    %v5341 = vpop.f32.mrb[0].mxu0
    %v5342 = vadd.f32 %v223, %v5341
    %v5343 = vpop.f32.mrb[0].mxu0
    %5344 = vdwg.mxu0
    %v5345 = vsel %vm567, %v5339, -inf
    %5346 = vmax.xlane.f32.xlu0 %v5345
    %v5347 = vpop.xlane.xlu0 %5346
    %v5348 = vsel %vm567, %v5342, -inf
    %5349 = vmax.xlane.f32.xlu0 %v5348
    %v5350 = vpop.xlane.xlu0 %5349
    %v5351 = vsub.f32 %v5339, %v5347
    %v5352 = vsub.f32 %v5342, %v5350
    %v5353 = vmul.f32 %v5351, 1.442695
    %v5354 = vpow.pop %v5353
    %v5355 = vmul.f32 %v5352, 1.442695
    %v5356 = vpow.pop %v5355
    %v5357 = vsel %vm567, %v5354, 0.0
    %5358 = vadd.xlane.f32.xlu0 %v5357
    %v5359 = vpop.xlane.xlu0 %5358
    %v5360 = vsel %vm567, %v5356, 0.0
    %5361 = vadd.xlane.f32.xlu0 %v5360
    %v5362 = vpop.xlane.xlu0 %5361
    %v5363 = vrcp.pop %v5359
    %v5364 = vrcp.pop %v5362
    %v5365 = vmul.f32 %v5354, %v5363
    %v5366 = vmul.f32 %v5356, %v5364
    %v5367 = vmul.f32 %v4929, %v884
    %v5368 = vmul.f32 %v4932, %v884
    %v5369 = vpack.c.bf16 %v5368, %v5367
    %v5370 = vpack.c.bf16 %v5366, %v5365
    %v5372 = vsel %vm567, %v5370, 0
    %5374 = vmatprep.subr.bf16.mxu0 0
    %5375 = vmatpush1.bf16.msra.mxu0 %v5369
    %5376 = vmatprep.subr.bf16.mxu0 0
    %5377 = vmatpush1.bf16.msra.mxu0 0
    %5378 = vmatprep.subr.bf16.mxu0 0
    %5379 = vmatpush1.bf16.msra.mxu0 0
    %5380 = vmatprep.subr.bf16.mxu0 0
    %5381 = vmatpush1.bf16.msra.mxu0 0
    %5382 = vmatprep.subr.bf16.mxu0 0
    %5383 = vmatpush1.bf16.msra.mxu0 0
    %5384 = vmatprep.subr.bf16.mxu0 0
    %5385 = vmatpush1.bf16.msra.mxu0 0
    %5386 = vmatprep.subr.bf16.mxu0 0
    %5387 = vmatpush1.bf16.msra.mxu0 0
    %5388 = vmatprep.subr.bf16.mxu0 0
    %5389 = vmatpush1.bf16.msra.mxu0 0
    %5390 = vmatprep.subr.bf16.mxu0 0
    %5391 = vmatpush1.bf16.msra.mxu0 0
    %5392 = vmatprep.subr.bf16.mxu0 0
    %5393 = vmatpush1.bf16.msra.mxu0 0
    %5394 = vmatprep.subr.bf16.mxu0 0
    %5395 = vmatpush1.bf16.msra.mxu0 0
    %5396 = vmatprep.subr.bf16.mxu0 0
    %5397 = vmatpush1.bf16.msra.mxu0 0
    %5398 = vmatprep.subr.bf16.mxu0 0
    %5399 = vmatpush1.bf16.msra.mxu0 0
    %5400 = vmatprep.subr.bf16.mxu0 0
    %5401 = vmatpush1.bf16.msra.mxu0 0
    %5402 = vmatprep.subr.bf16.mxu0 0
    %5403 = vmatpush1.bf16.msra.mxu0 0
    %5404 = vmatprep.subr.bf16.mxu0 0
    %5405 = vmatpush1.bf16.msra.mxu0 0
    %5406 = vmatprep.mubr.bf16.mxu0 0
    %5407 = vmatmul.mubr.bf16.gmra.mrb[0].mxu0 %v5372
    %v5408 = vpop.f32.mrb[0].mxu0
    %v5409 = vadd.f32 0.0, %v5408
    %v5410 = vpop.f32.mrb[0].mxu0
    %v5411 = vpop.f32.mrb[0].mxu0
    %v5412 = vadd.f32 0.0, %v5411
    %v5413 = vpop.f32.mrb[0].mxu0
    %5414 = vdwg.mxu0
    %v5415 = vadd.f32 %v5299, %v5409
    %v5416 = vadd.f32 %v5300, %v5412
    %v5417 = vpack.c.bf16 %v5416, %v5415
    %v5419 = vlaneseq
    %v5420 = vshrl.u32 %v5419, 7
    %v5421 = vsub.s32 0, %v5420
    %v5422 = vrot.slane %v4955, %v5421
    %v5440 = vunpack.c.l.b16 %v4938
    %v5441 = vunpack.c.l.b16 %v4939
    %v5442 = vunpack.c.l.b16 %v4940
    %v5443 = vunpack.c.l.b16 %v4941
    %v5444 = vunpack.c.l.b16 %v4942
    %v5445 = vunpack.c.l.b16 %v4943
    %v5446 = vunpack.c.l.b16 %v4944
    %v5447 = vunpack.c.l.b16 %v4945
    %v5448 = vunpack.c.l.b16 %v4946
    %v5449 = vunpack.c.l.b16 %v4947
    %v5450 = vunpack.c.l.b16 %v4948
    %v5451 = vunpack.c.l.b16 %v4949
    %v5452 = vunpack.c.l.b16 %v4950
    %v5453 = vunpack.c.l.b16 %v4951
    %v5454 = vunpack.c.l.b16 %v4952
    %v5455 = vunpack.c.l.b16 %v4953
    %v5456 = vpack.c.b16 %v5441, %v5440
    %v5457 = vpack.c.b16 %v5443, %v5442
    %v5458 = vpack.c.b16 %v5445, %v5444
    %v5459 = vpack.c.b16 %v5447, %v5446
    %v5460 = vpack.c.b16 %v5449, %v5448
    %v5461 = vpack.c.b16 %v5451, %v5450
    %v5462 = vpack.c.b16 %v5453, %v5452
    %v5463 = vpack.c.b16 %v5455, %v5454
    %5472 = vmatprep.subr.bf16.mxu0 0
    %5473 = vmatpush1.bf16.msra.mxu0 %v5456
    %5474 = vmatprep.subr.bf16.mxu0 0
    %5475 = vmatpush1.bf16.msra.mxu0 %v5457
    %5476 = vmatprep.subr.bf16.mxu0 0
    %5477 = vmatpush1.bf16.msra.mxu0 %v5458
    %5478 = vmatprep.subr.bf16.mxu0 0
    %5479 = vmatpush1.bf16.msra.mxu0 %v5459
    %5480 = vmatprep.subr.bf16.mxu0 0
    %5481 = vmatpush1.bf16.msra.mxu0 %v5460
    %5482 = vmatprep.subr.bf16.mxu0 0
    %5483 = vmatpush1.bf16.msra.mxu0 %v5461
    %5484 = vmatprep.subr.bf16.mxu0 0
    %5485 = vmatpush1.bf16.msra.mxu0 %v5462
    %5486 = vmatprep.subr.bf16.mxu0 0
    %5487 = vmatpush1.bf16.msra.mxu0 %v5463
    %5488 = vmatprep.subr.bf16.mxu0 0
    %5489 = vmatpush1.bf16.msra.mxu0 0
    %5490 = vmatprep.subr.bf16.mxu0 0
    %5491 = vmatpush1.bf16.msra.mxu0 0
    %5492 = vmatprep.subr.bf16.mxu0 0
    %5493 = vmatpush1.bf16.msra.mxu0 0
    %5494 = vmatprep.subr.bf16.mxu0 0
    %5495 = vmatpush1.bf16.msra.mxu0 0
    %5496 = vmatprep.subr.bf16.mxu0 0
    %5497 = vmatpush1.bf16.msra.mxu0 0
    %5498 = vmatprep.subr.bf16.mxu0 0
    %5499 = vmatpush1.bf16.msra.mxu0 0
    %5500 = vmatprep.subr.bf16.mxu0 0
    %5501 = vmatpush1.bf16.msra.mxu0 0
    %5502 = vmatprep.subr.bf16.mxu0 0
    %5503 = vmatpush1.bf16.msra.mxu0 0
    %5504 = vmatprep.mubr.bf16.mxu0 0
    %5505 = vmatmul.mubr.bf16.gmra.mrb[0].mxu0 %v5417
    %v5506 = vpop.f32.mrb[0].mxu0
    %v5507 = vadd.f32 %v5422, %v5506
    %v5508 = vpop.f32.mrb[0].mxu0
    %v5509 = vpop.f32.mrb[0].mxu0
    %v5510 = vadd.f32 %v5422, %v5509
    %v5511 = vpop.f32.mrb[0].mxu0
    %5512 = vdwg.mxu0
    %v5513 = vadd.f32 %v4661, %v5507
    %v5514 = vadd.f32 %v4662, %v5510
    %5515 = vadd.xlane.f32.xlu0 %v5513
    %v5516 = vpop.xlane.xlu0 %5515
    %5517 = vadd.xlane.f32.xlu0 %v5514
    %v5518 = vpop.xlane.xlu0 %5517
    %v5519 = vmul.f32 %v5516, %v1104
    %v5520 = vmul.f32 %v5518, %v1104
    %v5521 = vsub.f32 %v5513, %v5519
    %v5522 = vsub.f32 %v5514, %v5520
    %v5523 = vmul.f32 %v5521, %v5521
    %v5524 = vmul.f32 %v5522, %v5522
    %5525 = vadd.xlane.f32.xlu0 %v5523
    %v5526 = vpop.xlane.xlu0 %5525
    %5527 = vadd.xlane.f32.xlu0 %v5524
    %v5528 = vpop.xlane.xlu0 %5527
    %v5529 = vmul.f32 %v5526, %v1104
    %v5530 = vmul.f32 %v5528, %v1104
    %v5531 = vadd.f32 %v5529, 1e-05
    %v5532 = vadd.f32 %v5530, 1e-05
    %v5533 = vrsqrt.pop %v5531
    %v5534 = vrsqrt.pop %v5532
    %v5535 = vmul.f32 %v5521, %v5533
    %v5536 = vmul.f32 %v5522, %v5534
    %v5538 = vlaneseq
    %v5539 = vshrl.u32 %v5538, 7
    %v5540 = vsub.s32 0, %v5539
    %v5541 = vrot.slane %v4664, %v5540
    %v5543 = vmul.f32 %v5535, %v5541
    %v5544 = vmul.f32 %v5536, %v5541
    %v5546 = vlaneseq
    %v5547 = vshrl.u32 %v5546, 7
    %v5548 = vsub.s32 0, %v5547
    %v5549 = vrot.slane %v4668, %v5548
    %v5551 = vadd.f32 %v5543, %v5549
    %v5552 = vadd.f32 %v5544, %v5549
    %v5553 = vpack.c.bf16 %v5552, %v5551
    %s5554 = scalar_lea.vmem [#allocation4], 192
    %v5555 = vld [vmem:[%s5554] sm:$0xf]
    %v5556 = vld [vmem:[%s5554 + $0xc] sm:$0xf]
    %v5557 = vld [vmem:[%s5554 + $0x18] sm:$0xf]
    %v5558 = vld [vmem:[%s5554 + $0x24] sm:$0xf]
    %v5559 = vld [vmem:[%s5554 + $0x30] sm:$0xf]
    %v5560 = vld [vmem:[%s5554 + $0x3c] sm:$0xf]
    %v5561 = vld [vmem:[%s5554 + $0x48] sm:$0xf]
    %v5562 = vld [vmem:[%s5554 + $0x54] sm:$0xf]
    %v5563 = vld [vmem:[%s5554 + $0x60] sm:$0xf]
    %v5564 = vld [vmem:[%s5554 + $0x6c] sm:$0xf]
    %v5565 = vld [vmem:[%s5554 + $0x78] sm:$0xf]
    %v5566 = vld [vmem:[%s5554 + $0x84] sm:$0xf]
    %v5567 = vld [vmem:[%s5554 + $0x90] sm:$0xf]
    %v5568 = vld [vmem:[%s5554 + $0x9c] sm:$0xf]
    %v5569 = vld [vmem:[%s5554 + $0xa8] sm:$0xf]
    %v5570 = vld [vmem:[%s5554 + $0xb4] sm:$0xf]
    %s5571 = scalar_lea.vmem [#allocation6], 3
    %v5572 = vld [vmem:[%s5571] sm:$0x1]
    %v5574 = vlaneseq
    %v5575 = vshrl.u32 %v5574, 7
    %v5576 = vsub.s32 0, %v5575
    %v5577 = vrot.slane %v5572, %v5576
    %v5595 = vunpack.c.l.b16 %v5555
    %v5596 = vunpack.c.l.b16 %v5556
    %v5597 = vunpack.c.l.b16 %v5557
    %v5598 = vunpack.c.l.b16 %v5558
    %v5599 = vunpack.c.l.b16 %v5559
    %v5600 = vunpack.c.l.b16 %v5560
    %v5601 = vunpack.c.l.b16 %v5561
    %v5602 = vunpack.c.l.b16 %v5562
    %v5603 = vunpack.c.l.b16 %v5563
    %v5604 = vunpack.c.l.b16 %v5564
    %v5605 = vunpack.c.l.b16 %v5565
    %v5606 = vunpack.c.l.b16 %v5566
    %v5607 = vunpack.c.l.b16 %v5567
    %v5608 = vunpack.c.l.b16 %v5568
    %v5609 = vunpack.c.l.b16 %v5569
    %v5610 = vunpack.c.l.b16 %v5570
    %v5611 = vpack.c.b16 %v5596, %v5595
    %v5612 = vpack.c.b16 %v5598, %v5597
    %v5613 = vpack.c.b16 %v5600, %v5599
    %v5614 = vpack.c.b16 %v5602, %v5601
    %v5615 = vpack.c.b16 %v5604, %v5603
    %v5616 = vpack.c.b16 %v5606, %v5605
    %v5617 = vpack.c.b16 %v5608, %v5607
    %v5618 = vpack.c.b16 %v5610, %v5609
    %5627 = vmatprep.subr.bf16.mxu0 0
    %5628 = vmatpush1.bf16.msra.mxu0 %v5611
    %5629 = vmatprep.subr.bf16.mxu0 0
    %5630 = vmatpush1.bf16.msra.mxu0 %v5612
    %5631 = vmatprep.subr.bf16.mxu0 0
    %5632 = vmatpush1.bf16.msra.mxu0 %v5613
    %5633 = vmatprep.subr.bf16.mxu0 0
    %5634 = vmatpush1.bf16.msra.mxu0 %v5614
    %5635 = vmatprep.subr.bf16.mxu0 0
    %5636 = vmatpush1.bf16.msra.mxu0 %v5615
    %5637 = vmatprep.subr.bf16.mxu0 0
    %5638 = vmatpush1.bf16.msra.mxu0 %v5616
    %5639 = vmatprep.subr.bf16.mxu0 0
    %5640 = vmatpush1.bf16.msra.mxu0 %v5617
    %5641 = vmatprep.subr.bf16.mxu0 0
    %5642 = vmatpush1.bf16.msra.mxu0 %v5618
    %5643 = vmatprep.subr.bf16.mxu0 0
    %5644 = vmatpush1.bf16.msra.mxu0 0
    %5645 = vmatprep.subr.bf16.mxu0 0
    %5646 = vmatpush1.bf16.msra.mxu0 0
    %5647 = vmatprep.subr.bf16.mxu0 0
    %5648 = vmatpush1.bf16.msra.mxu0 0
    %5649 = vmatprep.subr.bf16.mxu0 0
    %5650 = vmatpush1.bf16.msra.mxu0 0
    %5651 = vmatprep.subr.bf16.mxu0 0
    %5652 = vmatpush1.bf16.msra.mxu0 0
    %5653 = vmatprep.subr.bf16.mxu0 0
    %5654 = vmatpush1.bf16.msra.mxu0 0
    %5655 = vmatprep.subr.bf16.mxu0 0
    %5656 = vmatpush1.bf16.msra.mxu0 0
    %5657 = vmatprep.subr.bf16.mxu0 0
    %5658 = vmatpush1.bf16.msra.mxu0 0
    %5659 = vmatprep.mubr.bf16.mxu0 0
    %5660 = vmatmul.mubr.bf16.gmra.mrb[0].mxu0 %v5553
    %v5661 = vpop.f32.mrb[0].mxu0
    %v5662 = vadd.f32 %v5577, %v5661
    %v5663 = vpop.f32.mrb[0].mxu0
    %v5664 = vpop.f32.mrb[0].mxu0
    %v5665 = vadd.f32 %v5577, %v5664
    %v5666 = vpop.f32.mrb[0].mxu0
    %5667 = vdwg.mxu0
    %v5668 = vmul.f32 %v5662, 0.17677669
    %v5669 = vmul.f32 %v5665, 0.17677669
    %v5670 = vld [vmem:[%s5554 + $0x4] sm:$0xff]
    %v5671 = vld [vmem:[%s5554 + $0x10] sm:$0xff]
    %v5672 = vld [vmem:[%s5554 + $0x1c] sm:$0xff]
    %v5673 = vld [vmem:[%s5554 + $0x28] sm:$0xff]
    %v5674 = vld [vmem:[%s5554 + $0x34] sm:$0xff]
    %v5675 = vld [vmem:[%s5554 + $0x40] sm:$0xff]
    %v5676 = vld [vmem:[%s5554 + $0x4c] sm:$0xff]
    %v5677 = vld [vmem:[%s5554 + $0x58] sm:$0xff]
    %v5678 = vld [vmem:[%s5554 + $0x64] sm:$0xff]
    %v5679 = vld [vmem:[%s5554 + $0x70] sm:$0xff]
    %v5680 = vld [vmem:[%s5554 + $0x7c] sm:$0xff]
    %v5681 = vld [vmem:[%s5554 + $0x88] sm:$0xff]
    %v5682 = vld [vmem:[%s5554 + $0x94] sm:$0xff]
    %v5683 = vld [vmem:[%s5554 + $0xa0] sm:$0xff]
    %v5684 = vld [vmem:[%s5554 + $0xac] sm:$0xff]
    %v5685 = vld [vmem:[%s5554 + $0xb8] sm:$0xff]
    %v5686 = vld [vmem:[%s5571 + $0x1] sm:$0x3]
    %v5688 = vlaneseq
    %v5689 = vshrl.u32 %v5688, 7
    %v5690 = vsub.s32 0, %v5689
    %v5691 = vrot.slane %v5686, %v5690
    %v5692 = vlaneseq
    %v5693 = vshrl.u32 %v5692, 7
    %v5694 = vsub.s32 1, %v5693
    %v5695 = vrot.slane %v5686, %v5694
    %v5714 = vunpack.c.l.b16 %v5670
    %v5715 = vunpack.c.h.b16 %v5670
    %v5716 = vunpack.c.l.b16 %v5671
    %v5717 = vunpack.c.h.b16 %v5671
    %v5718 = vunpack.c.l.b16 %v5672
    %v5719 = vunpack.c.h.b16 %v5672
    %v5720 = vunpack.c.l.b16 %v5673
    %v5721 = vunpack.c.h.b16 %v5673
    %v5722 = vunpack.c.l.b16 %v5674
    %v5723 = vunpack.c.h.b16 %v5674
    %v5724 = vunpack.c.l.b16 %v5675
    %v5725 = vunpack.c.h.b16 %v5675
    %v5726 = vunpack.c.l.b16 %v5676
    %v5727 = vunpack.c.h.b16 %v5676
    %v5728 = vunpack.c.l.b16 %v5677
    %v5729 = vunpack.c.h.b16 %v5677
    %v5730 = vunpack.c.l.b16 %v5678
    %v5731 = vunpack.c.h.b16 %v5678
    %v5732 = vunpack.c.l.b16 %v5679
    %v5733 = vunpack.c.h.b16 %v5679
    %v5734 = vunpack.c.l.b16 %v5680
    %v5735 = vunpack.c.h.b16 %v5680
    %v5736 = vunpack.c.l.b16 %v5681
    %v5737 = vunpack.c.h.b16 %v5681
    %v5738 = vunpack.c.l.b16 %v5682
    %v5739 = vunpack.c.h.b16 %v5682
    %v5740 = vunpack.c.l.b16 %v5683
    %v5741 = vunpack.c.h.b16 %v5683
    %v5742 = vunpack.c.l.b16 %v5684
    %v5743 = vunpack.c.h.b16 %v5684
    %v5744 = vunpack.c.l.b16 %v5685
    %v5745 = vunpack.c.h.b16 %v5685
    %v5746 = vpack.c.b16 %v5716, %v5714
    %v5747 = vpack.c.b16 %v5717, %v5715
    %v5748 = vpack.c.b16 %v5720, %v5718
    %v5749 = vpack.c.b16 %v5721, %v5719
    %v5750 = vpack.c.b16 %v5724, %v5722
    %v5751 = vpack.c.b16 %v5725, %v5723
    %v5752 = vpack.c.b16 %v5728, %v5726
    %v5753 = vpack.c.b16 %v5729, %v5727
    %v5754 = vpack.c.b16 %v5732, %v5730
    %v5755 = vpack.c.b16 %v5733, %v5731
    %v5756 = vpack.c.b16 %v5736, %v5734
    %v5757 = vpack.c.b16 %v5737, %v5735
    %v5758 = vpack.c.b16 %v5740, %v5738
    %v5759 = vpack.c.b16 %v5741, %v5739
    %v5760 = vpack.c.b16 %v5744, %v5742
    %v5761 = vpack.c.b16 %v5745, %v5743
    %5778 = vmatprep.subr.bf16.mxu0 %v5747
    %5779 = vmatpush1.bf16.msra.mxu0 %v5746
    %5780 = vmatprep.subr.bf16.mxu0 %v5749
    %5781 = vmatpush1.bf16.msra.mxu0 %v5748
    %5782 = vmatprep.subr.bf16.mxu0 %v5751
    %5783 = vmatpush1.bf16.msra.mxu0 %v5750
    %5784 = vmatprep.subr.bf16.mxu0 %v5753
    %5785 = vmatpush1.bf16.msra.mxu0 %v5752
    %5786 = vmatprep.subr.bf16.mxu0 %v5755
    %5787 = vmatpush1.bf16.msra.mxu0 %v5754
    %5788 = vmatprep.subr.bf16.mxu0 %v5757
    %5789 = vmatpush1.bf16.msra.mxu0 %v5756
    %5790 = vmatprep.subr.bf16.mxu0 %v5759
    %5791 = vmatpush1.bf16.msra.mxu0 %v5758
    %5792 = vmatprep.subr.bf16.mxu0 %v5761
    %5793 = vmatpush1.bf16.msra.mxu0 %v5760
    %5794 = vmatprep.subr.bf16.mxu0 0
    %5795 = vmatpush1.bf16.msra.mxu0 0
    %5796 = vmatprep.subr.bf16.mxu0 0
    %5797 = vmatpush1.bf16.msra.mxu0 0
    %5798 = vmatprep.subr.bf16.mxu0 0
    %5799 = vmatpush1.bf16.msra.mxu0 0
    %5800 = vmatprep.subr.bf16.mxu0 0
    %5801 = vmatpush1.bf16.msra.mxu0 0
    %5802 = vmatprep.subr.bf16.mxu0 0
    %5803 = vmatpush1.bf16.msra.mxu0 0
    %5804 = vmatprep.subr.bf16.mxu0 0
    %5805 = vmatpush1.bf16.msra.mxu0 0
    %5806 = vmatprep.subr.bf16.mxu0 0
    %5807 = vmatpush1.bf16.msra.mxu0 0
    %5808 = vmatprep.subr.bf16.mxu0 0
    %5809 = vmatpush1.bf16.msra.mxu0 0
    %5810 = vmatprep.mubr.bf16.mxu0 0
    %5811 = vmatmul.mubr.bf16.gmra.mrb[0].mxu0 %v221
    %v5812 = vpop.f32.mrb[0].mxu0
    %v5813 = vadd.f32 %v5691, %v5812
    %v5814 = vpop.f32.mrb[0].mxu0
    %v5815 = vadd.f32 %v5695, %v5814
    %v5816 = vpop.f32.mrb[0].mxu0
    %v5817 = vadd.f32 %v5691, %v5816
    %v5818 = vpop.f32.mrb[0].mxu0
    %v5819 = vadd.f32 %v5695, %v5818
    %5820 = vdwg.mxu0
    %s5821 = scalar_lea.vmem [#allocation7], 64
    %v5822 = vld [vmem:[%s5821] sm:$0xf]
    %v5823 = vld [vmem:[%s5821 + $0x4] sm:$0xf]
    %v5824 = vld [vmem:[%s5821 + $0x8] sm:$0xf]
    %v5825 = vld [vmem:[%s5821 + $0xc] sm:$0xf]
    %v5826 = vld [vmem:[%s5821 + $0x10] sm:$0xf]
    %v5827 = vld [vmem:[%s5821 + $0x14] sm:$0xf]
    %v5828 = vld [vmem:[%s5821 + $0x18] sm:$0xf]
    %v5829 = vld [vmem:[%s5821 + $0x1c] sm:$0xf]
    %v5830 = vld [vmem:[%s5821 + $0x20] sm:$0xf]
    %v5831 = vld [vmem:[%s5821 + $0x24] sm:$0xf]
    %v5832 = vld [vmem:[%s5821 + $0x28] sm:$0xf]
    %v5833 = vld [vmem:[%s5821 + $0x2c] sm:$0xf]
    %v5834 = vld [vmem:[%s5821 + $0x30] sm:$0xf]
    %v5835 = vld [vmem:[%s5821 + $0x34] sm:$0xf]
    %v5836 = vld [vmem:[%s5821 + $0x38] sm:$0xf]
    %v5837 = vld [vmem:[%s5821 + $0x3c] sm:$0xf]
    %s5838 = scalar_lea.vmem [#allocation9], 1
    %v5839 = vld [vmem:[%s5838] sm:$0x1]
    %v5840 = vpack.c.bf16 %v5817, %v5813
    %v5841 = vmul.f32 %v5668, %v521
    %v5842 = vmul.f32 %v5669, %v521
    %v5843 = vpack.c.bf16 %v5842, %v5841
    %5844 = vmatprep.subr.bf16.mxu0 0
    %5845 = vmatpush1.bf16.xpose.msra.mxu0 %v5840
    %5846 = vmatprep.subr.bf16.mxu0 0
    %5847 = vmatpush1.bf16.xpose.msra.mxu0 0
    %5848 = vmatprep.subr.bf16.mxu0 0
    %5849 = vmatpush1.bf16.xpose.msra.mxu0 0
    %5850 = vmatprep.subr.bf16.mxu0 0
    %5851 = vmatpush1.bf16.xpose.msra.mxu0 0
    %5852 = vmatprep.subr.bf16.mxu0 0
    %5853 = vmatpush1.bf16.xpose.msra.mxu0 0
    %5854 = vmatprep.subr.bf16.mxu0 0
    %5855 = vmatpush1.bf16.xpose.msra.mxu0 0
    %5856 = vmatprep.subr.bf16.mxu0 0
    %5857 = vmatpush1.bf16.xpose.msra.mxu0 0
    %5858 = vmatprep.subr.bf16.mxu0 0
    %5859 = vmatpush1.bf16.xpose.msra.mxu0 0
    %5860 = vmatprep.subr.bf16.mxu0 0
    %5861 = vmatpush1.bf16.xpose.msra.mxu0 0
    %5862 = vmatprep.subr.bf16.mxu0 0
    %5863 = vmatpush1.bf16.xpose.msra.mxu0 0
    %5864 = vmatprep.subr.bf16.mxu0 0
    %5865 = vmatpush1.bf16.xpose.msra.mxu0 0
    %5866 = vmatprep.subr.bf16.mxu0 0
    %5867 = vmatpush1.bf16.xpose.msra.mxu0 0
    %5868 = vmatprep.subr.bf16.mxu0 0
    %5869 = vmatpush1.bf16.xpose.msra.mxu0 0
    %5870 = vmatprep.subr.bf16.mxu0 0
    %5871 = vmatpush1.bf16.xpose.msra.mxu0 0
    %5872 = vmatprep.subr.bf16.mxu0 0
    %5873 = vmatpush1.bf16.xpose.msra.mxu0 0
    %5874 = vmatprep.subr.bf16.mxu0 0
    %5875 = vmatpush1.bf16.xpose.msra.mxu0 0
    %5876 = vmatprep.mubr.bf16.mxu0 0
    %5877 = vmatmul.mubr.bf16.gmra.mrb[0].mxu0 %v5843
    %v5878 = vpop.f32.mrb[0].mxu0
    %v5879 = vadd.f32 %v224, %v5878
    %v5880 = vpop.f32.mrb[0].mxu0
    %v5881 = vpop.f32.mrb[0].mxu0
    %v5882 = vadd.f32 %v225, %v5881
    %v5883 = vpop.f32.mrb[0].mxu0
    %5884 = vdwg.mxu0
    %v5885 = vsel %vm567, %v5879, -inf
    %5886 = vmax.xlane.f32.xlu0 %v5885
    %v5887 = vpop.xlane.xlu0 %5886
    %v5888 = vsel %vm567, %v5882, -inf
    %5889 = vmax.xlane.f32.xlu0 %v5888
    %v5890 = vpop.xlane.xlu0 %5889
    %v5891 = vsub.f32 %v5879, %v5887
    %v5892 = vsub.f32 %v5882, %v5890
    %v5893 = vmul.f32 %v5891, 1.442695
    %v5894 = vpow.pop %v5893
    %v5895 = vmul.f32 %v5892, 1.442695
    %v5896 = vpow.pop %v5895
    %v5897 = vsel %vm567, %v5894, 0.0
    %5898 = vadd.xlane.f32.xlu0 %v5897
    %v5899 = vpop.xlane.xlu0 %5898
    %v5900 = vsel %vm567, %v5896, 0.0
    %5901 = vadd.xlane.f32.xlu0 %v5900
    %v5902 = vpop.xlane.xlu0 %5901
    %v5903 = vrcp.pop %v5899
    %v5904 = vrcp.pop %v5902
    %v5905 = vmul.f32 %v5894, %v5903
    %v5906 = vmul.f32 %v5896, %v5904
    %v5907 = vmul.f32 %v5815, %v521
    %v5908 = vmul.f32 %v5819, %v521
    %v5909 = vpack.c.bf16 %v5908, %v5907
    %v5910 = vpack.c.bf16 %v5906, %v5905
    %v5911 = vmul.f32 %v5668, %v598
    %v5912 = vmul.f32 %v5669, %v598
    %v5913 = vpack.c.bf16 %v5912, %v5911
    %5914 = vmatprep.subr.bf16.mxu0 0
    %5915 = vmatpush1.bf16.xpose.msra.mxu0 %v5840
    %5916 = vmatprep.subr.bf16.mxu0 0
    %5917 = vmatpush1.bf16.xpose.msra.mxu0 0
    %5918 = vmatprep.subr.bf16.mxu0 0
    %5919 = vmatpush1.bf16.xpose.msra.mxu0 0
    %5920 = vmatprep.subr.bf16.mxu0 0
    %5921 = vmatpush1.bf16.xpose.msra.mxu0 0
    %5922 = vmatprep.subr.bf16.mxu0 0
    %5923 = vmatpush1.bf16.xpose.msra.mxu0 0
    %5924 = vmatprep.subr.bf16.mxu0 0
    %5925 = vmatpush1.bf16.xpose.msra.mxu0 0
    %5926 = vmatprep.subr.bf16.mxu0 0
    %5927 = vmatpush1.bf16.xpose.msra.mxu0 0
    %5928 = vmatprep.subr.bf16.mxu0 0
    %5929 = vmatpush1.bf16.xpose.msra.mxu0 0
    %5930 = vmatprep.subr.bf16.mxu0 0
    %5931 = vmatpush1.bf16.xpose.msra.mxu0 0
    %5932 = vmatprep.subr.bf16.mxu0 0
    %5933 = vmatpush1.bf16.xpose.msra.mxu0 0
    %5934 = vmatprep.subr.bf16.mxu0 0
    %5935 = vmatpush1.bf16.xpose.msra.mxu0 0
    %5936 = vmatprep.subr.bf16.mxu0 0
    %5937 = vmatpush1.bf16.xpose.msra.mxu0 0
    %5938 = vmatprep.subr.bf16.mxu0 0
    %5939 = vmatpush1.bf16.xpose.msra.mxu0 0
    %5940 = vmatprep.subr.bf16.mxu0 0
    %5941 = vmatpush1.bf16.xpose.msra.mxu0 0
    %5942 = vmatprep.subr.bf16.mxu0 0
    %5943 = vmatpush1.bf16.xpose.msra.mxu0 0
    %5944 = vmatprep.subr.bf16.mxu0 0
    %5945 = vmatpush1.bf16.xpose.msra.mxu0 0
    %5946 = vmatprep.mubr.bf16.mxu0 0
    %5947 = vmatmul.mubr.bf16.gmra.mrb[0].mxu0 %v5913
    %v5948 = vpop.f32.mrb[0].mxu0
    %v5949 = vadd.f32 %v224, %v5948
    %v5950 = vpop.f32.mrb[0].mxu0
    %v5951 = vpop.f32.mrb[0].mxu0
    %v5952 = vadd.f32 %v225, %v5951
    %v5953 = vpop.f32.mrb[0].mxu0
    %5954 = vdwg.mxu0
    %v5955 = vsel %vm567, %v5949, -inf
    %5956 = vmax.xlane.f32.xlu0 %v5955
    %v5957 = vpop.xlane.xlu0 %5956
    %v5958 = vsel %vm567, %v5952, -inf
    %5959 = vmax.xlane.f32.xlu0 %v5958
    %v5960 = vpop.xlane.xlu0 %5959
    %v5961 = vsub.f32 %v5949, %v5957
    %v5962 = vsub.f32 %v5952, %v5960
    %v5963 = vmul.f32 %v5961, 1.442695
    %v5964 = vpow.pop %v5963
    %v5965 = vmul.f32 %v5962, 1.442695
    %v5966 = vpow.pop %v5965
    %v5967 = vsel %vm567, %v5964, 0.0
    %5968 = vadd.xlane.f32.xlu0 %v5967
    %v5969 = vpop.xlane.xlu0 %5968
    %v5970 = vsel %vm567, %v5966, 0.0
    %5971 = vadd.xlane.f32.xlu0 %v5970
    %v5972 = vpop.xlane.xlu0 %5971
    %v5973 = vrcp.pop %v5969
    %v5974 = vrcp.pop %v5972
    %v5975 = vmul.f32 %v5964, %v5973
    %v5976 = vmul.f32 %v5966, %v5974
    %v5977 = vmul.f32 %v5815, %v598
    %v5978 = vmul.f32 %v5819, %v598
    %v5979 = vpack.c.bf16 %v5978, %v5977
    %v5980 = vpack.c.bf16 %v5976, %v5975
    %v5982 = vsel %vm567, %v5980, 0
    %5984 = vmatprep.subr.bf16.mxu0 0
    %5985 = vmatpush1.bf16.msra.mxu0 %v5979
    %5986 = vmatprep.subr.bf16.mxu0 0
    %5987 = vmatpush1.bf16.msra.mxu0 0
    %5988 = vmatprep.subr.bf16.mxu0 0
    %5989 = vmatpush1.bf16.msra.mxu0 0
    %5990 = vmatprep.subr.bf16.mxu0 0
    %5991 = vmatpush1.bf16.msra.mxu0 0
    %5992 = vmatprep.subr.bf16.mxu0 0
    %5993 = vmatpush1.bf16.msra.mxu0 0
    %5994 = vmatprep.subr.bf16.mxu0 0
    %5995 = vmatpush1.bf16.msra.mxu0 0
    %5996 = vmatprep.subr.bf16.mxu0 0
    %5997 = vmatpush1.bf16.msra.mxu0 0
    %5998 = vmatprep.subr.bf16.mxu0 0
    %5999 = vmatpush1.bf16.msra.mxu0 0
    %6000 = vmatprep.subr.bf16.mxu0 0
    %6001 = vmatpush1.bf16.msra.mxu0 0
    %6002 = vmatprep.subr.bf16.mxu0 0
    %6003 = vmatpush1.bf16.msra.mxu0 0
    %6004 = vmatprep.subr.bf16.mxu0 0
    %6005 = vmatpush1.bf16.msra.mxu0 0
    %6006 = vmatprep.subr.bf16.mxu0 0
    %6007 = vmatpush1.bf16.msra.mxu0 0
    %6008 = vmatprep.subr.bf16.mxu0 0
    %6009 = vmatpush1.bf16.msra.mxu0 0
    %6010 = vmatprep.subr.bf16.mxu0 0
    %6011 = vmatpush1.bf16.msra.mxu0 0
    %6012 = vmatprep.subr.bf16.mxu0 0
    %6013 = vmatpush1.bf16.msra.mxu0 0
    %6014 = vmatprep.subr.bf16.mxu0 0
    %6015 = vmatpush1.bf16.msra.mxu0 0
    %6016 = vmatprep.mubr.bf16.mxu0 0
    %6017 = vmatmul.mubr.bf16.gmra.mrb[0].mxu0 %v5982
    %v6018 = vpop.f32.mrb[0].mxu0
    %v6019 = vadd.f32 0.0, %v6018
    %v6020 = vpop.f32.mrb[0].mxu0
    %v6021 = vpop.f32.mrb[0].mxu0
    %v6022 = vadd.f32 0.0, %v6021
    %v6023 = vpop.f32.mrb[0].mxu0
    %6024 = vdwg.mxu0
    %v6026 = vsel %vm567, %v5910, 0
    %6028 = vmatprep.subr.bf16.mxu0 0
    %6029 = vmatpush1.bf16.msra.mxu0 %v5909
    %6030 = vmatprep.subr.bf16.mxu0 0
    %6031 = vmatpush1.bf16.msra.mxu0 0
    %6032 = vmatprep.subr.bf16.mxu0 0
    %6033 = vmatpush1.bf16.msra.mxu0 0
    %6034 = vmatprep.subr.bf16.mxu0 0
    %6035 = vmatpush1.bf16.msra.mxu0 0
    %6036 = vmatprep.subr.bf16.mxu0 0
    %6037 = vmatpush1.bf16.msra.mxu0 0
    %6038 = vmatprep.subr.bf16.mxu0 0
    %6039 = vmatpush1.bf16.msra.mxu0 0
    %6040 = vmatprep.subr.bf16.mxu0 0
    %6041 = vmatpush1.bf16.msra.mxu0 0
    %6042 = vmatprep.subr.bf16.mxu0 0
    %6043 = vmatpush1.bf16.msra.mxu0 0
    %6044 = vmatprep.subr.bf16.mxu0 0
    %6045 = vmatpush1.bf16.msra.mxu0 0
    %6046 = vmatprep.subr.bf16.mxu0 0
    %6047 = vmatpush1.bf16.msra.mxu0 0
    %6048 = vmatprep.subr.bf16.mxu0 0
    %6049 = vmatpush1.bf16.msra.mxu0 0
    %6050 = vmatprep.subr.bf16.mxu0 0
    %6051 = vmatpush1.bf16.msra.mxu0 0
    %6052 = vmatprep.subr.bf16.mxu0 0
    %6053 = vmatpush1.bf16.msra.mxu0 0
    %6054 = vmatprep.subr.bf16.mxu0 0
    %6055 = vmatpush1.bf16.msra.mxu0 0
    %6056 = vmatprep.subr.bf16.mxu0 0
    %6057 = vmatpush1.bf16.msra.mxu0 0
    %6058 = vmatprep.subr.bf16.mxu0 0
    %6059 = vmatpush1.bf16.msra.mxu0 0
    %6060 = vmatprep.mubr.bf16.mxu0 0
    %6061 = vmatmul.mubr.bf16.gmra.mrb[0].mxu0 %v6026
    %v6062 = vpop.f32.mrb[0].mxu0
    %v6063 = vadd.f32 %v6019, %v6062
    %v6064 = vpop.f32.mrb[0].mxu0
    %v6065 = vpop.f32.mrb[0].mxu0
    %v6066 = vadd.f32 %v6022, %v6065
    %v6067 = vpop.f32.mrb[0].mxu0
    %6068 = vdwg.mxu0
    %v6069 = vmul.f32 %v5668, %v762
    %v6070 = vmul.f32 %v5669, %v762
    %v6071 = vpack.c.bf16 %v6070, %v6069
    %6072 = vmatprep.subr.bf16.mxu0 0
    %6073 = vmatpush1.bf16.xpose.msra.mxu0 %v5840
    %6074 = vmatprep.subr.bf16.mxu0 0
    %6075 = vmatpush1.bf16.xpose.msra.mxu0 0
    %6076 = vmatprep.subr.bf16.mxu0 0
    %6077 = vmatpush1.bf16.xpose.msra.mxu0 0
    %6078 = vmatprep.subr.bf16.mxu0 0
    %6079 = vmatpush1.bf16.xpose.msra.mxu0 0
    %6080 = vmatprep.subr.bf16.mxu0 0
    %6081 = vmatpush1.bf16.xpose.msra.mxu0 0
    %6082 = vmatprep.subr.bf16.mxu0 0
    %6083 = vmatpush1.bf16.xpose.msra.mxu0 0
    %6084 = vmatprep.subr.bf16.mxu0 0
    %6085 = vmatpush1.bf16.xpose.msra.mxu0 0
    %6086 = vmatprep.subr.bf16.mxu0 0
    %6087 = vmatpush1.bf16.xpose.msra.mxu0 0
    %6088 = vmatprep.subr.bf16.mxu0 0
    %6089 = vmatpush1.bf16.xpose.msra.mxu0 0
    %6090 = vmatprep.subr.bf16.mxu0 0
    %6091 = vmatpush1.bf16.xpose.msra.mxu0 0
    %6092 = vmatprep.subr.bf16.mxu0 0
    %6093 = vmatpush1.bf16.xpose.msra.mxu0 0
    %6094 = vmatprep.subr.bf16.mxu0 0
    %6095 = vmatpush1.bf16.xpose.msra.mxu0 0
    %6096 = vmatprep.subr.bf16.mxu0 0
    %6097 = vmatpush1.bf16.xpose.msra.mxu0 0
    %6098 = vmatprep.subr.bf16.mxu0 0
    %6099 = vmatpush1.bf16.xpose.msra.mxu0 0
    %6100 = vmatprep.subr.bf16.mxu0 0
    %6101 = vmatpush1.bf16.xpose.msra.mxu0 0
    %6102 = vmatprep.subr.bf16.mxu0 0
    %6103 = vmatpush1.bf16.xpose.msra.mxu0 0
    %6104 = vmatprep.mubr.bf16.mxu0 0
    %6105 = vmatmul.mubr.bf16.gmra.mrb[0].mxu0 %v6071
    %v6106 = vpop.f32.mrb[0].mxu0
    %v6107 = vadd.f32 %v224, %v6106
    %v6108 = vpop.f32.mrb[0].mxu0
    %v6109 = vpop.f32.mrb[0].mxu0
    %v6110 = vadd.f32 %v225, %v6109
    %v6111 = vpop.f32.mrb[0].mxu0
    %6112 = vdwg.mxu0
    %v6113 = vsel %vm567, %v6107, -inf
    %6114 = vmax.xlane.f32.xlu0 %v6113
    %v6115 = vpop.xlane.xlu0 %6114
    %v6116 = vsel %vm567, %v6110, -inf
    %6117 = vmax.xlane.f32.xlu0 %v6116
    %v6118 = vpop.xlane.xlu0 %6117
    %v6119 = vsub.f32 %v6107, %v6115
    %v6120 = vsub.f32 %v6110, %v6118
    %v6121 = vmul.f32 %v6119, 1.442695
    %v6122 = vpow.pop %v6121
    %v6123 = vmul.f32 %v6120, 1.442695
    %v6124 = vpow.pop %v6123
    %v6125 = vsel %vm567, %v6122, 0.0
    %6126 = vadd.xlane.f32.xlu0 %v6125
    %v6127 = vpop.xlane.xlu0 %6126
    %v6128 = vsel %vm567, %v6124, 0.0
    %6129 = vadd.xlane.f32.xlu0 %v6128
    %v6130 = vpop.xlane.xlu0 %6129
    %v6131 = vrcp.pop %v6127
    %v6132 = vrcp.pop %v6130
    %v6133 = vmul.f32 %v6122, %v6131
    %v6134 = vmul.f32 %v6124, %v6132
    %v6135 = vmul.f32 %v5815, %v762
    %v6136 = vmul.f32 %v5819, %v762
    %v6137 = vpack.c.bf16 %v6136, %v6135
    %v6138 = vpack.c.bf16 %v6134, %v6133
    %v6140 = vsel %vm567, %v6138, 0
    %6142 = vmatprep.subr.bf16.mxu0 0
    %6143 = vmatpush1.bf16.msra.mxu0 %v6137
    %6144 = vmatprep.subr.bf16.mxu0 0
    %6145 = vmatpush1.bf16.msra.mxu0 0
    %6146 = vmatprep.subr.bf16.mxu0 0
    %6147 = vmatpush1.bf16.msra.mxu0 0
    %6148 = vmatprep.subr.bf16.mxu0 0
    %6149 = vmatpush1.bf16.msra.mxu0 0
    %6150 = vmatprep.subr.bf16.mxu0 0
    %6151 = vmatpush1.bf16.msra.mxu0 0
    %6152 = vmatprep.subr.bf16.mxu0 0
    %6153 = vmatpush1.bf16.msra.mxu0 0
    %6154 = vmatprep.subr.bf16.mxu0 0
    %6155 = vmatpush1.bf16.msra.mxu0 0
    %6156 = vmatprep.subr.bf16.mxu0 0
    %6157 = vmatpush1.bf16.msra.mxu0 0
    %6158 = vmatprep.subr.bf16.mxu0 0
    %6159 = vmatpush1.bf16.msra.mxu0 0
    %6160 = vmatprep.subr.bf16.mxu0 0
    %6161 = vmatpush1.bf16.msra.mxu0 0
    %6162 = vmatprep.subr.bf16.mxu0 0
    %6163 = vmatpush1.bf16.msra.mxu0 0
    %6164 = vmatprep.subr.bf16.mxu0 0
    %6165 = vmatpush1.bf16.msra.mxu0 0
    %6166 = vmatprep.subr.bf16.mxu0 0
    %6167 = vmatpush1.bf16.msra.mxu0 0
    %6168 = vmatprep.subr.bf16.mxu0 0
    %6169 = vmatpush1.bf16.msra.mxu0 0
    %6170 = vmatprep.subr.bf16.mxu0 0
    %6171 = vmatpush1.bf16.msra.mxu0 0
    %6172 = vmatprep.subr.bf16.mxu0 0
    %6173 = vmatpush1.bf16.msra.mxu0 0
    %6174 = vmatprep.mubr.bf16.mxu0 0
    %6175 = vmatmul.mubr.bf16.gmra.mrb[0].mxu0 %v6140
    %v6176 = vpop.f32.mrb[0].mxu0
    %v6177 = vadd.f32 0.0, %v6176
    %v6178 = vpop.f32.mrb[0].mxu0
    %v6179 = vpop.f32.mrb[0].mxu0
    %v6180 = vadd.f32 0.0, %v6179
    %v6181 = vpop.f32.mrb[0].mxu0
    %6182 = vdwg.mxu0
    %v6183 = vadd.f32 %v6063, %v6177
    %v6184 = vadd.f32 %v6066, %v6180
    %v6185 = vmul.f32 %v5668, %v884
    %v6186 = vmul.f32 %v5669, %v884
    %v6187 = vpack.c.bf16 %v6186, %v6185
    %6188 = vmatprep.subr.bf16.mxu0 0
    %6189 = vmatpush1.bf16.xpose.msra.mxu0 %v5840
    %6190 = vmatprep.subr.bf16.mxu0 0
    %6191 = vmatpush1.bf16.xpose.msra.mxu0 0
    %6192 = vmatprep.subr.bf16.mxu0 0
    %6193 = vmatpush1.bf16.xpose.msra.mxu0 0
    %6194 = vmatprep.subr.bf16.mxu0 0
    %6195 = vmatpush1.bf16.xpose.msra.mxu0 0
    %6196 = vmatprep.subr.bf16.mxu0 0
    %6197 = vmatpush1.bf16.xpose.msra.mxu0 0
    %6198 = vmatprep.subr.bf16.mxu0 0
    %6199 = vmatpush1.bf16.xpose.msra.mxu0 0
    %6200 = vmatprep.subr.bf16.mxu0 0
    %6201 = vmatpush1.bf16.xpose.msra.mxu0 0
    %6202 = vmatprep.subr.bf16.mxu0 0
    %6203 = vmatpush1.bf16.xpose.msra.mxu0 0
    %6204 = vmatprep.subr.bf16.mxu0 0
    %6205 = vmatpush1.bf16.xpose.msra.mxu0 0
    %6206 = vmatprep.subr.bf16.mxu0 0
    %6207 = vmatpush1.bf16.xpose.msra.mxu0 0
    %6208 = vmatprep.subr.bf16.mxu0 0
    %6209 = vmatpush1.bf16.xpose.msra.mxu0 0
    %6210 = vmatprep.subr.bf16.mxu0 0
    %6211 = vmatpush1.bf16.xpose.msra.mxu0 0
    %6212 = vmatprep.subr.bf16.mxu0 0
    %6213 = vmatpush1.bf16.xpose.msra.mxu0 0
    %6214 = vmatprep.subr.bf16.mxu0 0
    %6215 = vmatpush1.bf16.xpose.msra.mxu0 0
    %6216 = vmatprep.subr.bf16.mxu0 0
    %6217 = vmatpush1.bf16.xpose.msra.mxu0 0
    %6218 = vmatprep.subr.bf16.mxu0 0
    %6219 = vmatpush1.bf16.xpose.msra.mxu0 0
    %6220 = vmatprep.mubr.bf16.mxu0 0
    %6221 = vmatmul.mubr.bf16.gmra.mrb[0].mxu0 %v6187
    %v6222 = vpop.f32.mrb[0].mxu0
    %v6223 = vadd.f32 %v224, %v6222
    %v6224 = vpop.f32.mrb[0].mxu0
    %v6225 = vpop.f32.mrb[0].mxu0
    %v6226 = vadd.f32 %v225, %v6225
    %v6227 = vpop.f32.mrb[0].mxu0
    %6228 = vdwg.mxu0
    %v6229 = vsel %vm567, %v6223, -inf
    %6230 = vmax.xlane.f32.xlu0 %v6229
    %v6231 = vpop.xlane.xlu0 %6230
    %v6232 = vsel %vm567, %v6226, -inf
    %6233 = vmax.xlane.f32.xlu0 %v6232
    %v6234 = vpop.xlane.xlu0 %6233
    %v6235 = vsub.f32 %v6223, %v6231
    %v6236 = vsub.f32 %v6226, %v6234
    %v6237 = vmul.f32 %v6235, 1.442695
    %v6238 = vpow.pop %v6237
    %v6239 = vmul.f32 %v6236, 1.442695
    %v6240 = vpow.pop %v6239
    %v6241 = vsel %vm567, %v6238, 0.0
    %6242 = vadd.xlane.f32.xlu0 %v6241
    %v6243 = vpop.xlane.xlu0 %6242
    %v6244 = vsel %vm567, %v6240, 0.0
    %6245 = vadd.xlane.f32.xlu0 %v6244
    %v6246 = vpop.xlane.xlu0 %6245
    %v6247 = vrcp.pop %v6243
    %v6248 = vrcp.pop %v6246
    %v6249 = vmul.f32 %v6238, %v6247
    %v6250 = vmul.f32 %v6240, %v6248
    %v6251 = vmul.f32 %v5815, %v884
    %v6252 = vmul.f32 %v5819, %v884
    %v6253 = vpack.c.bf16 %v6252, %v6251
    %v6254 = vpack.c.bf16 %v6250, %v6249
    %v6256 = vsel %vm567, %v6254, 0
    %6258 = vmatprep.subr.bf16.mxu0 0
    %6259 = vmatpush1.bf16.msra.mxu0 %v6253
    %6260 = vmatprep.subr.bf16.mxu0 0
    %6261 = vmatpush1.bf16.msra.mxu0 0
    %6262 = vmatprep.subr.bf16.mxu0 0
    %6263 = vmatpush1.bf16.msra.mxu0 0
    %6264 = vmatprep.subr.bf16.mxu0 0
    %6265 = vmatpush1.bf16.msra.mxu0 0
    %6266 = vmatprep.subr.bf16.mxu0 0
    %6267 = vmatpush1.bf16.msra.mxu0 0
    %6268 = vmatprep.subr.bf16.mxu0 0
    %6269 = vmatpush1.bf16.msra.mxu0 0
    %6270 = vmatprep.subr.bf16.mxu0 0
    %6271 = vmatpush1.bf16.msra.mxu0 0
    %6272 = vmatprep.subr.bf16.mxu0 0
    %6273 = vmatpush1.bf16.msra.mxu0 0
    %6274 = vmatprep.subr.bf16.mxu0 0
    %6275 = vmatpush1.bf16.msra.mxu0 0
    %6276 = vmatprep.subr.bf16.mxu0 0
    %6277 = vmatpush1.bf16.msra.mxu0 0
    %6278 = vmatprep.subr.bf16.mxu0 0
    %6279 = vmatpush1.bf16.msra.mxu0 0
    %6280 = vmatprep.subr.bf16.mxu0 0
    %6281 = vmatpush1.bf16.msra.mxu0 0
    %6282 = vmatprep.subr.bf16.mxu0 0
    %6283 = vmatpush1.bf16.msra.mxu0 0
    %6284 = vmatprep.subr.bf16.mxu0 0
    %6285 = vmatpush1.bf16.msra.mxu0 0
    %6286 = vmatprep.subr.bf16.mxu0 0
    %6287 = vmatpush1.bf16.msra.mxu0 0
    %6288 = vmatprep.subr.bf16.mxu0 0
    %6289 = vmatpush1.bf16.msra.mxu0 0
    %6290 = vmatprep.mubr.bf16.mxu0 0
    %6291 = vmatmul.mubr.bf16.gmra.mrb[0].mxu0 %v6256
    %v6292 = vpop.f32.mrb[0].mxu0
    %v6293 = vadd.f32 0.0, %v6292
    %v6294 = vpop.f32.mrb[0].mxu0
    %v6295 = vpop.f32.mrb[0].mxu0
    %v6296 = vadd.f32 0.0, %v6295
    %v6297 = vpop.f32.mrb[0].mxu0
    %6298 = vdwg.mxu0
    %v6299 = vadd.f32 %v6183, %v6293
    %v6300 = vadd.f32 %v6184, %v6296
    %v6301 = vpack.c.bf16 %v6300, %v6299
    %v6303 = vlaneseq
    %v6304 = vshrl.u32 %v6303, 7
    %v6305 = vsub.s32 0, %v6304
    %v6306 = vrot.slane %v5839, %v6305
    %v6324 = vunpack.c.l.b16 %v5822
    %v6325 = vunpack.c.l.b16 %v5823
    %v6326 = vunpack.c.l.b16 %v5824
    %v6327 = vunpack.c.l.b16 %v5825
    %v6328 = vunpack.c.l.b16 %v5826
    %v6329 = vunpack.c.l.b16 %v5827
    %v6330 = vunpack.c.l.b16 %v5828
    %v6331 = vunpack.c.l.b16 %v5829
    %v6332 = vunpack.c.l.b16 %v5830
    %v6333 = vunpack.c.l.b16 %v5831
    %v6334 = vunpack.c.l.b16 %v5832
    %v6335 = vunpack.c.l.b16 %v5833
    %v6336 = vunpack.c.l.b16 %v5834
    %v6337 = vunpack.c.l.b16 %v5835
    %v6338 = vunpack.c.l.b16 %v5836
    %v6339 = vunpack.c.l.b16 %v5837
    %v6340 = vpack.c.b16 %v6325, %v6324
    %v6341 = vpack.c.b16 %v6327, %v6326
    %v6342 = vpack.c.b16 %v6329, %v6328
    %v6343 = vpack.c.b16 %v6331, %v6330
    %v6344 = vpack.c.b16 %v6333, %v6332
    %v6345 = vpack.c.b16 %v6335, %v6334
    %v6346 = vpack.c.b16 %v6337, %v6336
    %v6347 = vpack.c.b16 %v6339, %v6338
    %6356 = vmatprep.subr.bf16.mxu0 0
    %6357 = vmatpush1.bf16.msra.mxu0 %v6340
    %6358 = vmatprep.subr.bf16.mxu0 0
    %6359 = vmatpush1.bf16.msra.mxu0 %v6341
    %6360 = vmatprep.subr.bf16.mxu0 0
    %6361 = vmatpush1.bf16.msra.mxu0 %v6342
    %6362 = vmatprep.subr.bf16.mxu0 0
    %6363 = vmatpush1.bf16.msra.mxu0 %v6343
    %6364 = vmatprep.subr.bf16.mxu0 0
    %6365 = vmatpush1.bf16.msra.mxu0 %v6344
    %6366 = vmatprep.subr.bf16.mxu0 0
    %6367 = vmatpush1.bf16.msra.mxu0 %v6345
    %6368 = vmatprep.subr.bf16.mxu0 0
    %6369 = vmatpush1.bf16.msra.mxu0 %v6346
    %6370 = vmatprep.subr.bf16.mxu0 0
    %6371 = vmatpush1.bf16.msra.mxu0 %v6347
    %6372 = vmatprep.subr.bf16.mxu0 0
    %6373 = vmatpush1.bf16.msra.mxu0 0
    %6374 = vmatprep.subr.bf16.mxu0 0
    %6375 = vmatpush1.bf16.msra.mxu0 0
    %6376 = vmatprep.subr.bf16.mxu0 0
    %6377 = vmatpush1.bf16.msra.mxu0 0
    %6378 = vmatprep.subr.bf16.mxu0 0
    %6379 = vmatpush1.bf16.msra.mxu0 0
    %6380 = vmatprep.subr.bf16.mxu0 0
    %6381 = vmatpush1.bf16.msra.mxu0 0
    %6382 = vmatprep.subr.bf16.mxu0 0
    %6383 = vmatpush1.bf16.msra.mxu0 0
    %6384 = vmatprep.subr.bf16.mxu0 0
    %6385 = vmatpush1.bf16.msra.mxu0 0
    %6386 = vmatprep.subr.bf16.mxu0 0
    %6387 = vmatpush1.bf16.msra.mxu0 0
    %6388 = vmatprep.mubr.bf16.mxu0 0
    %6389 = vmatmul.mubr.bf16.gmra.mrb[0].mxu0 %v6301
    %v6390 = vpop.f32.mrb[0].mxu0
    %v6391 = vadd.f32 %v6306, %v6390
    %v6392 = vpop.f32.mrb[0].mxu0
    %v6393 = vpop.f32.mrb[0].mxu0
    %v6394 = vadd.f32 %v6306, %v6393
    %v6395 = vpop.f32.mrb[0].mxu0
    %6396 = vdwg.mxu0
    %v6397 = vadd.f32 %v5551, %v6391
    %v6398 = vadd.f32 %v5552, %v6394
    %6399 = vadd.xlane.f32.xlu0 %v6397
    %v6400 = vpop.xlane.xlu0 %6399
    %6401 = vadd.xlane.f32.xlu0 %v6398
    %v6402 = vpop.xlane.xlu0 %6401
    %v6403 = vmul.f32 %v6400, %v1104
    %v6404 = vmul.f32 %v6402, %v1104
    %v6405 = vsub.f32 %v6397, %v6403
    %v6406 = vsub.f32 %v6398, %v6404
    %v6407 = vmul.f32 %v6405, %v6405
    %v6408 = vmul.f32 %v6406, %v6406
    %6409 = vadd.xlane.f32.xlu0 %v6407
    %v6410 = vpop.xlane.xlu0 %6409
    %6411 = vadd.xlane.f32.xlu0 %v6408
    %v6412 = vpop.xlane.xlu0 %6411
    %v6413 = vmul.f32 %v6410, %v1104
    %v6414 = vmul.f32 %v6412, %v1104
    %v6415 = vadd.f32 %v6413, 1e-05
    %v6416 = vadd.f32 %v6414, 1e-05
    %v6417 = vrsqrt.pop %v6415
    %v6418 = vrsqrt.pop %v6416
    %v6419 = vmul.f32 %v6405, %v6417
    %v6420 = vmul.f32 %v6406, %v6418
    %v6422 = vlaneseq
    %v6423 = vshrl.u32 %v6422, 7
    %v6424 = vsub.s32 0, %v6423
    %v6425 = vrot.slane %v4665, %v6424
    %v6427 = vmul.f32 %v6419, %v6425
    %v6428 = vmul.f32 %v6420, %v6425
    %v6430 = vlaneseq
    %v6431 = vshrl.u32 %v6430, 7
    %v6432 = vsub.s32 0, %v6431
    %v6433 = vrot.slane %v4669, %v6432
    %v6435 = vadd.f32 %v6427, %v6433
    %v6436 = vadd.f32 %v6428, %v6433
    %v6437 = vpack.c.bf16 %v6436, %v6435
    %s6438 = scalar_lea.vmem [#allocation10], 1024
    %v6439 = vld [vmem:[%s6438] sm:$0xff]
    %v6440 = vld [vmem:[%s6438 + $0x8] sm:$0xff]
    %v6441 = vld [vmem:[%s6438 + $0x10] sm:$0xff]
    %v6442 = vld [vmem:[%s6438 + $0x18] sm:$0xff]
    %v6443 = vld [vmem:[%s6438 + $0x20] sm:$0xff]
    %v6444 = vld [vmem:[%s6438 + $0x28] sm:$0xff]
    %v6445 = vld [vmem:[%s6438 + $0x30] sm:$0xff]
    %v6446 = vld [vmem:[%s6438 + $0x38] sm:$0xff]
    %v6447 = vld [vmem:[%s6438 + $0x40] sm:$0xff]
    %v6448 = vld [vmem:[%s6438 + $0x48] sm:$0xff]
    %v6449 = vld [vmem:[%s6438 + $0x50] sm:$0xff]
    %v6450 = vld [vmem:[%s6438 + $0x58] sm:$0xff]
    %v6451 = vld [vmem:[%s6438 + $0x60] sm:$0xff]
    %v6452 = vld [vmem:[%s6438 + $0x68] sm:$0xff]
    %v6453 = vld [vmem:[%s6438 + $0x70] sm:$0xff]
    %v6454 = vld [vmem:[%s6438 + $0x78] sm:$0xff]
    %v6455 = vld [vmem:[%s6438 + $0x80] sm:$0xff]
    %v6456 = vld [vmem:[%s6438 + $0x88] sm:$0xff]
    %v6457 = vld [vmem:[%s6438 + $0x90] sm:$0xff]
    %v6458 = vld [vmem:[%s6438 + $0x98] sm:$0xff]
    %v6459 = vld [vmem:[%s6438 + $0xa0] sm:$0xff]
    %v6460 = vld [vmem:[%s6438 + $0xa8] sm:$0xff]
    %v6461 = vld [vmem:[%s6438 + $0xb0] sm:$0xff]
    %v6462 = vld [vmem:[%s6438 + $0xb8] sm:$0xff]
    %v6463 = vld [vmem:[%s6438 + $0xc0] sm:$0xff]
    %v6464 = vld [vmem:[%s6438 + $0xc8] sm:$0xff]
    %v6465 = vld [vmem:[%s6438 + $0xd0] sm:$0xff]
    %v6466 = vld [vmem:[%s6438 + $0xd8] sm:$0xff]
    %v6467 = vld [vmem:[%s6438 + $0xe0] sm:$0xff]
    %v6468 = vld [vmem:[%s6438 + $0xe8] sm:$0xff]
    %v6469 = vld [vmem:[%s6438 + $0xf0] sm:$0xff]
    %v6470 = vld [vmem:[%s6438 + $0xf8] sm:$0xff]
    %v6471 = vld [vmem:[%s6438 + $0x100] sm:$0xff]
    %v6472 = vld [vmem:[%s6438 + $0x108] sm:$0xff]
    %v6473 = vld [vmem:[%s6438 + $0x110] sm:$0xff]
    %v6474 = vld [vmem:[%s6438 + $0x118] sm:$0xff]
    %v6475 = vld [vmem:[%s6438 + $0x120] sm:$0xff]
    %v6476 = vld [vmem:[%s6438 + $0x128] sm:$0xff]
    %v6477 = vld [vmem:[%s6438 + $0x130] sm:$0xff]
    %v6478 = vld [vmem:[%s6438 + $0x138] sm:$0xff]
    %v6479 = vld [vmem:[%s6438 + $0x140] sm:$0xff]
    %v6480 = vld [vmem:[%s6438 + $0x148] sm:$0xff]
    %v6481 = vld [vmem:[%s6438 + $0x150] sm:$0xff]
    %v6482 = vld [vmem:[%s6438 + $0x158] sm:$0xff]
    %v6483 = vld [vmem:[%s6438 + $0x160] sm:$0xff]
    %v6484 = vld [vmem:[%s6438 + $0x168] sm:$0xff]
    %v6485 = vld [vmem:[%s6438 + $0x170] sm:$0xff]
    %v6486 = vld [vmem:[%s6438 + $0x178] sm:$0xff]
    %v6487 = vld [vmem:[%s6438 + $0x180] sm:$0xff]
    %v6488 = vld [vmem:[%s6438 + $0x188] sm:$0xff]
    %v6489 = vld [vmem:[%s6438 + $0x190] sm:$0xff]
    %v6490 = vld [vmem:[%s6438 + $0x198] sm:$0xff]
    %v6491 = vld [vmem:[%s6438 + $0x1a0] sm:$0xff]
    %v6492 = vld [vmem:[%s6438 + $0x1a8] sm:$0xff]
    %v6493 = vld [vmem:[%s6438 + $0x1b0] sm:$0xff]
    %v6494 = vld [vmem:[%s6438 + $0x1b8] sm:$0xff]
    %v6495 = vld [vmem:[%s6438 + $0x1c0] sm:$0xff]
    %v6496 = vld [vmem:[%s6438 + $0x1c8] sm:$0xff]
    %v6497 = vld [vmem:[%s6438 + $0x1d0] sm:$0xff]
    %v6498 = vld [vmem:[%s6438 + $0x1d8] sm:$0xff]
    %v6499 = vld [vmem:[%s6438 + $0x1e0] sm:$0xff]
    %v6500 = vld [vmem:[%s6438 + $0x1e8] sm:$0xff]
    %v6501 = vld [vmem:[%s6438 + $0x1f0] sm:$0xff]
    %v6502 = vld [vmem:[%s6438 + $0x1f8] sm:$0xff]
    %v6503 = vld [vmem:[%s6438 + $0x200] sm:$0xff]
    %v6504 = vld [vmem:[%s6438 + $0x208] sm:$0xff]
    %v6505 = vld [vmem:[%s6438 + $0x210] sm:$0xff]
    %v6506 = vld [vmem:[%s6438 + $0x218] sm:$0xff]
    %v6507 = vld [vmem:[%s6438 + $0x220] sm:$0xff]
    %v6508 = vld [vmem:[%s6438 + $0x228] sm:$0xff]
    %v6509 = vld [vmem:[%s6438 + $0x230] sm:$0xff]
    %v6510 = vld [vmem:[%s6438 + $0x238] sm:$0xff]
    %v6511 = vld [vmem:[%s6438 + $0x240] sm:$0xff]
    %v6512 = vld [vmem:[%s6438 + $0x248] sm:$0xff]
    %v6513 = vld [vmem:[%s6438 + $0x250] sm:$0xff]
    %v6514 = vld [vmem:[%s6438 + $0x258] sm:$0xff]
    %v6515 = vld [vmem:[%s6438 + $0x260] sm:$0xff]
    %v6516 = vld [vmem:[%s6438 + $0x268] sm:$0xff]
    %v6517 = vld [vmem:[%s6438 + $0x270] sm:$0xff]
    %v6518 = vld [vmem:[%s6438 + $0x278] sm:$0xff]
    %v6519 = vld [vmem:[%s6438 + $0x280] sm:$0xff]
    %v6520 = vld [vmem:[%s6438 + $0x288] sm:$0xff]
    %v6521 = vld [vmem:[%s6438 + $0x290] sm:$0xff]
    %v6522 = vld [vmem:[%s6438 + $0x298] sm:$0xff]
    %v6523 = vld [vmem:[%s6438 + $0x2a0] sm:$0xff]
    %v6524 = vld [vmem:[%s6438 + $0x2a8] sm:$0xff]
    %v6525 = vld [vmem:[%s6438 + $0x2b0] sm:$0xff]
    %v6526 = vld [vmem:[%s6438 + $0x2b8] sm:$0xff]
    %v6527 = vld [vmem:[%s6438 + $0x2c0] sm:$0xff]
    %v6528 = vld [vmem:[%s6438 + $0x2c8] sm:$0xff]
    %v6529 = vld [vmem:[%s6438 + $0x2d0] sm:$0xff]
    %v6530 = vld [vmem:[%s6438 + $0x2d8] sm:$0xff]
    %v6531 = vld [vmem:[%s6438 + $0x2e0] sm:$0xff]
    %v6532 = vld [vmem:[%s6438 + $0x2e8] sm:$0xff]
    %v6533 = vld [vmem:[%s6438 + $0x2f0] sm:$0xff]
    %v6534 = vld [vmem:[%s6438 + $0x2f8] sm:$0xff]
    %v6535 = vld [vmem:[%s6438 + $0x300] sm:$0xff]
    %v6536 = vld [vmem:[%s6438 + $0x308] sm:$0xff]
    %v6537 = vld [vmem:[%s6438 + $0x310] sm:$0xff]
    %v6538 = vld [vmem:[%s6438 + $0x318] sm:$0xff]
    %v6539 = vld [vmem:[%s6438 + $0x320] sm:$0xff]
    %v6540 = vld [vmem:[%s6438 + $0x328] sm:$0xff]
    %v6541 = vld [vmem:[%s6438 + $0x330] sm:$0xff]
    %v6542 = vld [vmem:[%s6438 + $0x338] sm:$0xff]
    %v6543 = vld [vmem:[%s6438 + $0x340] sm:$0xff]
    %v6544 = vld [vmem:[%s6438 + $0x348] sm:$0xff]
    %v6545 = vld [vmem:[%s6438 + $0x350] sm:$0xff]
    %v6546 = vld [vmem:[%s6438 + $0x358] sm:$0xff]
    %v6547 = vld [vmem:[%s6438 + $0x360] sm:$0xff]
    %v6548 = vld [vmem:[%s6438 + $0x368] sm:$0xff]
    %v6549 = vld [vmem:[%s6438 + $0x370] sm:$0xff]
    %v6550 = vld [vmem:[%s6438 + $0x378] sm:$0xff]
    %v6551 = vld [vmem:[%s6438 + $0x380] sm:$0xff]
    %v6552 = vld [vmem:[%s6438 + $0x388] sm:$0xff]
    %v6553 = vld [vmem:[%s6438 + $0x390] sm:$0xff]
    %v6554 = vld [vmem:[%s6438 + $0x398] sm:$0xff]
    %v6555 = vld [vmem:[%s6438 + $0x3a0] sm:$0xff]
    %v6556 = vld [vmem:[%s6438 + $0x3a8] sm:$0xff]
    %v6557 = vld [vmem:[%s6438 + $0x3b0] sm:$0xff]
    %v6558 = vld [vmem:[%s6438 + $0x3b8] sm:$0xff]
    %v6559 = vld [vmem:[%s6438 + $0x3c0] sm:$0xff]
    %v6560 = vld [vmem:[%s6438 + $0x3c8] sm:$0xff]
    %v6561 = vld [vmem:[%s6438 + $0x3d0] sm:$0xff]
    %v6562 = vld [vmem:[%s6438 + $0x3d8] sm:$0xff]
    %v6563 = vld [vmem:[%s6438 + $0x3e0] sm:$0xff]
    %v6564 = vld [vmem:[%s6438 + $0x3e8] sm:$0xff]
    %v6565 = vld [vmem:[%s6438 + $0x3f0] sm:$0xff]
    %v6566 = vld [vmem:[%s6438 + $0x3f8] sm:$0xff]
    %s6567 = scalar_lea.vmem %s13, 16
    %v6568 = vld [vmem:[%s6567] sm:$0xff]
    %v6569 = vld [vmem:[%s6567 + $0x8] sm:$0xff]
    %v6572 = vlaneseq
    %v6573 = vshrl.u32 %v6572, 7
    %v6574 = vsub.s32 0, %v6573
    %v6575 = vrot.slane %v6568, %v6574
    %v6576 = vlaneseq
    %v6577 = vshrl.u32 %v6576, 7
    %v6578 = vsub.s32 1, %v6577
    %v6579 = vrot.slane %v6568, %v6578
    %v6580 = vlaneseq
    %v6581 = vshrl.u32 %v6580, 7
    %v6582 = vsub.s32 2, %v6581
    %v6583 = vrot.slane %v6568, %v6582
    %v6584 = vlaneseq
    %v6585 = vshrl.u32 %v6584, 7
    %v6586 = vsub.s32 3, %v6585
    %v6587 = vrot.slane %v6568, %v6586
    %v6588 = vlaneseq
    %v6589 = vshrl.u32 %v6588, 7
    %v6590 = vsub.s32 4, %v6589
    %v6591 = vrot.slane %v6568, %v6590
    %v6592 = vlaneseq
    %v6593 = vshrl.u32 %v6592, 7
    %v6594 = vsub.s32 5, %v6593
    %v6595 = vrot.slane %v6568, %v6594
    %v6596 = vlaneseq
    %v6597 = vshrl.u32 %v6596, 7
    %v6598 = vsub.s32 6, %v6597
    %v6599 = vrot.slane %v6568, %v6598
    %v6600 = vlaneseq
    %v6601 = vshrl.u32 %v6600, 7
    %v6602 = vsub.s32 7, %v6601
    %v6603 = vrot.slane %v6568, %v6602
    %v6604 = vlaneseq
    %v6605 = vshrl.u32 %v6604, 7
    %v6606 = vsub.s32 0, %v6605
    %v6607 = vrot.slane %v6569, %v6606
    %v6608 = vlaneseq
    %v6609 = vshrl.u32 %v6608, 7
    %v6610 = vsub.s32 1, %v6609
    %v6611 = vrot.slane %v6569, %v6610
    %v6612 = vlaneseq
    %v6613 = vshrl.u32 %v6612, 7
    %v6614 = vsub.s32 2, %v6613
    %v6615 = vrot.slane %v6569, %v6614
    %v6616 = vlaneseq
    %v6617 = vshrl.u32 %v6616, 7
    %v6618 = vsub.s32 3, %v6617
    %v6619 = vrot.slane %v6569, %v6618
    %v6620 = vlaneseq
    %v6621 = vshrl.u32 %v6620, 7
    %v6622 = vsub.s32 4, %v6621
    %v6623 = vrot.slane %v6569, %v6622
    %v6624 = vlaneseq
    %v6625 = vshrl.u32 %v6624, 7
    %v6626 = vsub.s32 5, %v6625
    %v6627 = vrot.slane %v6569, %v6626
    %v6628 = vlaneseq
    %v6629 = vshrl.u32 %v6628, 7
    %v6630 = vsub.s32 6, %v6629
    %v6631 = vrot.slane %v6569, %v6630
    %v6632 = vlaneseq
    %v6633 = vshrl.u32 %v6632, 7
    %v6634 = vsub.s32 7, %v6633
    %v6635 = vrot.slane %v6569, %v6634
    %v6780 = vunpack.c.l.b16 %v6439
    %v6781 = vunpack.c.h.b16 %v6439
    %v6782 = vunpack.c.l.b16 %v6440
    %v6783 = vunpack.c.h.b16 %v6440
    %v6784 = vunpack.c.l.b16 %v6441
    %v6785 = vunpack.c.h.b16 %v6441
    %v6786 = vunpack.c.l.b16 %v6442
    %v6787 = vunpack.c.h.b16 %v6442
    %v6788 = vunpack.c.l.b16 %v6443
    %v6789 = vunpack.c.h.b16 %v6443
    %v6790 = vunpack.c.l.b16 %v6444
    %v6791 = vunpack.c.h.b16 %v6444
    %v6792 = vunpack.c.l.b16 %v6445
    %v6793 = vunpack.c.h.b16 %v6445
    %v6794 = vunpack.c.l.b16 %v6446
    %v6795 = vunpack.c.h.b16 %v6446
    %v6796 = vunpack.c.l.b16 %v6447
    %v6797 = vunpack.c.h.b16 %v6447
    %v6798 = vunpack.c.l.b16 %v6448
    %v6799 = vunpack.c.h.b16 %v6448
    %v6800 = vunpack.c.l.b16 %v6449
    %v6801 = vunpack.c.h.b16 %v6449
    %v6802 = vunpack.c.l.b16 %v6450
    %v6803 = vunpack.c.h.b16 %v6450
    %v6804 = vunpack.c.l.b16 %v6451
    %v6805 = vunpack.c.h.b16 %v6451
    %v6806 = vunpack.c.l.b16 %v6452
    %v6807 = vunpack.c.h.b16 %v6452
    %v6808 = vunpack.c.l.b16 %v6453
    %v6809 = vunpack.c.h.b16 %v6453
    %v6810 = vunpack.c.l.b16 %v6454
    %v6811 = vunpack.c.h.b16 %v6454
    %v6812 = vunpack.c.l.b16 %v6455
    %v6813 = vunpack.c.h.b16 %v6455
    %v6814 = vunpack.c.l.b16 %v6456
    %v6815 = vunpack.c.h.b16 %v6456
    %v6816 = vunpack.c.l.b16 %v6457
    %v6817 = vunpack.c.h.b16 %v6457
    %v6818 = vunpack.c.l.b16 %v6458
    %v6819 = vunpack.c.h.b16 %v6458
    %v6820 = vunpack.c.l.b16 %v6459
    %v6821 = vunpack.c.h.b16 %v6459
    %v6822 = vunpack.c.l.b16 %v6460
    %v6823 = vunpack.c.h.b16 %v6460
    %v6824 = vunpack.c.l.b16 %v6461
    %v6825 = vunpack.c.h.b16 %v6461
    %v6826 = vunpack.c.l.b16 %v6462
    %v6827 = vunpack.c.h.b16 %v6462
    %v6828 = vunpack.c.l.b16 %v6463
    %v6829 = vunpack.c.h.b16 %v6463
    %v6830 = vunpack.c.l.b16 %v6464
    %v6831 = vunpack.c.h.b16 %v6464
    %v6832 = vunpack.c.l.b16 %v6465
    %v6833 = vunpack.c.h.b16 %v6465
    %v6834 = vunpack.c.l.b16 %v6466
    %v6835 = vunpack.c.h.b16 %v6466
    %v6836 = vunpack.c.l.b16 %v6467
    %v6837 = vunpack.c.h.b16 %v6467
    %v6838 = vunpack.c.l.b16 %v6468
    %v6839 = vunpack.c.h.b16 %v6468
    %v6840 = vunpack.c.l.b16 %v6469
    %v6841 = vunpack.c.h.b16 %v6469
    %v6842 = vunpack.c.l.b16 %v6470
    %v6843 = vunpack.c.h.b16 %v6470
    %v6844 = vunpack.c.l.b16 %v6471
    %v6845 = vunpack.c.h.b16 %v6471
    %v6846 = vunpack.c.l.b16 %v6472
    %v6847 = vunpack.c.h.b16 %v6472
    %v6848 = vunpack.c.l.b16 %v6473
    %v6849 = vunpack.c.h.b16 %v6473
    %v6850 = vunpack.c.l.b16 %v6474
    %v6851 = vunpack.c.h.b16 %v6474
    %v6852 = vunpack.c.l.b16 %v6475
    %v6853 = vunpack.c.h.b16 %v6475
    %v6854 = vunpack.c.l.b16 %v6476
    %v6855 = vunpack.c.h.b16 %v6476
    %v6856 = vunpack.c.l.b16 %v6477
    %v6857 = vunpack.c.h.b16 %v6477
    %v6858 = vunpack.c.l.b16 %v6478
    %v6859 = vunpack.c.h.b16 %v6478
    %v6860 = vunpack.c.l.b16 %v6479
    %v6861 = vunpack.c.h.b16 %v6479
    %v6862 = vunpack.c.l.b16 %v6480
    %v6863 = vunpack.c.h.b16 %v6480
    %v6864 = vunpack.c.l.b16 %v6481
    %v6865 = vunpack.c.h.b16 %v6481
    %v6866 = vunpack.c.l.b16 %v6482
    %v6867 = vunpack.c.h.b16 %v6482
    %v6868 = vunpack.c.l.b16 %v6483
    %v6869 = vunpack.c.h.b16 %v6483
    %v6870 = vunpack.c.l.b16 %v6484
    %v6871 = vunpack.c.h.b16 %v6484
    %v6872 = vunpack.c.l.b16 %v6485
    %v6873 = vunpack.c.h.b16 %v6485
    %v6874 = vunpack.c.l.b16 %v6486
    %v6875 = vunpack.c.h.b16 %v6486
    %v6876 = vunpack.c.l.b16 %v6487
    %v6877 = vunpack.c.h.b16 %v6487
    %v6878 = vunpack.c.l.b16 %v6488
    %v6879 = vunpack.c.h.b16 %v6488
    %v6880 = vunpack.c.l.b16 %v6489
    %v6881 = vunpack.c.h.b16 %v6489
    %v6882 = vunpack.c.l.b16 %v6490
    %v6883 = vunpack.c.h.b16 %v6490
    %v6884 = vunpack.c.l.b16 %v6491
    %v6885 = vunpack.c.h.b16 %v6491
    %v6886 = vunpack.c.l.b16 %v6492
    %v6887 = vunpack.c.h.b16 %v6492
    %v6888 = vunpack.c.l.b16 %v6493
    %v6889 = vunpack.c.h.b16 %v6493
    %v6890 = vunpack.c.l.b16 %v6494
    %v6891 = vunpack.c.h.b16 %v6494
    %v6892 = vunpack.c.l.b16 %v6495
    %v6893 = vunpack.c.h.b16 %v6495
    %v6894 = vunpack.c.l.b16 %v6496
    %v6895 = vunpack.c.h.b16 %v6496
    %v6896 = vunpack.c.l.b16 %v6497
    %v6897 = vunpack.c.h.b16 %v6497
    %v6898 = vunpack.c.l.b16 %v6498
    %v6899 = vunpack.c.h.b16 %v6498
    %v6900 = vunpack.c.l.b16 %v6499
    %v6901 = vunpack.c.h.b16 %v6499
    %v6902 = vunpack.c.l.b16 %v6500
    %v6903 = vunpack.c.h.b16 %v6500
    %v6904 = vunpack.c.l.b16 %v6501
    %v6905 = vunpack.c.h.b16 %v6501
    %v6906 = vunpack.c.l.b16 %v6502
    %v6907 = vunpack.c.h.b16 %v6502
    %v6908 = vunpack.c.l.b16 %v6503
    %v6909 = vunpack.c.h.b16 %v6503
    %v6910 = vunpack.c.l.b16 %v6504
    %v6911 = vunpack.c.h.b16 %v6504
    %v6912 = vunpack.c.l.b16 %v6505
    %v6913 = vunpack.c.h.b16 %v6505
    %v6914 = vunpack.c.l.b16 %v6506
    %v6915 = vunpack.c.h.b16 %v6506
    %v6916 = vunpack.c.l.b16 %v6507
    %v6917 = vunpack.c.h.b16 %v6507
    %v6918 = vunpack.c.l.b16 %v6508
    %v6919 = vunpack.c.h.b16 %v6508
    %v6920 = vunpack.c.l.b16 %v6509
    %v6921 = vunpack.c.h.b16 %v6509
    %v6922 = vunpack.c.l.b16 %v6510
    %v6923 = vunpack.c.h.b16 %v6510
    %v6924 = vunpack.c.l.b16 %v6511
    %v6925 = vunpack.c.h.b16 %v6511
    %v6926 = vunpack.c.l.b16 %v6512
    %v6927 = vunpack.c.h.b16 %v6512
    %v6928 = vunpack.c.l.b16 %v6513
    %v6929 = vunpack.c.h.b16 %v6513
    %v6930 = vunpack.c.l.b16 %v6514
    %v6931 = vunpack.c.h.b16 %v6514
    %v6932 = vunpack.c.l.b16 %v6515
    %v6933 = vunpack.c.h.b16 %v6515
    %v6934 = vunpack.c.l.b16 %v6516
    %v6935 = vunpack.c.h.b16 %v6516
    %v6936 = vunpack.c.l.b16 %v6517
    %v6937 = vunpack.c.h.b16 %v6517
    %v6938 = vunpack.c.l.b16 %v6518
    %v6939 = vunpack.c.h.b16 %v6518
    %v6940 = vunpack.c.l.b16 %v6519
    %v6941 = vunpack.c.h.b16 %v6519
    %v6942 = vunpack.c.l.b16 %v6520
    %v6943 = vunpack.c.h.b16 %v6520
    %v6944 = vunpack.c.l.b16 %v6521
    %v6945 = vunpack.c.h.b16 %v6521
    %v6946 = vunpack.c.l.b16 %v6522
    %v6947 = vunpack.c.h.b16 %v6522
    %v6948 = vunpack.c.l.b16 %v6523
    %v6949 = vunpack.c.h.b16 %v6523
    %v6950 = vunpack.c.l.b16 %v6524
    %v6951 = vunpack.c.h.b16 %v6524
    %v6952 = vunpack.c.l.b16 %v6525
    %v6953 = vunpack.c.h.b16 %v6525
    %v6954 = vunpack.c.l.b16 %v6526
    %v6955 = vunpack.c.h.b16 %v6526
    %v6956 = vunpack.c.l.b16 %v6527
    %v6957 = vunpack.c.h.b16 %v6527
    %v6958 = vunpack.c.l.b16 %v6528
    %v6959 = vunpack.c.h.b16 %v6528
    %v6960 = vunpack.c.l.b16 %v6529
    %v6961 = vunpack.c.h.b16 %v6529
    %v6962 = vunpack.c.l.b16 %v6530
    %v6963 = vunpack.c.h.b16 %v6530
    %v6964 = vunpack.c.l.b16 %v6531
    %v6965 = vunpack.c.h.b16 %v6531
    %v6966 = vunpack.c.l.b16 %v6532
    %v6967 = vunpack.c.h.b16 %v6532
    %v6968 = vunpack.c.l.b16 %v6533
    %v6969 = vunpack.c.h.b16 %v6533
    %v6970 = vunpack.c.l.b16 %v6534
    %v6971 = vunpack.c.h.b16 %v6534
    %v6972 = vunpack.c.l.b16 %v6535
    %v6973 = vunpack.c.h.b16 %v6535
    %v6974 = vunpack.c.l.b16 %v6536
    %v6975 = vunpack.c.h.b16 %v6536
    %v6976 = vunpack.c.l.b16 %v6537
    %v6977 = vunpack.c.h.b16 %v6537
    %v6978 = vunpack.c.l.b16 %v6538
    %v6979 = vunpack.c.h.b16 %v6538
    %v6980 = vunpack.c.l.b16 %v6539
    %v6981 = vunpack.c.h.b16 %v6539
    %v6982 = vunpack.c.l.b16 %v6540
    %v6983 = vunpack.c.h.b16 %v6540
    %v6984 = vunpack.c.l.b16 %v6541
    %v6985 = vunpack.c.h.b16 %v6541
    %v6986 = vunpack.c.l.b16 %v6542
    %v6987 = vunpack.c.h.b16 %v6542
    %v6988 = vunpack.c.l.b16 %v6543
    %v6989 = vunpack.c.h.b16 %v6543
    %v6990 = vunpack.c.l.b16 %v6544
    %v6991 = vunpack.c.h.b16 %v6544
    %v6992 = vunpack.c.l.b16 %v6545
    %v6993 = vunpack.c.h.b16 %v6545
    %v6994 = vunpack.c.l.b16 %v6546
    %v6995 = vunpack.c.h.b16 %v6546
    %v6996 = vunpack.c.l.b16 %v6547
    %v6997 = vunpack.c.h.b16 %v6547
    %v6998 = vunpack.c.l.b16 %v6548
    %v6999 = vunpack.c.h.b16 %v6548
    %v7000 = vunpack.c.l.b16 %v6549
    %v7001 = vunpack.c.h.b16 %v6549
    %v7002 = vunpack.c.l.b16 %v6550
    %v7003 = vunpack.c.h.b16 %v6550
    %v7004 = vunpack.c.l.b16 %v6551
    %v7005 = vunpack.c.h.b16 %v6551
    %v7006 = vunpack.c.l.b16 %v6552
    %v7007 = vunpack.c.h.b16 %v6552
    %v7008 = vunpack.c.l.b16 %v6553
    %v7009 = vunpack.c.h.b16 %v6553
    %v7010 = vunpack.c.l.b16 %v6554
    %v7011 = vunpack.c.h.b16 %v6554
    %v7012 = vunpack.c.l.b16 %v6555
    %v7013 = vunpack.c.h.b16 %v6555
    %v7014 = vunpack.c.l.b16 %v6556
    %v7015 = vunpack.c.h.b16 %v6556
    %v7016 = vunpack.c.l.b16 %v6557
    %v7017 = vunpack.c.h.b16 %v6557
    %v7018 = vunpack.c.l.b16 %v6558
    %v7019 = vunpack.c.h.b16 %v6558
    %v7020 = vunpack.c.l.b16 %v6559
    %v7021 = vunpack.c.h.b16 %v6559
    %v7022 = vunpack.c.l.b16 %v6560
    %v7023 = vunpack.c.h.b16 %v6560
    %v7024 = vunpack.c.l.b16 %v6561
    %v7025 = vunpack.c.h.b16 %v6561
    %v7026 = vunpack.c.l.b16 %v6562
    %v7027 = vunpack.c.h.b16 %v6562
    %v7028 = vunpack.c.l.b16 %v6563
    %v7029 = vunpack.c.h.b16 %v6563
    %v7030 = vunpack.c.l.b16 %v6564
    %v7031 = vunpack.c.h.b16 %v6564
    %v7032 = vunpack.c.l.b16 %v6565
    %v7033 = vunpack.c.h.b16 %v6565
    %v7034 = vunpack.c.l.b16 %v6566
    %v7035 = vunpack.c.h.b16 %v6566
    %v7036 = vpack.c.b16 %v6796, %v6780
    %v7037 = vpack.c.b16 %v6797, %v6781
    %v7038 = vpack.c.b16 %v6798, %v6782
    %v7039 = vpack.c.b16 %v6799, %v6783
    %v7040 = vpack.c.b16 %v6800, %v6784
    %v7041 = vpack.c.b16 %v6801, %v6785
    %v7042 = vpack.c.b16 %v6802, %v6786
    %v7043 = vpack.c.b16 %v6803, %v6787
    %v7044 = vpack.c.b16 %v6804, %v6788
    %v7045 = vpack.c.b16 %v6805, %v6789
    %v7046 = vpack.c.b16 %v6806, %v6790
    %v7047 = vpack.c.b16 %v6807, %v6791
    %v7048 = vpack.c.b16 %v6808, %v6792
    %v7049 = vpack.c.b16 %v6809, %v6793
    %v7050 = vpack.c.b16 %v6810, %v6794
    %v7051 = vpack.c.b16 %v6811, %v6795
    %v7052 = vpack.c.b16 %v6828, %v6812
    %v7053 = vpack.c.b16 %v6829, %v6813
    %v7054 = vpack.c.b16 %v6830, %v6814
    %v7055 = vpack.c.b16 %v6831, %v6815
    %v7056 = vpack.c.b16 %v6832, %v6816
    %v7057 = vpack.c.b16 %v6833, %v6817
    %v7058 = vpack.c.b16 %v6834, %v6818
    %v7059 = vpack.c.b16 %v6835, %v6819
    %v7060 = vpack.c.b16 %v6836, %v6820
    %v7061 = vpack.c.b16 %v6837, %v6821
    %v7062 = vpack.c.b16 %v6838, %v6822
    %v7063 = vpack.c.b16 %v6839, %v6823
    %v7064 = vpack.c.b16 %v6840, %v6824
    %v7065 = vpack.c.b16 %v6841, %v6825
    %v7066 = vpack.c.b16 %v6842, %v6826
    %v7067 = vpack.c.b16 %v6843, %v6827
    %v7068 = vpack.c.b16 %v6860, %v6844
    %v7069 = vpack.c.b16 %v6861, %v6845
    %v7070 = vpack.c.b16 %v6862, %v6846
    %v7071 = vpack.c.b16 %v6863, %v6847
    %v7072 = vpack.c.b16 %v6864, %v6848
    %v7073 = vpack.c.b16 %v6865, %v6849
    %v7074 = vpack.c.b16 %v6866, %v6850
    %v7075 = vpack.c.b16 %v6867, %v6851
    %v7076 = vpack.c.b16 %v6868, %v6852
    %v7077 = vpack.c.b16 %v6869, %v6853
    %v7078 = vpack.c.b16 %v6870, %v6854
    %v7079 = vpack.c.b16 %v6871, %v6855
    %v7080 = vpack.c.b16 %v6872, %v6856
    %v7081 = vpack.c.b16 %v6873, %v6857
    %v7082 = vpack.c.b16 %v6874, %v6858
    %v7083 = vpack.c.b16 %v6875, %v6859
    %v7084 = vpack.c.b16 %v6892, %v6876
    %v7085 = vpack.c.b16 %v6893, %v6877
    %v7086 = vpack.c.b16 %v6894, %v6878
    %v7087 = vpack.c.b16 %v6895, %v6879
    %v7088 = vpack.c.b16 %v6896, %v6880
    %v7089 = vpack.c.b16 %v6897, %v6881
    %v7090 = vpack.c.b16 %v6898, %v6882
    %v7091 = vpack.c.b16 %v6899, %v6883
    %v7092 = vpack.c.b16 %v6900, %v6884
    %v7093 = vpack.c.b16 %v6901, %v6885
    %v7094 = vpack.c.b16 %v6902, %v6886
    %v7095 = vpack.c.b16 %v6903, %v6887
    %v7096 = vpack.c.b16 %v6904, %v6888
    %v7097 = vpack.c.b16 %v6905, %v6889
    %v7098 = vpack.c.b16 %v6906, %v6890
    %v7099 = vpack.c.b16 %v6907, %v6891
    %v7100 = vpack.c.b16 %v6924, %v6908
    %v7101 = vpack.c.b16 %v6925, %v6909
    %v7102 = vpack.c.b16 %v6926, %v6910
    %v7103 = vpack.c.b16 %v6927, %v6911
    %v7104 = vpack.c.b16 %v6928, %v6912
    %v7105 = vpack.c.b16 %v6929, %v6913
    %v7106 = vpack.c.b16 %v6930, %v6914
    %v7107 = vpack.c.b16 %v6931, %v6915
    %v7108 = vpack.c.b16 %v6932, %v6916
    %v7109 = vpack.c.b16 %v6933, %v6917
    %v7110 = vpack.c.b16 %v6934, %v6918
    %v7111 = vpack.c.b16 %v6935, %v6919
    %v7112 = vpack.c.b16 %v6936, %v6920
    %v7113 = vpack.c.b16 %v6937, %v6921
    %v7114 = vpack.c.b16 %v6938, %v6922
    %v7115 = vpack.c.b16 %v6939, %v6923
    %v7116 = vpack.c.b16 %v6956, %v6940
    %v7117 = vpack.c.b16 %v6957, %v6941
    %v7118 = vpack.c.b16 %v6958, %v6942
    %v7119 = vpack.c.b16 %v6959, %v6943
    %v7120 = vpack.c.b16 %v6960, %v6944
    %v7121 = vpack.c.b16 %v6961, %v6945
    %v7122 = vpack.c.b16 %v6962, %v6946
    %v7123 = vpack.c.b16 %v6963, %v6947
    %v7124 = vpack.c.b16 %v6964, %v6948
    %v7125 = vpack.c.b16 %v6965, %v6949
    %v7126 = vpack.c.b16 %v6966, %v6950
    %v7127 = vpack.c.b16 %v6967, %v6951
    %v7128 = vpack.c.b16 %v6968, %v6952
    %v7129 = vpack.c.b16 %v6969, %v6953
    %v7130 = vpack.c.b16 %v6970, %v6954
    %v7131 = vpack.c.b16 %v6971, %v6955
    %v7132 = vpack.c.b16 %v6988, %v6972
    %v7133 = vpack.c.b16 %v6989, %v6973
    %v7134 = vpack.c.b16 %v6990, %v6974
    %v7135 = vpack.c.b16 %v6991, %v6975
    %v7136 = vpack.c.b16 %v6992, %v6976
    %v7137 = vpack.c.b16 %v6993, %v6977
    %v7138 = vpack.c.b16 %v6994, %v6978
    %v7139 = vpack.c.b16 %v6995, %v6979
    %v7140 = vpack.c.b16 %v6996, %v6980
    %v7141 = vpack.c.b16 %v6997, %v6981
    %v7142 = vpack.c.b16 %v6998, %v6982
    %v7143 = vpack.c.b16 %v6999, %v6983
    %v7144 = vpack.c.b16 %v7000, %v6984
    %v7145 = vpack.c.b16 %v7001, %v6985
    %v7146 = vpack.c.b16 %v7002, %v6986
    %v7147 = vpack.c.b16 %v7003, %v6987
    %v7148 = vpack.c.b16 %v7020, %v7004
    %v7149 = vpack.c.b16 %v7021, %v7005
    %v7150 = vpack.c.b16 %v7022, %v7006
    %v7151 = vpack.c.b16 %v7023, %v7007
    %v7152 = vpack.c.b16 %v7024, %v7008
    %v7153 = vpack.c.b16 %v7025, %v7009
    %v7154 = vpack.c.b16 %v7026, %v7010
    %v7155 = vpack.c.b16 %v7027, %v7011
    %v7156 = vpack.c.b16 %v7028, %v7012
    %v7157 = vpack.c.b16 %v7029, %v7013
    %v7158 = vpack.c.b16 %v7030, %v7014
    %v7159 = vpack.c.b16 %v7031, %v7015
    %v7160 = vpack.c.b16 %v7032, %v7016
    %v7161 = vpack.c.b16 %v7033, %v7017
    %v7162 = vpack.c.b16 %v7034, %v7018
    %v7163 = vpack.c.b16 %v7035, %v7019
    %7292 = vmatprep.subr.bf16.mxu0 %v7037
    %7293 = vmatpush1.bf16.msra.mxu0 %v7036
    %7294 = vmatprep.subr.bf16.mxu0 %v7053
    %7295 = vmatpush1.bf16.msra.mxu0 %v7052
    %7296 = vmatprep.subr.bf16.mxu0 %v7069
    %7297 = vmatpush1.bf16.msra.mxu0 %v7068
    %7298 = vmatprep.subr.bf16.mxu0 %v7085
    %7299 = vmatpush1.bf16.msra.mxu0 %v7084
    %7300 = vmatprep.subr.bf16.mxu0 %v7101
    %7301 = vmatpush1.bf16.msra.mxu0 %v7100
    %7302 = vmatprep.subr.bf16.mxu0 %v7117
    %7303 = vmatpush1.bf16.msra.mxu0 %v7116
    %7304 = vmatprep.subr.bf16.mxu0 %v7133
    %7305 = vmatpush1.bf16.msra.mxu0 %v7132
    %7306 = vmatprep.subr.bf16.mxu0 %v7149
    %7307 = vmatpush1.bf16.msra.mxu0 %v7148
    %7308 = vmatprep.subr.bf16.mxu0 0
    %7309 = vmatpush1.bf16.msra.mxu0 0
    %7310 = vmatprep.subr.bf16.mxu0 0
    %7311 = vmatpush1.bf16.msra.mxu0 0
    %7312 = vmatprep.subr.bf16.mxu0 0
    %7313 = vmatpush1.bf16.msra.mxu0 0
    %7314 = vmatprep.subr.bf16.mxu0 0
    %7315 = vmatpush1.bf16.msra.mxu0 0
    %7316 = vmatprep.subr.bf16.mxu0 0
    %7317 = vmatpush1.bf16.msra.mxu0 0
    %7318 = vmatprep.subr.bf16.mxu0 0
    %7319 = vmatpush1.bf16.msra.mxu0 0
    %7320 = vmatprep.subr.bf16.mxu0 0
    %7321 = vmatpush1.bf16.msra.mxu0 0
    %7322 = vmatprep.subr.bf16.mxu0 0
    %7323 = vmatpush1.bf16.msra.mxu0 0
    %7324 = vmatprep.mubr.bf16.mxu0 0
    %7325 = vmatmul.mubr.bf16.gmra.mrb[0].mxu0 %v6437
    %v7326 = vpop.f32.mrb[0].mxu0
    %v7327 = vadd.f32 %v6575, %v7326
    %v7328 = vpop.f32.mrb[0].mxu0
    %v7329 = vadd.f32 %v6579, %v7328
    %v7330 = vpop.f32.mrb[0].mxu0
    %v7331 = vadd.f32 %v6575, %v7330
    %v7332 = vpop.f32.mrb[0].mxu0
    %v7333 = vadd.f32 %v6579, %v7332
    %7334 = vdwg.mxu0
    %7335 = vmatprep.subr.bf16.mxu0 %v7039
    %7336 = vmatpush1.bf16.msra.mxu0 %v7038
    %7337 = vmatprep.subr.bf16.mxu0 %v7055
    %7338 = vmatpush1.bf16.msra.mxu0 %v7054
    %7339 = vmatprep.subr.bf16.mxu0 %v7071
    %7340 = vmatpush1.bf16.msra.mxu0 %v7070
    %7341 = vmatprep.subr.bf16.mxu0 %v7087
    %7342 = vmatpush1.bf16.msra.mxu0 %v7086
    %7343 = vmatprep.subr.bf16.mxu0 %v7103
    %7344 = vmatpush1.bf16.msra.mxu0 %v7102
    %7345 = vmatprep.subr.bf16.mxu0 %v7119
    %7346 = vmatpush1.bf16.msra.mxu0 %v7118
    %7347 = vmatprep.subr.bf16.mxu0 %v7135
    %7348 = vmatpush1.bf16.msra.mxu0 %v7134
    %7349 = vmatprep.subr.bf16.mxu0 %v7151
    %7350 = vmatpush1.bf16.msra.mxu0 %v7150
    %7351 = vmatprep.subr.bf16.mxu0 0
    %7352 = vmatpush1.bf16.msra.mxu0 0
    %7353 = vmatprep.subr.bf16.mxu0 0
    %7354 = vmatpush1.bf16.msra.mxu0 0
    %7355 = vmatprep.subr.bf16.mxu0 0
    %7356 = vmatpush1.bf16.msra.mxu0 0
    %7357 = vmatprep.subr.bf16.mxu0 0
    %7358 = vmatpush1.bf16.msra.mxu0 0
    %7359 = vmatprep.subr.bf16.mxu0 0
    %7360 = vmatpush1.bf16.msra.mxu0 0
    %7361 = vmatprep.subr.bf16.mxu0 0
    %7362 = vmatpush1.bf16.msra.mxu0 0
    %7363 = vmatprep.subr.bf16.mxu0 0
    %7364 = vmatpush1.bf16.msra.mxu0 0
    %7365 = vmatprep.subr.bf16.mxu0 0
    %7366 = vmatpush1.bf16.msra.mxu0 0
    %7367 = vmatprep.mubr.bf16.mxu0 0
    %7368 = vmatmul.mubr.bf16.gmra.mrb[0].mxu0 %v6437
    %v7369 = vpop.f32.mrb[0].mxu0
    %v7370 = vadd.f32 %v6583, %v7369
    %v7371 = vpop.f32.mrb[0].mxu0
    %v7372 = vadd.f32 %v6587, %v7371
    %v7373 = vpop.f32.mrb[0].mxu0
    %v7374 = vadd.f32 %v6583, %v7373
    %v7375 = vpop.f32.mrb[0].mxu0
    %v7376 = vadd.f32 %v6587, %v7375
    %7377 = vdwg.mxu0
    %7378 = vmatprep.subr.bf16.mxu0 %v7041
    %7379 = vmatpush1.bf16.msra.mxu0 %v7040
    %7380 = vmatprep.subr.bf16.mxu0 %v7057
    %7381 = vmatpush1.bf16.msra.mxu0 %v7056
    %7382 = vmatprep.subr.bf16.mxu0 %v7073
    %7383 = vmatpush1.bf16.msra.mxu0 %v7072
    %7384 = vmatprep.subr.bf16.mxu0 %v7089
    %7385 = vmatpush1.bf16.msra.mxu0 %v7088
    %7386 = vmatprep.subr.bf16.mxu0 %v7105
    %7387 = vmatpush1.bf16.msra.mxu0 %v7104
    %7388 = vmatprep.subr.bf16.mxu0 %v7121
    %7389 = vmatpush1.bf16.msra.mxu0 %v7120
    %7390 = vmatprep.subr.bf16.mxu0 %v7137
    %7391 = vmatpush1.bf16.msra.mxu0 %v7136
    %7392 = vmatprep.subr.bf16.mxu0 %v7153
    %7393 = vmatpush1.bf16.msra.mxu0 %v7152
    %7394 = vmatprep.subr.bf16.mxu0 0
    %7395 = vmatpush1.bf16.msra.mxu0 0
    %7396 = vmatprep.subr.bf16.mxu0 0
    %7397 = vmatpush1.bf16.msra.mxu0 0
    %7398 = vmatprep.subr.bf16.mxu0 0
    %7399 = vmatpush1.bf16.msra.mxu0 0
    %7400 = vmatprep.subr.bf16.mxu0 0
    %7401 = vmatpush1.bf16.msra.mxu0 0
    %7402 = vmatprep.subr.bf16.mxu0 0
    %7403 = vmatpush1.bf16.msra.mxu0 0
    %7404 = vmatprep.subr.bf16.mxu0 0
    %7405 = vmatpush1.bf16.msra.mxu0 0
    %7406 = vmatprep.subr.bf16.mxu0 0
    %7407 = vmatpush1.bf16.msra.mxu0 0
    %7408 = vmatprep.subr.bf16.mxu0 0
    %7409 = vmatpush1.bf16.msra.mxu0 0
    %7410 = vmatprep.mubr.bf16.mxu0 0
    %7411 = vmatmul.mubr.bf16.gmra.mrb[0].mxu0 %v6437
    %v7412 = vpop.f32.mrb[0].mxu0
    %v7413 = vadd.f32 %v6591, %v7412
    %v7414 = vpop.f32.mrb[0].mxu0
    %v7415 = vadd.f32 %v6595, %v7414
    %v7416 = vpop.f32.mrb[0].mxu0
    %v7417 = vadd.f32 %v6591, %v7416
    %v7418 = vpop.f32.mrb[0].mxu0
    %v7419 = vadd.f32 %v6595, %v7418
    %7420 = vdwg.mxu0
    %7421 = vmatprep.subr.bf16.mxu0 %v7043
    %7422 = vmatpush1.bf16.msra.mxu0 %v7042
    %7423 = vmatprep.subr.bf16.mxu0 %v7059
    %7424 = vmatpush1.bf16.msra.mxu0 %v7058
    %7425 = vmatprep.subr.bf16.mxu0 %v7075
    %7426 = vmatpush1.bf16.msra.mxu0 %v7074
    %7427 = vmatprep.subr.bf16.mxu0 %v7091
    %7428 = vmatpush1.bf16.msra.mxu0 %v7090
    %7429 = vmatprep.subr.bf16.mxu0 %v7107
    %7430 = vmatpush1.bf16.msra.mxu0 %v7106
    %7431 = vmatprep.subr.bf16.mxu0 %v7123
    %7432 = vmatpush1.bf16.msra.mxu0 %v7122
    %7433 = vmatprep.subr.bf16.mxu0 %v7139
    %7434 = vmatpush1.bf16.msra.mxu0 %v7138
    %7435 = vmatprep.subr.bf16.mxu0 %v7155
    %7436 = vmatpush1.bf16.msra.mxu0 %v7154
    %7437 = vmatprep.subr.bf16.mxu0 0
    %7438 = vmatpush1.bf16.msra.mxu0 0
    %7439 = vmatprep.subr.bf16.mxu0 0
    %7440 = vmatpush1.bf16.msra.mxu0 0
    %7441 = vmatprep.subr.bf16.mxu0 0
    %7442 = vmatpush1.bf16.msra.mxu0 0
    %7443 = vmatprep.subr.bf16.mxu0 0
    %7444 = vmatpush1.bf16.msra.mxu0 0
    %7445 = vmatprep.subr.bf16.mxu0 0
    %7446 = vmatpush1.bf16.msra.mxu0 0
    %7447 = vmatprep.subr.bf16.mxu0 0
    %7448 = vmatpush1.bf16.msra.mxu0 0
    %7449 = vmatprep.subr.bf16.mxu0 0
    %7450 = vmatpush1.bf16.msra.mxu0 0
    %7451 = vmatprep.subr.bf16.mxu0 0
    %7452 = vmatpush1.bf16.msra.mxu0 0
    %7453 = vmatprep.mubr.bf16.mxu0 0
    %7454 = vmatmul.mubr.bf16.gmra.mrb[0].mxu0 %v6437
    %v7455 = vpop.f32.mrb[0].mxu0
    %v7456 = vadd.f32 %v6599, %v7455
    %v7457 = vpop.f32.mrb[0].mxu0
    %v7458 = vadd.f32 %v6603, %v7457
    %v7459 = vpop.f32.mrb[0].mxu0
    %v7460 = vadd.f32 %v6599, %v7459
    %v7461 = vpop.f32.mrb[0].mxu0
    %v7462 = vadd.f32 %v6603, %v7461
    %7463 = vdwg.mxu0
    %7464 = vmatprep.subr.bf16.mxu0 %v7045
    %7465 = vmatpush1.bf16.msra.mxu0 %v7044
    %7466 = vmatprep.subr.bf16.mxu0 %v7061
    %7467 = vmatpush1.bf16.msra.mxu0 %v7060
    %7468 = vmatprep.subr.bf16.mxu0 %v7077
    %7469 = vmatpush1.bf16.msra.mxu0 %v7076
    %7470 = vmatprep.subr.bf16.mxu0 %v7093
    %7471 = vmatpush1.bf16.msra.mxu0 %v7092
    %7472 = vmatprep.subr.bf16.mxu0 %v7109
    %7473 = vmatpush1.bf16.msra.mxu0 %v7108
    %7474 = vmatprep.subr.bf16.mxu0 %v7125
    %7475 = vmatpush1.bf16.msra.mxu0 %v7124
    %7476 = vmatprep.subr.bf16.mxu0 %v7141
    %7477 = vmatpush1.bf16.msra.mxu0 %v7140
    %7478 = vmatprep.subr.bf16.mxu0 %v7157
    %7479 = vmatpush1.bf16.msra.mxu0 %v7156
    %7480 = vmatprep.subr.bf16.mxu0 0
    %7481 = vmatpush1.bf16.msra.mxu0 0
    %7482 = vmatprep.subr.bf16.mxu0 0
    %7483 = vmatpush1.bf16.msra.mxu0 0
    %7484 = vmatprep.subr.bf16.mxu0 0
    %7485 = vmatpush1.bf16.msra.mxu0 0
    %7486 = vmatprep.subr.bf16.mxu0 0
    %7487 = vmatpush1.bf16.msra.mxu0 0
    %7488 = vmatprep.subr.bf16.mxu0 0
    %7489 = vmatpush1.bf16.msra.mxu0 0
    %7490 = vmatprep.subr.bf16.mxu0 0
    %7491 = vmatpush1.bf16.msra.mxu0 0
    %7492 = vmatprep.subr.bf16.mxu0 0
    %7493 = vmatpush1.bf16.msra.mxu0 0
    %7494 = vmatprep.subr.bf16.mxu0 0
    %7495 = vmatpush1.bf16.msra.mxu0 0
    %7496 = vmatprep.mubr.bf16.mxu0 0
    %7497 = vmatmul.mubr.bf16.gmra.mrb[0].mxu0 %v6437
    %v7498 = vpop.f32.mrb[0].mxu0
    %v7499 = vadd.f32 %v6607, %v7498
    %v7500 = vpop.f32.mrb[0].mxu0
    %v7501 = vadd.f32 %v6611, %v7500
    %v7502 = vpop.f32.mrb[0].mxu0
    %v7503 = vadd.f32 %v6607, %v7502
    %v7504 = vpop.f32.mrb[0].mxu0
    %v7505 = vadd.f32 %v6611, %v7504
    %7506 = vdwg.mxu0
    %7507 = vmatprep.subr.bf16.mxu0 %v7047
    %7508 = vmatpush1.bf16.msra.mxu0 %v7046
    %7509 = vmatprep.subr.bf16.mxu0 %v7063
    %7510 = vmatpush1.bf16.msra.mxu0 %v7062
    %7511 = vmatprep.subr.bf16.mxu0 %v7079
    %7512 = vmatpush1.bf16.msra.mxu0 %v7078
    %7513 = vmatprep.subr.bf16.mxu0 %v7095
    %7514 = vmatpush1.bf16.msra.mxu0 %v7094
    %7515 = vmatprep.subr.bf16.mxu0 %v7111
    %7516 = vmatpush1.bf16.msra.mxu0 %v7110
    %7517 = vmatprep.subr.bf16.mxu0 %v7127
    %7518 = vmatpush1.bf16.msra.mxu0 %v7126
    %7519 = vmatprep.subr.bf16.mxu0 %v7143
    %7520 = vmatpush1.bf16.msra.mxu0 %v7142
    %7521 = vmatprep.subr.bf16.mxu0 %v7159
    %7522 = vmatpush1.bf16.msra.mxu0 %v7158
    %7523 = vmatprep.subr.bf16.mxu0 0
    %7524 = vmatpush1.bf16.msra.mxu0 0
    %7525 = vmatprep.subr.bf16.mxu0 0
    %7526 = vmatpush1.bf16.msra.mxu0 0
    %7527 = vmatprep.subr.bf16.mxu0 0
    %7528 = vmatpush1.bf16.msra.mxu0 0
    %7529 = vmatprep.subr.bf16.mxu0 0
    %7530 = vmatpush1.bf16.msra.mxu0 0
    %7531 = vmatprep.subr.bf16.mxu0 0
    %7532 = vmatpush1.bf16.msra.mxu0 0
    %7533 = vmatprep.subr.bf16.mxu0 0
    %7534 = vmatpush1.bf16.msra.mxu0 0
    %7535 = vmatprep.subr.bf16.mxu0 0
    %7536 = vmatpush1.bf16.msra.mxu0 0
    %7537 = vmatprep.subr.bf16.mxu0 0
    %7538 = vmatpush1.bf16.msra.mxu0 0
    %7539 = vmatprep.mubr.bf16.mxu0 0
    %7540 = vmatmul.mubr.bf16.gmra.mrb[0].mxu0 %v6437
    %v7541 = vpop.f32.mrb[0].mxu0
    %v7542 = vadd.f32 %v6615, %v7541
    %v7543 = vpop.f32.mrb[0].mxu0
    %v7544 = vadd.f32 %v6619, %v7543
    %v7545 = vpop.f32.mrb[0].mxu0
    %v7546 = vadd.f32 %v6615, %v7545
    %v7547 = vpop.f32.mrb[0].mxu0
    %v7548 = vadd.f32 %v6619, %v7547
    %7549 = vdwg.mxu0
    %7550 = vmatprep.subr.bf16.mxu0 %v7049
    %7551 = vmatpush1.bf16.msra.mxu0 %v7048
    %7552 = vmatprep.subr.bf16.mxu0 %v7065
    %7553 = vmatpush1.bf16.msra.mxu0 %v7064
    %7554 = vmatprep.subr.bf16.mxu0 %v7081
    %7555 = vmatpush1.bf16.msra.mxu0 %v7080
    %7556 = vmatprep.subr.bf16.mxu0 %v7097
    %7557 = vmatpush1.bf16.msra.mxu0 %v7096
    %7558 = vmatprep.subr.bf16.mxu0 %v7113
    %7559 = vmatpush1.bf16.msra.mxu0 %v7112
    %7560 = vmatprep.subr.bf16.mxu0 %v7129
    %7561 = vmatpush1.bf16.msra.mxu0 %v7128
    %7562 = vmatprep.subr.bf16.mxu0 %v7145
    %7563 = vmatpush1.bf16.msra.mxu0 %v7144
    %7564 = vmatprep.subr.bf16.mxu0 %v7161
    %7565 = vmatpush1.bf16.msra.mxu0 %v7160
    %7566 = vmatprep.subr.bf16.mxu0 0
    %7567 = vmatpush1.bf16.msra.mxu0 0
    %7568 = vmatprep.subr.bf16.mxu0 0
    %7569 = vmatpush1.bf16.msra.mxu0 0
    %7570 = vmatprep.subr.bf16.mxu0 0
    %7571 = vmatpush1.bf16.msra.mxu0 0
    %7572 = vmatprep.subr.bf16.mxu0 0
    %7573 = vmatpush1.bf16.msra.mxu0 0
    %7574 = vmatprep.subr.bf16.mxu0 0
    %7575 = vmatpush1.bf16.msra.mxu0 0
    %7576 = vmatprep.subr.bf16.mxu0 0
    %7577 = vmatpush1.bf16.msra.mxu0 0
    %7578 = vmatprep.subr.bf16.mxu0 0
    %7579 = vmatpush1.bf16.msra.mxu0 0
    %7580 = vmatprep.subr.bf16.mxu0 0
    %7581 = vmatpush1.bf16.msra.mxu0 0
    %7582 = vmatprep.mubr.bf16.mxu0 0
    %7583 = vmatmul.mubr.bf16.gmra.mrb[0].mxu0 %v6437
    %v7584 = vpop.f32.mrb[0].mxu0
    %v7585 = vadd.f32 %v6623, %v7584
    %v7586 = vpop.f32.mrb[0].mxu0
    %v7587 = vadd.f32 %v6627, %v7586
    %v7588 = vpop.f32.mrb[0].mxu0
    %v7589 = vadd.f32 %v6623, %v7588
    %v7590 = vpop.f32.mrb[0].mxu0
    %v7591 = vadd.f32 %v6627, %v7590
    %7592 = vdwg.mxu0
    %7593 = vmatprep.subr.bf16.mxu0 %v7051
    %7594 = vmatpush1.bf16.msra.mxu0 %v7050
    %7595 = vmatprep.subr.bf16.mxu0 %v7067
    %7596 = vmatpush1.bf16.msra.mxu0 %v7066
    %7597 = vmatprep.subr.bf16.mxu0 %v7083
    %7598 = vmatpush1.bf16.msra.mxu0 %v7082
    %7599 = vmatprep.subr.bf16.mxu0 %v7099
    %7600 = vmatpush1.bf16.msra.mxu0 %v7098
    %7601 = vmatprep.subr.bf16.mxu0 %v7115
    %7602 = vmatpush1.bf16.msra.mxu0 %v7114
    %7603 = vmatprep.subr.bf16.mxu0 %v7131
    %7604 = vmatpush1.bf16.msra.mxu0 %v7130
    %7605 = vmatprep.subr.bf16.mxu0 %v7147
    %7606 = vmatpush1.bf16.msra.mxu0 %v7146
    %7607 = vmatprep.subr.bf16.mxu0 %v7163
    %7608 = vmatpush1.bf16.msra.mxu0 %v7162
    %7609 = vmatprep.subr.bf16.mxu0 0
    %7610 = vmatpush1.bf16.msra.mxu0 0
    %7611 = vmatprep.subr.bf16.mxu0 0
    %7612 = vmatpush1.bf16.msra.mxu0 0
    %7613 = vmatprep.subr.bf16.mxu0 0
    %7614 = vmatpush1.bf16.msra.mxu0 0
    %7615 = vmatprep.subr.bf16.mxu0 0
    %7616 = vmatpush1.bf16.msra.mxu0 0
    %7617 = vmatprep.subr.bf16.mxu0 0
    %7618 = vmatpush1.bf16.msra.mxu0 0
    %7619 = vmatprep.subr.bf16.mxu0 0
    %7620 = vmatpush1.bf16.msra.mxu0 0
    %7621 = vmatprep.subr.bf16.mxu0 0
    %7622 = vmatpush1.bf16.msra.mxu0 0
    %7623 = vmatprep.subr.bf16.mxu0 0
    %7624 = vmatpush1.bf16.msra.mxu0 0
    %7625 = vmatprep.mubr.bf16.mxu0 0
    %7626 = vmatmul.mubr.bf16.gmra.mrb[0].mxu0 %v6437
    %v7627 = vpop.f32.mrb[0].mxu0
    %v7628 = vadd.f32 %v6631, %v7627
    %v7629 = vpop.f32.mrb[0].mxu0
    %v7630 = vadd.f32 %v6635, %v7629
    %v7631 = vpop.f32.mrb[0].mxu0
    %v7632 = vadd.f32 %v6631, %v7631
    %v7633 = vpop.f32.mrb[0].mxu0
    %v7634 = vadd.f32 %v6635, %v7633
    %7635 = vdwg.mxu0
    %v7636 = vmax.f32 %v7327, 0.0
    %v7637 = vmax.f32 %v7329, 0.0
    %v7638 = vmax.f32 %v7370, 0.0
    %v7639 = vmax.f32 %v7372, 0.0
    %v7640 = vmax.f32 %v7413, 0.0
    %v7641 = vmax.f32 %v7415, 0.0
    %v7642 = vmax.f32 %v7456, 0.0
    %v7643 = vmax.f32 %v7458, 0.0
    %v7644 = vmax.f32 %v7499, 0.0
    %v7645 = vmax.f32 %v7501, 0.0
    %v7646 = vmax.f32 %v7542, 0.0
    %v7647 = vmax.f32 %v7544, 0.0
    %v7648 = vmax.f32 %v7585, 0.0
    %v7649 = vmax.f32 %v7587, 0.0
    %v7650 = vmax.f32 %v7628, 0.0
    %v7651 = vmax.f32 %v7630, 0.0
    %v7652 = vmax.f32 %v7331, 0.0
    %v7653 = vmax.f32 %v7333, 0.0
    %v7654 = vmax.f32 %v7374, 0.0
    %v7655 = vmax.f32 %v7376, 0.0
    %v7656 = vmax.f32 %v7417, 0.0
    %v7657 = vmax.f32 %v7419, 0.0
    %v7658 = vmax.f32 %v7460, 0.0
    %v7659 = vmax.f32 %v7462, 0.0
    %v7660 = vmax.f32 %v7503, 0.0
    %v7661 = vmax.f32 %v7505, 0.0
    %v7662 = vmax.f32 %v7546, 0.0
    %v7663 = vmax.f32 %v7548, 0.0
    %v7664 = vmax.f32 %v7589, 0.0
    %v7665 = vmax.f32 %v7591, 0.0
    %v7666 = vmax.f32 %v7632, 0.0
    %v7667 = vmax.f32 %v7634, 0.0
    %v7668 = vpack.c.bf16 %v7652, %v7636
    %v7669 = vpack.c.bf16 %v7653, %v7637
    %v7670 = vpack.c.bf16 %v7654, %v7638
    %v7671 = vpack.c.bf16 %v7655, %v7639
    %v7672 = vpack.c.bf16 %v7656, %v7640
    %v7673 = vpack.c.bf16 %v7657, %v7641
    %v7674 = vpack.c.bf16 %v7658, %v7642
    %v7675 = vpack.c.bf16 %v7659, %v7643
    %v7676 = vpack.c.bf16 %v7660, %v7644
    %v7677 = vpack.c.bf16 %v7661, %v7645
    %v7678 = vpack.c.bf16 %v7662, %v7646
    %v7679 = vpack.c.bf16 %v7663, %v7647
    %v7680 = vpack.c.bf16 %v7664, %v7648
    %v7681 = vpack.c.bf16 %v7665, %v7649
    %v7682 = vpack.c.bf16 %v7666, %v7650
    %v7683 = vpack.c.bf16 %v7667, %v7651
    %s7684 = scalar_lea.vmem [#allocation12], 1024
    %v7685 = vld [vmem:[%s7684] sm:$0xf]
    %v7686 = vld [vmem:[%s7684 + $0x4] sm:$0xf]
    %v7687 = vld [vmem:[%s7684 + $0x8] sm:$0xf]
    %v7688 = vld [vmem:[%s7684 + $0xc] sm:$0xf]
    %v7689 = vld [vmem:[%s7684 + $0x10] sm:$0xf]
    %v7690 = vld [vmem:[%s7684 + $0x14] sm:$0xf]
    %v7691 = vld [vmem:[%s7684 + $0x18] sm:$0xf]
    %v7692 = vld [vmem:[%s7684 + $0x1c] sm:$0xf]
    %v7693 = vld [vmem:[%s7684 + $0x20] sm:$0xf]
    %v7694 = vld [vmem:[%s7684 + $0x24] sm:$0xf]
    %v7695 = vld [vmem:[%s7684 + $0x28] sm:$0xf]
    %v7696 = vld [vmem:[%s7684 + $0x2c] sm:$0xf]
    %v7697 = vld [vmem:[%s7684 + $0x30] sm:$0xf]
    %v7698 = vld [vmem:[%s7684 + $0x34] sm:$0xf]
    %v7699 = vld [vmem:[%s7684 + $0x38] sm:$0xf]
    %v7700 = vld [vmem:[%s7684 + $0x3c] sm:$0xf]
    %v7701 = vld [vmem:[%s7684 + $0x40] sm:$0xf]
    %v7702 = vld [vmem:[%s7684 + $0x44] sm:$0xf]
    %v7703 = vld [vmem:[%s7684 + $0x48] sm:$0xf]
    %v7704 = vld [vmem:[%s7684 + $0x4c] sm:$0xf]
    %v7705 = vld [vmem:[%s7684 + $0x50] sm:$0xf]
    %v7706 = vld [vmem:[%s7684 + $0x54] sm:$0xf]
    %v7707 = vld [vmem:[%s7684 + $0x58] sm:$0xf]
    %v7708 = vld [vmem:[%s7684 + $0x5c] sm:$0xf]
    %v7709 = vld [vmem:[%s7684 + $0x60] sm:$0xf]
    %v7710 = vld [vmem:[%s7684 + $0x64] sm:$0xf]
    %v7711 = vld [vmem:[%s7684 + $0x68] sm:$0xf]
    %v7712 = vld [vmem:[%s7684 + $0x6c] sm:$0xf]
    %v7713 = vld [vmem:[%s7684 + $0x70] sm:$0xf]
    %v7714 = vld [vmem:[%s7684 + $0x74] sm:$0xf]
    %v7715 = vld [vmem:[%s7684 + $0x78] sm:$0xf]
    %v7716 = vld [vmem:[%s7684 + $0x7c] sm:$0xf]
    %v7717 = vld [vmem:[%s7684 + $0x80] sm:$0xf]
    %v7718 = vld [vmem:[%s7684 + $0x84] sm:$0xf]
    %v7719 = vld [vmem:[%s7684 + $0x88] sm:$0xf]
    %v7720 = vld [vmem:[%s7684 + $0x8c] sm:$0xf]
    %v7721 = vld [vmem:[%s7684 + $0x90] sm:$0xf]
    %v7722 = vld [vmem:[%s7684 + $0x94] sm:$0xf]
    %v7723 = vld [vmem:[%s7684 + $0x98] sm:$0xf]
    %v7724 = vld [vmem:[%s7684 + $0x9c] sm:$0xf]
    %v7725 = vld [vmem:[%s7684 + $0xa0] sm:$0xf]
    %v7726 = vld [vmem:[%s7684 + $0xa4] sm:$0xf]
    %v7727 = vld [vmem:[%s7684 + $0xa8] sm:$0xf]
    %v7728 = vld [vmem:[%s7684 + $0xac] sm:$0xf]
    %v7729 = vld [vmem:[%s7684 + $0xb0] sm:$0xf]
    %v7730 = vld [vmem:[%s7684 + $0xb4] sm:$0xf]
    %v7731 = vld [vmem:[%s7684 + $0xb8] sm:$0xf]
    %v7732 = vld [vmem:[%s7684 + $0xbc] sm:$0xf]
    %v7733 = vld [vmem:[%s7684 + $0xc0] sm:$0xf]
    %v7734 = vld [vmem:[%s7684 + $0xc4] sm:$0xf]
    %v7735 = vld [vmem:[%s7684 + $0xc8] sm:$0xf]
    %v7736 = vld [vmem:[%s7684 + $0xcc] sm:$0xf]
    %v7737 = vld [vmem:[%s7684 + $0xd0] sm:$0xf]
    %v7738 = vld [vmem:[%s7684 + $0xd4] sm:$0xf]
    %v7739 = vld [vmem:[%s7684 + $0xd8] sm:$0xf]
    %v7740 = vld [vmem:[%s7684 + $0xdc] sm:$0xf]
    %v7741 = vld [vmem:[%s7684 + $0xe0] sm:$0xf]
    %v7742 = vld [vmem:[%s7684 + $0xe4] sm:$0xf]
    %v7743 = vld [vmem:[%s7684 + $0xe8] sm:$0xf]
    %v7744 = vld [vmem:[%s7684 + $0xec] sm:$0xf]
    %v7745 = vld [vmem:[%s7684 + $0xf0] sm:$0xf]
    %v7746 = vld [vmem:[%s7684 + $0xf4] sm:$0xf]
    %v7747 = vld [vmem:[%s7684 + $0xf8] sm:$0xf]
    %v7748 = vld [vmem:[%s7684 + $0xfc] sm:$0xf]
    %v7749 = vld [vmem:[%s7684 + $0x100] sm:$0xf]
    %v7750 = vld [vmem:[%s7684 + $0x104] sm:$0xf]
    %v7751 = vld [vmem:[%s7684 + $0x108] sm:$0xf]
    %v7752 = vld [vmem:[%s7684 + $0x10c] sm:$0xf]
    %v7753 = vld [vmem:[%s7684 + $0x110] sm:$0xf]
    %v7754 = vld [vmem:[%s7684 + $0x114] sm:$0xf]
    %v7755 = vld [vmem:[%s7684 + $0x118] sm:$0xf]
    %v7756 = vld [vmem:[%s7684 + $0x11c] sm:$0xf]
    %v7757 = vld [vmem:[%s7684 + $0x120] sm:$0xf]
    %v7758 = vld [vmem:[%s7684 + $0x124] sm:$0xf]
    %v7759 = vld [vmem:[%s7684 + $0x128] sm:$0xf]
    %v7760 = vld [vmem:[%s7684 + $0x12c] sm:$0xf]
    %v7761 = vld [vmem:[%s7684 + $0x130] sm:$0xf]
    %v7762 = vld [vmem:[%s7684 + $0x134] sm:$0xf]
    %v7763 = vld [vmem:[%s7684 + $0x138] sm:$0xf]
    %v7764 = vld [vmem:[%s7684 + $0x13c] sm:$0xf]
    %v7765 = vld [vmem:[%s7684 + $0x140] sm:$0xf]
    %v7766 = vld [vmem:[%s7684 + $0x144] sm:$0xf]
    %v7767 = vld [vmem:[%s7684 + $0x148] sm:$0xf]
    %v7768 = vld [vmem:[%s7684 + $0x14c] sm:$0xf]
    %v7769 = vld [vmem:[%s7684 + $0x150] sm:$0xf]
    %v7770 = vld [vmem:[%s7684 + $0x154] sm:$0xf]
    %v7771 = vld [vmem:[%s7684 + $0x158] sm:$0xf]
    %v7772 = vld [vmem:[%s7684 + $0x15c] sm:$0xf]
    %v7773 = vld [vmem:[%s7684 + $0x160] sm:$0xf]
    %v7774 = vld [vmem:[%s7684 + $0x164] sm:$0xf]
    %v7775 = vld [vmem:[%s7684 + $0x168] sm:$0xf]
    %v7776 = vld [vmem:[%s7684 + $0x16c] sm:$0xf]
    %v7777 = vld [vmem:[%s7684 + $0x170] sm:$0xf]
    %v7778 = vld [vmem:[%s7684 + $0x174] sm:$0xf]
    %v7779 = vld [vmem:[%s7684 + $0x178] sm:$0xf]
    %v7780 = vld [vmem:[%s7684 + $0x17c] sm:$0xf]
    %v7781 = vld [vmem:[%s7684 + $0x180] sm:$0xf]
    %v7782 = vld [vmem:[%s7684 + $0x184] sm:$0xf]
    %v7783 = vld [vmem:[%s7684 + $0x188] sm:$0xf]
    %v7784 = vld [vmem:[%s7684 + $0x18c] sm:$0xf]
    %v7785 = vld [vmem:[%s7684 + $0x190] sm:$0xf]
    %v7786 = vld [vmem:[%s7684 + $0x194] sm:$0xf]
    %v7787 = vld [vmem:[%s7684 + $0x198] sm:$0xf]
    %v7788 = vld [vmem:[%s7684 + $0x19c] sm:$0xf]
    %v7789 = vld [vmem:[%s7684 + $0x1a0] sm:$0xf]
    %v7790 = vld [vmem:[%s7684 + $0x1a4] sm:$0xf]
    %v7791 = vld [vmem:[%s7684 + $0x1a8] sm:$0xf]
    %v7792 = vld [vmem:[%s7684 + $0x1ac] sm:$0xf]
    %v7793 = vld [vmem:[%s7684 + $0x1b0] sm:$0xf]
    %v7794 = vld [vmem:[%s7684 + $0x1b4] sm:$0xf]
    %v7795 = vld [vmem:[%s7684 + $0x1b8] sm:$0xf]
    %v7796 = vld [vmem:[%s7684 + $0x1bc] sm:$0xf]
    %v7797 = vld [vmem:[%s7684 + $0x1c0] sm:$0xf]
    %v7798 = vld [vmem:[%s7684 + $0x1c4] sm:$0xf]
    %v7799 = vld [vmem:[%s7684 + $0x1c8] sm:$0xf]
    %v7800 = vld [vmem:[%s7684 + $0x1cc] sm:$0xf]
    %v7801 = vld [vmem:[%s7684 + $0x1d0] sm:$0xf]
    %v7802 = vld [vmem:[%s7684 + $0x1d4] sm:$0xf]
    %v7803 = vld [vmem:[%s7684 + $0x1d8] sm:$0xf]
    %v7804 = vld [vmem:[%s7684 + $0x1dc] sm:$0xf]
    %v7805 = vld [vmem:[%s7684 + $0x1e0] sm:$0xf]
    %v7806 = vld [vmem:[%s7684 + $0x1e4] sm:$0xf]
    %v7807 = vld [vmem:[%s7684 + $0x1e8] sm:$0xf]
    %v7808 = vld [vmem:[%s7684 + $0x1ec] sm:$0xf]
    %v7809 = vld [vmem:[%s7684 + $0x1f0] sm:$0xf]
    %v7810 = vld [vmem:[%s7684 + $0x1f4] sm:$0xf]
    %v7811 = vld [vmem:[%s7684 + $0x1f8] sm:$0xf]
    %v7812 = vld [vmem:[%s7684 + $0x1fc] sm:$0xf]
    %v7813 = vld [vmem:[%s7684 + $0x200] sm:$0xf]
    %v7814 = vld [vmem:[%s7684 + $0x204] sm:$0xf]
    %v7815 = vld [vmem:[%s7684 + $0x208] sm:$0xf]
    %v7816 = vld [vmem:[%s7684 + $0x20c] sm:$0xf]
    %v7817 = vld [vmem:[%s7684 + $0x210] sm:$0xf]
    %v7818 = vld [vmem:[%s7684 + $0x214] sm:$0xf]
    %v7819 = vld [vmem:[%s7684 + $0x218] sm:$0xf]
    %v7820 = vld [vmem:[%s7684 + $0x21c] sm:$0xf]
    %v7821 = vld [vmem:[%s7684 + $0x220] sm:$0xf]
    %v7822 = vld [vmem:[%s7684 + $0x224] sm:$0xf]
    %v7823 = vld [vmem:[%s7684 + $0x228] sm:$0xf]
    %v7824 = vld [vmem:[%s7684 + $0x22c] sm:$0xf]
    %v7825 = vld [vmem:[%s7684 + $0x230] sm:$0xf]
    %v7826 = vld [vmem:[%s7684 + $0x234] sm:$0xf]
    %v7827 = vld [vmem:[%s7684 + $0x238] sm:$0xf]
    %v7828 = vld [vmem:[%s7684 + $0x23c] sm:$0xf]
    %v7829 = vld [vmem:[%s7684 + $0x240] sm:$0xf]
    %v7830 = vld [vmem:[%s7684 + $0x244] sm:$0xf]
    %v7831 = vld [vmem:[%s7684 + $0x248] sm:$0xf]
    %v7832 = vld [vmem:[%s7684 + $0x24c] sm:$0xf]
    %v7833 = vld [vmem:[%s7684 + $0x250] sm:$0xf]
    %v7834 = vld [vmem:[%s7684 + $0x254] sm:$0xf]
    %v7835 = vld [vmem:[%s7684 + $0x258] sm:$0xf]
    %v7836 = vld [vmem:[%s7684 + $0x25c] sm:$0xf]
    %v7837 = vld [vmem:[%s7684 + $0x260] sm:$0xf]
    %v7838 = vld [vmem:[%s7684 + $0x264] sm:$0xf]
    %v7839 = vld [vmem:[%s7684 + $0x268] sm:$0xf]
    %v7840 = vld [vmem:[%s7684 + $0x26c] sm:$0xf]
    %v7841 = vld [vmem:[%s7684 + $0x270] sm:$0xf]
    %v7842 = vld [vmem:[%s7684 + $0x274] sm:$0xf]
    %v7843 = vld [vmem:[%s7684 + $0x278] sm:$0xf]
    %v7844 = vld [vmem:[%s7684 + $0x27c] sm:$0xf]
    %v7845 = vld [vmem:[%s7684 + $0x280] sm:$0xf]
    %v7846 = vld [vmem:[%s7684 + $0x284] sm:$0xf]
    %v7847 = vld [vmem:[%s7684 + $0x288] sm:$0xf]
    %v7848 = vld [vmem:[%s7684 + $0x28c] sm:$0xf]
    %v7849 = vld [vmem:[%s7684 + $0x290] sm:$0xf]
    %v7850 = vld [vmem:[%s7684 + $0x294] sm:$0xf]
    %v7851 = vld [vmem:[%s7684 + $0x298] sm:$0xf]
    %v7852 = vld [vmem:[%s7684 + $0x29c] sm:$0xf]
    %v7853 = vld [vmem:[%s7684 + $0x2a0] sm:$0xf]
    %v7854 = vld [vmem:[%s7684 + $0x2a4] sm:$0xf]
    %v7855 = vld [vmem:[%s7684 + $0x2a8] sm:$0xf]
    %v7856 = vld [vmem:[%s7684 + $0x2ac] sm:$0xf]
    %v7857 = vld [vmem:[%s7684 + $0x2b0] sm:$0xf]
    %v7858 = vld [vmem:[%s7684 + $0x2b4] sm:$0xf]
    %v7859 = vld [vmem:[%s7684 + $0x2b8] sm:$0xf]
    %v7860 = vld [vmem:[%s7684 + $0x2bc] sm:$0xf]
    %v7861 = vld [vmem:[%s7684 + $0x2c0] sm:$0xf]
    %v7862 = vld [vmem:[%s7684 + $0x2c4] sm:$0xf]
    %v7863 = vld [vmem:[%s7684 + $0x2c8] sm:$0xf]
    %v7864 = vld [vmem:[%s7684 + $0x2cc] sm:$0xf]
    %v7865 = vld [vmem:[%s7684 + $0x2d0] sm:$0xf]
    %v7866 = vld [vmem:[%s7684 + $0x2d4] sm:$0xf]
    %v7867 = vld [vmem:[%s7684 + $0x2d8] sm:$0xf]
    %v7868 = vld [vmem:[%s7684 + $0x2dc] sm:$0xf]
    %v7869 = vld [vmem:[%s7684 + $0x2e0] sm:$0xf]
    %v7870 = vld [vmem:[%s7684 + $0x2e4] sm:$0xf]
    %v7871 = vld [vmem:[%s7684 + $0x2e8] sm:$0xf]
    %v7872 = vld [vmem:[%s7684 + $0x2ec] sm:$0xf]
    %v7873 = vld [vmem:[%s7684 + $0x2f0] sm:$0xf]
    %v7874 = vld [vmem:[%s7684 + $0x2f4] sm:$0xf]
    %v7875 = vld [vmem:[%s7684 + $0x2f8] sm:$0xf]
    %v7876 = vld [vmem:[%s7684 + $0x2fc] sm:$0xf]
    %v7877 = vld [vmem:[%s7684 + $0x300] sm:$0xf]
    %v7878 = vld [vmem:[%s7684 + $0x304] sm:$0xf]
    %v7879 = vld [vmem:[%s7684 + $0x308] sm:$0xf]
    %v7880 = vld [vmem:[%s7684 + $0x30c] sm:$0xf]
    %v7881 = vld [vmem:[%s7684 + $0x310] sm:$0xf]
    %v7882 = vld [vmem:[%s7684 + $0x314] sm:$0xf]
    %v7883 = vld [vmem:[%s7684 + $0x318] sm:$0xf]
    %v7884 = vld [vmem:[%s7684 + $0x31c] sm:$0xf]
    %v7885 = vld [vmem:[%s7684 + $0x320] sm:$0xf]
    %v7886 = vld [vmem:[%s7684 + $0x324] sm:$0xf]
    %v7887 = vld [vmem:[%s7684 + $0x328] sm:$0xf]
    %v7888 = vld [vmem:[%s7684 + $0x32c] sm:$0xf]
    %v7889 = vld [vmem:[%s7684 + $0x330] sm:$0xf]
    %v7890 = vld [vmem:[%s7684 + $0x334] sm:$0xf]
    %v7891 = vld [vmem:[%s7684 + $0x338] sm:$0xf]
    %v7892 = vld [vmem:[%s7684 + $0x33c] sm:$0xf]
    %v7893 = vld [vmem:[%s7684 + $0x340] sm:$0xf]
    %v7894 = vld [vmem:[%s7684 + $0x344] sm:$0xf]
    %v7895 = vld [vmem:[%s7684 + $0x348] sm:$0xf]
    %v7896 = vld [vmem:[%s7684 + $0x34c] sm:$0xf]
    %v7897 = vld [vmem:[%s7684 + $0x350] sm:$0xf]
    %v7898 = vld [vmem:[%s7684 + $0x354] sm:$0xf]
    %v7899 = vld [vmem:[%s7684 + $0x358] sm:$0xf]
    %v7900 = vld [vmem:[%s7684 + $0x35c] sm:$0xf]
    %v7901 = vld [vmem:[%s7684 + $0x360] sm:$0xf]
    %v7902 = vld [vmem:[%s7684 + $0x364] sm:$0xf]
    %v7903 = vld [vmem:[%s7684 + $0x368] sm:$0xf]
    %v7904 = vld [vmem:[%s7684 + $0x36c] sm:$0xf]
    %v7905 = vld [vmem:[%s7684 + $0x370] sm:$0xf]
    %v7906 = vld [vmem:[%s7684 + $0x374] sm:$0xf]
    %v7907 = vld [vmem:[%s7684 + $0x378] sm:$0xf]
    %v7908 = vld [vmem:[%s7684 + $0x37c] sm:$0xf]
    %v7909 = vld [vmem:[%s7684 + $0x380] sm:$0xf]
    %v7910 = vld [vmem:[%s7684 + $0x384] sm:$0xf]
    %v7911 = vld [vmem:[%s7684 + $0x388] sm:$0xf]
    %v7912 = vld [vmem:[%s7684 + $0x38c] sm:$0xf]
    %v7913 = vld [vmem:[%s7684 + $0x390] sm:$0xf]
    %v7914 = vld [vmem:[%s7684 + $0x394] sm:$0xf]
    %v7915 = vld [vmem:[%s7684 + $0x398] sm:$0xf]
    %v7916 = vld [vmem:[%s7684 + $0x39c] sm:$0xf]
    %v7917 = vld [vmem:[%s7684 + $0x3a0] sm:$0xf]
    %v7918 = vld [vmem:[%s7684 + $0x3a4] sm:$0xf]
    %v7919 = vld [vmem:[%s7684 + $0x3a8] sm:$0xf]
    %v7920 = vld [vmem:[%s7684 + $0x3ac] sm:$0xf]
    %v7921 = vld [vmem:[%s7684 + $0x3b0] sm:$0xf]
    %v7922 = vld [vmem:[%s7684 + $0x3b4] sm:$0xf]
    %v7923 = vld [vmem:[%s7684 + $0x3b8] sm:$0xf]
    %v7924 = vld [vmem:[%s7684 + $0x3bc] sm:$0xf]
    %v7925 = vld [vmem:[%s7684 + $0x3c0] sm:$0xf]
    %v7926 = vld [vmem:[%s7684 + $0x3c4] sm:$0xf]
    %v7927 = vld [vmem:[%s7684 + $0x3c8] sm:$0xf]
    %v7928 = vld [vmem:[%s7684 + $0x3cc] sm:$0xf]
    %v7929 = vld [vmem:[%s7684 + $0x3d0] sm:$0xf]
    %v7930 = vld [vmem:[%s7684 + $0x3d4] sm:$0xf]
    %v7931 = vld [vmem:[%s7684 + $0x3d8] sm:$0xf]
    %v7932 = vld [vmem:[%s7684 + $0x3dc] sm:$0xf]
    %v7933 = vld [vmem:[%s7684 + $0x3e0] sm:$0xf]
    %v7934 = vld [vmem:[%s7684 + $0x3e4] sm:$0xf]
    %v7935 = vld [vmem:[%s7684 + $0x3e8] sm:$0xf]
    %v7936 = vld [vmem:[%s7684 + $0x3ec] sm:$0xf]
    %v7937 = vld [vmem:[%s7684 + $0x3f0] sm:$0xf]
    %v7938 = vld [vmem:[%s7684 + $0x3f4] sm:$0xf]
    %v7939 = vld [vmem:[%s7684 + $0x3f8] sm:$0xf]
    %v7940 = vld [vmem:[%s7684 + $0x3fc] sm:$0xf]
    %s7941 = scalar_lea.vmem [#allocation13], 1
    %v7942 = vld [vmem:[%s7941] sm:$0x1]
    %v7944 = vlaneseq
    %v7945 = vshrl.u32 %v7944, 7
    %v7946 = vsub.s32 0, %v7945
    %v7947 = vrot.slane %v7942, %v7946
    %v8205 = vunpack.c.l.b16 %v7685
    %v8206 = vunpack.c.l.b16 %v7686
    %v8207 = vunpack.c.l.b16 %v7687
    %v8208 = vunpack.c.l.b16 %v7688
    %v8209 = vunpack.c.l.b16 %v7689
    %v8210 = vunpack.c.l.b16 %v7690
    %v8211 = vunpack.c.l.b16 %v7691
    %v8212 = vunpack.c.l.b16 %v7692
    %v8213 = vunpack.c.l.b16 %v7693
    %v8214 = vunpack.c.l.b16 %v7694
    %v8215 = vunpack.c.l.b16 %v7695
    %v8216 = vunpack.c.l.b16 %v7696
    %v8217 = vunpack.c.l.b16 %v7697
    %v8218 = vunpack.c.l.b16 %v7698
    %v8219 = vunpack.c.l.b16 %v7699
    %v8220 = vunpack.c.l.b16 %v7700
    %v8221 = vunpack.c.l.b16 %v7701
    %v8222 = vunpack.c.l.b16 %v7702
    %v8223 = vunpack.c.l.b16 %v7703
    %v8224 = vunpack.c.l.b16 %v7704
    %v8225 = vunpack.c.l.b16 %v7705
    %v8226 = vunpack.c.l.b16 %v7706
    %v8227 = vunpack.c.l.b16 %v7707
    %v8228 = vunpack.c.l.b16 %v7708
    %v8229 = vunpack.c.l.b16 %v7709
    %v8230 = vunpack.c.l.b16 %v7710
    %v8231 = vunpack.c.l.b16 %v7711
    %v8232 = vunpack.c.l.b16 %v7712
    %v8233 = vunpack.c.l.b16 %v7713
    %v8234 = vunpack.c.l.b16 %v7714
    %v8235 = vunpack.c.l.b16 %v7715
    %v8236 = vunpack.c.l.b16 %v7716
    %v8237 = vunpack.c.l.b16 %v7717
    %v8238 = vunpack.c.l.b16 %v7718
    %v8239 = vunpack.c.l.b16 %v7719
    %v8240 = vunpack.c.l.b16 %v7720
    %v8241 = vunpack.c.l.b16 %v7721
    %v8242 = vunpack.c.l.b16 %v7722
    %v8243 = vunpack.c.l.b16 %v7723
    %v8244 = vunpack.c.l.b16 %v7724
    %v8245 = vunpack.c.l.b16 %v7725
    %v8246 = vunpack.c.l.b16 %v7726
    %v8247 = vunpack.c.l.b16 %v7727
    %v8248 = vunpack.c.l.b16 %v7728
    %v8249 = vunpack.c.l.b16 %v7729
    %v8250 = vunpack.c.l.b16 %v7730
    %v8251 = vunpack.c.l.b16 %v7731
    %v8252 = vunpack.c.l.b16 %v7732
    %v8253 = vunpack.c.l.b16 %v7733
    %v8254 = vunpack.c.l.b16 %v7734
    %v8255 = vunpack.c.l.b16 %v7735
    %v8256 = vunpack.c.l.b16 %v7736
    %v8257 = vunpack.c.l.b16 %v7737
    %v8258 = vunpack.c.l.b16 %v7738
    %v8259 = vunpack.c.l.b16 %v7739
    %v8260 = vunpack.c.l.b16 %v7740
    %v8261 = vunpack.c.l.b16 %v7741
    %v8262 = vunpack.c.l.b16 %v7742
    %v8263 = vunpack.c.l.b16 %v7743
    %v8264 = vunpack.c.l.b16 %v7744
    %v8265 = vunpack.c.l.b16 %v7745
    %v8266 = vunpack.c.l.b16 %v7746
    %v8267 = vunpack.c.l.b16 %v7747
    %v8268 = vunpack.c.l.b16 %v7748
    %v8269 = vunpack.c.l.b16 %v7749
    %v8270 = vunpack.c.l.b16 %v7750
    %v8271 = vunpack.c.l.b16 %v7751
    %v8272 = vunpack.c.l.b16 %v7752
    %v8273 = vunpack.c.l.b16 %v7753
    %v8274 = vunpack.c.l.b16 %v7754
    %v8275 = vunpack.c.l.b16 %v7755
    %v8276 = vunpack.c.l.b16 %v7756
    %v8277 = vunpack.c.l.b16 %v7757
    %v8278 = vunpack.c.l.b16 %v7758
    %v8279 = vunpack.c.l.b16 %v7759
    %v8280 = vunpack.c.l.b16 %v7760
    %v8281 = vunpack.c.l.b16 %v7761
    %v8282 = vunpack.c.l.b16 %v7762
    %v8283 = vunpack.c.l.b16 %v7763
    %v8284 = vunpack.c.l.b16 %v7764
    %v8285 = vunpack.c.l.b16 %v7765
    %v8286 = vunpack.c.l.b16 %v7766
    %v8287 = vunpack.c.l.b16 %v7767
    %v8288 = vunpack.c.l.b16 %v7768
    %v8289 = vunpack.c.l.b16 %v7769
    %v8290 = vunpack.c.l.b16 %v7770
    %v8291 = vunpack.c.l.b16 %v7771
    %v8292 = vunpack.c.l.b16 %v7772
    %v8293 = vunpack.c.l.b16 %v7773
    %v8294 = vunpack.c.l.b16 %v7774
    %v8295 = vunpack.c.l.b16 %v7775
    %v8296 = vunpack.c.l.b16 %v7776
    %v8297 = vunpack.c.l.b16 %v7777
    %v8298 = vunpack.c.l.b16 %v7778
    %v8299 = vunpack.c.l.b16 %v7779
    %v8300 = vunpack.c.l.b16 %v7780
    %v8301 = vunpack.c.l.b16 %v7781
    %v8302 = vunpack.c.l.b16 %v7782
    %v8303 = vunpack.c.l.b16 %v7783
    %v8304 = vunpack.c.l.b16 %v7784
    %v8305 = vunpack.c.l.b16 %v7785
    %v8306 = vunpack.c.l.b16 %v7786
    %v8307 = vunpack.c.l.b16 %v7787
    %v8308 = vunpack.c.l.b16 %v7788
    %v8309 = vunpack.c.l.b16 %v7789
    %v8310 = vunpack.c.l.b16 %v7790
    %v8311 = vunpack.c.l.b16 %v7791
    %v8312 = vunpack.c.l.b16 %v7792
    %v8313 = vunpack.c.l.b16 %v7793
    %v8314 = vunpack.c.l.b16 %v7794
    %v8315 = vunpack.c.l.b16 %v7795
    %v8316 = vunpack.c.l.b16 %v7796
    %v8317 = vunpack.c.l.b16 %v7797
    %v8318 = vunpack.c.l.b16 %v7798
    %v8319 = vunpack.c.l.b16 %v7799
    %v8320 = vunpack.c.l.b16 %v7800
    %v8321 = vunpack.c.l.b16 %v7801
    %v8322 = vunpack.c.l.b16 %v7802
    %v8323 = vunpack.c.l.b16 %v7803
    %v8324 = vunpack.c.l.b16 %v7804
    %v8325 = vunpack.c.l.b16 %v7805
    %v8326 = vunpack.c.l.b16 %v7806
    %v8327 = vunpack.c.l.b16 %v7807
    %v8328 = vunpack.c.l.b16 %v7808
    %v8329 = vunpack.c.l.b16 %v7809
    %v8330 = vunpack.c.l.b16 %v7810
    %v8331 = vunpack.c.l.b16 %v7811
    %v8332 = vunpack.c.l.b16 %v7812
    %v8333 = vunpack.c.l.b16 %v7813
    %v8334 = vunpack.c.l.b16 %v7814
    %v8335 = vunpack.c.l.b16 %v7815
    %v8336 = vunpack.c.l.b16 %v7816
    %v8337 = vunpack.c.l.b16 %v7817
    %v8338 = vunpack.c.l.b16 %v7818
    %v8339 = vunpack.c.l.b16 %v7819
    %v8340 = vunpack.c.l.b16 %v7820
    %v8341 = vunpack.c.l.b16 %v7821
    %v8342 = vunpack.c.l.b16 %v7822
    %v8343 = vunpack.c.l.b16 %v7823
    %v8344 = vunpack.c.l.b16 %v7824
    %v8345 = vunpack.c.l.b16 %v7825
    %v8346 = vunpack.c.l.b16 %v7826
    %v8347 = vunpack.c.l.b16 %v7827
    %v8348 = vunpack.c.l.b16 %v7828
    %v8349 = vunpack.c.l.b16 %v7829
    %v8350 = vunpack.c.l.b16 %v7830
    %v8351 = vunpack.c.l.b16 %v7831
    %v8352 = vunpack.c.l.b16 %v7832
    %v8353 = vunpack.c.l.b16 %v7833
    %v8354 = vunpack.c.l.b16 %v7834
    %v8355 = vunpack.c.l.b16 %v7835
    %v8356 = vunpack.c.l.b16 %v7836
    %v8357 = vunpack.c.l.b16 %v7837
    %v8358 = vunpack.c.l.b16 %v7838
    %v8359 = vunpack.c.l.b16 %v7839
    %v8360 = vunpack.c.l.b16 %v7840
    %v8361 = vunpack.c.l.b16 %v7841
    %v8362 = vunpack.c.l.b16 %v7842
    %v8363 = vunpack.c.l.b16 %v7843
    %v8364 = vunpack.c.l.b16 %v7844
    %v8365 = vunpack.c.l.b16 %v7845
    %v8366 = vunpack.c.l.b16 %v7846
    %v8367 = vunpack.c.l.b16 %v7847
    %v8368 = vunpack.c.l.b16 %v7848
    %v8369 = vunpack.c.l.b16 %v7849
    %v8370 = vunpack.c.l.b16 %v7850
    %v8371 = vunpack.c.l.b16 %v7851
    %v8372 = vunpack.c.l.b16 %v7852
    %v8373 = vunpack.c.l.b16 %v7853
    %v8374 = vunpack.c.l.b16 %v7854
    %v8375 = vunpack.c.l.b16 %v7855
    %v8376 = vunpack.c.l.b16 %v7856
    %v8377 = vunpack.c.l.b16 %v7857
    %v8378 = vunpack.c.l.b16 %v7858
    %v8379 = vunpack.c.l.b16 %v7859
    %v8380 = vunpack.c.l.b16 %v7860
    %v8381 = vunpack.c.l.b16 %v7861
    %v8382 = vunpack.c.l.b16 %v7862
    %v8383 = vunpack.c.l.b16 %v7863
    %v8384 = vunpack.c.l.b16 %v7864
    %v8385 = vunpack.c.l.b16 %v7865
    %v8386 = vunpack.c.l.b16 %v7866
    %v8387 = vunpack.c.l.b16 %v7867
    %v8388 = vunpack.c.l.b16 %v7868
    %v8389 = vunpack.c.l.b16 %v7869
    %v8390 = vunpack.c.l.b16 %v7870
    %v8391 = vunpack.c.l.b16 %v7871
    %v8392 = vunpack.c.l.b16 %v7872
    %v8393 = vunpack.c.l.b16 %v7873
    %v8394 = vunpack.c.l.b16 %v7874
    %v8395 = vunpack.c.l.b16 %v7875
    %v8396 = vunpack.c.l.b16 %v7876
    %v8397 = vunpack.c.l.b16 %v7877
    %v8398 = vunpack.c.l.b16 %v7878
    %v8399 = vunpack.c.l.b16 %v7879
    %v8400 = vunpack.c.l.b16 %v7880
    %v8401 = vunpack.c.l.b16 %v7881
    %v8402 = vunpack.c.l.b16 %v7882
    %v8403 = vunpack.c.l.b16 %v7883
    %v8404 = vunpack.c.l.b16 %v7884
    %v8405 = vunpack.c.l.b16 %v7885
    %v8406 = vunpack.c.l.b16 %v7886
    %v8407 = vunpack.c.l.b16 %v7887
    %v8408 = vunpack.c.l.b16 %v7888
    %v8409 = vunpack.c.l.b16 %v7889
    %v8410 = vunpack.c.l.b16 %v7890
    %v8411 = vunpack.c.l.b16 %v7891
    %v8412 = vunpack.c.l.b16 %v7892
    %v8413 = vunpack.c.l.b16 %v7893
    %v8414 = vunpack.c.l.b16 %v7894
    %v8415 = vunpack.c.l.b16 %v7895
    %v8416 = vunpack.c.l.b16 %v7896
    %v8417 = vunpack.c.l.b16 %v7897
    %v8418 = vunpack.c.l.b16 %v7898
    %v8419 = vunpack.c.l.b16 %v7899
    %v8420 = vunpack.c.l.b16 %v7900
    %v8421 = vunpack.c.l.b16 %v7901
    %v8422 = vunpack.c.l.b16 %v7902
    %v8423 = vunpack.c.l.b16 %v7903
    %v8424 = vunpack.c.l.b16 %v7904
    %v8425 = vunpack.c.l.b16 %v7905
    %v8426 = vunpack.c.l.b16 %v7906
    %v8427 = vunpack.c.l.b16 %v7907
    %v8428 = vunpack.c.l.b16 %v7908
    %v8429 = vunpack.c.l.b16 %v7909
    %v8430 = vunpack.c.l.b16 %v7910
    %v8431 = vunpack.c.l.b16 %v7911
    %v8432 = vunpack.c.l.b16 %v7912
    %v8433 = vunpack.c.l.b16 %v7913
    %v8434 = vunpack.c.l.b16 %v7914
    %v8435 = vunpack.c.l.b16 %v7915
    %v8436 = vunpack.c.l.b16 %v7916
    %v8437 = vunpack.c.l.b16 %v7917
    %v8438 = vunpack.c.l.b16 %v7918
    %v8439 = vunpack.c.l.b16 %v7919
    %v8440 = vunpack.c.l.b16 %v7920
    %v8441 = vunpack.c.l.b16 %v7921
    %v8442 = vunpack.c.l.b16 %v7922
    %v8443 = vunpack.c.l.b16 %v7923
    %v8444 = vunpack.c.l.b16 %v7924
    %v8445 = vunpack.c.l.b16 %v7925
    %v8446 = vunpack.c.l.b16 %v7926
    %v8447 = vunpack.c.l.b16 %v7927
    %v8448 = vunpack.c.l.b16 %v7928
    %v8449 = vunpack.c.l.b16 %v7929
    %v8450 = vunpack.c.l.b16 %v7930
    %v8451 = vunpack.c.l.b16 %v7931
    %v8452 = vunpack.c.l.b16 %v7932
    %v8453 = vunpack.c.l.b16 %v7933
    %v8454 = vunpack.c.l.b16 %v7934
    %v8455 = vunpack.c.l.b16 %v7935
    %v8456 = vunpack.c.l.b16 %v7936
    %v8457 = vunpack.c.l.b16 %v7937
    %v8458 = vunpack.c.l.b16 %v7938
    %v8459 = vunpack.c.l.b16 %v7939
    %v8460 = vunpack.c.l.b16 %v7940
    %v8461 = vpack.c.b16 %v8206, %v8205
    %v8462 = vpack.c.b16 %v8208, %v8207
    %v8463 = vpack.c.b16 %v8210, %v8209
    %v8464 = vpack.c.b16 %v8212, %v8211
    %v8465 = vpack.c.b16 %v8214, %v8213
    %v8466 = vpack.c.b16 %v8216, %v8215
    %v8467 = vpack.c.b16 %v8218, %v8217
    %v8468 = vpack.c.b16 %v8220, %v8219
    %v8469 = vpack.c.b16 %v8222, %v8221
    %v8470 = vpack.c.b16 %v8224, %v8223
    %v8471 = vpack.c.b16 %v8226, %v8225
    %v8472 = vpack.c.b16 %v8228, %v8227
    %v8473 = vpack.c.b16 %v8230, %v8229
    %v8474 = vpack.c.b16 %v8232, %v8231
    %v8475 = vpack.c.b16 %v8234, %v8233
    %v8476 = vpack.c.b16 %v8236, %v8235
    %v8477 = vpack.c.b16 %v8238, %v8237
    %v8478 = vpack.c.b16 %v8240, %v8239
    %v8479 = vpack.c.b16 %v8242, %v8241
    %v8480 = vpack.c.b16 %v8244, %v8243
    %v8481 = vpack.c.b16 %v8246, %v8245
    %v8482 = vpack.c.b16 %v8248, %v8247
    %v8483 = vpack.c.b16 %v8250, %v8249
    %v8484 = vpack.c.b16 %v8252, %v8251
    %v8485 = vpack.c.b16 %v8254, %v8253
    %v8486 = vpack.c.b16 %v8256, %v8255
    %v8487 = vpack.c.b16 %v8258, %v8257
    %v8488 = vpack.c.b16 %v8260, %v8259
    %v8489 = vpack.c.b16 %v8262, %v8261
    %v8490 = vpack.c.b16 %v8264, %v8263
    %v8491 = vpack.c.b16 %v8266, %v8265
    %v8492 = vpack.c.b16 %v8268, %v8267
    %v8493 = vpack.c.b16 %v8270, %v8269
    %v8494 = vpack.c.b16 %v8272, %v8271
    %v8495 = vpack.c.b16 %v8274, %v8273
    %v8496 = vpack.c.b16 %v8276, %v8275
    %v8497 = vpack.c.b16 %v8278, %v8277
    %v8498 = vpack.c.b16 %v8280, %v8279
    %v8499 = vpack.c.b16 %v8282, %v8281
    %v8500 = vpack.c.b16 %v8284, %v8283
    %v8501 = vpack.c.b16 %v8286, %v8285
    %v8502 = vpack.c.b16 %v8288, %v8287
    %v8503 = vpack.c.b16 %v8290, %v8289
    %v8504 = vpack.c.b16 %v8292, %v8291
    %v8505 = vpack.c.b16 %v8294, %v8293
    %v8506 = vpack.c.b16 %v8296, %v8295
    %v8507 = vpack.c.b16 %v8298, %v8297
    %v8508 = vpack.c.b16 %v8300, %v8299
    %v8509 = vpack.c.b16 %v8302, %v8301
    %v8510 = vpack.c.b16 %v8304, %v8303
    %v8511 = vpack.c.b16 %v8306, %v8305
    %v8512 = vpack.c.b16 %v8308, %v8307
    %v8513 = vpack.c.b16 %v8310, %v8309
    %v8514 = vpack.c.b16 %v8312, %v8311
    %v8515 = vpack.c.b16 %v8314, %v8313
    %v8516 = vpack.c.b16 %v8316, %v8315
    %v8517 = vpack.c.b16 %v8318, %v8317
    %v8518 = vpack.c.b16 %v8320, %v8319
    %v8519 = vpack.c.b16 %v8322, %v8321
    %v8520 = vpack.c.b16 %v8324, %v8323
    %v8521 = vpack.c.b16 %v8326, %v8325
    %v8522 = vpack.c.b16 %v8328, %v8327
    %v8523 = vpack.c.b16 %v8330, %v8329
    %v8524 = vpack.c.b16 %v8332, %v8331
    %v8525 = vpack.c.b16 %v8334, %v8333
    %v8526 = vpack.c.b16 %v8336, %v8335
    %v8527 = vpack.c.b16 %v8338, %v8337
    %v8528 = vpack.c.b16 %v8340, %v8339
    %v8529 = vpack.c.b16 %v8342, %v8341
    %v8530 = vpack.c.b16 %v8344, %v8343
    %v8531 = vpack.c.b16 %v8346, %v8345
    %v8532 = vpack.c.b16 %v8348, %v8347
    %v8533 = vpack.c.b16 %v8350, %v8349
    %v8534 = vpack.c.b16 %v8352, %v8351
    %v8535 = vpack.c.b16 %v8354, %v8353
    %v8536 = vpack.c.b16 %v8356, %v8355
    %v8537 = vpack.c.b16 %v8358, %v8357
    %v8538 = vpack.c.b16 %v8360, %v8359
    %v8539 = vpack.c.b16 %v8362, %v8361
    %v8540 = vpack.c.b16 %v8364, %v8363
    %v8541 = vpack.c.b16 %v8366, %v8365
    %v8542 = vpack.c.b16 %v8368, %v8367
    %v8543 = vpack.c.b16 %v8370, %v8369
    %v8544 = vpack.c.b16 %v8372, %v8371
    %v8545 = vpack.c.b16 %v8374, %v8373
    %v8546 = vpack.c.b16 %v8376, %v8375
    %v8547 = vpack.c.b16 %v8378, %v8377
    %v8548 = vpack.c.b16 %v8380, %v8379
    %v8549 = vpack.c.b16 %v8382, %v8381
    %v8550 = vpack.c.b16 %v8384, %v8383
    %v8551 = vpack.c.b16 %v8386, %v8385
    %v8552 = vpack.c.b16 %v8388, %v8387
    %v8553 = vpack.c.b16 %v8390, %v8389
    %v8554 = vpack.c.b16 %v8392, %v8391
    %v8555 = vpack.c.b16 %v8394, %v8393
    %v8556 = vpack.c.b16 %v8396, %v8395
    %v8557 = vpack.c.b16 %v8398, %v8397
    %v8558 = vpack.c.b16 %v8400, %v8399
    %v8559 = vpack.c.b16 %v8402, %v8401
    %v8560 = vpack.c.b16 %v8404, %v8403
    %v8561 = vpack.c.b16 %v8406, %v8405
    %v8562 = vpack.c.b16 %v8408, %v8407
    %v8563 = vpack.c.b16 %v8410, %v8409
    %v8564 = vpack.c.b16 %v8412, %v8411
    %v8565 = vpack.c.b16 %v8414, %v8413
    %v8566 = vpack.c.b16 %v8416, %v8415
    %v8567 = vpack.c.b16 %v8418, %v8417
    %v8568 = vpack.c.b16 %v8420, %v8419
    %v8569 = vpack.c.b16 %v8422, %v8421
    %v8570 = vpack.c.b16 %v8424, %v8423
    %v8571 = vpack.c.b16 %v8426, %v8425
    %v8572 = vpack.c.b16 %v8428, %v8427
    %v8573 = vpack.c.b16 %v8430, %v8429
    %v8574 = vpack.c.b16 %v8432, %v8431
    %v8575 = vpack.c.b16 %v8434, %v8433
    %v8576 = vpack.c.b16 %v8436, %v8435
    %v8577 = vpack.c.b16 %v8438, %v8437
    %v8578 = vpack.c.b16 %v8440, %v8439
    %v8579 = vpack.c.b16 %v8442, %v8441
    %v8580 = vpack.c.b16 %v8444, %v8443
    %v8581 = vpack.c.b16 %v8446, %v8445
    %v8582 = vpack.c.b16 %v8448, %v8447
    %v8583 = vpack.c.b16 %v8450, %v8449
    %v8584 = vpack.c.b16 %v8452, %v8451
    %v8585 = vpack.c.b16 %v8454, %v8453
    %v8586 = vpack.c.b16 %v8456, %v8455
    %v8587 = vpack.c.b16 %v8458, %v8457
    %v8588 = vpack.c.b16 %v8460, %v8459
    %8717 = vmatprep.subr.bf16.mxu0 0
    %8718 = vmatpush1.bf16.msra.mxu0 %v8461
    %8719 = vmatprep.subr.bf16.mxu0 0
    %8720 = vmatpush1.bf16.msra.mxu0 %v8462
    %8721 = vmatprep.subr.bf16.mxu0 0
    %8722 = vmatpush1.bf16.msra.mxu0 %v8463
    %8723 = vmatprep.subr.bf16.mxu0 0
    %8724 = vmatpush1.bf16.msra.mxu0 %v8464
    %8725 = vmatprep.subr.bf16.mxu0 0
    %8726 = vmatpush1.bf16.msra.mxu0 %v8465
    %8727 = vmatprep.subr.bf16.mxu0 0
    %8728 = vmatpush1.bf16.msra.mxu0 %v8466
    %8729 = vmatprep.subr.bf16.mxu0 0
    %8730 = vmatpush1.bf16.msra.mxu0 %v8467
    %8731 = vmatprep.subr.bf16.mxu0 0
    %8732 = vmatpush1.bf16.msra.mxu0 %v8468
    %8733 = vmatprep.subr.bf16.mxu0 0
    %8734 = vmatpush1.bf16.msra.mxu0 %v8469
    %8735 = vmatprep.subr.bf16.mxu0 0
    %8736 = vmatpush1.bf16.msra.mxu0 %v8470
    %8737 = vmatprep.subr.bf16.mxu0 0
    %8738 = vmatpush1.bf16.msra.mxu0 %v8471
    %8739 = vmatprep.subr.bf16.mxu0 0
    %8740 = vmatpush1.bf16.msra.mxu0 %v8472
    %8741 = vmatprep.subr.bf16.mxu0 0
    %8742 = vmatpush1.bf16.msra.mxu0 %v8473
    %8743 = vmatprep.subr.bf16.mxu0 0
    %8744 = vmatpush1.bf16.msra.mxu0 %v8474
    %8745 = vmatprep.subr.bf16.mxu0 0
    %8746 = vmatpush1.bf16.msra.mxu0 %v8475
    %8747 = vmatprep.subr.bf16.mxu0 0
    %8748 = vmatpush1.bf16.msra.mxu0 %v8476
    %8749 = vmatprep.mubr.bf16.mxu0 %v7669
    %8750 = vmatmul.mubr.bf16.gmra.mrb[0].mxu0 %v7668
    %v8751 = vpop.f32.mrb[0].mxu0
    %v8752 = vadd.f32 %v7947, %v8751
    %v8753 = vpop.f32.mrb[0].mxu0
    %v8754 = vpop.f32.mrb[0].mxu0
    %v8755 = vadd.f32 %v7947, %v8754
    %v8756 = vpop.f32.mrb[0].mxu0
    %8757 = vdwg.mxu0
    %8758 = vmatprep.subr.bf16.mxu0 0
    %8759 = vmatpush1.bf16.msra.mxu0 %v8477
    %8760 = vmatprep.subr.bf16.mxu0 0
    %8761 = vmatpush1.bf16.msra.mxu0 %v8478
    %8762 = vmatprep.subr.bf16.mxu0 0
    %8763 = vmatpush1.bf16.msra.mxu0 %v8479
    %8764 = vmatprep.subr.bf16.mxu0 0
    %8765 = vmatpush1.bf16.msra.mxu0 %v8480
    %8766 = vmatprep.subr.bf16.mxu0 0
    %8767 = vmatpush1.bf16.msra.mxu0 %v8481
    %8768 = vmatprep.subr.bf16.mxu0 0
    %8769 = vmatpush1.bf16.msra.mxu0 %v8482
    %8770 = vmatprep.subr.bf16.mxu0 0
    %8771 = vmatpush1.bf16.msra.mxu0 %v8483
    %8772 = vmatprep.subr.bf16.mxu0 0
    %8773 = vmatpush1.bf16.msra.mxu0 %v8484
    %8774 = vmatprep.subr.bf16.mxu0 0
    %8775 = vmatpush1.bf16.msra.mxu0 %v8485
    %8776 = vmatprep.subr.bf16.mxu0 0
    %8777 = vmatpush1.bf16.msra.mxu0 %v8486
    %8778 = vmatprep.subr.bf16.mxu0 0
    %8779 = vmatpush1.bf16.msra.mxu0 %v8487
    %8780 = vmatprep.subr.bf16.mxu0 0
    %8781 = vmatpush1.bf16.msra.mxu0 %v8488
    %8782 = vmatprep.subr.bf16.mxu0 0
    %8783 = vmatpush1.bf16.msra.mxu0 %v8489
    %8784 = vmatprep.subr.bf16.mxu0 0
    %8785 = vmatpush1.bf16.msra.mxu0 %v8490
    %8786 = vmatprep.subr.bf16.mxu0 0
    %8787 = vmatpush1.bf16.msra.mxu0 %v8491
    %8788 = vmatprep.subr.bf16.mxu0 0
    %8789 = vmatpush1.bf16.msra.mxu0 %v8492
    %8790 = vmatprep.mubr.bf16.mxu0 %v7671
    %8791 = vmatmul.mubr.bf16.gmra.mrb[0].mxu0 %v7670
    %v8792 = vpop.f32.mrb[0].mxu0
    %v8793 = vadd.f32 %v8752, %v8792
    %v8794 = vpop.f32.mrb[0].mxu0
    %v8795 = vpop.f32.mrb[0].mxu0
    %v8796 = vadd.f32 %v8755, %v8795
    %v8797 = vpop.f32.mrb[0].mxu0
    %8798 = vdwg.mxu0
    %8799 = vmatprep.subr.bf16.mxu0 0
    %8800 = vmatpush1.bf16.msra.mxu0 %v8493
    %8801 = vmatprep.subr.bf16.mxu0 0
    %8802 = vmatpush1.bf16.msra.mxu0 %v8494
    %8803 = vmatprep.subr.bf16.mxu0 0
    %8804 = vmatpush1.bf16.msra.mxu0 %v8495
    %8805 = vmatprep.subr.bf16.mxu0 0
    %8806 = vmatpush1.bf16.msra.mxu0 %v8496
    %8807 = vmatprep.subr.bf16.mxu0 0
    %8808 = vmatpush1.bf16.msra.mxu0 %v8497
    %8809 = vmatprep.subr.bf16.mxu0 0
    %8810 = vmatpush1.bf16.msra.mxu0 %v8498
    %8811 = vmatprep.subr.bf16.mxu0 0
    %8812 = vmatpush1.bf16.msra.mxu0 %v8499
    %8813 = vmatprep.subr.bf16.mxu0 0
    %8814 = vmatpush1.bf16.msra.mxu0 %v8500
    %8815 = vmatprep.subr.bf16.mxu0 0
    %8816 = vmatpush1.bf16.msra.mxu0 %v8501
    %8817 = vmatprep.subr.bf16.mxu0 0
    %8818 = vmatpush1.bf16.msra.mxu0 %v8502
    %8819 = vmatprep.subr.bf16.mxu0 0
    %8820 = vmatpush1.bf16.msra.mxu0 %v8503
    %8821 = vmatprep.subr.bf16.mxu0 0
    %8822 = vmatpush1.bf16.msra.mxu0 %v8504
    %8823 = vmatprep.subr.bf16.mxu0 0
    %8824 = vmatpush1.bf16.msra.mxu0 %v8505
    %8825 = vmatprep.subr.bf16.mxu0 0
    %8826 = vmatpush1.bf16.msra.mxu0 %v8506
    %8827 = vmatprep.subr.bf16.mxu0 0
    %8828 = vmatpush1.bf16.msra.mxu0 %v8507
    %8829 = vmatprep.subr.bf16.mxu0 0
    %8830 = vmatpush1.bf16.msra.mxu0 %v8508
    %8831 = vmatprep.mubr.bf16.mxu0 %v7673
    %8832 = vmatmul.mubr.bf16.gmra.mrb[0].mxu0 %v7672
    %v8833 = vpop.f32.mrb[0].mxu0
    %v8834 = vadd.f32 %v8793, %v8833
    %v8835 = vpop.f32.mrb[0].mxu0
    %v8836 = vpop.f32.mrb[0].mxu0
    %v8837 = vadd.f32 %v8796, %v8836
    %v8838 = vpop.f32.mrb[0].mxu0
    %8839 = vdwg.mxu0
    %8840 = vmatprep.subr.bf16.mxu0 0
    %8841 = vmatpush1.bf16.msra.mxu0 %v8509
    %8842 = vmatprep.subr.bf16.mxu0 0
    %8843 = vmatpush1.bf16.msra.mxu0 %v8510
    %8844 = vmatprep.subr.bf16.mxu0 0
    %8845 = vmatpush1.bf16.msra.mxu0 %v8511
    %8846 = vmatprep.subr.bf16.mxu0 0
    %8847 = vmatpush1.bf16.msra.mxu0 %v8512
    %8848 = vmatprep.subr.bf16.mxu0 0
    %8849 = vmatpush1.bf16.msra.mxu0 %v8513
    %8850 = vmatprep.subr.bf16.mxu0 0
    %8851 = vmatpush1.bf16.msra.mxu0 %v8514
    %8852 = vmatprep.subr.bf16.mxu0 0
    %8853 = vmatpush1.bf16.msra.mxu0 %v8515
    %8854 = vmatprep.subr.bf16.mxu0 0
    %8855 = vmatpush1.bf16.msra.mxu0 %v8516
    %8856 = vmatprep.subr.bf16.mxu0 0
    %8857 = vmatpush1.bf16.msra.mxu0 %v8517
    %8858 = vmatprep.subr.bf16.mxu0 0
    %8859 = vmatpush1.bf16.msra.mxu0 %v8518
    %8860 = vmatprep.subr.bf16.mxu0 0
    %8861 = vmatpush1.bf16.msra.mxu0 %v8519
    %8862 = vmatprep.subr.bf16.mxu0 0
    %8863 = vmatpush1.bf16.msra.mxu0 %v8520
    %8864 = vmatprep.subr.bf16.mxu0 0
    %8865 = vmatpush1.bf16.msra.mxu0 %v8521
    %8866 = vmatprep.subr.bf16.mxu0 0
    %8867 = vmatpush1.bf16.msra.mxu0 %v8522
    %8868 = vmatprep.subr.bf16.mxu0 0
    %8869 = vmatpush1.bf16.msra.mxu0 %v8523
    %8870 = vmatprep.subr.bf16.mxu0 0
    %8871 = vmatpush1.bf16.msra.mxu0 %v8524
    %8872 = vmatprep.mubr.bf16.mxu0 %v7675
    %8873 = vmatmul.mubr.bf16.gmra.mrb[0].mxu0 %v7674
    %v8874 = vpop.f32.mrb[0].mxu0
    %v8875 = vadd.f32 %v8834, %v8874
    %v8876 = vpop.f32.mrb[0].mxu0
    %v8877 = vpop.f32.mrb[0].mxu0
    %v8878 = vadd.f32 %v8837, %v8877
    %v8879 = vpop.f32.mrb[0].mxu0
    %8880 = vdwg.mxu0
    %8881 = vmatprep.subr.bf16.mxu0 0
    %8882 = vmatpush1.bf16.msra.mxu0 %v8525
    %8883 = vmatprep.subr.bf16.mxu0 0
    %8884 = vmatpush1.bf16.msra.mxu0 %v8526
    %8885 = vmatprep.subr.bf16.mxu0 0
    %8886 = vmatpush1.bf16.msra.mxu0 %v8527
    %8887 = vmatprep.subr.bf16.mxu0 0
    %8888 = vmatpush1.bf16.msra.mxu0 %v8528
    %8889 = vmatprep.subr.bf16.mxu0 0
    %8890 = vmatpush1.bf16.msra.mxu0 %v8529
    %8891 = vmatprep.subr.bf16.mxu0 0
    %8892 = vmatpush1.bf16.msra.mxu0 %v8530
    %8893 = vmatprep.subr.bf16.mxu0 0
    %8894 = vmatpush1.bf16.msra.mxu0 %v8531
    %8895 = vmatprep.subr.bf16.mxu0 0
    %8896 = vmatpush1.bf16.msra.mxu0 %v8532
    %8897 = vmatprep.subr.bf16.mxu0 0
    %8898 = vmatpush1.bf16.msra.mxu0 %v8533
    %8899 = vmatprep.subr.bf16.mxu0 0
    %8900 = vmatpush1.bf16.msra.mxu0 %v8534
    %8901 = vmatprep.subr.bf16.mxu0 0
    %8902 = vmatpush1.bf16.msra.mxu0 %v8535
    %8903 = vmatprep.subr.bf16.mxu0 0
    %8904 = vmatpush1.bf16.msra.mxu0 %v8536
    %8905 = vmatprep.subr.bf16.mxu0 0
    %8906 = vmatpush1.bf16.msra.mxu0 %v8537
    %8907 = vmatprep.subr.bf16.mxu0 0
    %8908 = vmatpush1.bf16.msra.mxu0 %v8538
    %8909 = vmatprep.subr.bf16.mxu0 0
    %8910 = vmatpush1.bf16.msra.mxu0 %v8539
    %8911 = vmatprep.subr.bf16.mxu0 0
    %8912 = vmatpush1.bf16.msra.mxu0 %v8540
    %8913 = vmatprep.mubr.bf16.mxu0 %v7677
    %8914 = vmatmul.mubr.bf16.gmra.mrb[0].mxu0 %v7676
    %v8915 = vpop.f32.mrb[0].mxu0
    %v8916 = vadd.f32 %v8875, %v8915
    %v8917 = vpop.f32.mrb[0].mxu0
    %v8918 = vpop.f32.mrb[0].mxu0
    %v8919 = vadd.f32 %v8878, %v8918
    %v8920 = vpop.f32.mrb[0].mxu0
    %8921 = vdwg.mxu0
    %8922 = vmatprep.subr.bf16.mxu0 0
    %8923 = vmatpush1.bf16.msra.mxu0 %v8541
    %8924 = vmatprep.subr.bf16.mxu0 0
    %8925 = vmatpush1.bf16.msra.mxu0 %v8542
    %8926 = vmatprep.subr.bf16.mxu0 0
    %8927 = vmatpush1.bf16.msra.mxu0 %v8543
    %8928 = vmatprep.subr.bf16.mxu0 0
    %8929 = vmatpush1.bf16.msra.mxu0 %v8544
    %8930 = vmatprep.subr.bf16.mxu0 0
    %8931 = vmatpush1.bf16.msra.mxu0 %v8545
    %8932 = vmatprep.subr.bf16.mxu0 0
    %8933 = vmatpush1.bf16.msra.mxu0 %v8546
    %8934 = vmatprep.subr.bf16.mxu0 0
    %8935 = vmatpush1.bf16.msra.mxu0 %v8547
    %8936 = vmatprep.subr.bf16.mxu0 0
    %8937 = vmatpush1.bf16.msra.mxu0 %v8548
    %8938 = vmatprep.subr.bf16.mxu0 0
    %8939 = vmatpush1.bf16.msra.mxu0 %v8549
    %8940 = vmatprep.subr.bf16.mxu0 0
    %8941 = vmatpush1.bf16.msra.mxu0 %v8550
    %8942 = vmatprep.subr.bf16.mxu0 0
    %8943 = vmatpush1.bf16.msra.mxu0 %v8551
    %8944 = vmatprep.subr.bf16.mxu0 0
    %8945 = vmatpush1.bf16.msra.mxu0 %v8552
    %8946 = vmatprep.subr.bf16.mxu0 0
    %8947 = vmatpush1.bf16.msra.mxu0 %v8553
    %8948 = vmatprep.subr.bf16.mxu0 0
    %8949 = vmatpush1.bf16.msra.mxu0 %v8554
    %8950 = vmatprep.subr.bf16.mxu0 0
    %8951 = vmatpush1.bf16.msra.mxu0 %v8555
    %8952 = vmatprep.subr.bf16.mxu0 0
    %8953 = vmatpush1.bf16.msra.mxu0 %v8556
    %8954 = vmatprep.mubr.bf16.mxu0 %v7679
    %8955 = vmatmul.mubr.bf16.gmra.mrb[0].mxu0 %v7678
    %v8956 = vpop.f32.mrb[0].mxu0
    %v8957 = vadd.f32 %v8916, %v8956
    %v8958 = vpop.f32.mrb[0].mxu0
    %v8959 = vpop.f32.mrb[0].mxu0
    %v8960 = vadd.f32 %v8919, %v8959
    %v8961 = vpop.f32.mrb[0].mxu0
    %8962 = vdwg.mxu0
    %8963 = vmatprep.subr.bf16.mxu0 0
    %8964 = vmatpush1.bf16.msra.mxu0 %v8557
    %8965 = vmatprep.subr.bf16.mxu0 0
    %8966 = vmatpush1.bf16.msra.mxu0 %v8558
    %8967 = vmatprep.subr.bf16.mxu0 0
    %8968 = vmatpush1.bf16.msra.mxu0 %v8559
    %8969 = vmatprep.subr.bf16.mxu0 0
    %8970 = vmatpush1.bf16.msra.mxu0 %v8560
    %8971 = vmatprep.subr.bf16.mxu0 0
    %8972 = vmatpush1.bf16.msra.mxu0 %v8561
    %8973 = vmatprep.subr.bf16.mxu0 0
    %8974 = vmatpush1.bf16.msra.mxu0 %v8562
    %8975 = vmatprep.subr.bf16.mxu0 0
    %8976 = vmatpush1.bf16.msra.mxu0 %v8563
    %8977 = vmatprep.subr.bf16.mxu0 0
    %8978 = vmatpush1.bf16.msra.mxu0 %v8564
    %8979 = vmatprep.subr.bf16.mxu0 0
    %8980 = vmatpush1.bf16.msra.mxu0 %v8565
    %8981 = vmatprep.subr.bf16.mxu0 0
    %8982 = vmatpush1.bf16.msra.mxu0 %v8566
    %8983 = vmatprep.subr.bf16.mxu0 0
    %8984 = vmatpush1.bf16.msra.mxu0 %v8567
    %8985 = vmatprep.subr.bf16.mxu0 0
    %8986 = vmatpush1.bf16.msra.mxu0 %v8568
    %8987 = vmatprep.subr.bf16.mxu0 0
    %8988 = vmatpush1.bf16.msra.mxu0 %v8569
    %8989 = vmatprep.subr.bf16.mxu0 0
    %8990 = vmatpush1.bf16.msra.mxu0 %v8570
    %8991 = vmatprep.subr.bf16.mxu0 0
    %8992 = vmatpush1.bf16.msra.mxu0 %v8571
    %8993 = vmatprep.subr.bf16.mxu0 0
    %8994 = vmatpush1.bf16.msra.mxu0 %v8572
    %8995 = vmatprep.mubr.bf16.mxu0 %v7681
    %8996 = vmatmul.mubr.bf16.gmra.mrb[0].mxu0 %v7680
    %v8997 = vpop.f32.mrb[0].mxu0
    %v8998 = vadd.f32 %v8957, %v8997
    %v8999 = vpop.f32.mrb[0].mxu0
    %v9000 = vpop.f32.mrb[0].mxu0
    %v9001 = vadd.f32 %v8960, %v9000
    %v9002 = vpop.f32.mrb[0].mxu0
    %9003 = vdwg.mxu0
    %9004 = vmatprep.subr.bf16.mxu0 0
    %9005 = vmatpush1.bf16.msra.mxu0 %v8573
    %9006 = vmatprep.subr.bf16.mxu0 0
    %9007 = vmatpush1.bf16.msra.mxu0 %v8574
    %9008 = vmatprep.subr.bf16.mxu0 0
    %9009 = vmatpush1.bf16.msra.mxu0 %v8575
    %9010 = vmatprep.subr.bf16.mxu0 0
    %9011 = vmatpush1.bf16.msra.mxu0 %v8576
    %9012 = vmatprep.subr.bf16.mxu0 0
    %9013 = vmatpush1.bf16.msra.mxu0 %v8577
    %9014 = vmatprep.subr.bf16.mxu0 0
    %9015 = vmatpush1.bf16.msra.mxu0 %v8578
    %9016 = vmatprep.subr.bf16.mxu0 0
    %9017 = vmatpush1.bf16.msra.mxu0 %v8579
    %9018 = vmatprep.subr.bf16.mxu0 0
    %9019 = vmatpush1.bf16.msra.mxu0 %v8580
    %9020 = vmatprep.subr.bf16.mxu0 0
    %9021 = vmatpush1.bf16.msra.mxu0 %v8581
    %9022 = vmatprep.subr.bf16.mxu0 0
    %9023 = vmatpush1.bf16.msra.mxu0 %v8582
    %9024 = vmatprep.subr.bf16.mxu0 0
    %9025 = vmatpush1.bf16.msra.mxu0 %v8583
    %9026 = vmatprep.subr.bf16.mxu0 0
    %9027 = vmatpush1.bf16.msra.mxu0 %v8584
    %9028 = vmatprep.subr.bf16.mxu0 0
    %9029 = vmatpush1.bf16.msra.mxu0 %v8585
    %9030 = vmatprep.subr.bf16.mxu0 0
    %9031 = vmatpush1.bf16.msra.mxu0 %v8586
    %9032 = vmatprep.subr.bf16.mxu0 0
    %9033 = vmatpush1.bf16.msra.mxu0 %v8587
    %9034 = vmatprep.subr.bf16.mxu0 0
    %9035 = vmatpush1.bf16.msra.mxu0 %v8588
    %9036 = vmatprep.mubr.bf16.mxu0 %v7683
    %9037 = vmatmul.mubr.bf16.gmra.mrb[0].mxu0 %v7682
    %v9038 = vpop.f32.mrb[0].mxu0
    %v9039 = vadd.f32 %v8998, %v9038
    %v9040 = vpop.f32.mrb[0].mxu0
    %v9041 = vpop.f32.mrb[0].mxu0
    %v9042 = vadd.f32 %v9001, %v9041
    %v9043 = vpop.f32.mrb[0].mxu0
    %9044 = vdwg.mxu0
    %v9045 = vadd.f32 %v6435, %v9039
    %v9046 = vadd.f32 %v6436, %v9042
    %9047 = vadd.xlane.f32.xlu0 %v9045
    %v9048 = vpop.xlane.xlu0 %9047
    %9049 = vadd.xlane.f32.xlu0 %v9046
    %v9050 = vpop.xlane.xlu0 %9049
    %v9051 = vmul.f32 %v9048, %v1104
    %v9052 = vmul.f32 %v9050, %v1104
    %v9053 = vsub.f32 %v9045, %v9051
    %v9054 = vsub.f32 %v9046, %v9052
    %v9055 = vmul.f32 %v9053, %v9053
    %v9056 = vmul.f32 %v9054, %v9054
    %9057 = vadd.xlane.f32.xlu0 %v9055
    %v9058 = vpop.xlane.xlu0 %9057
    %9059 = vadd.xlane.f32.xlu0 %v9056
    %v9060 = vpop.xlane.xlu0 %9059
    %v9061 = vmul.f32 %v9058, %v1104
    %v9062 = vmul.f32 %v9060, %v1104
    %v9063 = vadd.f32 %v9061, 1e-05
    %v9064 = vadd.f32 %v9062, 1e-05
    %v9065 = vrsqrt.pop %v9063
    %v9066 = vrsqrt.pop %v9064
    %v9067 = vmul.f32 %v9053, %v9065
    %v9068 = vmul.f32 %v9054, %v9066
    %v9070 = vlaneseq
    %v9071 = vshrl.u32 %v9070, 7
    %v9072 = vsub.s32 0, %v9071
    %v9073 = vrot.slane %v4666, %v9072
    %v9075 = vmul.f32 %v9067, %v9073
    %v9076 = vmul.f32 %v9068, %v9073
    %v9078 = vlaneseq
    %v9079 = vshrl.u32 %v9078, 7
    %v9080 = vsub.s32 0, %v9079
    %v9081 = vrot.slane %v4670, %v9080
    %v9083 = vadd.f32 %v9075, %v9081
    %v9084 = vadd.f32 %v9076, %v9081
    %v9085 = vld [vmem:[%s18] sm:$0x1]
    %v9086 = vld [vmem:[#allocation18] sm:$0x1]
    %9087 = vadd.xlane.f32.xlu0 %v9083
    %v9088 = vpop.xlane.xlu0 %9087
    %9089 = vadd.xlane.f32.xlu0 %v9084
    %v9090 = vpop.xlane.xlu0 %9089
    %v9091 = vmul.f32 %v9088, %v1104
    %v9092 = vmul.f32 %v9090, %v1104
    %v9093 = vsub.f32 %v9083, %v9091
    %v9094 = vsub.f32 %v9084, %v9092
    %v9095 = vmul.f32 %v9093, %v9093
    %v9096 = vmul.f32 %v9094, %v9094
    %9097 = vadd.xlane.f32.xlu0 %v9095
    %v9098 = vpop.xlane.xlu0 %9097
    %9099 = vadd.xlane.f32.xlu0 %v9096
    %v9100 = vpop.xlane.xlu0 %9099
    %v9101 = vmul.f32 %v9098, %v1104
    %v9102 = vmul.f32 %v9100, %v1104
    %v9103 = vadd.f32 %v9101, 1e-05
    %v9104 = vadd.f32 %v9102, 1e-05
    %v9105 = vrsqrt.pop %v9103
    %v9106 = vrsqrt.pop %v9104
    %v9107 = vmul.f32 %v9093, %v9105
    %v9108 = vmul.f32 %v9094, %v9106
    %v9110 = vlaneseq
    %v9111 = vshrl.u32 %v9110, 7
    %v9112 = vsub.s32 0, %v9111
    %v9113 = vrot.slane %v9085, %v9112
    %v9115 = vmul.f32 %v9107, %v9113
    %v9116 = vmul.f32 %v9108, %v9113
    %v9118 = vlaneseq
    %v9119 = vshrl.u32 %v9118, 7
    %v9120 = vsub.s32 0, %v9119
    %v9121 = vrot.slane %v9086, %v9120
    %v9123 = vadd.f32 %v9115, %v9121
    %v9124 = vadd.f32 %v9116, %v9121
    %v9125 = vpack.c.bf16 %v9124, %v9123
    %v9126 = vld [vmem:[%s20] sm:$0xf]
    %v9127 = vld [vmem:[%s20 + $0x4] sm:$0xf]
    %v9128 = vld [vmem:[%s20 + $0x8] sm:$0xf]
    %v9129 = vld [vmem:[%s20 + $0xc] sm:$0xf]
    %v9130 = vld [vmem:[%s20 + $0x10] sm:$0xf]
    %v9131 = vld [vmem:[%s20 + $0x14] sm:$0xf]
    %v9132 = vld [vmem:[%s20 + $0x18] sm:$0xf]
    %v9133 = vld [vmem:[%s20 + $0x1c] sm:$0xf]
    %v9134 = vld [vmem:[%s20 + $0x20] sm:$0xf]
    %v9135 = vld [vmem:[%s20 + $0x24] sm:$0xf]
    %v9136 = vld [vmem:[%s20 + $0x28] sm:$0xf]
    %v9137 = vld [vmem:[%s20 + $0x2c] sm:$0xf]
    %v9138 = vld [vmem:[%s20 + $0x30] sm:$0xf]
    %v9139 = vld [vmem:[%s20 + $0x34] sm:$0xf]
    %v9140 = vld [vmem:[%s20 + $0x38] sm:$0xf]
    %v9141 = vld [vmem:[%s20 + $0x3c] sm:$0xf]
    %v9142 = vld [vmem:[%s21] sm:$0x1]
    %v9144 = vlaneseq
    %v9145 = vshrl.u32 %v9144, 7
    %v9146 = vsub.s32 0, %v9145
    %v9147 = vrot.slane %v9142, %v9146
    %v9165 = vunpack.c.l.b16 %v9126
    %v9166 = vunpack.c.l.b16 %v9127
    %v9167 = vunpack.c.l.b16 %v9128
    %v9168 = vunpack.c.l.b16 %v9129
    %v9169 = vunpack.c.l.b16 %v9130
    %v9170 = vunpack.c.l.b16 %v9131
    %v9171 = vunpack.c.l.b16 %v9132
    %v9172 = vunpack.c.l.b16 %v9133
    %v9173 = vunpack.c.l.b16 %v9134
    %v9174 = vunpack.c.l.b16 %v9135
    %v9175 = vunpack.c.l.b16 %v9136
    %v9176 = vunpack.c.l.b16 %v9137
    %v9177 = vunpack.c.l.b16 %v9138
    %v9178 = vunpack.c.l.b16 %v9139
    %v9179 = vunpack.c.l.b16 %v9140
    %v9180 = vunpack.c.l.b16 %v9141
    %v9181 = vpack.c.b16 %v9166, %v9165
    %v9182 = vpack.c.b16 %v9168, %v9167
    %v9183 = vpack.c.b16 %v9170, %v9169
    %v9184 = vpack.c.b16 %v9172, %v9171
    %v9185 = vpack.c.b16 %v9174, %v9173
    %v9186 = vpack.c.b16 %v9176, %v9175
    %v9187 = vpack.c.b16 %v9178, %v9177
    %v9188 = vpack.c.b16 %v9180, %v9179
    %9197 = vmatprep.subr.bf16.mxu0 0
    %9198 = vmatpush1.bf16.msra.mxu0 %v9181
    %9199 = vmatprep.subr.bf16.mxu0 0
    %9200 = vmatpush1.bf16.msra.mxu0 %v9182
    %9201 = vmatprep.subr.bf16.mxu0 0
    %9202 = vmatpush1.bf16.msra.mxu0 %v9183
    %9203 = vmatprep.subr.bf16.mxu0 0
    %9204 = vmatpush1.bf16.msra.mxu0 %v9184
    %9205 = vmatprep.subr.bf16.mxu0 0
    %9206 = vmatpush1.bf16.msra.mxu0 %v9185
    %9207 = vmatprep.subr.bf16.mxu0 0
    %9208 = vmatpush1.bf16.msra.mxu0 %v9186
    %9209 = vmatprep.subr.bf16.mxu0 0
    %9210 = vmatpush1.bf16.msra.mxu0 %v9187
    %9211 = vmatprep.subr.bf16.mxu0 0
    %9212 = vmatpush1.bf16.msra.mxu0 %v9188
    %9213 = vmatprep.subr.bf16.mxu0 0
    %9214 = vmatpush1.bf16.msra.mxu0 0
    %9215 = vmatprep.subr.bf16.mxu0 0
    %9216 = vmatpush1.bf16.msra.mxu0 0
    %9217 = vmatprep.subr.bf16.mxu0 0
    %9218 = vmatpush1.bf16.msra.mxu0 0
    %9219 = vmatprep.subr.bf16.mxu0 0
    %9220 = vmatpush1.bf16.msra.mxu0 0
    %9221 = vmatprep.subr.bf16.mxu0 0
    %9222 = vmatpush1.bf16.msra.mxu0 0
    %9223 = vmatprep.subr.bf16.mxu0 0
    %9224 = vmatpush1.bf16.msra.mxu0 0
    %9225 = vmatprep.subr.bf16.mxu0 0
    %9226 = vmatpush1.bf16.msra.mxu0 0
    %9227 = vmatprep.subr.bf16.mxu0 0
    %9228 = vmatpush1.bf16.msra.mxu0 0
    %9229 = vmatprep.mubr.bf16.mxu0 0
    %9230 = vmatmul.mubr.bf16.gmra.mrb[0].mxu0 %v9125
    %v9231 = vpop.f32.mrb[0].mxu0
    %v9232 = vadd.f32 %v9147, %v9231
    %v9233 = vpop.f32.mrb[0].mxu0
    %v9234 = vpop.f32.mrb[0].mxu0
    %v9235 = vadd.f32 %v9147, %v9234
    %v9236 = vpop.f32.mrb[0].mxu0
    %9237 = vdwg.mxu0
    %9238 = vst [vmem:[%s22] sm:$0xff] %v9232
    %9239 = vst [vmem:[%s22 + $0x8] sm:$0xff] %v9235
    // Predicated region
    $region134: #{char_gpt_forward.1} parent=1 // pred_check
      _
    $region135: #{char_gpt_forward.1} parent=1 // pred_check_branch
      %9241 = sbr.rel (0) target = $region137
    $region136: #{char_gpt_forward.1} parent=1 // pred_region
      _
    $region137: #{char_gpt_forward.1} parent=1 // pred_fallthru
      _
    // Predicated region
    $region138: #{char_gpt_forward.1} parent=1 // pred_check
      _
    $region139: #{char_gpt_forward.1} parent=1 // pred_check_branch
      %9243 = sbr.rel (0) target = $region141
    $region140: #{char_gpt_forward.1} parent=1 // pred_region
      _
    $region141: #{char_gpt_forward.1} parent=1 // pred_fallthru
      _
    %9244 = vsyncpa [#allocation3], 1
    %9245 = vsyncpa [#allocation5], 1
    %9246 = vsyncpa [#allocation8], 1
    %9247 = vsyncpa [#allocation11], 1
    %9248 = vsyncpa [#allocation14], 1
    %9249 = vsyncpa [#allocation17], 1

</llo_original>
